<compile_context>
chip_gen: v7x
topology: tpu7x:2x2x1
jax: 0.10.0
libtpu: 0.0.40
codegen_flags: <defaults>
</compile_context>

<pallas_src>
import jax
import jax.numpy as jnp
from jax.experimental import pallas as pl
from jax.experimental.pallas import tpu as pltpu

LEAKY_SLOPE = 0.1  # the module uses nn.LeakyReLU(0.1)


def _leaky_relu(x, slope=LEAKY_SLOPE):
    return jnp.where(x >= 0, x, slope * x)


# ----------------------------------------------------------------------------
# Fused Pallas kernel: multi-layer bidirectional GRU + classifier head
# ----------------------------------------------------------------------------
def make_seq_classifier_kernel(num_layers, T, B, H, C):
    """Builds the fused kernel.

    Inputs (all full-array VMEM blocks, no grid):
      x            [T*B, D0]   bf16   time-major embeddings, row = t*B + b
      per layer, per direction (fwd then bwd):
        wih  [3, Din, H] bf16   per-gate input weights (pre-transposed)
        whh  [3, H,   H] f32    per-gate recurrent weights (pre-transposed)
        bih  [3, 1,   H] f32
        bhh  [3, 1,   H] f32
      fc1_w [2H, H] f32, fc1_b [1, H] f32, fc2_w [H, C] f32, fc2_b [1, C] f32
    Output: logits [B, C] f32
    Scratch (VMEM): seq_f, seq_b [T,B,H]; gi_{f,b}{r,z,n} [T,B,H]  (all f32)
    """
    num_dirs = 2  # the module's forward assumes bidirectional (h0 has num_layers*2 rows)

    def kernel(*refs):
        idx = 0
        x_ref = refs[idx]; idx += 1
        gru = []
        for _ in range(num_layers):
            dirs = []
            for _ in range(num_dirs):
                dirs.append(refs[idx:idx + 4])          # (wih, whh, bih, bhh)
                idx += 4
            gru.append(dirs)
        fc1_w, fc1_b, fc2_w, fc2_b = refs[idx:idx + 4]; idx += 4
        out_ref = refs[idx]; idx += 1
        seq_f, seq_b = refs[idx:idx + 2]; idx += 2
        gi_f = refs[idx:idx + 3]; idx += 3              # (r, z, n) scratch, fwd dir
        gi_b = refs[idx:idx + 3]; idx += 3              # (r, z, n) scratch, bwd dir

        h0 = jnp.zeros((B, H), jnp.float32)

        # ------------------------------------------------------------------
        # helpers
        # ------------------------------------------------------------------
        def load_recurrent(dir_params):
            """Load recurrent weights/biases ONCE (stay in vregs across the loop)."""
            _, whh, _, bhh = dir_params
            W = (whh[0], whh[1], whh[2])                # each [H, H] f32
            b = (bhh[0], bhh[1], bhh[2])                # each [1, H] f32
            return W, b

        def gru_cell(h, i_r, i_z, i_n, W, b):
            """PyTorch GRU cell, gate order (r, z, n); h and i_* are [B, H] f32."""
            h_r = jnp.dot(h, W[0], preferred_element_type=jnp.float32) + b[0]
            h_z = jnp.dot(h, W[1], preferred_element_type=jnp.float32) + b[1]
            h_n = jnp.dot(h, W[2], preferred_element_type=jnp.float32) + b[2]
            r = jax.nn.sigmoid(i_r + h_r)
            z = jax.nn.sigmoid(i_z + h_z)
            n = jnp.tanh(i_n + r * h_n)
            return (1.0 - z) * n + z * h

        def project_full(gi_scr, dir_params, xs):
            """Hoisted input projection x @ W_ih + b_ih over ALL timesteps.

            xs: list of (x2d bf16 [T*B, k], (row0, row1)); the layer input is the
            virtual concat of the parts, so each part is matmul'ed against the
            matching row-slice of wih instead of concatenating activations."""
            wih, _, bih, _ = dir_params
            for g in range(3):
                w = wih[g]                               # [Din, H] bf16
                acc = bih[g]                             # [1, H] f32, broadcasts
                for x2d, (r0, r1) in xs:
                    acc = acc + jnp.dot(x2d, w[r0:r1, :],
                                        preferred_element_type=jnp.float32)
                gi_scr[g][...] = acc.reshape(T, B, H)

        def project_last(dir_params, xs_last):
            """Input projection at ONLY t = T-1 (all the final layer's backward
            direction ever needs)."""
            wih, _, bih, _ = dir_params
            out = []
            for g in range(3):
                w = wih[g]
                acc = bih[g]                             # [1, H]
                for x2d, (r0, r1) in xs_last:            # x2d is [B, k] bf16
                    acc = acc + jnp.dot(x2d, w[r0:r1, :],
                                        preferred_element_type=jnp.float32)
                out.append(acc)                          # [B, H]
            return out

        def run_middle_layer(layer):
            """Both directions interleaved in one unrolled loop; writes seq_f/seq_b."""
            Wf, bf = load_recurrent(gru[layer][0])
            Wb, bb = load_recurrent(gru[layer][1])

            def step(t, carry):
                h_f, h_b = carry
                tr = T - 1 - t
                h_f = gru_cell(h_f, gi_f[0][t], gi_f[1][t], gi_f[2][t], Wf, bf)
                h_b = gru_cell(h_b, gi_b[0][tr], gi_b[1][tr], gi_b[2][tr], Wb, bb)
                seq_f[t] = h_f
                seq_b[tr] = h_b
                return (h_f, h_b)

            jax.lax.fori_loop(0, T, step, (h0, h0), unroll=True)

        def run_final_forward(layer):
            """Only h(T-1) of the fwd dir is consumed: no sequence writeback."""
            Wf, bf = load_recurrent(gru[layer][0])

            def step(t, h_f):
                return gru_cell(h_f, gi_f[0][t], gi_f[1][t], gi_f[2][t], Wf, bf)

            return jax.lax.fori_loop(0, T, step, h0, unroll=True)

        def final_backward_cell(dir_params, i_last):
            """The bwd dir's output at t=T-1 is its FIRST step with h0 = 0."""
            _, _, _, bhh = dir_params
            i_r, i_z, i_n = i_last
            r = jax.nn.sigmoid(i_r + bhh[0])
            z = jax.nn.sigmoid(i_z + bhh[1])
            n = jnp.tanh(i_n + r * bhh[2])
            return (1.0 - z) * n                         # + z * h0 with h0 = 0

        # ------------------------------------------------------------------
        # network
        # ------------------------------------------------------------------
        d0 = x_ref.shape[1]
        x_full = [(x_ref[...], (0, d0))]                 # layer-0 input (bf16 embeddings)
        x_last = None

        h_f_last = h_b_last = None
        for layer in range(num_layers):
            is_last = layer == num_layers - 1
            project_full(gi_f, gru[layer][0], x_full)
            if not is_last:
                project_full(gi_b, gru[layer][1], x_full)
                run_middle_layer(layer)
                xf = seq_f[...].reshape(T * B, H).astype(jnp.bfloat16)
                xb = seq_b[...].reshape(T * B, H).astype(jnp.bfloat16)
                x_full = [(xf, (0, H)), (xb, (H, 2 * H))]
                x_last = [(seq_f[T - 1].astype(jnp.bfloat16), (0, H)),
                          (seq_b[T - 1].astype(jnp.bfloat16), (H, 2 * H))]
            else:
                h_f_last = run_final_forward(layer)
                if x_last is None:
                    # single-layer model: fall back to the full bwd projection
                    project_full(gi_b, gru[layer][1], x_full)
                    i_last = (gi_b[0][T - 1], gi_b[1][T - 1], gi_b[2][T - 1])
                else:
                    i_last = project_last(gru[layer][1], x_last)
                h_b_last = final_backward_cell(gru[layer][1], i_last)

        # Head: LeakyReLU -> fc1 -> Dropout(identity at eval) -> LeakyReLU -> fc2
        # TODO(synk): nn.Dropout is identity at inference; no stochastic dropout applied.
        a_f = _leaky_relu(h_f_last)
        a_b = _leaky_relu(h_b_last)
        w1 = fc1_w[...]                                   # [2H, H]
        h1 = (jnp.dot(a_f, w1[:H, :], preferred_element_type=jnp.float32)
              + jnp.dot(a_b, w1[H:, :], preferred_element_type=jnp.float32)
              + fc1_b[...])
        h1 = _leaky_relu(h1)
        out_ref[...] = (jnp.dot(h1, fc2_w[...], preferred_element_type=jnp.float32)
                        + fc2_b[...])

    return kernel


# ----------------------------------------------------------------------------
# Wrappers
# ----------------------------------------------------------------------------
def prepare_params(raw):
    """One-time layout transforms (pre-transpose, per-gate split, bf16 cast)."""
    H = raw["gru"][0][0]["whh"].shape[1]
    prepared = {"embeddings": raw["embeddings"].astype(jnp.float32)}
    gru = []
    for layer in raw["gru"]:
        dirs = []
        for d in layer:
            din = d["wih"].shape[1]
            dirs.append({
                "wih": jnp.transpose(d["wih"].reshape(3, H, din), (0, 2, 1)).astype(jnp.bfloat16),
                "whh": jnp.transpose(d["whh"].reshape(3, H, H), (0, 2, 1)).astype(jnp.float32),
                "bih": d["bih"].reshape(3, 1, H).astype(jnp.float32),
                "bhh": d["bhh"].reshape(3, 1, H).astype(jnp.float32),
            })
        gru.append(dirs)
    prepared["gru"] = gru
    prepared["fc1_w"] = jnp.transpose(raw["fc1_w"]).astype(jnp.float32)   # [2H, H]
    prepared["fc1_b"] = raw["fc1_b"].reshape(1, -1).astype(jnp.float32)   # [1, H]
    prepared["fc2_w"] = jnp.transpose(raw["fc2_w"]).astype(jnp.float32)   # [H, C]
    prepared["fc2_b"] = raw["fc2_b"].reshape(1, -1).astype(jnp.float32)   # [1, C]
    return prepared


def seq_classifier_forward(prepared, tokens):
    """tokens: int32 [B, T] -> logits [B, num_class] (matches SeqClassifier.forward)."""
    B, T = tokens.shape
    H = prepared["gru"][0][0]["whh"].shape[-1]
    C = prepared["fc2_b"].shape[-1]
    num_layers = len(prepared["gru"])

    # Embedding gather + time-major flattening is XLA glue outside the kernel.
    emb = jnp.take(prepared["embeddings"], tokens, axis=0)          # [B, T, D]
    x2d = jnp.transpose(emb, (1, 0, 2)).reshape(T * B, -1).astype(jnp.bfloat16)

    flat = [x2d]
    for layer in prepared["gru"]:
        for d in layer:
            flat += [d["wih"], d["whh"], d["bih"], d["bhh"]]
    flat += [prepared["fc1_w"], prepared["fc1_b"], prepared["fc2_w"], prepared["fc2_b"]]

    kernel = make_seq_classifier_kernel(num_layers, T, B, H, C)
    return pl.pallas_call(
        kernel,
        out_shape=jax.ShapeDtypeStruct((B, C), jnp.float32),
        scratch_shapes=[pltpu.VMEM((T, B, H), jnp.float32) for _ in range(8)],
    )(*flat)


# ----------------------------------------------------------------------------
# Deterministic parameter init (synthetic; shapes follow the module's __init__)
# ----------------------------------------------------------------------------
def init_params(key, vocab, emb_dim, hidden, num_layers, num_class, bidirectional=True):
    num_dirs = 2 if bidirectional else 1
    n_keys = 1 + num_layers * num_dirs * 4 + 4
    keys = iter(jax.random.split(key, n_keys))

    def u(k, shape, scale):
        return jax.random.uniform(k, shape, jnp.float32, -scale, scale)

    params = {"embeddings": jax.random.normal(next(keys), (vocab, emb_dim), jnp.float32)}
    gru = []
    s = 1.0 / float(hidden) ** 0.5
    for layer in range(num_layers):
        d_in = emb_dim if layer == 0 else hidden * num_dirs
        dirs = []
        for _ in range(num_dirs):
            dirs.append({
                "wih": u(next(keys), (3 * hidden, d_in), s),
                "whh": u(next(keys), (3 * hidden, hidden), s),
                "bih": u(next(keys), (3 * hidden,), s),
                "bhh": u(next(keys), (3 * hidden,), s),
            })
        gru.append(dirs)
    params["gru"] = gru
    enc_out = hidden * num_dirs
    params["fc1_w"] = u(next(keys), (hidden, enc_out), 1.0 / float(enc_out) ** 0.5)
    params["fc1_b"] = u(next(keys), (hidden,), 1.0 / float(enc_out) ** 0.5)
    params["fc2_w"] = u(next(keys), (num_class, hidden), 1.0 / float(hidden) ** 0.5)
    params["fc2_b"] = u(next(keys), (num_class,), 1.0 / float(hidden) ** 0.5)
    return params


if __name__ == "__main__":
    B, T = 2, 8
    VOCAB, EMB_DIM = 50, 300            # GRU input_size is hard-coded to 300 in the module
    HIDDEN, NUM_LAYERS, NUM_CLASS = 32, 2, 10

    root = jax.random.PRNGKey(0)
    k_params, k_tok = jax.random.split(root)
    raw = init_params(k_params, VOCAB, EMB_DIM, HIDDEN, NUM_LAYERS, NUM_CLASS, bidirectional=True)
    prepared = prepare_params(raw)
    tokens = jax.random.randint(k_tok, (B, T), 0, VOCAB, dtype=jnp.int32)

    logits = seq_classifier_forward(prepared, tokens)
    logits = jax.block_until_ready(logits)
    assert logits.shape == (B, NUM_CLASS), logits.shape
    assert bool(jnp.all(jnp.isfinite(logits)))
    print("KERNEL_OK")
</pallas_src>

<mosaic_0001>
module attributes {stable_mosaic.version = 11 : i64} {
  func.func @kernel(%arg0: memref<16x300xbf16, #tpu.memory_space<vmem>>, %arg1: memref<3x300x32xbf16, #tpu.memory_space<vmem>>, %arg2: memref<3x32x32xf32, #tpu.memory_space<vmem>>, %arg3: memref<3x1x32xf32, #tpu.memory_space<vmem>>, %arg4: memref<3x1x32xf32, #tpu.memory_space<vmem>>, %arg5: memref<3x300x32xbf16, #tpu.memory_space<vmem>>, %arg6: memref<3x32x32xf32, #tpu.memory_space<vmem>>, %arg7: memref<3x1x32xf32, #tpu.memory_space<vmem>>, %arg8: memref<3x1x32xf32, #tpu.memory_space<vmem>>, %arg9: memref<3x64x32xbf16, #tpu.memory_space<vmem>>, %arg10: memref<3x32x32xf32, #tpu.memory_space<vmem>>, %arg11: memref<3x1x32xf32, #tpu.memory_space<vmem>>, %arg12: memref<3x1x32xf32, #tpu.memory_space<vmem>>, %arg13: memref<3x64x32xbf16, #tpu.memory_space<vmem>>, %arg14: memref<3x32x32xf32, #tpu.memory_space<vmem>>, %arg15: memref<3x1x32xf32, #tpu.memory_space<vmem>>, %arg16: memref<3x1x32xf32, #tpu.memory_space<vmem>>, %arg17: memref<64x32xf32, #tpu.memory_space<vmem>>, %arg18: memref<1x32xf32, #tpu.memory_space<vmem>>, %arg19: memref<32x10xf32, #tpu.memory_space<vmem>>, %arg20: memref<1x10xf32, #tpu.memory_space<vmem>>, %arg21: memref<2x10xf32, #tpu.memory_space<vmem>>, %arg22: memref<8x2x32xf32, #tpu.memory_space<vmem>>, %arg23: memref<8x2x32xf32, #tpu.memory_space<vmem>>, %arg24: memref<8x2x32xf32, #tpu.memory_space<vmem>>, %arg25: memref<8x2x32xf32, #tpu.memory_space<vmem>>, %arg26: memref<8x2x32xf32, #tpu.memory_space<vmem>>, %arg27: memref<8x2x32xf32, #tpu.memory_space<vmem>>, %arg28: memref<8x2x32xf32, #tpu.memory_space<vmem>>, %arg29: memref<8x2x32xf32, #tpu.memory_space<vmem>>) attributes {dimension_semantics = [], scalar_prefetch = 0 : i64, scratch_operands = 8 : i64, tpu.core_type = #tpu.core_type<tc>} {
    %cst = arith.constant 0.000000e+00 : f32
    %0 = vector.broadcast %cst : f32 to vector<2x32xf32>
    %c0 = arith.constant 0 : index
    %c0_0 = arith.constant 0 : index
    %1 = vector.load %arg0[%c0, %c0_0] : memref<16x300xbf16, #tpu.memory_space<vmem>>, vector<16x300xbf16>
    %c0_1 = arith.constant 0 : index
    %c0_2 = arith.constant 0 : index
    %c0_3 = arith.constant 0 : index
    %2 = vector.load %arg1[%c0_1, %c0_2, %c0_3] : memref<3x300x32xbf16, #tpu.memory_space<vmem>>, vector<1x300x32xbf16>
    %3 = vector.shape_cast %2 : vector<1x300x32xbf16> to vector<300x32xbf16>
    %c0_4 = arith.constant 0 : index
    %c0_5 = arith.constant 0 : index
    %c0_6 = arith.constant 0 : index
    %4 = vector.load %arg3[%c0_4, %c0_5, %c0_6] : memref<3x1x32xf32, #tpu.memory_space<vmem>>, vector<1x1x32xf32>
    %5 = vector.shape_cast %4 : vector<1x1x32xf32> to vector<1x32xf32>
    %cst_7 = arith.constant dense<0.000000e+00> : vector<16x32xf32>
    %6 = tpu.matmul %1, %3, %cst_7 {dimension_numbers = #tpu.dot_dimension_numbers<[1], [0], [0], [1], [0, 0, 1, 1], [], []>} : vector<16x300xbf16>, vector<300x32xbf16>, vector<16x32xf32> -> vector<16x32xf32>
    %7 = vector.broadcast %5 : vector<1x32xf32> to vector<16x32xf32>
    %8 = arith.addf %7, %6 : vector<16x32xf32>
    %9 = vector.shape_cast %8 : vector<16x32xf32> to vector<8x2x32xf32>
    %c0_8 = arith.constant 0 : index
    %c0_9 = arith.constant 0 : index
    %c0_10 = arith.constant 0 : index
    %10 = vector.load %arg24[%c0_8, %c0_9, %c0_10] : memref<8x2x32xf32, #tpu.memory_space<vmem>>, vector<8x2x32xf32>
    tpu.vector_store %arg24[%c0_8, %c0_9, %c0_10], %9 {strides = array<i32>} : memref<8x2x32xf32, #tpu.memory_space<vmem>>, vector<8x2x32xf32>,
    %c1 = arith.constant 1 : index
    %c0_11 = arith.constant 0 : index
    %c0_12 = arith.constant 0 : index
    %11 = vector.load %arg1[%c1, %c0_11, %c0_12] : memref<3x300x32xbf16, #tpu.memory_space<vmem>>, vector<1x300x32xbf16>
    %12 = vector.shape_cast %11 : vector<1x300x32xbf16> to vector<300x32xbf16>
    %c1_13 = arith.constant 1 : index
    %c0_14 = arith.constant 0 : index
    %c0_15 = arith.constant 0 : index
    %13 = vector.load %arg3[%c1_13, %c0_14, %c0_15] : memref<3x1x32xf32, #tpu.memory_space<vmem>>, vector<1x1x32xf32>
    %14 = vector.shape_cast %13 : vector<1x1x32xf32> to vector<1x32xf32>
    %cst_16 = arith.constant dense<0.000000e+00> : vector<16x32xf32>
    %15 = tpu.matmul %1, %12, %cst_16 {dimension_numbers = #tpu.dot_dimension_numbers<[1], [0], [0], [1], [0, 0, 1, 1], [], []>} : vector<16x300xbf16>, vector<300x32xbf16>, vector<16x32xf32> -> vector<16x32xf32>
    %16 = vector.broadcast %14 : vector<1x32xf32> to vector<16x32xf32>
    %17 = arith.addf %16, %15 : vector<16x32xf32>
    %18 = vector.shape_cast %17 : vector<16x32xf32> to vector<8x2x32xf32>
    %c0_17 = arith.constant 0 : index
    %c0_18 = arith.constant 0 : index
    %c0_19 = arith.constant 0 : index
    %19 = vector.load %arg25[%c0_17, %c0_18, %c0_19] : memref<8x2x32xf32, #tpu.memory_space<vmem>>, vector<8x2x32xf32>
    tpu.vector_store %arg25[%c0_17, %c0_18, %c0_19], %18 {strides = array<i32>} : memref<8x2x32xf32, #tpu.memory_space<vmem>>, vector<8x2x32xf32>,
    %c2 = arith.constant 2 : index
    %c0_20 = arith.constant 0 : index
    %c0_21 = arith.constant 0 : index
    %20 = vector.load %arg1[%c2, %c0_20, %c0_21] : memref<3x300x32xbf16, #tpu.memory_space<vmem>>, vector<1x300x32xbf16>
    %21 = vector.shape_cast %20 : vector<1x300x32xbf16> to vector<300x32xbf16>
    %c2_22 = arith.constant 2 : index
    %c0_23 = arith.constant 0 : index
    %c0_24 = arith.constant 0 : index
    %22 = vector.load %arg3[%c2_22, %c0_23, %c0_24] : memref<3x1x32xf32, #tpu.memory_space<vmem>>, vector<1x1x32xf32>
    %23 = vector.shape_cast %22 : vector<1x1x32xf32> to vector<1x32xf32>
    %cst_25 = arith.constant dense<0.000000e+00> : vector<16x32xf32>
    %24 = tpu.matmul %1, %21, %cst_25 {dimension_numbers = #tpu.dot_dimension_numbers<[1], [0], [0], [1], [0, 0, 1, 1], [], []>} : vector<16x300xbf16>, vector<300x32xbf16>, vector<16x32xf32> -> vector<16x32xf32>
    %25 = vector.broadcast %23 : vector<1x32xf32> to vector<16x32xf32>
    %26 = arith.addf %25, %24 : vector<16x32xf32>
    %27 = vector.shape_cast %26 : vector<16x32xf32> to vector<8x2x32xf32>
    %c0_26 = arith.constant 0 : index
    %c0_27 = arith.constant 0 : index
    %c0_28 = arith.constant 0 : index
    %28 = vector.load %arg26[%c0_26, %c0_27, %c0_28] : memref<8x2x32xf32, #tpu.memory_space<vmem>>, vector<8x2x32xf32>
    tpu.vector_store %arg26[%c0_26, %c0_27, %c0_28], %27 {strides = array<i32>} : memref<8x2x32xf32, #tpu.memory_space<vmem>>, vector<8x2x32xf32>,
    %c0_29 = arith.constant 0 : index
    %c0_30 = arith.constant 0 : index
    %c0_31 = arith.constant 0 : index
    %29 = vector.load %arg5[%c0_29, %c0_30, %c0_31] : memref<3x300x32xbf16, #tpu.memory_space<vmem>>, vector<1x300x32xbf16>
    %30 = vector.shape_cast %29 : vector<1x300x32xbf16> to vector<300x32xbf16>
    %c0_32 = arith.constant 0 : index
    %c0_33 = arith.constant 0 : index
    %c0_34 = arith.constant 0 : index
    %31 = vector.load %arg7[%c0_32, %c0_33, %c0_34] : memref<3x1x32xf32, #tpu.memory_space<vmem>>, vector<1x1x32xf32>
    %32 = vector.shape_cast %31 : vector<1x1x32xf32> to vector<1x32xf32>
    %cst_35 = arith.constant dense<0.000000e+00> : vector<16x32xf32>
    %33 = tpu.matmul %1, %30, %cst_35 {dimension_numbers = #tpu.dot_dimension_numbers<[1], [0], [0], [1], [0, 0, 1, 1], [], []>} : vector<16x300xbf16>, vector<300x32xbf16>, vector<16x32xf32> -> vector<16x32xf32>
    %34 = vector.broadcast %32 : vector<1x32xf32> to vector<16x32xf32>
    %35 = arith.addf %34, %33 : vector<16x32xf32>
    %36 = vector.shape_cast %35 : vector<16x32xf32> to vector<8x2x32xf32>
    %c0_36 = arith.constant 0 : index
    %c0_37 = arith.constant 0 : index
    %c0_38 = arith.constant 0 : index
    %37 = vector.load %arg27[%c0_36, %c0_37, %c0_38] : memref<8x2x32xf32, #tpu.memory_space<vmem>>, vector<8x2x32xf32>
    tpu.vector_store %arg27[%c0_36, %c0_37, %c0_38], %36 {strides = array<i32>} : memref<8x2x32xf32, #tpu.memory_space<vmem>>, vector<8x2x32xf32>,
    %c1_39 = arith.constant 1 : index
    %c0_40 = arith.constant 0 : index
    %c0_41 = arith.constant 0 : index
    %38 = vector.load %arg5[%c1_39, %c0_40, %c0_41] : memref<3x300x32xbf16, #tpu.memory_space<vmem>>, vector<1x300x32xbf16>
    %39 = vector.shape_cast %38 : vector<1x300x32xbf16> to vector<300x32xbf16>
    %c1_42 = arith.constant 1 : index
    %c0_43 = arith.constant 0 : index
    %c0_44 = arith.constant 0 : index
    %40 = vector.load %arg7[%c1_42, %c0_43, %c0_44] : memref<3x1x32xf32, #tpu.memory_space<vmem>>, vector<1x1x32xf32>
    %41 = vector.shape_cast %40 : vector<1x1x32xf32> to vector<1x32xf32>
    %cst_45 = arith.constant dense<0.000000e+00> : vector<16x32xf32>
    %42 = tpu.matmul %1, %39, %cst_45 {dimension_numbers = #tpu.dot_dimension_numbers<[1], [0], [0], [1], [0, 0, 1, 1], [], []>} : vector<16x300xbf16>, vector<300x32xbf16>, vector<16x32xf32> -> vector<16x32xf32>
    %43 = vector.broadcast %41 : vector<1x32xf32> to vector<16x32xf32>
    %44 = arith.addf %43, %42 : vector<16x32xf32>
    %45 = vector.shape_cast %44 : vector<16x32xf32> to vector<8x2x32xf32>
    %c0_46 = arith.constant 0 : index
    %c0_47 = arith.constant 0 : index
    %c0_48 = arith.constant 0 : index
    %46 = vector.load %arg28[%c0_46, %c0_47, %c0_48] : memref<8x2x32xf32, #tpu.memory_space<vmem>>, vector<8x2x32xf32>
    tpu.vector_store %arg28[%c0_46, %c0_47, %c0_48], %45 {strides = array<i32>} : memref<8x2x32xf32, #tpu.memory_space<vmem>>, vector<8x2x32xf32>,
    %c2_49 = arith.constant 2 : index
    %c0_50 = arith.constant 0 : index
    %c0_51 = arith.constant 0 : index
    %47 = vector.load %arg5[%c2_49, %c0_50, %c0_51] : memref<3x300x32xbf16, #tpu.memory_space<vmem>>, vector<1x300x32xbf16>
    %48 = vector.shape_cast %47 : vector<1x300x32xbf16> to vector<300x32xbf16>
    %c2_52 = arith.constant 2 : index
    %c0_53 = arith.constant 0 : index
    %c0_54 = arith.constant 0 : index
    %49 = vector.load %arg7[%c2_52, %c0_53, %c0_54] : memref<3x1x32xf32, #tpu.memory_space<vmem>>, vector<1x1x32xf32>
    %50 = vector.shape_cast %49 : vector<1x1x32xf32> to vector<1x32xf32>
    %cst_55 = arith.constant dense<0.000000e+00> : vector<16x32xf32>
    %51 = tpu.matmul %1, %48, %cst_55 {dimension_numbers = #tpu.dot_dimension_numbers<[1], [0], [0], [1], [0, 0, 1, 1], [], []>} : vector<16x300xbf16>, vector<300x32xbf16>, vector<16x32xf32> -> vector<16x32xf32>
    %52 = vector.broadcast %50 : vector<1x32xf32> to vector<16x32xf32>
    %53 = arith.addf %52, %51 : vector<16x32xf32>
    %54 = vector.shape_cast %53 : vector<16x32xf32> to vector<8x2x32xf32>
    %c0_56 = arith.constant 0 : index
    %c0_57 = arith.constant 0 : index
    %c0_58 = arith.constant 0 : index
    %55 = vector.load %arg29[%c0_56, %c0_57, %c0_58] : memref<8x2x32xf32, #tpu.memory_space<vmem>>, vector<8x2x32xf32>
    tpu.vector_store %arg29[%c0_56, %c0_57, %c0_58], %54 {strides = array<i32>} : memref<8x2x32xf32, #tpu.memory_space<vmem>>, vector<8x2x32xf32>,
    %c0_59 = arith.constant 0 : index
    %c0_60 = arith.constant 0 : index
    %c0_61 = arith.constant 0 : index
    %56 = vector.load %arg2[%c0_59, %c0_60, %c0_61] : memref<3x32x32xf32, #tpu.memory_space<vmem>>, vector<1x32x32xf32>
    %57 = vector.shape_cast %56 : vector<1x32x32xf32> to vector<32x32xf32>
    %c1_62 = arith.constant 1 : index
    %c0_63 = arith.constant 0 : index
    %c0_64 = arith.constant 0 : index
    %58 = vector.load %arg2[%c1_62, %c0_63, %c0_64] : memref<3x32x32xf32, #tpu.memory_space<vmem>>, vector<1x32x32xf32>
    %59 = vector.shape_cast %58 : vector<1x32x32xf32> to vector<32x32xf32>
    %c2_65 = arith.constant 2 : index
    %c0_66 = arith.constant 0 : index
    %c0_67 = arith.constant 0 : index
    %60 = vector.load %arg2[%c2_65, %c0_66, %c0_67] : memref<3x32x32xf32, #tpu.memory_space<vmem>>, vector<1x32x32xf32>
    %61 = vector.shape_cast %60 : vector<1x32x32xf32> to vector<32x32xf32>
    %c0_68 = arith.constant 0 : index
    %c0_69 = arith.constant 0 : index
    %c0_70 = arith.constant 0 : index
    %62 = vector.load %arg4[%c0_68, %c0_69, %c0_70] : memref<3x1x32xf32, #tpu.memory_space<vmem>>, vector<1x1x32xf32>
    %63 = vector.shape_cast %62 : vector<1x1x32xf32> to vector<1x32xf32>
    %c1_71 = arith.constant 1 : index
    %c0_72 = arith.constant 0 : index
    %c0_73 = arith.constant 0 : index
    %64 = vector.load %arg4[%c1_71, %c0_72, %c0_73] : memref<3x1x32xf32, #tpu.memory_space<vmem>>, vector<1x1x32xf32>
    %65 = vector.shape_cast %64 : vector<1x1x32xf32> to vector<1x32xf32>
    %c2_74 = arith.constant 2 : index
    %c0_75 = arith.constant 0 : index
    %c0_76 = arith.constant 0 : index
    %66 = vector.load %arg4[%c2_74, %c0_75, %c0_76] : memref<3x1x32xf32, #tpu.memory_space<vmem>>, vector<1x1x32xf32>
    %67 = vector.shape_cast %66 : vector<1x1x32xf32> to vector<1x32xf32>
    %c0_77 = arith.constant 0 : index
    %c0_78 = arith.constant 0 : index
    %c0_79 = arith.constant 0 : index
    %68 = vector.load %arg6[%c0_77, %c0_78, %c0_79] : memref<3x32x32xf32, #tpu.memory_space<vmem>>, vector<1x32x32xf32>
    %69 = vector.shape_cast %68 : vector<1x32x32xf32> to vector<32x32xf32>
    %c1_80 = arith.constant 1 : index
    %c0_81 = arith.constant 0 : index
    %c0_82 = arith.constant 0 : index
    %70 = vector.load %arg6[%c1_80, %c0_81, %c0_82] : memref<3x32x32xf32, #tpu.memory_space<vmem>>, vector<1x32x32xf32>
    %71 = vector.shape_cast %70 : vector<1x32x32xf32> to vector<32x32xf32>
    %c2_83 = arith.constant 2 : index
    %c0_84 = arith.constant 0 : index
    %c0_85 = arith.constant 0 : index
    %72 = vector.load %arg6[%c2_83, %c0_84, %c0_85] : memref<3x32x32xf32, #tpu.memory_space<vmem>>, vector<1x32x32xf32>
    %73 = vector.shape_cast %72 : vector<1x32x32xf32> to vector<32x32xf32>
    %c0_86 = arith.constant 0 : index
    %c0_87 = arith.constant 0 : index
    %c0_88 = arith.constant 0 : index
    %74 = vector.load %arg8[%c0_86, %c0_87, %c0_88] : memref<3x1x32xf32, #tpu.memory_space<vmem>>, vector<1x1x32xf32>
    %75 = vector.shape_cast %74 : vector<1x1x32xf32> to vector<1x32xf32>
    %c1_89 = arith.constant 1 : index
    %c0_90 = arith.constant 0 : index
    %c0_91 = arith.constant 0 : index
    %76 = vector.load %arg8[%c1_89, %c0_90, %c0_91] : memref<3x1x32xf32, #tpu.memory_space<vmem>>, vector<1x1x32xf32>
    %77 = vector.shape_cast %76 : vector<1x1x32xf32> to vector<1x32xf32>
    %c2_92 = arith.constant 2 : index
    %c0_93 = arith.constant 0 : index
    %c0_94 = arith.constant 0 : index
    %78 = vector.load %arg8[%c2_92, %c0_93, %c0_94] : memref<3x1x32xf32, #tpu.memory_space<vmem>>, vector<1x1x32xf32>
    %79 = vector.shape_cast %78 : vector<1x1x32xf32> to vector<1x32xf32>
    %c0_i32 = arith.constant 0 : i32
    %c7_i32 = arith.constant 7 : i32
    %80 = arith.subi %c7_i32, %c0_i32 : i32
    %81 = arith.index_cast %c0_i32 : i32 to index
    %c0_95 = arith.constant 0 : index
    %c0_96 = arith.constant 0 : index
    %82 = vector.load %arg24[%81, %c0_95, %c0_96] : memref<8x2x32xf32, #tpu.memory_space<vmem>>, vector<1x2x32xf32>
    %83 = vector.shape_cast %82 : vector<1x2x32xf32> to vector<2x32xf32>
    %84 = arith.index_cast %c0_i32 : i32 to index
    %c0_97 = arith.constant 0 : index
    %c0_98 = arith.constant 0 : index
    %85 = vector.load %arg25[%84, %c0_97, %c0_98] : memref<8x2x32xf32, #tpu.memory_space<vmem>>, vector<1x2x32xf32>
    %86 = vector.shape_cast %85 : vector<1x2x32xf32> to vector<2x32xf32>
    %87 = arith.index_cast %c0_i32 : i32 to index
    %c0_99 = arith.constant 0 : index
    %c0_100 = arith.constant 0 : index
    %88 = vector.load %arg26[%87, %c0_99, %c0_100] : memref<8x2x32xf32, #tpu.memory_space<vmem>>, vector<1x2x32xf32>
    %89 = vector.shape_cast %88 : vector<1x2x32xf32> to vector<2x32xf32>
    %cst_101 = arith.constant dense<0.000000e+00> : vector<2x32xf32>
    %90 = tpu.matmul %0, %57, %cst_101 {dimension_numbers = #tpu.dot_dimension_numbers<[1], [0], [0], [1], [0, 0, 1, 1], [], []>} : vector<2x32xf32>, vector<32x32xf32>, vector<2x32xf32> -> vector<2x32xf32>
    %91 = vector.broadcast %63 : vector<1x32xf32> to vector<2x32xf32>
    %92 = arith.addf %90, %91 : vector<2x32xf32>
    %cst_102 = arith.constant dense<0.000000e+00> : vector<2x32xf32>
    %93 = tpu.matmul %0, %59, %cst_102 {dimension_numbers = #tpu.dot_dimension_numbers<[1], [0], [0], [1], [0, 0, 1, 1], [], []>} : vector<2x32xf32>, vector<32x32xf32>, vector<2x32xf32> -> vector<2x32xf32>
    %94 = vector.broadcast %65 : vector<1x32xf32> to vector<2x32xf32>
    %95 = arith.addf %93, %94 : vector<2x32xf32>
    %cst_103 = arith.constant dense<0.000000e+00> : vector<2x32xf32>
    %96 = tpu.matmul %0, %61, %cst_103 {dimension_numbers = #tpu.dot_dimension_numbers<[1], [0], [0], [1], [0, 0, 1, 1], [], []>} : vector<2x32xf32>, vector<32x32xf32>, vector<2x32xf32> -> vector<2x32xf32>
    %97 = vector.broadcast %67 : vector<1x32xf32> to vector<2x32xf32>
    %98 = arith.addf %96, %97 : vector<2x32xf32>
    %99 = arith.addf %83, %92 : vector<2x32xf32>
    %100 = arith.negf %99 : vector<2x32xf32>
    %101 = math.exp %100 : vector<2x32xf32>
    %cst_104 = arith.constant 1.000000e+00 : f32
    %102 = vector.broadcast %cst_104 : f32 to vector<2x32xf32>
    %103 = arith.addf %102, %101 : vector<2x32xf32>
    %104 = arith.divf %102, %103 : vector<2x32xf32>
    %105 = arith.addf %86, %95 : vector<2x32xf32>
    %106 = arith.negf %105 : vector<2x32xf32>
    %107 = math.exp %106 : vector<2x32xf32>
    %cst_105 = arith.constant 1.000000e+00 : f32
    %108 = vector.broadcast %cst_105 : f32 to vector<2x32xf32>
    %109 = arith.addf %108, %107 : vector<2x32xf32>
    %110 = arith.divf %108, %109 : vector<2x32xf32>
    %111 = arith.mulf %104, %98 : vector<2x32xf32>
    %112 = arith.addf %89, %111 : vector<2x32xf32>
    %113 = math.tanh %112 : vector<2x32xf32>
    %cst_106 = arith.constant 1.000000e+00 : f32
    %114 = vector.broadcast %cst_106 : f32 to vector<2x32xf32>
    %115 = arith.subf %114, %110 : vector<2x32xf32>
    %116 = arith.mulf %115, %113 : vector<2x32xf32>
    %117 = arith.mulf %110, %0 : vector<2x32xf32>
    %118 = arith.addf %116, %117 : vector<2x32xf32>
    %119 = arith.index_cast %80 : i32 to index
    %c0_107 = arith.constant 0 : index
    %c0_108 = arith.constant 0 : index
    %120 = vector.load %arg27[%119, %c0_107, %c0_108] : memref<8x2x32xf32, #tpu.memory_space<vmem>>, vector<1x2x32xf32>
    %121 = vector.shape_cast %120 : vector<1x2x32xf32> to vector<2x32xf32>
    %122 = arith.index_cast %80 : i32 to index
    %c0_109 = arith.constant 0 : index
    %c0_110 = arith.constant 0 : index
    %123 = vector.load %arg28[%122, %c0_109, %c0_110] : memref<8x2x32xf32, #tpu.memory_space<vmem>>, vector<1x2x32xf32>
    %124 = vector.shape_cast %123 : vector<1x2x32xf32> to vector<2x32xf32>
    %125 = arith.index_cast %80 : i32 to index
    %c0_111 = arith.constant 0 : index
    %c0_112 = arith.constant 0 : index
    %126 = vector.load %arg29[%125, %c0_111, %c0_112] : memref<8x2x32xf32, #tpu.memory_space<vmem>>, vector<1x2x32xf32>
    %127 = vector.shape_cast %126 : vector<1x2x32xf32> to vector<2x32xf32>
    %cst_113 = arith.constant dense<0.000000e+00> : vector<2x32xf32>
    %128 = tpu.matmul %0, %69, %cst_113 {dimension_numbers = #tpu.dot_dimension_numbers<[1], [0], [0], [1], [0, 0, 1, 1], [], []>} : vector<2x32xf32>, vector<32x32xf32>, vector<2x32xf32> -> vector<2x32xf32>
    %129 = vector.broadcast %75 : vector<1x32xf32> to vector<2x32xf32>
    %130 = arith.addf %128, %129 : vector<2x32xf32>
    %cst_114 = arith.constant dense<0.000000e+00> : vector<2x32xf32>
    %131 = tpu.matmul %0, %71, %cst_114 {dimension_numbers = #tpu.dot_dimension_numbers<[1], [0], [0], [1], [0, 0, 1, 1], [], []>} : vector<2x32xf32>, vector<32x32xf32>, vector<2x32xf32> -> vector<2x32xf32>
    %132 = vector.broadcast %77 : vector<1x32xf32> to vector<2x32xf32>
    %133 = arith.addf %131, %132 : vector<2x32xf32>
    %cst_115 = arith.constant dense<0.000000e+00> : vector<2x32xf32>
    %134 = tpu.matmul %0, %73, %cst_115 {dimension_numbers = #tpu.dot_dimension_numbers<[1], [0], [0], [1], [0, 0, 1, 1], [], []>} : vector<2x32xf32>, vector<32x32xf32>, vector<2x32xf32> -> vector<2x32xf32>
    %135 = vector.broadcast %79 : vector<1x32xf32> to vector<2x32xf32>
    %136 = arith.addf %134, %135 : vector<2x32xf32>
    %137 = arith.addf %121, %130 : vector<2x32xf32>
    %138 = arith.negf %137 : vector<2x32xf32>
    %139 = math.exp %138 : vector<2x32xf32>
    %cst_116 = arith.constant 1.000000e+00 : f32
    %140 = vector.broadcast %cst_116 : f32 to vector<2x32xf32>
    %141 = arith.addf %140, %139 : vector<2x32xf32>
    %142 = arith.divf %140, %141 : vector<2x32xf32>
    %143 = arith.addf %124, %133 : vector<2x32xf32>
    %144 = arith.negf %143 : vector<2x32xf32>
    %145 = math.exp %144 : vector<2x32xf32>
    %cst_117 = arith.constant 1.000000e+00 : f32
    %146 = vector.broadcast %cst_117 : f32 to vector<2x32xf32>
    %147 = arith.addf %146, %145 : vector<2x32xf32>
    %148 = arith.divf %146, %147 : vector<2x32xf32>
    %149 = arith.mulf %142, %136 : vector<2x32xf32>
    %150 = arith.addf %127, %149 : vector<2x32xf32>
    %151 = math.tanh %150 : vector<2x32xf32>
    %cst_118 = arith.constant 1.000000e+00 : f32
    %152 = vector.broadcast %cst_118 : f32 to vector<2x32xf32>
    %153 = arith.subf %152, %148 : vector<2x32xf32>
    %154 = arith.mulf %153, %151 : vector<2x32xf32>
    %155 = arith.mulf %148, %0 : vector<2x32xf32>
    %156 = arith.addf %154, %155 : vector<2x32xf32>
    %157 = arith.index_cast %c0_i32 : i32 to index
    %c0_119 = arith.constant 0 : index
    %c0_120 = arith.constant 0 : index
    %158 = vector.load %arg22[%157, %c0_119, %c0_120] : memref<8x2x32xf32, #tpu.memory_space<vmem>>, vector<1x2x32xf32>
    %159 = vector.shape_cast %158 : vector<1x2x32xf32> to vector<2x32xf32>
    %160 = vector.shape_cast %118 : vector<2x32xf32> to vector<1x2x32xf32>
    tpu.vector_store %arg22[%157, %c0_119, %c0_120], %160 {strides = array<i32>} : memref<8x2x32xf32, #tpu.memory_space<vmem>>, vector<1x2x32xf32>,
    %161 = arith.index_cast %80 : i32 to index
    %c0_121 = arith.constant 0 : index
    %c0_122 = arith.constant 0 : index
    %162 = vector.load %arg23[%161, %c0_121, %c0_122] : memref<8x2x32xf32, #tpu.memory_space<vmem>>, vector<1x2x32xf32>
    %163 = vector.shape_cast %162 : vector<1x2x32xf32> to vector<2x32xf32>
    %164 = vector.shape_cast %156 : vector<2x32xf32> to vector<1x2x32xf32>
    tpu.vector_store %arg23[%161, %c0_121, %c0_122], %164 {strides = array<i32>} : memref<8x2x32xf32, #tpu.memory_space<vmem>>, vector<1x2x32xf32>,
    %c1_i32 = arith.constant 1 : i32
    %c7_i32_123 = arith.constant 7 : i32
    %165 = arith.subi %c7_i32_123, %c1_i32 : i32
    %166 = arith.index_cast %c1_i32 : i32 to index
    %c0_124 = arith.constant 0 : index
    %c0_125 = arith.constant 0 : index
    %167 = vector.load %arg24[%166, %c0_124, %c0_125] : memref<8x2x32xf32, #tpu.memory_space<vmem>>, vector<1x2x32xf32>
    %168 = vector.shape_cast %167 : vector<1x2x32xf32> to vector<2x32xf32>
    %169 = arith.index_cast %c1_i32 : i32 to index
    %c0_126 = arith.constant 0 : index
    %c0_127 = arith.constant 0 : index
    %170 = vector.load %arg25[%169, %c0_126, %c0_127] : memref<8x2x32xf32, #tpu.memory_space<vmem>>, vector<1x2x32xf32>
    %171 = vector.shape_cast %170 : vector<1x2x32xf32> to vector<2x32xf32>
    %172 = arith.index_cast %c1_i32 : i32 to index
    %c0_128 = arith.constant 0 : index
    %c0_129 = arith.constant 0 : index
    %173 = vector.load %arg26[%172, %c0_128, %c0_129] : memref<8x2x32xf32, #tpu.memory_space<vmem>>, vector<1x2x32xf32>
    %174 = vector.shape_cast %173 : vector<1x2x32xf32> to vector<2x32xf32>
    %cst_130 = arith.constant dense<0.000000e+00> : vector<2x32xf32>
    %175 = tpu.matmul %118, %57, %cst_130 {dimension_numbers = #tpu.dot_dimension_numbers<[1], [0], [0], [1], [0, 0, 1, 1], [], []>} : vector<2x32xf32>, vector<32x32xf32>, vector<2x32xf32> -> vector<2x32xf32>
    %176 = vector.broadcast %63 : vector<1x32xf32> to vector<2x32xf32>
    %177 = arith.addf %175, %176 : vector<2x32xf32>
    %cst_131 = arith.constant dense<0.000000e+00> : vector<2x32xf32>
    %178 = tpu.matmul %118, %59, %cst_131 {dimension_numbers = #tpu.dot_dimension_numbers<[1], [0], [0], [1], [0, 0, 1, 1], [], []>} : vector<2x32xf32>, vector<32x32xf32>, vector<2x32xf32> -> vector<2x32xf32>
    %179 = vector.broadcast %65 : vector<1x32xf32> to vector<2x32xf32>
    %180 = arith.addf %178, %179 : vector<2x32xf32>
    %cst_132 = arith.constant dense<0.000000e+00> : vector<2x32xf32>
    %181 = tpu.matmul %118, %61, %cst_132 {dimension_numbers = #tpu.dot_dimension_numbers<[1], [0], [0], [1], [0, 0, 1, 1], [], []>} : vector<2x32xf32>, vector<32x32xf32>, vector<2x32xf32> -> vector<2x32xf32>
    %182 = vector.broadcast %67 : vector<1x32xf32> to vector<2x32xf32>
    %183 = arith.addf %181, %182 : vector<2x32xf32>
    %184 = arith.addf %168, %177 : vector<2x32xf32>
    %185 = arith.negf %184 : vector<2x32xf32>
    %186 = math.exp %185 : vector<2x32xf32>
    %cst_133 = arith.constant 1.000000e+00 : f32
    %187 = vector.broadcast %cst_133 : f32 to vector<2x32xf32>
    %188 = arith.addf %187, %186 : vector<2x32xf32>
    %189 = arith.divf %187, %188 : vector<2x32xf32>
    %190 = arith.addf %171, %180 : vector<2x32xf32>
    %191 = arith.negf %190 : vector<2x32xf32>
    %192 = math.exp %191 : vector<2x32xf32>
    %cst_134 = arith.constant 1.000000e+00 : f32
    %193 = vector.broadcast %cst_134 : f32 to vector<2x32xf32>
    %194 = arith.addf %193, %192 : vector<2x32xf32>
    %195 = arith.divf %193, %194 : vector<2x32xf32>
    %196 = arith.mulf %189, %183 : vector<2x32xf32>
    %197 = arith.addf %174, %196 : vector<2x32xf32>
    %198 = math.tanh %197 : vector<2x32xf32>
    %cst_135 = arith.constant 1.000000e+00 : f32
    %199 = vector.broadcast %cst_135 : f32 to vector<2x32xf32>
    %200 = arith.subf %199, %195 : vector<2x32xf32>
    %201 = arith.mulf %200, %198 : vector<2x32xf32>
    %202 = arith.mulf %195, %118 : vector<2x32xf32>
    %203 = arith.addf %201, %202 : vector<2x32xf32>
    %204 = arith.index_cast %165 : i32 to index
    %c0_136 = arith.constant 0 : index
    %c0_137 = arith.constant 0 : index
    %205 = vector.load %arg27[%204, %c0_136, %c0_137] : memref<8x2x32xf32, #tpu.memory_space<vmem>>, vector<1x2x32xf32>
    %206 = vector.shape_cast %205 : vector<1x2x32xf32> to vector<2x32xf32>
    %207 = arith.index_cast %165 : i32 to index
    %c0_138 = arith.constant 0 : index
    %c0_139 = arith.constant 0 : index
    %208 = vector.load %arg28[%207, %c0_138, %c0_139] : memref<8x2x32xf32, #tpu.memory_space<vmem>>, vector<1x2x32xf32>
    %209 = vector.shape_cast %208 : vector<1x2x32xf32> to vector<2x32xf32>
    %210 = arith.index_cast %165 : i32 to index
    %c0_140 = arith.constant 0 : index
    %c0_141 = arith.constant 0 : index
    %211 = vector.load %arg29[%210, %c0_140, %c0_141] : memref<8x2x32xf32, #tpu.memory_space<vmem>>, vector<1x2x32xf32>
    %212 = vector.shape_cast %211 : vector<1x2x32xf32> to vector<2x32xf32>
    %cst_142 = arith.constant dense<0.000000e+00> : vector<2x32xf32>
    %213 = tpu.matmul %156, %69, %cst_142 {dimension_numbers = #tpu.dot_dimension_numbers<[1], [0], [0], [1], [0, 0, 1, 1], [], []>} : vector<2x32xf32>, vector<32x32xf32>, vector<2x32xf32> -> vector<2x32xf32>
    %214 = vector.broadcast %75 : vector<1x32xf32> to vector<2x32xf32>
    %215 = arith.addf %213, %214 : vector<2x32xf32>
    %cst_143 = arith.constant dense<0.000000e+00> : vector<2x32xf32>
    %216 = tpu.matmul %156, %71, %cst_143 {dimension_numbers = #tpu.dot_dimension_numbers<[1], [0], [0], [1], [0, 0, 1, 1], [], []>} : vector<2x32xf32>, vector<32x32xf32>, vector<2x32xf32> -> vector<2x32xf32>
    %217 = vector.broadcast %77 : vector<1x32xf32> to vector<2x32xf32>
    %218 = arith.addf %216, %217 : vector<2x32xf32>
    %cst_144 = arith.constant dense<0.000000e+00> : vector<2x32xf32>
    %219 = tpu.matmul %156, %73, %cst_144 {dimension_numbers = #tpu.dot_dimension_numbers<[1], [0], [0], [1], [0, 0, 1, 1], [], []>} : vector<2x32xf32>, vector<32x32xf32>, vector<2x32xf32> -> vector<2x32xf32>
    %220 = vector.broadcast %79 : vector<1x32xf32> to vector<2x32xf32>
    %221 = arith.addf %219, %220 : vector<2x32xf32>
    %222 = arith.addf %206, %215 : vector<2x32xf32>
    %223 = arith.negf %222 : vector<2x32xf32>
    %224 = math.exp %223 : vector<2x32xf32>
    %cst_145 = arith.constant 1.000000e+00 : f32
    %225 = vector.broadcast %cst_145 : f32 to vector<2x32xf32>
    %226 = arith.addf %225, %224 : vector<2x32xf32>
    %227 = arith.divf %225, %226 : vector<2x32xf32>
    %228 = arith.addf %209, %218 : vector<2x32xf32>
    %229 = arith.negf %228 : vector<2x32xf32>
    %230 = math.exp %229 : vector<2x32xf32>
    %cst_146 = arith.constant 1.000000e+00 : f32
    %231 = vector.broadcast %cst_146 : f32 to vector<2x32xf32>
    %232 = arith.addf %231, %230 : vector<2x32xf32>
    %233 = arith.divf %231, %232 : vector<2x32xf32>
    %234 = arith.mulf %227, %221 : vector<2x32xf32>
    %235 = arith.addf %212, %234 : vector<2x32xf32>
    %236 = math.tanh %235 : vector<2x32xf32>
    %cst_147 = arith.constant 1.000000e+00 : f32
    %237 = vector.broadcast %cst_147 : f32 to vector<2x32xf32>
    %238 = arith.subf %237, %233 : vector<2x32xf32>
    %239 = arith.mulf %238, %236 : vector<2x32xf32>
    %240 = arith.mulf %233, %156 : vector<2x32xf32>
    %241 = arith.addf %239, %240 : vector<2x32xf32>
    %242 = arith.index_cast %c1_i32 : i32 to index
    %c0_148 = arith.constant 0 : index
    %c0_149 = arith.constant 0 : index
    %243 = vector.load %arg22[%242, %c0_148, %c0_149] : memref<8x2x32xf32, #tpu.memory_space<vmem>>, vector<1x2x32xf32>
    %244 = vector.shape_cast %243 : vector<1x2x32xf32> to vector<2x32xf32>
    %245 = vector.shape_cast %203 : vector<2x32xf32> to vector<1x2x32xf32>
    tpu.vector_store %arg22[%242, %c0_148, %c0_149], %245 {strides = array<i32>} : memref<8x2x32xf32, #tpu.memory_space<vmem>>, vector<1x2x32xf32>,
    %246 = arith.index_cast %165 : i32 to index
    %c0_150 = arith.constant 0 : index
    %c0_151 = arith.constant 0 : index
    %247 = vector.load %arg23[%246, %c0_150, %c0_151] : memref<8x2x32xf32, #tpu.memory_space<vmem>>, vector<1x2x32xf32>
    %248 = vector.shape_cast %247 : vector<1x2x32xf32> to vector<2x32xf32>
    %249 = vector.shape_cast %241 : vector<2x32xf32> to vector<1x2x32xf32>
    tpu.vector_store %arg23[%246, %c0_150, %c0_151], %249 {strides = array<i32>} : memref<8x2x32xf32, #tpu.memory_space<vmem>>, vector<1x2x32xf32>,
    %c2_i32 = arith.constant 2 : i32
    %c7_i32_152 = arith.constant 7 : i32
    %250 = arith.subi %c7_i32_152, %c2_i32 : i32
    %251 = arith.index_cast %c2_i32 : i32 to index
    %c0_153 = arith.constant 0 : index
    %c0_154 = arith.constant 0 : index
    %252 = vector.load %arg24[%251, %c0_153, %c0_154] : memref<8x2x32xf32, #tpu.memory_space<vmem>>, vector<1x2x32xf32>
    %253 = vector.shape_cast %252 : vector<1x2x32xf32> to vector<2x32xf32>
    %254 = arith.index_cast %c2_i32 : i32 to index
    %c0_155 = arith.constant 0 : index
    %c0_156 = arith.constant 0 : index
    %255 = vector.load %arg25[%254, %c0_155, %c0_156] : memref<8x2x32xf32, #tpu.memory_space<vmem>>, vector<1x2x32xf32>
    %256 = vector.shape_cast %255 : vector<1x2x32xf32> to vector<2x32xf32>
    %257 = arith.index_cast %c2_i32 : i32 to index
    %c0_157 = arith.constant 0 : index
    %c0_158 = arith.constant 0 : index
    %258 = vector.load %arg26[%257, %c0_157, %c0_158] : memref<8x2x32xf32, #tpu.memory_space<vmem>>, vector<1x2x32xf32>
    %259 = vector.shape_cast %258 : vector<1x2x32xf32> to vector<2x32xf32>
    %cst_159 = arith.constant dense<0.000000e+00> : vector<2x32xf32>
    %260 = tpu.matmul %203, %57, %cst_159 {dimension_numbers = #tpu.dot_dimension_numbers<[1], [0], [0], [1], [0, 0, 1, 1], [], []>} : vector<2x32xf32>, vector<32x32xf32>, vector<2x32xf32> -> vector<2x32xf32>
    %261 = vector.broadcast %63 : vector<1x32xf32> to vector<2x32xf32>
    %262 = arith.addf %260, %261 : vector<2x32xf32>
    %cst_160 = arith.constant dense<0.000000e+00> : vector<2x32xf32>
    %263 = tpu.matmul %203, %59, %cst_160 {dimension_numbers = #tpu.dot_dimension_numbers<[1], [0], [0], [1], [0, 0, 1, 1], [], []>} : vector<2x32xf32>, vector<32x32xf32>, vector<2x32xf32> -> vector<2x32xf32>
    %264 = vector.broadcast %65 : vector<1x32xf32> to vector<2x32xf32>
    %265 = arith.addf %263, %264 : vector<2x32xf32>
    %cst_161 = arith.constant dense<0.000000e+00> : vector<2x32xf32>
    %266 = tpu.matmul %203, %61, %cst_161 {dimension_numbers = #tpu.dot_dimension_numbers<[1], [0], [0], [1], [0, 0, 1, 1], [], []>} : vector<2x32xf32>, vector<32x32xf32>, vector<2x32xf32> -> vector<2x32xf32>
    %267 = vector.broadcast %67 : vector<1x32xf32> to vector<2x32xf32>
    %268 = arith.addf %266, %267 : vector<2x32xf32>
    %269 = arith.addf %253, %262 : vector<2x32xf32>
    %270 = arith.negf %269 : vector<2x32xf32>
    %271 = math.exp %270 : vector<2x32xf32>
    %cst_162 = arith.constant 1.000000e+00 : f32
    %272 = vector.broadcast %cst_162 : f32 to vector<2x32xf32>
    %273 = arith.addf %272, %271 : vector<2x32xf32>
    %274 = arith.divf %272, %273 : vector<2x32xf32>
    %275 = arith.addf %256, %265 : vector<2x32xf32>
    %276 = arith.negf %275 : vector<2x32xf32>
    %277 = math.exp %276 : vector<2x32xf32>
    %cst_163 = arith.constant 1.000000e+00 : f32
    %278 = vector.broadcast %cst_163 : f32 to vector<2x32xf32>
    %279 = arith.addf %278, %277 : vector<2x32xf32>
    %280 = arith.divf %278, %279 : vector<2x32xf32>
    %281 = arith.mulf %274, %268 : vector<2x32xf32>
    %282 = arith.addf %259, %281 : vector<2x32xf32>
    %283 = math.tanh %282 : vector<2x32xf32>
    %cst_164 = arith.constant 1.000000e+00 : f32
    %284 = vector.broadcast %cst_164 : f32 to vector<2x32xf32>
    %285 = arith.subf %284, %280 : vector<2x32xf32>
    %286 = arith.mulf %285, %283 : vector<2x32xf32>
    %287 = arith.mulf %280, %203 : vector<2x32xf32>
    %288 = arith.addf %286, %287 : vector<2x32xf32>
    %289 = arith.index_cast %250 : i32 to index
    %c0_165 = arith.constant 0 : index
    %c0_166 = arith.constant 0 : index
    %290 = vector.load %arg27[%289, %c0_165, %c0_166] : memref<8x2x32xf32, #tpu.memory_space<vmem>>, vector<1x2x32xf32>
    %291 = vector.shape_cast %290 : vector<1x2x32xf32> to vector<2x32xf32>
    %292 = arith.index_cast %250 : i32 to index
    %c0_167 = arith.constant 0 : index
    %c0_168 = arith.constant 0 : index
    %293 = vector.load %arg28[%292, %c0_167, %c0_168] : memref<8x2x32xf32, #tpu.memory_space<vmem>>, vector<1x2x32xf32>
    %294 = vector.shape_cast %293 : vector<1x2x32xf32> to vector<2x32xf32>
    %295 = arith.index_cast %250 : i32 to index
    %c0_169 = arith.constant 0 : index
    %c0_170 = arith.constant 0 : index
    %296 = vector.load %arg29[%295, %c0_169, %c0_170] : memref<8x2x32xf32, #tpu.memory_space<vmem>>, vector<1x2x32xf32>
    %297 = vector.shape_cast %296 : vector<1x2x32xf32> to vector<2x32xf32>
    %cst_171 = arith.constant dense<0.000000e+00> : vector<2x32xf32>
    %298 = tpu.matmul %241, %69, %cst_171 {dimension_numbers = #tpu.dot_dimension_numbers<[1], [0], [0], [1], [0, 0, 1, 1], [], []>} : vector<2x32xf32>, vector<32x32xf32>, vector<2x32xf32> -> vector<2x32xf32>
    %299 = vector.broadcast %75 : vector<1x32xf32> to vector<2x32xf32>
    %300 = arith.addf %298, %299 : vector<2x32xf32>
    %cst_172 = arith.constant dense<0.000000e+00> : vector<2x32xf32>
    %301 = tpu.matmul %241, %71, %cst_172 {dimension_numbers = #tpu.dot_dimension_numbers<[1], [0], [0], [1], [0, 0, 1, 1], [], []>} : vector<2x32xf32>, vector<32x32xf32>, vector<2x32xf32> -> vector<2x32xf32>
    %302 = vector.broadcast %77 : vector<1x32xf32> to vector<2x32xf32>
    %303 = arith.addf %301, %302 : vector<2x32xf32>
    %cst_173 = arith.constant dense<0.000000e+00> : vector<2x32xf32>
    %304 = tpu.matmul %241, %73, %cst_173 {dimension_numbers = #tpu.dot_dimension_numbers<[1], [0], [0], [1], [0, 0, 1, 1], [], []>} : vector<2x32xf32>, vector<32x32xf32>, vector<2x32xf32> -> vector<2x32xf32>
    %305 = vector.broadcast %79 : vector<1x32xf32> to vector<2x32xf32>
    %306 = arith.addf %304, %305 : vector<2x32xf32>
    %307 = arith.addf %291, %300 : vector<2x32xf32>
    %308 = arith.negf %307 : vector<2x32xf32>
    %309 = math.exp %308 : vector<2x32xf32>
    %cst_174 = arith.constant 1.000000e+00 : f32
    %310 = vector.broadcast %cst_174 : f32 to vector<2x32xf32>
    %311 = arith.addf %310, %309 : vector<2x32xf32>
    %312 = arith.divf %310, %311 : vector<2x32xf32>
    %313 = arith.addf %294, %303 : vector<2x32xf32>
    %314 = arith.negf %313 : vector<2x32xf32>
    %315 = math.exp %314 : vector<2x32xf32>
    %cst_175 = arith.constant 1.000000e+00 : f32
    %316 = vector.broadcast %cst_175 : f32 to vector<2x32xf32>
    %317 = arith.addf %316, %315 : vector<2x32xf32>
    %318 = arith.divf %316, %317 : vector<2x32xf32>
    %319 = arith.mulf %312, %306 : vector<2x32xf32>
    %320 = arith.addf %297, %319 : vector<2x32xf32>
    %321 = math.tanh %320 : vector<2x32xf32>
    %cst_176 = arith.constant 1.000000e+00 : f32
    %322 = vector.broadcast %cst_176 : f32 to vector<2x32xf32>
    %323 = arith.subf %322, %318 : vector<2x32xf32>
    %324 = arith.mulf %323, %321 : vector<2x32xf32>
    %325 = arith.mulf %318, %241 : vector<2x32xf32>
    %326 = arith.addf %324, %325 : vector<2x32xf32>
    %327 = arith.index_cast %c2_i32 : i32 to index
    %c0_177 = arith.constant 0 : index
    %c0_178 = arith.constant 0 : index
    %328 = vector.load %arg22[%327, %c0_177, %c0_178] : memref<8x2x32xf32, #tpu.memory_space<vmem>>, vector<1x2x32xf32>
    %329 = vector.shape_cast %328 : vector<1x2x32xf32> to vector<2x32xf32>
    %330 = vector.shape_cast %288 : vector<2x32xf32> to vector<1x2x32xf32>
    tpu.vector_store %arg22[%327, %c0_177, %c0_178], %330 {strides = array<i32>} : memref<8x2x32xf32, #tpu.memory_space<vmem>>, vector<1x2x32xf32>,
    %331 = arith.index_cast %250 : i32 to index
    %c0_179 = arith.constant 0 : index
    %c0_180 = arith.constant 0 : index
    %332 = vector.load %arg23[%331, %c0_179, %c0_180] : memref<8x2x32xf32, #tpu.memory_space<vmem>>, vector<1x2x32xf32>
    %333 = vector.shape_cast %332 : vector<1x2x32xf32> to vector<2x32xf32>
    %334 = vector.shape_cast %326 : vector<2x32xf32> to vector<1x2x32xf32>
    tpu.vector_store %arg23[%331, %c0_179, %c0_180], %334 {strides = array<i32>} : memref<8x2x32xf32, #tpu.memory_space<vmem>>, vector<1x2x32xf32>,
    %c3_i32 = arith.constant 3 : i32
    %c7_i32_181 = arith.constant 7 : i32
    %335 = arith.subi %c7_i32_181, %c3_i32 : i32
    %336 = arith.index_cast %c3_i32 : i32 to index
    %c0_182 = arith.constant 0 : index
    %c0_183 = arith.constant 0 : index
    %337 = vector.load %arg24[%336, %c0_182, %c0_183] : memref<8x2x32xf32, #tpu.memory_space<vmem>>, vector<1x2x32xf32>
    %338 = vector.shape_cast %337 : vector<1x2x32xf32> to vector<2x32xf32>
    %339 = arith.index_cast %c3_i32 : i32 to index
    %c0_184 = arith.constant 0 : index
    %c0_185 = arith.constant 0 : index
    %340 = vector.load %arg25[%339, %c0_184, %c0_185] : memref<8x2x32xf32, #tpu.memory_space<vmem>>, vector<1x2x32xf32>
    %341 = vector.shape_cast %340 : vector<1x2x32xf32> to vector<2x32xf32>
    %342 = arith.index_cast %c3_i32 : i32 to index
    %c0_186 = arith.constant 0 : index
    %c0_187 = arith.constant 0 : index
    %343 = vector.load %arg26[%342, %c0_186, %c0_187] : memref<8x2x32xf32, #tpu.memory_space<vmem>>, vector<1x2x32xf32>
    %344 = vector.shape_cast %343 : vector<1x2x32xf32> to vector<2x32xf32>
    %cst_188 = arith.constant dense<0.000000e+00> : vector<2x32xf32>
    %345 = tpu.matmul %288, %57, %cst_188 {dimension_numbers = #tpu.dot_dimension_numbers<[1], [0], [0], [1], [0, 0, 1, 1], [], []>} : vector<2x32xf32>, vector<32x32xf32>, vector<2x32xf32> -> vector<2x32xf32>
    %346 = vector.broadcast %63 : vector<1x32xf32> to vector<2x32xf32>
    %347 = arith.addf %345, %346 : vector<2x32xf32>
    %cst_189 = arith.constant dense<0.000000e+00> : vector<2x32xf32>
    %348 = tpu.matmul %288, %59, %cst_189 {dimension_numbers = #tpu.dot_dimension_numbers<[1], [0], [0], [1], [0, 0, 1, 1], [], []>} : vector<2x32xf32>, vector<32x32xf32>, vector<2x32xf32> -> vector<2x32xf32>
    %349 = vector.broadcast %65 : vector<1x32xf32> to vector<2x32xf32>
    %350 = arith.addf %348, %349 : vector<2x32xf32>
    %cst_190 = arith.constant dense<0.000000e+00> : vector<2x32xf32>
    %351 = tpu.matmul %288, %61, %cst_190 {dimension_numbers = #tpu.dot_dimension_numbers<[1], [0], [0], [1], [0, 0, 1, 1], [], []>} : vector<2x32xf32>, vector<32x32xf32>, vector<2x32xf32> -> vector<2x32xf32>
    %352 = vector.broadcast %67 : vector<1x32xf32> to vector<2x32xf32>
    %353 = arith.addf %351, %352 : vector<2x32xf32>
    %354 = arith.addf %338, %347 : vector<2x32xf32>
    %355 = arith.negf %354 : vector<2x32xf32>
    %356 = math.exp %355 : vector<2x32xf32>
    %cst_191 = arith.constant 1.000000e+00 : f32
    %357 = vector.broadcast %cst_191 : f32 to vector<2x32xf32>
    %358 = arith.addf %357, %356 : vector<2x32xf32>
    %359 = arith.divf %357, %358 : vector<2x32xf32>
    %360 = arith.addf %341, %350 : vector<2x32xf32>
    %361 = arith.negf %360 : vector<2x32xf32>
    %362 = math.exp %361 : vector<2x32xf32>
    %cst_192 = arith.constant 1.000000e+00 : f32
    %363 = vector.broadcast %cst_192 : f32 to vector<2x32xf32>
    %364 = arith.addf %363, %362 : vector<2x32xf32>
    %365 = arith.divf %363, %364 : vector<2x32xf32>
    %366 = arith.mulf %359, %353 : vector<2x32xf32>
    %367 = arith.addf %344, %366 : vector<2x32xf32>
    %368 = math.tanh %367 : vector<2x32xf32>
    %cst_193 = arith.constant 1.000000e+00 : f32
    %369 = vector.broadcast %cst_193 : f32 to vector<2x32xf32>
    %370 = arith.subf %369, %365 : vector<2x32xf32>
    %371 = arith.mulf %370, %368 : vector<2x32xf32>
    %372 = arith.mulf %365, %288 : vector<2x32xf32>
    %373 = arith.addf %371, %372 : vector<2x32xf32>
    %374 = arith.index_cast %335 : i32 to index
    %c0_194 = arith.constant 0 : index
    %c0_195 = arith.constant 0 : index
    %375 = vector.load %arg27[%374, %c0_194, %c0_195] : memref<8x2x32xf32, #tpu.memory_space<vmem>>, vector<1x2x32xf32>
    %376 = vector.shape_cast %375 : vector<1x2x32xf32> to vector<2x32xf32>
    %377 = arith.index_cast %335 : i32 to index
    %c0_196 = arith.constant 0 : index
    %c0_197 = arith.constant 0 : index
    %378 = vector.load %arg28[%377, %c0_196, %c0_197] : memref<8x2x32xf32, #tpu.memory_space<vmem>>, vector<1x2x32xf32>
    %379 = vector.shape_cast %378 : vector<1x2x32xf32> to vector<2x32xf32>
    %380 = arith.index_cast %335 : i32 to index
    %c0_198 = arith.constant 0 : index
    %c0_199 = arith.constant 0 : index
    %381 = vector.load %arg29[%380, %c0_198, %c0_199] : memref<8x2x32xf32, #tpu.memory_space<vmem>>, vector<1x2x32xf32>
    %382 = vector.shape_cast %381 : vector<1x2x32xf32> to vector<2x32xf32>
    %cst_200 = arith.constant dense<0.000000e+00> : vector<2x32xf32>
    %383 = tpu.matmul %326, %69, %cst_200 {dimension_numbers = #tpu.dot_dimension_numbers<[1], [0], [0], [1], [0, 0, 1, 1], [], []>} : vector<2x32xf32>, vector<32x32xf32>, vector<2x32xf32> -> vector<2x32xf32>
    %384 = vector.broadcast %75 : vector<1x32xf32> to vector<2x32xf32>
    %385 = arith.addf %383, %384 : vector<2x32xf32>
    %cst_201 = arith.constant dense<0.000000e+00> : vector<2x32xf32>
    %386 = tpu.matmul %326, %71, %cst_201 {dimension_numbers = #tpu.dot_dimension_numbers<[1], [0], [0], [1], [0, 0, 1, 1], [], []>} : vector<2x32xf32>, vector<32x32xf32>, vector<2x32xf32> -> vector<2x32xf32>
    %387 = vector.broadcast %77 : vector<1x32xf32> to vector<2x32xf32>
    %388 = arith.addf %386, %387 : vector<2x32xf32>
    %cst_202 = arith.constant dense<0.000000e+00> : vector<2x32xf32>
    %389 = tpu.matmul %326, %73, %cst_202 {dimension_numbers = #tpu.dot_dimension_numbers<[1], [0], [0], [1], [0, 0, 1, 1], [], []>} : vector<2x32xf32>, vector<32x32xf32>, vector<2x32xf32> -> vector<2x32xf32>
    %390 = vector.broadcast %79 : vector<1x32xf32> to vector<2x32xf32>
    %391 = arith.addf %389, %390 : vector<2x32xf32>
    %392 = arith.addf %376, %385 : vector<2x32xf32>
    %393 = arith.negf %392 : vector<2x32xf32>
    %394 = math.exp %393 : vector<2x32xf32>
    %cst_203 = arith.constant 1.000000e+00 : f32
    %395 = vector.broadcast %cst_203 : f32 to vector<2x32xf32>
    %396 = arith.addf %395, %394 : vector<2x32xf32>
    %397 = arith.divf %395, %396 : vector<2x32xf32>
    %398 = arith.addf %379, %388 : vector<2x32xf32>
    %399 = arith.negf %398 : vector<2x32xf32>
    %400 = math.exp %399 : vector<2x32xf32>
    %cst_204 = arith.constant 1.000000e+00 : f32
    %401 = vector.broadcast %cst_204 : f32 to vector<2x32xf32>
    %402 = arith.addf %401, %400 : vector<2x32xf32>
    %403 = arith.divf %401, %402 : vector<2x32xf32>
    %404 = arith.mulf %397, %391 : vector<2x32xf32>
    %405 = arith.addf %382, %404 : vector<2x32xf32>
    %406 = math.tanh %405 : vector<2x32xf32>
    %cst_205 = arith.constant 1.000000e+00 : f32
    %407 = vector.broadcast %cst_205 : f32 to vector<2x32xf32>
    %408 = arith.subf %407, %403 : vector<2x32xf32>
    %409 = arith.mulf %408, %406 : vector<2x32xf32>
    %410 = arith.mulf %403, %326 : vector<2x32xf32>
    %411 = arith.addf %409, %410 : vector<2x32xf32>
    %412 = arith.index_cast %c3_i32 : i32 to index
    %c0_206 = arith.constant 0 : index
    %c0_207 = arith.constant 0 : index
    %413 = vector.load %arg22[%412, %c0_206, %c0_207] : memref<8x2x32xf32, #tpu.memory_space<vmem>>, vector<1x2x32xf32>
    %414 = vector.shape_cast %413 : vector<1x2x32xf32> to vector<2x32xf32>
    %415 = vector.shape_cast %373 : vector<2x32xf32> to vector<1x2x32xf32>
    tpu.vector_store %arg22[%412, %c0_206, %c0_207], %415 {strides = array<i32>} : memref<8x2x32xf32, #tpu.memory_space<vmem>>, vector<1x2x32xf32>,
    %416 = arith.index_cast %335 : i32 to index
    %c0_208 = arith.constant 0 : index
    %c0_209 = arith.constant 0 : index
    %417 = vector.load %arg23[%416, %c0_208, %c0_209] : memref<8x2x32xf32, #tpu.memory_space<vmem>>, vector<1x2x32xf32>
    %418 = vector.shape_cast %417 : vector<1x2x32xf32> to vector<2x32xf32>
    %419 = vector.shape_cast %411 : vector<2x32xf32> to vector<1x2x32xf32>
    tpu.vector_store %arg23[%416, %c0_208, %c0_209], %419 {strides = array<i32>} : memref<8x2x32xf32, #tpu.memory_space<vmem>>, vector<1x2x32xf32>,
    %c4_i32 = arith.constant 4 : i32
    %c7_i32_210 = arith.constant 7 : i32
    %420 = arith.subi %c7_i32_210, %c4_i32 : i32
    %421 = arith.index_cast %c4_i32 : i32 to index
    %c0_211 = arith.constant 0 : index
    %c0_212 = arith.constant 0 : index
    %422 = vector.load %arg24[%421, %c0_211, %c0_212] : memref<8x2x32xf32, #tpu.memory_space<vmem>>, vector<1x2x32xf32>
    %423 = vector.shape_cast %422 : vector<1x2x32xf32> to vector<2x32xf32>
    %424 = arith.index_cast %c4_i32 : i32 to index
    %c0_213 = arith.constant 0 : index
    %c0_214 = arith.constant 0 : index
    %425 = vector.load %arg25[%424, %c0_213, %c0_214] : memref<8x2x32xf32, #tpu.memory_space<vmem>>, vector<1x2x32xf32>
    %426 = vector.shape_cast %425 : vector<1x2x32xf32> to vector<2x32xf32>
    %427 = arith.index_cast %c4_i32 : i32 to index
    %c0_215 = arith.constant 0 : index
    %c0_216 = arith.constant 0 : index
    %428 = vector.load %arg26[%427, %c0_215, %c0_216] : memref<8x2x32xf32, #tpu.memory_space<vmem>>, vector<1x2x32xf32>
    %429 = vector.shape_cast %428 : vector<1x2x32xf32> to vector<2x32xf32>
    %cst_217 = arith.constant dense<0.000000e+00> : vector<2x32xf32>
    %430 = tpu.matmul %373, %57, %cst_217 {dimension_numbers = #tpu.dot_dimension_numbers<[1], [0], [0], [1], [0, 0, 1, 1], [], []>} : vector<2x32xf32>, vector<32x32xf32>, vector<2x32xf32> -> vector<2x32xf32>
    %431 = vector.broadcast %63 : vector<1x32xf32> to vector<2x32xf32>
    %432 = arith.addf %430, %431 : vector<2x32xf32>
    %cst_218 = arith.constant dense<0.000000e+00> : vector<2x32xf32>
    %433 = tpu.matmul %373, %59, %cst_218 {dimension_numbers = #tpu.dot_dimension_numbers<[1], [0], [0], [1], [0, 0, 1, 1], [], []>} : vector<2x32xf32>, vector<32x32xf32>, vector<2x32xf32> -> vector<2x32xf32>
    %434 = vector.broadcast %65 : vector<1x32xf32> to vector<2x32xf32>
    %435 = arith.addf %433, %434 : vector<2x32xf32>
    %cst_219 = arith.constant dense<0.000000e+00> : vector<2x32xf32>
    %436 = tpu.matmul %373, %61, %cst_219 {dimension_numbers = #tpu.dot_dimension_numbers<[1], [0], [0], [1], [0, 0, 1, 1], [], []>} : vector<2x32xf32>, vector<32x32xf32>, vector<2x32xf32> -> vector<2x32xf32>
    %437 = vector.broadcast %67 : vector<1x32xf32> to vector<2x32xf32>
    %438 = arith.addf %436, %437 : vector<2x32xf32>
    %439 = arith.addf %423, %432 : vector<2x32xf32>
    %440 = arith.negf %439 : vector<2x32xf32>
    %441 = math.exp %440 : vector<2x32xf32>
    %cst_220 = arith.constant 1.000000e+00 : f32
    %442 = vector.broadcast %cst_220 : f32 to vector<2x32xf32>
    %443 = arith.addf %442, %441 : vector<2x32xf32>
    %444 = arith.divf %442, %443 : vector<2x32xf32>
    %445 = arith.addf %426, %435 : vector<2x32xf32>
    %446 = arith.negf %445 : vector<2x32xf32>
    %447 = math.exp %446 : vector<2x32xf32>
    %cst_221 = arith.constant 1.000000e+00 : f32
    %448 = vector.broadcast %cst_221 : f32 to vector<2x32xf32>
    %449 = arith.addf %448, %447 : vector<2x32xf32>
    %450 = arith.divf %448, %449 : vector<2x32xf32>
    %451 = arith.mulf %444, %438 : vector<2x32xf32>
    %452 = arith.addf %429, %451 : vector<2x32xf32>
    %453 = math.tanh %452 : vector<2x32xf32>
    %cst_222 = arith.constant 1.000000e+00 : f32
    %454 = vector.broadcast %cst_222 : f32 to vector<2x32xf32>
    %455 = arith.subf %454, %450 : vector<2x32xf32>
    %456 = arith.mulf %455, %453 : vector<2x32xf32>
    %457 = arith.mulf %450, %373 : vector<2x32xf32>
    %458 = arith.addf %456, %457 : vector<2x32xf32>
    %459 = arith.index_cast %420 : i32 to index
    %c0_223 = arith.constant 0 : index
    %c0_224 = arith.constant 0 : index
    %460 = vector.load %arg27[%459, %c0_223, %c0_224] : memref<8x2x32xf32, #tpu.memory_space<vmem>>, vector<1x2x32xf32>
    %461 = vector.shape_cast %460 : vector<1x2x32xf32> to vector<2x32xf32>
    %462 = arith.index_cast %420 : i32 to index
    %c0_225 = arith.constant 0 : index
    %c0_226 = arith.constant 0 : index
    %463 = vector.load %arg28[%462, %c0_225, %c0_226] : memref<8x2x32xf32, #tpu.memory_space<vmem>>, vector<1x2x32xf32>
    %464 = vector.shape_cast %463 : vector<1x2x32xf32> to vector<2x32xf32>
    %465 = arith.index_cast %420 : i32 to index
    %c0_227 = arith.constant 0 : index
    %c0_228 = arith.constant 0 : index
    %466 = vector.load %arg29[%465, %c0_227, %c0_228] : memref<8x2x32xf32, #tpu.memory_space<vmem>>, vector<1x2x32xf32>
    %467 = vector.shape_cast %466 : vector<1x2x32xf32> to vector<2x32xf32>
    %cst_229 = arith.constant dense<0.000000e+00> : vector<2x32xf32>
    %468 = tpu.matmul %411, %69, %cst_229 {dimension_numbers = #tpu.dot_dimension_numbers<[1], [0], [0], [1], [0, 0, 1, 1], [], []>} : vector<2x32xf32>, vector<32x32xf32>, vector<2x32xf32> -> vector<2x32xf32>
    %469 = vector.broadcast %75 : vector<1x32xf32> to vector<2x32xf32>
    %470 = arith.addf %468, %469 : vector<2x32xf32>
    %cst_230 = arith.constant dense<0.000000e+00> : vector<2x32xf32>
    %471 = tpu.matmul %411, %71, %cst_230 {dimension_numbers = #tpu.dot_dimension_numbers<[1], [0], [0], [1], [0, 0, 1, 1], [], []>} : vector<2x32xf32>, vector<32x32xf32>, vector<2x32xf32> -> vector<2x32xf32>
    %472 = vector.broadcast %77 : vector<1x32xf32> to vector<2x32xf32>
    %473 = arith.addf %471, %472 : vector<2x32xf32>
    %cst_231 = arith.constant dense<0.000000e+00> : vector<2x32xf32>
    %474 = tpu.matmul %411, %73, %cst_231 {dimension_numbers = #tpu.dot_dimension_numbers<[1], [0], [0], [1], [0, 0, 1, 1], [], []>} : vector<2x32xf32>, vector<32x32xf32>, vector<2x32xf32> -> vector<2x32xf32>
    %475 = vector.broadcast %79 : vector<1x32xf32> to vector<2x32xf32>
    %476 = arith.addf %474, %475 : vector<2x32xf32>
    %477 = arith.addf %461, %470 : vector<2x32xf32>
    %478 = arith.negf %477 : vector<2x32xf32>
    %479 = math.exp %478 : vector<2x32xf32>
    %cst_232 = arith.constant 1.000000e+00 : f32
    %480 = vector.broadcast %cst_232 : f32 to vector<2x32xf32>
    %481 = arith.addf %480, %479 : vector<2x32xf32>
    %482 = arith.divf %480, %481 : vector<2x32xf32>
    %483 = arith.addf %464, %473 : vector<2x32xf32>
    %484 = arith.negf %483 : vector<2x32xf32>
    %485 = math.exp %484 : vector<2x32xf32>
    %cst_233 = arith.constant 1.000000e+00 : f32
    %486 = vector.broadcast %cst_233 : f32 to vector<2x32xf32>
    %487 = arith.addf %486, %485 : vector<2x32xf32>
    %488 = arith.divf %486, %487 : vector<2x32xf32>
    %489 = arith.mulf %482, %476 : vector<2x32xf32>
    %490 = arith.addf %467, %489 : vector<2x32xf32>
    %491 = math.tanh %490 : vector<2x32xf32>
    %cst_234 = arith.constant 1.000000e+00 : f32
    %492 = vector.broadcast %cst_234 : f32 to vector<2x32xf32>
    %493 = arith.subf %492, %488 : vector<2x32xf32>
    %494 = arith.mulf %493, %491 : vector<2x32xf32>
    %495 = arith.mulf %488, %411 : vector<2x32xf32>
    %496 = arith.addf %494, %495 : vector<2x32xf32>
    %497 = arith.index_cast %c4_i32 : i32 to index
    %c0_235 = arith.constant 0 : index
    %c0_236 = arith.constant 0 : index
    %498 = vector.load %arg22[%497, %c0_235, %c0_236] : memref<8x2x32xf32, #tpu.memory_space<vmem>>, vector<1x2x32xf32>
    %499 = vector.shape_cast %498 : vector<1x2x32xf32> to vector<2x32xf32>
    %500 = vector.shape_cast %458 : vector<2x32xf32> to vector<1x2x32xf32>
    tpu.vector_store %arg22[%497, %c0_235, %c0_236], %500 {strides = array<i32>} : memref<8x2x32xf32, #tpu.memory_space<vmem>>, vector<1x2x32xf32>,
    %501 = arith.index_cast %420 : i32 to index
    %c0_237 = arith.constant 0 : index
    %c0_238 = arith.constant 0 : index
    %502 = vector.load %arg23[%501, %c0_237, %c0_238] : memref<8x2x32xf32, #tpu.memory_space<vmem>>, vector<1x2x32xf32>
    %503 = vector.shape_cast %502 : vector<1x2x32xf32> to vector<2x32xf32>
    %504 = vector.shape_cast %496 : vector<2x32xf32> to vector<1x2x32xf32>
    tpu.vector_store %arg23[%501, %c0_237, %c0_238], %504 {strides = array<i32>} : memref<8x2x32xf32, #tpu.memory_space<vmem>>, vector<1x2x32xf32>,
    %c5_i32 = arith.constant 5 : i32
    %c7_i32_239 = arith.constant 7 : i32
    %505 = arith.subi %c7_i32_239, %c5_i32 : i32
    %506 = arith.index_cast %c5_i32 : i32 to index
    %c0_240 = arith.constant 0 : index
    %c0_241 = arith.constant 0 : index
    %507 = vector.load %arg24[%506, %c0_240, %c0_241] : memref<8x2x32xf32, #tpu.memory_space<vmem>>, vector<1x2x32xf32>
    %508 = vector.shape_cast %507 : vector<1x2x32xf32> to vector<2x32xf32>
    %509 = arith.index_cast %c5_i32 : i32 to index
    %c0_242 = arith.constant 0 : index
    %c0_243 = arith.constant 0 : index
    %510 = vector.load %arg25[%509, %c0_242, %c0_243] : memref<8x2x32xf32, #tpu.memory_space<vmem>>, vector<1x2x32xf32>
    %511 = vector.shape_cast %510 : vector<1x2x32xf32> to vector<2x32xf32>
    %512 = arith.index_cast %c5_i32 : i32 to index
    %c0_244 = arith.constant 0 : index
    %c0_245 = arith.constant 0 : index
    %513 = vector.load %arg26[%512, %c0_244, %c0_245] : memref<8x2x32xf32, #tpu.memory_space<vmem>>, vector<1x2x32xf32>
    %514 = vector.shape_cast %513 : vector<1x2x32xf32> to vector<2x32xf32>
    %cst_246 = arith.constant dense<0.000000e+00> : vector<2x32xf32>
    %515 = tpu.matmul %458, %57, %cst_246 {dimension_numbers = #tpu.dot_dimension_numbers<[1], [0], [0], [1], [0, 0, 1, 1], [], []>} : vector<2x32xf32>, vector<32x32xf32>, vector<2x32xf32> -> vector<2x32xf32>
    %516 = vector.broadcast %63 : vector<1x32xf32> to vector<2x32xf32>
    %517 = arith.addf %515, %516 : vector<2x32xf32>
    %cst_247 = arith.constant dense<0.000000e+00> : vector<2x32xf32>
    %518 = tpu.matmul %458, %59, %cst_247 {dimension_numbers = #tpu.dot_dimension_numbers<[1], [0], [0], [1], [0, 0, 1, 1], [], []>} : vector<2x32xf32>, vector<32x32xf32>, vector<2x32xf32> -> vector<2x32xf32>
    %519 = vector.broadcast %65 : vector<1x32xf32> to vector<2x32xf32>
    %520 = arith.addf %518, %519 : vector<2x32xf32>
    %cst_248 = arith.constant dense<0.000000e+00> : vector<2x32xf32>
    %521 = tpu.matmul %458, %61, %cst_248 {dimension_numbers = #tpu.dot_dimension_numbers<[1], [0], [0], [1], [0, 0, 1, 1], [], []>} : vector<2x32xf32>, vector<32x32xf32>, vector<2x32xf32> -> vector<2x32xf32>
    %522 = vector.broadcast %67 : vector<1x32xf32> to vector<2x32xf32>
    %523 = arith.addf %521, %522 : vector<2x32xf32>
    %524 = arith.addf %508, %517 : vector<2x32xf32>
    %525 = arith.negf %524 : vector<2x32xf32>
    %526 = math.exp %525 : vector<2x32xf32>
    %cst_249 = arith.constant 1.000000e+00 : f32
    %527 = vector.broadcast %cst_249 : f32 to vector<2x32xf32>
    %528 = arith.addf %527, %526 : vector<2x32xf32>
    %529 = arith.divf %527, %528 : vector<2x32xf32>
    %530 = arith.addf %511, %520 : vector<2x32xf32>
    %531 = arith.negf %530 : vector<2x32xf32>
    %532 = math.exp %531 : vector<2x32xf32>
    %cst_250 = arith.constant 1.000000e+00 : f32
    %533 = vector.broadcast %cst_250 : f32 to vector<2x32xf32>
    %534 = arith.addf %533, %532 : vector<2x32xf32>
    %535 = arith.divf %533, %534 : vector<2x32xf32>
    %536 = arith.mulf %529, %523 : vector<2x32xf32>
    %537 = arith.addf %514, %536 : vector<2x32xf32>
    %538 = math.tanh %537 : vector<2x32xf32>
    %cst_251 = arith.constant 1.000000e+00 : f32
    %539 = vector.broadcast %cst_251 : f32 to vector<2x32xf32>
    %540 = arith.subf %539, %535 : vector<2x32xf32>
    %541 = arith.mulf %540, %538 : vector<2x32xf32>
    %542 = arith.mulf %535, %458 : vector<2x32xf32>
    %543 = arith.addf %541, %542 : vector<2x32xf32>
    %544 = arith.index_cast %505 : i32 to index
    %c0_252 = arith.constant 0 : index
    %c0_253 = arith.constant 0 : index
    %545 = vector.load %arg27[%544, %c0_252, %c0_253] : memref<8x2x32xf32, #tpu.memory_space<vmem>>, vector<1x2x32xf32>
    %546 = vector.shape_cast %545 : vector<1x2x32xf32> to vector<2x32xf32>
    %547 = arith.index_cast %505 : i32 to index
    %c0_254 = arith.constant 0 : index
    %c0_255 = arith.constant 0 : index
    %548 = vector.load %arg28[%547, %c0_254, %c0_255] : memref<8x2x32xf32, #tpu.memory_space<vmem>>, vector<1x2x32xf32>
    %549 = vector.shape_cast %548 : vector<1x2x32xf32> to vector<2x32xf32>
    %550 = arith.index_cast %505 : i32 to index
    %c0_256 = arith.constant 0 : index
    %c0_257 = arith.constant 0 : index
    %551 = vector.load %arg29[%550, %c0_256, %c0_257] : memref<8x2x32xf32, #tpu.memory_space<vmem>>, vector<1x2x32xf32>
    %552 = vector.shape_cast %551 : vector<1x2x32xf32> to vector<2x32xf32>
    %cst_258 = arith.constant dense<0.000000e+00> : vector<2x32xf32>
    %553 = tpu.matmul %496, %69, %cst_258 {dimension_numbers = #tpu.dot_dimension_numbers<[1], [0], [0], [1], [0, 0, 1, 1], [], []>} : vector<2x32xf32>, vector<32x32xf32>, vector<2x32xf32> -> vector<2x32xf32>
    %554 = vector.broadcast %75 : vector<1x32xf32> to vector<2x32xf32>
    %555 = arith.addf %553, %554 : vector<2x32xf32>
    %cst_259 = arith.constant dense<0.000000e+00> : vector<2x32xf32>
    %556 = tpu.matmul %496, %71, %cst_259 {dimension_numbers = #tpu.dot_dimension_numbers<[1], [0], [0], [1], [0, 0, 1, 1], [], []>} : vector<2x32xf32>, vector<32x32xf32>, vector<2x32xf32> -> vector<2x32xf32>
    %557 = vector.broadcast %77 : vector<1x32xf32> to vector<2x32xf32>
    %558 = arith.addf %556, %557 : vector<2x32xf32>
    %cst_260 = arith.constant dense<0.000000e+00> : vector<2x32xf32>
    %559 = tpu.matmul %496, %73, %cst_260 {dimension_numbers = #tpu.dot_dimension_numbers<[1], [0], [0], [1], [0, 0, 1, 1], [], []>} : vector<2x32xf32>, vector<32x32xf32>, vector<2x32xf32> -> vector<2x32xf32>
    %560 = vector.broadcast %79 : vector<1x32xf32> to vector<2x32xf32>
    %561 = arith.addf %559, %560 : vector<2x32xf32>
    %562 = arith.addf %546, %555 : vector<2x32xf32>
    %563 = arith.negf %562 : vector<2x32xf32>
    %564 = math.exp %563 : vector<2x32xf32>
    %cst_261 = arith.constant 1.000000e+00 : f32
    %565 = vector.broadcast %cst_261 : f32 to vector<2x32xf32>
    %566 = arith.addf %565, %564 : vector<2x32xf32>
    %567 = arith.divf %565, %566 : vector<2x32xf32>
    %568 = arith.addf %549, %558 : vector<2x32xf32>
    %569 = arith.negf %568 : vector<2x32xf32>
    %570 = math.exp %569 : vector<2x32xf32>
    %cst_262 = arith.constant 1.000000e+00 : f32
    %571 = vector.broadcast %cst_262 : f32 to vector<2x32xf32>
    %572 = arith.addf %571, %570 : vector<2x32xf32>
    %573 = arith.divf %571, %572 : vector<2x32xf32>
    %574 = arith.mulf %567, %561 : vector<2x32xf32>
    %575 = arith.addf %552, %574 : vector<2x32xf32>
    %576 = math.tanh %575 : vector<2x32xf32>
    %cst_263 = arith.constant 1.000000e+00 : f32
    %577 = vector.broadcast %cst_263 : f32 to vector<2x32xf32>
    %578 = arith.subf %577, %573 : vector<2x32xf32>
    %579 = arith.mulf %578, %576 : vector<2x32xf32>
    %580 = arith.mulf %573, %496 : vector<2x32xf32>
    %581 = arith.addf %579, %580 : vector<2x32xf32>
    %582 = arith.index_cast %c5_i32 : i32 to index
    %c0_264 = arith.constant 0 : index
    %c0_265 = arith.constant 0 : index
    %583 = vector.load %arg22[%582, %c0_264, %c0_265] : memref<8x2x32xf32, #tpu.memory_space<vmem>>, vector<1x2x32xf32>
    %584 = vector.shape_cast %583 : vector<1x2x32xf32> to vector<2x32xf32>
    %585 = vector.shape_cast %543 : vector<2x32xf32> to vector<1x2x32xf32>
    tpu.vector_store %arg22[%582, %c0_264, %c0_265], %585 {strides = array<i32>} : memref<8x2x32xf32, #tpu.memory_space<vmem>>, vector<1x2x32xf32>,
    %586 = arith.index_cast %505 : i32 to index
    %c0_266 = arith.constant 0 : index
    %c0_267 = arith.constant 0 : index
    %587 = vector.load %arg23[%586, %c0_266, %c0_267] : memref<8x2x32xf32, #tpu.memory_space<vmem>>, vector<1x2x32xf32>
    %588 = vector.shape_cast %587 : vector<1x2x32xf32> to vector<2x32xf32>
    %589 = vector.shape_cast %581 : vector<2x32xf32> to vector<1x2x32xf32>
    tpu.vector_store %arg23[%586, %c0_266, %c0_267], %589 {strides = array<i32>} : memref<8x2x32xf32, #tpu.memory_space<vmem>>, vector<1x2x32xf32>,
    %c6_i32 = arith.constant 6 : i32
    %c7_i32_268 = arith.constant 7 : i32
    %590 = arith.subi %c7_i32_268, %c6_i32 : i32
    %591 = arith.index_cast %c6_i32 : i32 to index
    %c0_269 = arith.constant 0 : index
    %c0_270 = arith.constant 0 : index
    %592 = vector.load %arg24[%591, %c0_269, %c0_270] : memref<8x2x32xf32, #tpu.memory_space<vmem>>, vector<1x2x32xf32>
    %593 = vector.shape_cast %592 : vector<1x2x32xf32> to vector<2x32xf32>
    %594 = arith.index_cast %c6_i32 : i32 to index
    %c0_271 = arith.constant 0 : index
    %c0_272 = arith.constant 0 : index
    %595 = vector.load %arg25[%594, %c0_271, %c0_272] : memref<8x2x32xf32, #tpu.memory_space<vmem>>, vector<1x2x32xf32>
    %596 = vector.shape_cast %595 : vector<1x2x32xf32> to vector<2x32xf32>
    %597 = arith.index_cast %c6_i32 : i32 to index
    %c0_273 = arith.constant 0 : index
    %c0_274 = arith.constant 0 : index
    %598 = vector.load %arg26[%597, %c0_273, %c0_274] : memref<8x2x32xf32, #tpu.memory_space<vmem>>, vector<1x2x32xf32>
    %599 = vector.shape_cast %598 : vector<1x2x32xf32> to vector<2x32xf32>
    %cst_275 = arith.constant dense<0.000000e+00> : vector<2x32xf32>
    %600 = tpu.matmul %543, %57, %cst_275 {dimension_numbers = #tpu.dot_dimension_numbers<[1], [0], [0], [1], [0, 0, 1, 1], [], []>} : vector<2x32xf32>, vector<32x32xf32>, vector<2x32xf32> -> vector<2x32xf32>
    %601 = vector.broadcast %63 : vector<1x32xf32> to vector<2x32xf32>
    %602 = arith.addf %600, %601 : vector<2x32xf32>
    %cst_276 = arith.constant dense<0.000000e+00> : vector<2x32xf32>
    %603 = tpu.matmul %543, %59, %cst_276 {dimension_numbers = #tpu.dot_dimension_numbers<[1], [0], [0], [1], [0, 0, 1, 1], [], []>} : vector<2x32xf32>, vector<32x32xf32>, vector<2x32xf32> -> vector<2x32xf32>
    %604 = vector.broadcast %65 : vector<1x32xf32> to vector<2x32xf32>
    %605 = arith.addf %603, %604 : vector<2x32xf32>
    %cst_277 = arith.constant dense<0.000000e+00> : vector<2x32xf32>
    %606 = tpu.matmul %543, %61, %cst_277 {dimension_numbers = #tpu.dot_dimension_numbers<[1], [0], [0], [1], [0, 0, 1, 1], [], []>} : vector<2x32xf32>, vector<32x32xf32>, vector<2x32xf32> -> vector<2x32xf32>
    %607 = vector.broadcast %67 : vector<1x32xf32> to vector<2x32xf32>
    %608 = arith.addf %606, %607 : vector<2x32xf32>
    %609 = arith.addf %593, %602 : vector<2x32xf32>
    %610 = arith.negf %609 : vector<2x32xf32>
    %611 = math.exp %610 : vector<2x32xf32>
    %cst_278 = arith.constant 1.000000e+00 : f32
    %612 = vector.broadcast %cst_278 : f32 to vector<2x32xf32>
    %613 = arith.addf %612, %611 : vector<2x32xf32>
    %614 = arith.divf %612, %613 : vector<2x32xf32>
    %615 = arith.addf %596, %605 : vector<2x32xf32>
    %616 = arith.negf %615 : vector<2x32xf32>
    %617 = math.exp %616 : vector<2x32xf32>
    %cst_279 = arith.constant 1.000000e+00 : f32
    %618 = vector.broadcast %cst_279 : f32 to vector<2x32xf32>
    %619 = arith.addf %618, %617 : vector<2x32xf32>
    %620 = arith.divf %618, %619 : vector<2x32xf32>
    %621 = arith.mulf %614, %608 : vector<2x32xf32>
    %622 = arith.addf %599, %621 : vector<2x32xf32>
    %623 = math.tanh %622 : vector<2x32xf32>
    %cst_280 = arith.constant 1.000000e+00 : f32
    %624 = vector.broadcast %cst_280 : f32 to vector<2x32xf32>
    %625 = arith.subf %624, %620 : vector<2x32xf32>
    %626 = arith.mulf %625, %623 : vector<2x32xf32>
    %627 = arith.mulf %620, %543 : vector<2x32xf32>
    %628 = arith.addf %626, %627 : vector<2x32xf32>
    %629 = arith.index_cast %590 : i32 to index
    %c0_281 = arith.constant 0 : index
    %c0_282 = arith.constant 0 : index
    %630 = vector.load %arg27[%629, %c0_281, %c0_282] : memref<8x2x32xf32, #tpu.memory_space<vmem>>, vector<1x2x32xf32>
    %631 = vector.shape_cast %630 : vector<1x2x32xf32> to vector<2x32xf32>
    %632 = arith.index_cast %590 : i32 to index
    %c0_283 = arith.constant 0 : index
    %c0_284 = arith.constant 0 : index
    %633 = vector.load %arg28[%632, %c0_283, %c0_284] : memref<8x2x32xf32, #tpu.memory_space<vmem>>, vector<1x2x32xf32>
    %634 = vector.shape_cast %633 : vector<1x2x32xf32> to vector<2x32xf32>
    %635 = arith.index_cast %590 : i32 to index
    %c0_285 = arith.constant 0 : index
    %c0_286 = arith.constant 0 : index
    %636 = vector.load %arg29[%635, %c0_285, %c0_286] : memref<8x2x32xf32, #tpu.memory_space<vmem>>, vector<1x2x32xf32>
    %637 = vector.shape_cast %636 : vector<1x2x32xf32> to vector<2x32xf32>
    %cst_287 = arith.constant dense<0.000000e+00> : vector<2x32xf32>
    %638 = tpu.matmul %581, %69, %cst_287 {dimension_numbers = #tpu.dot_dimension_numbers<[1], [0], [0], [1], [0, 0, 1, 1], [], []>} : vector<2x32xf32>, vector<32x32xf32>, vector<2x32xf32> -> vector<2x32xf32>
    %639 = vector.broadcast %75 : vector<1x32xf32> to vector<2x32xf32>
    %640 = arith.addf %638, %639 : vector<2x32xf32>
    %cst_288 = arith.constant dense<0.000000e+00> : vector<2x32xf32>
    %641 = tpu.matmul %581, %71, %cst_288 {dimension_numbers = #tpu.dot_dimension_numbers<[1], [0], [0], [1], [0, 0, 1, 1], [], []>} : vector<2x32xf32>, vector<32x32xf32>, vector<2x32xf32> -> vector<2x32xf32>
    %642 = vector.broadcast %77 : vector<1x32xf32> to vector<2x32xf32>
    %643 = arith.addf %641, %642 : vector<2x32xf32>
    %cst_289 = arith.constant dense<0.000000e+00> : vector<2x32xf32>
    %644 = tpu.matmul %581, %73, %cst_289 {dimension_numbers = #tpu.dot_dimension_numbers<[1], [0], [0], [1], [0, 0, 1, 1], [], []>} : vector<2x32xf32>, vector<32x32xf32>, vector<2x32xf32> -> vector<2x32xf32>
    %645 = vector.broadcast %79 : vector<1x32xf32> to vector<2x32xf32>
    %646 = arith.addf %644, %645 : vector<2x32xf32>
    %647 = arith.addf %631, %640 : vector<2x32xf32>
    %648 = arith.negf %647 : vector<2x32xf32>
    %649 = math.exp %648 : vector<2x32xf32>
    %cst_290 = arith.constant 1.000000e+00 : f32
    %650 = vector.broadcast %cst_290 : f32 to vector<2x32xf32>
    %651 = arith.addf %650, %649 : vector<2x32xf32>
    %652 = arith.divf %650, %651 : vector<2x32xf32>
    %653 = arith.addf %634, %643 : vector<2x32xf32>
    %654 = arith.negf %653 : vector<2x32xf32>
    %655 = math.exp %654 : vector<2x32xf32>
    %cst_291 = arith.constant 1.000000e+00 : f32
    %656 = vector.broadcast %cst_291 : f32 to vector<2x32xf32>
    %657 = arith.addf %656, %655 : vector<2x32xf32>
    %658 = arith.divf %656, %657 : vector<2x32xf32>
    %659 = arith.mulf %652, %646 : vector<2x32xf32>
    %660 = arith.addf %637, %659 : vector<2x32xf32>
    %661 = math.tanh %660 : vector<2x32xf32>
    %cst_292 = arith.constant 1.000000e+00 : f32
    %662 = vector.broadcast %cst_292 : f32 to vector<2x32xf32>
    %663 = arith.subf %662, %658 : vector<2x32xf32>
    %664 = arith.mulf %663, %661 : vector<2x32xf32>
    %665 = arith.mulf %658, %581 : vector<2x32xf32>
    %666 = arith.addf %664, %665 : vector<2x32xf32>
    %667 = arith.index_cast %c6_i32 : i32 to index
    %c0_293 = arith.constant 0 : index
    %c0_294 = arith.constant 0 : index
    %668 = vector.load %arg22[%667, %c0_293, %c0_294] : memref<8x2x32xf32, #tpu.memory_space<vmem>>, vector<1x2x32xf32>
    %669 = vector.shape_cast %668 : vector<1x2x32xf32> to vector<2x32xf32>
    %670 = vector.shape_cast %628 : vector<2x32xf32> to vector<1x2x32xf32>
    tpu.vector_store %arg22[%667, %c0_293, %c0_294], %670 {strides = array<i32>} : memref<8x2x32xf32, #tpu.memory_space<vmem>>, vector<1x2x32xf32>,
    %671 = arith.index_cast %590 : i32 to index
    %c0_295 = arith.constant 0 : index
    %c0_296 = arith.constant 0 : index
    %672 = vector.load %arg23[%671, %c0_295, %c0_296] : memref<8x2x32xf32, #tpu.memory_space<vmem>>, vector<1x2x32xf32>
    %673 = vector.shape_cast %672 : vector<1x2x32xf32> to vector<2x32xf32>
    %674 = vector.shape_cast %666 : vector<2x32xf32> to vector<1x2x32xf32>
    tpu.vector_store %arg23[%671, %c0_295, %c0_296], %674 {strides = array<i32>} : memref<8x2x32xf32, #tpu.memory_space<vmem>>, vector<1x2x32xf32>,
    %c7_i32_297 = arith.constant 7 : i32
    %c7_i32_298 = arith.constant 7 : i32
    %675 = arith.subi %c7_i32_298, %c7_i32_297 : i32
    %676 = arith.index_cast %c7_i32_297 : i32 to index
    %c0_299 = arith.constant 0 : index
    %c0_300 = arith.constant 0 : index
    %677 = vector.load %arg24[%676, %c0_299, %c0_300] : memref<8x2x32xf32, #tpu.memory_space<vmem>>, vector<1x2x32xf32>
    %678 = vector.shape_cast %677 : vector<1x2x32xf32> to vector<2x32xf32>
    %679 = arith.index_cast %c7_i32_297 : i32 to index
    %c0_301 = arith.constant 0 : index
    %c0_302 = arith.constant 0 : index
    %680 = vector.load %arg25[%679, %c0_301, %c0_302] : memref<8x2x32xf32, #tpu.memory_space<vmem>>, vector<1x2x32xf32>
    %681 = vector.shape_cast %680 : vector<1x2x32xf32> to vector<2x32xf32>
    %682 = arith.index_cast %c7_i32_297 : i32 to index
    %c0_303 = arith.constant 0 : index
    %c0_304 = arith.constant 0 : index
    %683 = vector.load %arg26[%682, %c0_303, %c0_304] : memref<8x2x32xf32, #tpu.memory_space<vmem>>, vector<1x2x32xf32>
    %684 = vector.shape_cast %683 : vector<1x2x32xf32> to vector<2x32xf32>
    %cst_305 = arith.constant dense<0.000000e+00> : vector<2x32xf32>
    %685 = tpu.matmul %628, %57, %cst_305 {dimension_numbers = #tpu.dot_dimension_numbers<[1], [0], [0], [1], [0, 0, 1, 1], [], []>} : vector<2x32xf32>, vector<32x32xf32>, vector<2x32xf32> -> vector<2x32xf32>
    %686 = vector.broadcast %63 : vector<1x32xf32> to vector<2x32xf32>
    %687 = arith.addf %685, %686 : vector<2x32xf32>
    %cst_306 = arith.constant dense<0.000000e+00> : vector<2x32xf32>
    %688 = tpu.matmul %628, %59, %cst_306 {dimension_numbers = #tpu.dot_dimension_numbers<[1], [0], [0], [1], [0, 0, 1, 1], [], []>} : vector<2x32xf32>, vector<32x32xf32>, vector<2x32xf32> -> vector<2x32xf32>
    %689 = vector.broadcast %65 : vector<1x32xf32> to vector<2x32xf32>
    %690 = arith.addf %688, %689 : vector<2x32xf32>
    %cst_307 = arith.constant dense<0.000000e+00> : vector<2x32xf32>
    %691 = tpu.matmul %628, %61, %cst_307 {dimension_numbers = #tpu.dot_dimension_numbers<[1], [0], [0], [1], [0, 0, 1, 1], [], []>} : vector<2x32xf32>, vector<32x32xf32>, vector<2x32xf32> -> vector<2x32xf32>
    %692 = vector.broadcast %67 : vector<1x32xf32> to vector<2x32xf32>
    %693 = arith.addf %691, %692 : vector<2x32xf32>
    %694 = arith.addf %678, %687 : vector<2x32xf32>
    %695 = arith.negf %694 : vector<2x32xf32>
    %696 = math.exp %695 : vector<2x32xf32>
    %cst_308 = arith.constant 1.000000e+00 : f32
    %697 = vector.broadcast %cst_308 : f32 to vector<2x32xf32>
    %698 = arith.addf %697, %696 : vector<2x32xf32>
    %699 = arith.divf %697, %698 : vector<2x32xf32>
    %700 = arith.addf %681, %690 : vector<2x32xf32>
    %701 = arith.negf %700 : vector<2x32xf32>
    %702 = math.exp %701 : vector<2x32xf32>
    %cst_309 = arith.constant 1.000000e+00 : f32
    %703 = vector.broadcast %cst_309 : f32 to vector<2x32xf32>
    %704 = arith.addf %703, %702 : vector<2x32xf32>
    %705 = arith.divf %703, %704 : vector<2x32xf32>
    %706 = arith.mulf %699, %693 : vector<2x32xf32>
    %707 = arith.addf %684, %706 : vector<2x32xf32>
    %708 = math.tanh %707 : vector<2x32xf32>
    %cst_310 = arith.constant 1.000000e+00 : f32
    %709 = vector.broadcast %cst_310 : f32 to vector<2x32xf32>
    %710 = arith.subf %709, %705 : vector<2x32xf32>
    %711 = arith.mulf %710, %708 : vector<2x32xf32>
    %712 = arith.mulf %705, %628 : vector<2x32xf32>
    %713 = arith.addf %711, %712 : vector<2x32xf32>
    %714 = arith.index_cast %675 : i32 to index
    %c0_311 = arith.constant 0 : index
    %c0_312 = arith.constant 0 : index
    %715 = vector.load %arg27[%714, %c0_311, %c0_312] : memref<8x2x32xf32, #tpu.memory_space<vmem>>, vector<1x2x32xf32>
    %716 = vector.shape_cast %715 : vector<1x2x32xf32> to vector<2x32xf32>
    %717 = arith.index_cast %675 : i32 to index
    %c0_313 = arith.constant 0 : index
    %c0_314 = arith.constant 0 : index
    %718 = vector.load %arg28[%717, %c0_313, %c0_314] : memref<8x2x32xf32, #tpu.memory_space<vmem>>, vector<1x2x32xf32>
    %719 = vector.shape_cast %718 : vector<1x2x32xf32> to vector<2x32xf32>
    %720 = arith.index_cast %675 : i32 to index
    %c0_315 = arith.constant 0 : index
    %c0_316 = arith.constant 0 : index
    %721 = vector.load %arg29[%720, %c0_315, %c0_316] : memref<8x2x32xf32, #tpu.memory_space<vmem>>, vector<1x2x32xf32>
    %722 = vector.shape_cast %721 : vector<1x2x32xf32> to vector<2x32xf32>
    %cst_317 = arith.constant dense<0.000000e+00> : vector<2x32xf32>
    %723 = tpu.matmul %666, %69, %cst_317 {dimension_numbers = #tpu.dot_dimension_numbers<[1], [0], [0], [1], [0, 0, 1, 1], [], []>} : vector<2x32xf32>, vector<32x32xf32>, vector<2x32xf32> -> vector<2x32xf32>
    %724 = vector.broadcast %75 : vector<1x32xf32> to vector<2x32xf32>
    %725 = arith.addf %723, %724 : vector<2x32xf32>
    %cst_318 = arith.constant dense<0.000000e+00> : vector<2x32xf32>
    %726 = tpu.matmul %666, %71, %cst_318 {dimension_numbers = #tpu.dot_dimension_numbers<[1], [0], [0], [1], [0, 0, 1, 1], [], []>} : vector<2x32xf32>, vector<32x32xf32>, vector<2x32xf32> -> vector<2x32xf32>
    %727 = vector.broadcast %77 : vector<1x32xf32> to vector<2x32xf32>
    %728 = arith.addf %726, %727 : vector<2x32xf32>
    %cst_319 = arith.constant dense<0.000000e+00> : vector<2x32xf32>
    %729 = tpu.matmul %666, %73, %cst_319 {dimension_numbers = #tpu.dot_dimension_numbers<[1], [0], [0], [1], [0, 0, 1, 1], [], []>} : vector<2x32xf32>, vector<32x32xf32>, vector<2x32xf32> -> vector<2x32xf32>
    %730 = vector.broadcast %79 : vector<1x32xf32> to vector<2x32xf32>
    %731 = arith.addf %729, %730 : vector<2x32xf32>
    %732 = arith.addf %716, %725 : vector<2x32xf32>
    %733 = arith.negf %732 : vector<2x32xf32>
    %734 = math.exp %733 : vector<2x32xf32>
    %cst_320 = arith.constant 1.000000e+00 : f32
    %735 = vector.broadcast %cst_320 : f32 to vector<2x32xf32>
    %736 = arith.addf %735, %734 : vector<2x32xf32>
    %737 = arith.divf %735, %736 : vector<2x32xf32>
    %738 = arith.addf %719, %728 : vector<2x32xf32>
    %739 = arith.negf %738 : vector<2x32xf32>
    %740 = math.exp %739 : vector<2x32xf32>
    %cst_321 = arith.constant 1.000000e+00 : f32
    %741 = vector.broadcast %cst_321 : f32 to vector<2x32xf32>
    %742 = arith.addf %741, %740 : vector<2x32xf32>
    %743 = arith.divf %741, %742 : vector<2x32xf32>
    %744 = arith.mulf %737, %731 : vector<2x32xf32>
    %745 = arith.addf %722, %744 : vector<2x32xf32>
    %746 = math.tanh %745 : vector<2x32xf32>
    %cst_322 = arith.constant 1.000000e+00 : f32
    %747 = vector.broadcast %cst_322 : f32 to vector<2x32xf32>
    %748 = arith.subf %747, %743 : vector<2x32xf32>
    %749 = arith.mulf %748, %746 : vector<2x32xf32>
    %750 = arith.mulf %743, %666 : vector<2x32xf32>
    %751 = arith.addf %749, %750 : vector<2x32xf32>
    %752 = arith.index_cast %c7_i32_297 : i32 to index
    %c0_323 = arith.constant 0 : index
    %c0_324 = arith.constant 0 : index
    %753 = vector.load %arg22[%752, %c0_323, %c0_324] : memref<8x2x32xf32, #tpu.memory_space<vmem>>, vector<1x2x32xf32>
    %754 = vector.shape_cast %753 : vector<1x2x32xf32> to vector<2x32xf32>
    %755 = vector.shape_cast %713 : vector<2x32xf32> to vector<1x2x32xf32>
    tpu.vector_store %arg22[%752, %c0_323, %c0_324], %755 {strides = array<i32>} : memref<8x2x32xf32, #tpu.memory_space<vmem>>, vector<1x2x32xf32>,
    %756 = arith.index_cast %675 : i32 to index
    %c0_325 = arith.constant 0 : index
    %c0_326 = arith.constant 0 : index
    %757 = vector.load %arg23[%756, %c0_325, %c0_326] : memref<8x2x32xf32, #tpu.memory_space<vmem>>, vector<1x2x32xf32>
    %758 = vector.shape_cast %757 : vector<1x2x32xf32> to vector<2x32xf32>
    %759 = vector.shape_cast %751 : vector<2x32xf32> to vector<1x2x32xf32>
    tpu.vector_store %arg23[%756, %c0_325, %c0_326], %759 {strides = array<i32>} : memref<8x2x32xf32, #tpu.memory_space<vmem>>, vector<1x2x32xf32>,
    %c8_i32 = arith.constant 8 : i32
    %c0_327 = arith.constant 0 : index
    %c0_328 = arith.constant 0 : index
    %c0_329 = arith.constant 0 : index
    %760 = vector.load %arg22[%c0_327, %c0_328, %c0_329] : memref<8x2x32xf32, #tpu.memory_space<vmem>>, vector<8x2x32xf32>
    %761 = vector.shape_cast %760 : vector<8x2x32xf32> to vector<16x32xf32>
    %762 = arith.truncf %761 : vector<16x32xf32> to vector<16x32xbf16>
    %c0_330 = arith.constant 0 : index
    %c0_331 = arith.constant 0 : index
    %c0_332 = arith.constant 0 : index
    %763 = vector.load %arg23[%c0_330, %c0_331, %c0_332] : memref<8x2x32xf32, #tpu.memory_space<vmem>>, vector<8x2x32xf32>
    %764 = vector.shape_cast %763 : vector<8x2x32xf32> to vector<16x32xf32>
    %765 = arith.truncf %764 : vector<16x32xf32> to vector<16x32xbf16>
    %c7 = arith.constant 7 : index
    %c0_333 = arith.constant 0 : index
    %c0_334 = arith.constant 0 : index
    %766 = vector.load %arg22[%c7, %c0_333, %c0_334] : memref<8x2x32xf32, #tpu.memory_space<vmem>>, vector<1x2x32xf32>
    %767 = vector.shape_cast %766 : vector<1x2x32xf32> to vector<2x32xf32>
    %768 = arith.truncf %767 : vector<2x32xf32> to vector<2x32xbf16>
    %c7_335 = arith.constant 7 : index
    %c0_336 = arith.constant 0 : index
    %c0_337 = arith.constant 0 : index
    %769 = vector.load %arg23[%c7_335, %c0_336, %c0_337] : memref<8x2x32xf32, #tpu.memory_space<vmem>>, vector<1x2x32xf32>
    %770 = vector.shape_cast %769 : vector<1x2x32xf32> to vector<2x32xf32>
    %771 = arith.truncf %770 : vector<2x32xf32> to vector<2x32xbf16>
    %c0_338 = arith.constant 0 : index
    %c0_339 = arith.constant 0 : index
    %c0_340 = arith.constant 0 : index
    %772 = vector.load %arg9[%c0_338, %c0_339, %c0_340] : memref<3x64x32xbf16, #tpu.memory_space<vmem>>, vector<1x64x32xbf16>
    %773 = vector.shape_cast %772 : vector<1x64x32xbf16> to vector<64x32xbf16>
    %c0_341 = arith.constant 0 : index
    %c0_342 = arith.constant 0 : index
    %c0_343 = arith.constant 0 : index
    %774 = vector.load %arg11[%c0_341, %c0_342, %c0_343] : memref<3x1x32xf32, #tpu.memory_space<vmem>>, vector<1x1x32xf32>
    %775 = vector.shape_cast %774 : vector<1x1x32xf32> to vector<1x32xf32>
    %776 = vector.extract_strided_slice %773 {offsets = [0, 0], sizes = [32, 32], strides = [1, 1]} : vector<64x32xbf16> to vector<32x32xbf16>
    %cst_344 = arith.constant dense<0.000000e+00> : vector<16x32xf32>
    %777 = tpu.matmul %762, %776, %cst_344 {dimension_numbers = #tpu.dot_dimension_numbers<[1], [0], [0], [1], [0, 0, 1, 1], [], []>} : vector<16x32xbf16>, vector<32x32xbf16>, vector<16x32xf32> -> vector<16x32xf32>
    %778 = vector.broadcast %775 : vector<1x32xf32> to vector<16x32xf32>
    %779 = arith.addf %778, %777 : vector<16x32xf32>
    %780 = vector.extract_strided_slice %773 {offsets = [32, 0], sizes = [32, 32], strides = [1, 1]} : vector<64x32xbf16> to vector<32x32xbf16>
    %cst_345 = arith.constant dense<0.000000e+00> : vector<16x32xf32>
    %781 = tpu.matmul %765, %780, %cst_345 {dimension_numbers = #tpu.dot_dimension_numbers<[1], [0], [0], [1], [0, 0, 1, 1], [], []>} : vector<16x32xbf16>, vector<32x32xbf16>, vector<16x32xf32> -> vector<16x32xf32>
    %782 = arith.addf %779, %781 : vector<16x32xf32>
    %783 = vector.shape_cast %782 : vector<16x32xf32> to vector<8x2x32xf32>
    %c0_346 = arith.constant 0 : index
    %c0_347 = arith.constant 0 : index
    %c0_348 = arith.constant 0 : index
    %784 = vector.load %arg24[%c0_346, %c0_347, %c0_348] : memref<8x2x32xf32, #tpu.memory_space<vmem>>, vector<8x2x32xf32>
    tpu.vector_store %arg24[%c0_346, %c0_347, %c0_348], %783 {strides = array<i32>} : memref<8x2x32xf32, #tpu.memory_space<vmem>>, vector<8x2x32xf32>,
    %c1_349 = arith.constant 1 : index
    %c0_350 = arith.constant 0 : index
    %c0_351 = arith.constant 0 : index
    %785 = vector.load %arg9[%c1_349, %c0_350, %c0_351] : memref<3x64x32xbf16, #tpu.memory_space<vmem>>, vector<1x64x32xbf16>
    %786 = vector.shape_cast %785 : vector<1x64x32xbf16> to vector<64x32xbf16>
    %c1_352 = arith.constant 1 : index
    %c0_353 = arith.constant 0 : index
    %c0_354 = arith.constant 0 : index
    %787 = vector.load %arg11[%c1_352, %c0_353, %c0_354] : memref<3x1x32xf32, #tpu.memory_space<vmem>>, vector<1x1x32xf32>
    %788 = vector.shape_cast %787 : vector<1x1x32xf32> to vector<1x32xf32>
    %789 = vector.extract_strided_slice %786 {offsets = [0, 0], sizes = [32, 32], strides = [1, 1]} : vector<64x32xbf16> to vector<32x32xbf16>
    %cst_355 = arith.constant dense<0.000000e+00> : vector<16x32xf32>
    %790 = tpu.matmul %762, %789, %cst_355 {dimension_numbers = #tpu.dot_dimension_numbers<[1], [0], [0], [1], [0, 0, 1, 1], [], []>} : vector<16x32xbf16>, vector<32x32xbf16>, vector<16x32xf32> -> vector<16x32xf32>
    %791 = vector.broadcast %788 : vector<1x32xf32> to vector<16x32xf32>
    %792 = arith.addf %791, %790 : vector<16x32xf32>
    %793 = vector.extract_strided_slice %786 {offsets = [32, 0], sizes = [32, 32], strides = [1, 1]} : vector<64x32xbf16> to vector<32x32xbf16>
    %cst_356 = arith.constant dense<0.000000e+00> : vector<16x32xf32>
    %794 = tpu.matmul %765, %793, %cst_356 {dimension_numbers = #tpu.dot_dimension_numbers<[1], [0], [0], [1], [0, 0, 1, 1], [], []>} : vector<16x32xbf16>, vector<32x32xbf16>, vector<16x32xf32> -> vector<16x32xf32>
    %795 = arith.addf %792, %794 : vector<16x32xf32>
    %796 = vector.shape_cast %795 : vector<16x32xf32> to vector<8x2x32xf32>
    %c0_357 = arith.constant 0 : index
    %c0_358 = arith.constant 0 : index
    %c0_359 = arith.constant 0 : index
    %797 = vector.load %arg25[%c0_357, %c0_358, %c0_359] : memref<8x2x32xf32, #tpu.memory_space<vmem>>, vector<8x2x32xf32>
    tpu.vector_store %arg25[%c0_357, %c0_358, %c0_359], %796 {strides = array<i32>} : memref<8x2x32xf32, #tpu.memory_space<vmem>>, vector<8x2x32xf32>,
    %c2_360 = arith.constant 2 : index
    %c0_361 = arith.constant 0 : index
    %c0_362 = arith.constant 0 : index
    %798 = vector.load %arg9[%c2_360, %c0_361, %c0_362] : memref<3x64x32xbf16, #tpu.memory_space<vmem>>, vector<1x64x32xbf16>
    %799 = vector.shape_cast %798 : vector<1x64x32xbf16> to vector<64x32xbf16>
    %c2_363 = arith.constant 2 : index
    %c0_364 = arith.constant 0 : index
    %c0_365 = arith.constant 0 : index
    %800 = vector.load %arg11[%c2_363, %c0_364, %c0_365] : memref<3x1x32xf32, #tpu.memory_space<vmem>>, vector<1x1x32xf32>
    %801 = vector.shape_cast %800 : vector<1x1x32xf32> to vector<1x32xf32>
    %802 = vector.extract_strided_slice %799 {offsets = [0, 0], sizes = [32, 32], strides = [1, 1]} : vector<64x32xbf16> to vector<32x32xbf16>
    %cst_366 = arith.constant dense<0.000000e+00> : vector<16x32xf32>
    %803 = tpu.matmul %762, %802, %cst_366 {dimension_numbers = #tpu.dot_dimension_numbers<[1], [0], [0], [1], [0, 0, 1, 1], [], []>} : vector<16x32xbf16>, vector<32x32xbf16>, vector<16x32xf32> -> vector<16x32xf32>
    %804 = vector.broadcast %801 : vector<1x32xf32> to vector<16x32xf32>
    %805 = arith.addf %804, %803 : vector<16x32xf32>
    %806 = vector.extract_strided_slice %799 {offsets = [32, 0], sizes = [32, 32], strides = [1, 1]} : vector<64x32xbf16> to vector<32x32xbf16>
    %cst_367 = arith.constant dense<0.000000e+00> : vector<16x32xf32>
    %807 = tpu.matmul %765, %806, %cst_367 {dimension_numbers = #tpu.dot_dimension_numbers<[1], [0], [0], [1], [0, 0, 1, 1], [], []>} : vector<16x32xbf16>, vector<32x32xbf16>, vector<16x32xf32> -> vector<16x32xf32>
    %808 = arith.addf %805, %807 : vector<16x32xf32>
    %809 = vector.shape_cast %808 : vector<16x32xf32> to vector<8x2x32xf32>
    %c0_368 = arith.constant 0 : index
    %c0_369 = arith.constant 0 : index
    %c0_370 = arith.constant 0 : index
    %810 = vector.load %arg26[%c0_368, %c0_369, %c0_370] : memref<8x2x32xf32, #tpu.memory_space<vmem>>, vector<8x2x32xf32>
    tpu.vector_store %arg26[%c0_368, %c0_369, %c0_370], %809 {strides = array<i32>} : memref<8x2x32xf32, #tpu.memory_space<vmem>>, vector<8x2x32xf32>,
    %c0_371 = arith.constant 0 : index
    %c0_372 = arith.constant 0 : index
    %c0_373 = arith.constant 0 : index
    %811 = vector.load %arg10[%c0_371, %c0_372, %c0_373] : memref<3x32x32xf32, #tpu.memory_space<vmem>>, vector<1x32x32xf32>
    %812 = vector.shape_cast %811 : vector<1x32x32xf32> to vector<32x32xf32>
    %c1_374 = arith.constant 1 : index
    %c0_375 = arith.constant 0 : index
    %c0_376 = arith.constant 0 : index
    %813 = vector.load %arg10[%c1_374, %c0_375, %c0_376] : memref<3x32x32xf32, #tpu.memory_space<vmem>>, vector<1x32x32xf32>
    %814 = vector.shape_cast %813 : vector<1x32x32xf32> to vector<32x32xf32>
    %c2_377 = arith.constant 2 : index
    %c0_378 = arith.constant 0 : index
    %c0_379 = arith.constant 0 : index
    %815 = vector.load %arg10[%c2_377, %c0_378, %c0_379] : memref<3x32x32xf32, #tpu.memory_space<vmem>>, vector<1x32x32xf32>
    %816 = vector.shape_cast %815 : vector<1x32x32xf32> to vector<32x32xf32>
    %c0_380 = arith.constant 0 : index
    %c0_381 = arith.constant 0 : index
    %c0_382 = arith.constant 0 : index
    %817 = vector.load %arg12[%c0_380, %c0_381, %c0_382] : memref<3x1x32xf32, #tpu.memory_space<vmem>>, vector<1x1x32xf32>
    %818 = vector.shape_cast %817 : vector<1x1x32xf32> to vector<1x32xf32>
    %c1_383 = arith.constant 1 : index
    %c0_384 = arith.constant 0 : index
    %c0_385 = arith.constant 0 : index
    %819 = vector.load %arg12[%c1_383, %c0_384, %c0_385] : memref<3x1x32xf32, #tpu.memory_space<vmem>>, vector<1x1x32xf32>
    %820 = vector.shape_cast %819 : vector<1x1x32xf32> to vector<1x32xf32>
    %c2_386 = arith.constant 2 : index
    %c0_387 = arith.constant 0 : index
    %c0_388 = arith.constant 0 : index
    %821 = vector.load %arg12[%c2_386, %c0_387, %c0_388] : memref<3x1x32xf32, #tpu.memory_space<vmem>>, vector<1x1x32xf32>
    %822 = vector.shape_cast %821 : vector<1x1x32xf32> to vector<1x32xf32>
    %c0_i32_389 = arith.constant 0 : i32
    %823 = arith.index_cast %c0_i32_389 : i32 to index
    %c0_390 = arith.constant 0 : index
    %c0_391 = arith.constant 0 : index
    %824 = vector.load %arg24[%823, %c0_390, %c0_391] : memref<8x2x32xf32, #tpu.memory_space<vmem>>, vector<1x2x32xf32>
    %825 = vector.shape_cast %824 : vector<1x2x32xf32> to vector<2x32xf32>
    %826 = arith.index_cast %c0_i32_389 : i32 to index
    %c0_392 = arith.constant 0 : index
    %c0_393 = arith.constant 0 : index
    %827 = vector.load %arg25[%826, %c0_392, %c0_393] : memref<8x2x32xf32, #tpu.memory_space<vmem>>, vector<1x2x32xf32>
    %828 = vector.shape_cast %827 : vector<1x2x32xf32> to vector<2x32xf32>
    %829 = arith.index_cast %c0_i32_389 : i32 to index
    %c0_394 = arith.constant 0 : index
    %c0_395 = arith.constant 0 : index
    %830 = vector.load %arg26[%829, %c0_394, %c0_395] : memref<8x2x32xf32, #tpu.memory_space<vmem>>, vector<1x2x32xf32>
    %831 = vector.shape_cast %830 : vector<1x2x32xf32> to vector<2x32xf32>
    %cst_396 = arith.constant dense<0.000000e+00> : vector<2x32xf32>
    %832 = tpu.matmul %0, %812, %cst_396 {dimension_numbers = #tpu.dot_dimension_numbers<[1], [0], [0], [1], [0, 0, 1, 1], [], []>} : vector<2x32xf32>, vector<32x32xf32>, vector<2x32xf32> -> vector<2x32xf32>
    %833 = vector.broadcast %818 : vector<1x32xf32> to vector<2x32xf32>
    %834 = arith.addf %832, %833 : vector<2x32xf32>
    %cst_397 = arith.constant dense<0.000000e+00> : vector<2x32xf32>
    %835 = tpu.matmul %0, %814, %cst_397 {dimension_numbers = #tpu.dot_dimension_numbers<[1], [0], [0], [1], [0, 0, 1, 1], [], []>} : vector<2x32xf32>, vector<32x32xf32>, vector<2x32xf32> -> vector<2x32xf32>
    %836 = vector.broadcast %820 : vector<1x32xf32> to vector<2x32xf32>
    %837 = arith.addf %835, %836 : vector<2x32xf32>
    %cst_398 = arith.constant dense<0.000000e+00> : vector<2x32xf32>
    %838 = tpu.matmul %0, %816, %cst_398 {dimension_numbers = #tpu.dot_dimension_numbers<[1], [0], [0], [1], [0, 0, 1, 1], [], []>} : vector<2x32xf32>, vector<32x32xf32>, vector<2x32xf32> -> vector<2x32xf32>
    %839 = vector.broadcast %822 : vector<1x32xf32> to vector<2x32xf32>
    %840 = arith.addf %838, %839 : vector<2x32xf32>
    %841 = arith.addf %825, %834 : vector<2x32xf32>
    %842 = arith.negf %841 : vector<2x32xf32>
    %843 = math.exp %842 : vector<2x32xf32>
    %cst_399 = arith.constant 1.000000e+00 : f32
    %844 = vector.broadcast %cst_399 : f32 to vector<2x32xf32>
    %845 = arith.addf %844, %843 : vector<2x32xf32>
    %846 = arith.divf %844, %845 : vector<2x32xf32>
    %847 = arith.addf %828, %837 : vector<2x32xf32>
    %848 = arith.negf %847 : vector<2x32xf32>
    %849 = math.exp %848 : vector<2x32xf32>
    %cst_400 = arith.constant 1.000000e+00 : f32
    %850 = vector.broadcast %cst_400 : f32 to vector<2x32xf32>
    %851 = arith.addf %850, %849 : vector<2x32xf32>
    %852 = arith.divf %850, %851 : vector<2x32xf32>
    %853 = arith.mulf %846, %840 : vector<2x32xf32>
    %854 = arith.addf %831, %853 : vector<2x32xf32>
    %855 = math.tanh %854 : vector<2x32xf32>
    %cst_401 = arith.constant 1.000000e+00 : f32
    %856 = vector.broadcast %cst_401 : f32 to vector<2x32xf32>
    %857 = arith.subf %856, %852 : vector<2x32xf32>
    %858 = arith.mulf %857, %855 : vector<2x32xf32>
    %859 = arith.mulf %852, %0 : vector<2x32xf32>
    %860 = arith.addf %858, %859 : vector<2x32xf32>
    %c1_i32_402 = arith.constant 1 : i32
    %861 = arith.index_cast %c1_i32_402 : i32 to index
    %c0_403 = arith.constant 0 : index
    %c0_404 = arith.constant 0 : index
    %862 = vector.load %arg24[%861, %c0_403, %c0_404] : memref<8x2x32xf32, #tpu.memory_space<vmem>>, vector<1x2x32xf32>
    %863 = vector.shape_cast %862 : vector<1x2x32xf32> to vector<2x32xf32>
    %864 = arith.index_cast %c1_i32_402 : i32 to index
    %c0_405 = arith.constant 0 : index
    %c0_406 = arith.constant 0 : index
    %865 = vector.load %arg25[%864, %c0_405, %c0_406] : memref<8x2x32xf32, #tpu.memory_space<vmem>>, vector<1x2x32xf32>
    %866 = vector.shape_cast %865 : vector<1x2x32xf32> to vector<2x32xf32>
    %867 = arith.index_cast %c1_i32_402 : i32 to index
    %c0_407 = arith.constant 0 : index
    %c0_408 = arith.constant 0 : index
    %868 = vector.load %arg26[%867, %c0_407, %c0_408] : memref<8x2x32xf32, #tpu.memory_space<vmem>>, vector<1x2x32xf32>
    %869 = vector.shape_cast %868 : vector<1x2x32xf32> to vector<2x32xf32>
    %cst_409 = arith.constant dense<0.000000e+00> : vector<2x32xf32>
    %870 = tpu.matmul %860, %812, %cst_409 {dimension_numbers = #tpu.dot_dimension_numbers<[1], [0], [0], [1], [0, 0, 1, 1], [], []>} : vector<2x32xf32>, vector<32x32xf32>, vector<2x32xf32> -> vector<2x32xf32>
    %871 = vector.broadcast %818 : vector<1x32xf32> to vector<2x32xf32>
    %872 = arith.addf %870, %871 : vector<2x32xf32>
    %cst_410 = arith.constant dense<0.000000e+00> : vector<2x32xf32>
    %873 = tpu.matmul %860, %814, %cst_410 {dimension_numbers = #tpu.dot_dimension_numbers<[1], [0], [0], [1], [0, 0, 1, 1], [], []>} : vector<2x32xf32>, vector<32x32xf32>, vector<2x32xf32> -> vector<2x32xf32>
    %874 = vector.broadcast %820 : vector<1x32xf32> to vector<2x32xf32>
    %875 = arith.addf %873, %874 : vector<2x32xf32>
    %cst_411 = arith.constant dense<0.000000e+00> : vector<2x32xf32>
    %876 = tpu.matmul %860, %816, %cst_411 {dimension_numbers = #tpu.dot_dimension_numbers<[1], [0], [0], [1], [0, 0, 1, 1], [], []>} : vector<2x32xf32>, vector<32x32xf32>, vector<2x32xf32> -> vector<2x32xf32>
    %877 = vector.broadcast %822 : vector<1x32xf32> to vector<2x32xf32>
    %878 = arith.addf %876, %877 : vector<2x32xf32>
    %879 = arith.addf %863, %872 : vector<2x32xf32>
    %880 = arith.negf %879 : vector<2x32xf32>
    %881 = math.exp %880 : vector<2x32xf32>
    %cst_412 = arith.constant 1.000000e+00 : f32
    %882 = vector.broadcast %cst_412 : f32 to vector<2x32xf32>
    %883 = arith.addf %882, %881 : vector<2x32xf32>
    %884 = arith.divf %882, %883 : vector<2x32xf32>
    %885 = arith.addf %866, %875 : vector<2x32xf32>
    %886 = arith.negf %885 : vector<2x32xf32>
    %887 = math.exp %886 : vector<2x32xf32>
    %cst_413 = arith.constant 1.000000e+00 : f32
    %888 = vector.broadcast %cst_413 : f32 to vector<2x32xf32>
    %889 = arith.addf %888, %887 : vector<2x32xf32>
    %890 = arith.divf %888, %889 : vector<2x32xf32>
    %891 = arith.mulf %884, %878 : vector<2x32xf32>
    %892 = arith.addf %869, %891 : vector<2x32xf32>
    %893 = math.tanh %892 : vector<2x32xf32>
    %cst_414 = arith.constant 1.000000e+00 : f32
    %894 = vector.broadcast %cst_414 : f32 to vector<2x32xf32>
    %895 = arith.subf %894, %890 : vector<2x32xf32>
    %896 = arith.mulf %895, %893 : vector<2x32xf32>
    %897 = arith.mulf %890, %860 : vector<2x32xf32>
    %898 = arith.addf %896, %897 : vector<2x32xf32>
    %c2_i32_415 = arith.constant 2 : i32
    %899 = arith.index_cast %c2_i32_415 : i32 to index
    %c0_416 = arith.constant 0 : index
    %c0_417 = arith.constant 0 : index
    %900 = vector.load %arg24[%899, %c0_416, %c0_417] : memref<8x2x32xf32, #tpu.memory_space<vmem>>, vector<1x2x32xf32>
    %901 = vector.shape_cast %900 : vector<1x2x32xf32> to vector<2x32xf32>
    %902 = arith.index_cast %c2_i32_415 : i32 to index
    %c0_418 = arith.constant 0 : index
    %c0_419 = arith.constant 0 : index
    %903 = vector.load %arg25[%902, %c0_418, %c0_419] : memref<8x2x32xf32, #tpu.memory_space<vmem>>, vector<1x2x32xf32>
    %904 = vector.shape_cast %903 : vector<1x2x32xf32> to vector<2x32xf32>
    %905 = arith.index_cast %c2_i32_415 : i32 to index
    %c0_420 = arith.constant 0 : index
    %c0_421 = arith.constant 0 : index
    %906 = vector.load %arg26[%905, %c0_420, %c0_421] : memref<8x2x32xf32, #tpu.memory_space<vmem>>, vector<1x2x32xf32>
    %907 = vector.shape_cast %906 : vector<1x2x32xf32> to vector<2x32xf32>
    %cst_422 = arith.constant dense<0.000000e+00> : vector<2x32xf32>
    %908 = tpu.matmul %898, %812, %cst_422 {dimension_numbers = #tpu.dot_dimension_numbers<[1], [0], [0], [1], [0, 0, 1, 1], [], []>} : vector<2x32xf32>, vector<32x32xf32>, vector<2x32xf32> -> vector<2x32xf32>
    %909 = vector.broadcast %818 : vector<1x32xf32> to vector<2x32xf32>
    %910 = arith.addf %908, %909 : vector<2x32xf32>
    %cst_423 = arith.constant dense<0.000000e+00> : vector<2x32xf32>
    %911 = tpu.matmul %898, %814, %cst_423 {dimension_numbers = #tpu.dot_dimension_numbers<[1], [0], [0], [1], [0, 0, 1, 1], [], []>} : vector<2x32xf32>, vector<32x32xf32>, vector<2x32xf32> -> vector<2x32xf32>
    %912 = vector.broadcast %820 : vector<1x32xf32> to vector<2x32xf32>
    %913 = arith.addf %911, %912 : vector<2x32xf32>
    %cst_424 = arith.constant dense<0.000000e+00> : vector<2x32xf32>
    %914 = tpu.matmul %898, %816, %cst_424 {dimension_numbers = #tpu.dot_dimension_numbers<[1], [0], [0], [1], [0, 0, 1, 1], [], []>} : vector<2x32xf32>, vector<32x32xf32>, vector<2x32xf32> -> vector<2x32xf32>
    %915 = vector.broadcast %822 : vector<1x32xf32> to vector<2x32xf32>
    %916 = arith.addf %914, %915 : vector<2x32xf32>
    %917 = arith.addf %901, %910 : vector<2x32xf32>
    %918 = arith.negf %917 : vector<2x32xf32>
    %919 = math.exp %918 : vector<2x32xf32>
    %cst_425 = arith.constant 1.000000e+00 : f32
    %920 = vector.broadcast %cst_425 : f32 to vector<2x32xf32>
    %921 = arith.addf %920, %919 : vector<2x32xf32>
    %922 = arith.divf %920, %921 : vector<2x32xf32>
    %923 = arith.addf %904, %913 : vector<2x32xf32>
    %924 = arith.negf %923 : vector<2x32xf32>
    %925 = math.exp %924 : vector<2x32xf32>
    %cst_426 = arith.constant 1.000000e+00 : f32
    %926 = vector.broadcast %cst_426 : f32 to vector<2x32xf32>
    %927 = arith.addf %926, %925 : vector<2x32xf32>
    %928 = arith.divf %926, %927 : vector<2x32xf32>
    %929 = arith.mulf %922, %916 : vector<2x32xf32>
    %930 = arith.addf %907, %929 : vector<2x32xf32>
    %931 = math.tanh %930 : vector<2x32xf32>
    %cst_427 = arith.constant 1.000000e+00 : f32
    %932 = vector.broadcast %cst_427 : f32 to vector<2x32xf32>
    %933 = arith.subf %932, %928 : vector<2x32xf32>
    %934 = arith.mulf %933, %931 : vector<2x32xf32>
    %935 = arith.mulf %928, %898 : vector<2x32xf32>
    %936 = arith.addf %934, %935 : vector<2x32xf32>
    %c3_i32_428 = arith.constant 3 : i32
    %937 = arith.index_cast %c3_i32_428 : i32 to index
    %c0_429 = arith.constant 0 : index
    %c0_430 = arith.constant 0 : index
    %938 = vector.load %arg24[%937, %c0_429, %c0_430] : memref<8x2x32xf32, #tpu.memory_space<vmem>>, vector<1x2x32xf32>
    %939 = vector.shape_cast %938 : vector<1x2x32xf32> to vector<2x32xf32>
    %940 = arith.index_cast %c3_i32_428 : i32 to index
    %c0_431 = arith.constant 0 : index
    %c0_432 = arith.constant 0 : index
    %941 = vector.load %arg25[%940, %c0_431, %c0_432] : memref<8x2x32xf32, #tpu.memory_space<vmem>>, vector<1x2x32xf32>
    %942 = vector.shape_cast %941 : vector<1x2x32xf32> to vector<2x32xf32>
    %943 = arith.index_cast %c3_i32_428 : i32 to index
    %c0_433 = arith.constant 0 : index
    %c0_434 = arith.constant 0 : index
    %944 = vector.load %arg26[%943, %c0_433, %c0_434] : memref<8x2x32xf32, #tpu.memory_space<vmem>>, vector<1x2x32xf32>
    %945 = vector.shape_cast %944 : vector<1x2x32xf32> to vector<2x32xf32>
    %cst_435 = arith.constant dense<0.000000e+00> : vector<2x32xf32>
    %946 = tpu.matmul %936, %812, %cst_435 {dimension_numbers = #tpu.dot_dimension_numbers<[1], [0], [0], [1], [0, 0, 1, 1], [], []>} : vector<2x32xf32>, vector<32x32xf32>, vector<2x32xf32> -> vector<2x32xf32>
    %947 = vector.broadcast %818 : vector<1x32xf32> to vector<2x32xf32>
    %948 = arith.addf %946, %947 : vector<2x32xf32>
    %cst_436 = arith.constant dense<0.000000e+00> : vector<2x32xf32>
    %949 = tpu.matmul %936, %814, %cst_436 {dimension_numbers = #tpu.dot_dimension_numbers<[1], [0], [0], [1], [0, 0, 1, 1], [], []>} : vector<2x32xf32>, vector<32x32xf32>, vector<2x32xf32> -> vector<2x32xf32>
    %950 = vector.broadcast %820 : vector<1x32xf32> to vector<2x32xf32>
    %951 = arith.addf %949, %950 : vector<2x32xf32>
    %cst_437 = arith.constant dense<0.000000e+00> : vector<2x32xf32>
    %952 = tpu.matmul %936, %816, %cst_437 {dimension_numbers = #tpu.dot_dimension_numbers<[1], [0], [0], [1], [0, 0, 1, 1], [], []>} : vector<2x32xf32>, vector<32x32xf32>, vector<2x32xf32> -> vector<2x32xf32>
    %953 = vector.broadcast %822 : vector<1x32xf32> to vector<2x32xf32>
    %954 = arith.addf %952, %953 : vector<2x32xf32>
    %955 = arith.addf %939, %948 : vector<2x32xf32>
    %956 = arith.negf %955 : vector<2x32xf32>
    %957 = math.exp %956 : vector<2x32xf32>
    %cst_438 = arith.constant 1.000000e+00 : f32
    %958 = vector.broadcast %cst_438 : f32 to vector<2x32xf32>
    %959 = arith.addf %958, %957 : vector<2x32xf32>
    %960 = arith.divf %958, %959 : vector<2x32xf32>
    %961 = arith.addf %942, %951 : vector<2x32xf32>
    %962 = arith.negf %961 : vector<2x32xf32>
    %963 = math.exp %962 : vector<2x32xf32>
    %cst_439 = arith.constant 1.000000e+00 : f32
    %964 = vector.broadcast %cst_439 : f32 to vector<2x32xf32>
    %965 = arith.addf %964, %963 : vector<2x32xf32>
    %966 = arith.divf %964, %965 : vector<2x32xf32>
    %967 = arith.mulf %960, %954 : vector<2x32xf32>
    %968 = arith.addf %945, %967 : vector<2x32xf32>
    %969 = math.tanh %968 : vector<2x32xf32>
    %cst_440 = arith.constant 1.000000e+00 : f32
    %970 = vector.broadcast %cst_440 : f32 to vector<2x32xf32>
    %971 = arith.subf %970, %966 : vector<2x32xf32>
    %972 = arith.mulf %971, %969 : vector<2x32xf32>
    %973 = arith.mulf %966, %936 : vector<2x32xf32>
    %974 = arith.addf %972, %973 : vector<2x32xf32>
    %c4_i32_441 = arith.constant 4 : i32
    %975 = arith.index_cast %c4_i32_441 : i32 to index
    %c0_442 = arith.constant 0 : index
    %c0_443 = arith.constant 0 : index
    %976 = vector.load %arg24[%975, %c0_442, %c0_443] : memref<8x2x32xf32, #tpu.memory_space<vmem>>, vector<1x2x32xf32>
    %977 = vector.shape_cast %976 : vector<1x2x32xf32> to vector<2x32xf32>
    %978 = arith.index_cast %c4_i32_441 : i32 to index
    %c0_444 = arith.constant 0 : index
    %c0_445 = arith.constant 0 : index
    %979 = vector.load %arg25[%978, %c0_444, %c0_445] : memref<8x2x32xf32, #tpu.memory_space<vmem>>, vector<1x2x32xf32>
    %980 = vector.shape_cast %979 : vector<1x2x32xf32> to vector<2x32xf32>
    %981 = arith.index_cast %c4_i32_441 : i32 to index
    %c0_446 = arith.constant 0 : index
    %c0_447 = arith.constant 0 : index
    %982 = vector.load %arg26[%981, %c0_446, %c0_447] : memref<8x2x32xf32, #tpu.memory_space<vmem>>, vector<1x2x32xf32>
    %983 = vector.shape_cast %982 : vector<1x2x32xf32> to vector<2x32xf32>
    %cst_448 = arith.constant dense<0.000000e+00> : vector<2x32xf32>
    %984 = tpu.matmul %974, %812, %cst_448 {dimension_numbers = #tpu.dot_dimension_numbers<[1], [0], [0], [1], [0, 0, 1, 1], [], []>} : vector<2x32xf32>, vector<32x32xf32>, vector<2x32xf32> -> vector<2x32xf32>
    %985 = vector.broadcast %818 : vector<1x32xf32> to vector<2x32xf32>
    %986 = arith.addf %984, %985 : vector<2x32xf32>
    %cst_449 = arith.constant dense<0.000000e+00> : vector<2x32xf32>
    %987 = tpu.matmul %974, %814, %cst_449 {dimension_numbers = #tpu.dot_dimension_numbers<[1], [0], [0], [1], [0, 0, 1, 1], [], []>} : vector<2x32xf32>, vector<32x32xf32>, vector<2x32xf32> -> vector<2x32xf32>
    %988 = vector.broadcast %820 : vector<1x32xf32> to vector<2x32xf32>
    %989 = arith.addf %987, %988 : vector<2x32xf32>
    %cst_450 = arith.constant dense<0.000000e+00> : vector<2x32xf32>
    %990 = tpu.matmul %974, %816, %cst_450 {dimension_numbers = #tpu.dot_dimension_numbers<[1], [0], [0], [1], [0, 0, 1, 1], [], []>} : vector<2x32xf32>, vector<32x32xf32>, vector<2x32xf32> -> vector<2x32xf32>
    %991 = vector.broadcast %822 : vector<1x32xf32> to vector<2x32xf32>
    %992 = arith.addf %990, %991 : vector<2x32xf32>
    %993 = arith.addf %977, %986 : vector<2x32xf32>
    %994 = arith.negf %993 : vector<2x32xf32>
    %995 = math.exp %994 : vector<2x32xf32>
    %cst_451 = arith.constant 1.000000e+00 : f32
    %996 = vector.broadcast %cst_451 : f32 to vector<2x32xf32>
    %997 = arith.addf %996, %995 : vector<2x32xf32>
    %998 = arith.divf %996, %997 : vector<2x32xf32>
    %999 = arith.addf %980, %989 : vector<2x32xf32>
    %1000 = arith.negf %999 : vector<2x32xf32>
    %1001 = math.exp %1000 : vector<2x32xf32>
    %cst_452 = arith.constant 1.000000e+00 : f32
    %1002 = vector.broadcast %cst_452 : f32 to vector<2x32xf32>
    %1003 = arith.addf %1002, %1001 : vector<2x32xf32>
    %1004 = arith.divf %1002, %1003 : vector<2x32xf32>
    %1005 = arith.mulf %998, %992 : vector<2x32xf32>
    %1006 = arith.addf %983, %1005 : vector<2x32xf32>
    %1007 = math.tanh %1006 : vector<2x32xf32>
    %cst_453 = arith.constant 1.000000e+00 : f32
    %1008 = vector.broadcast %cst_453 : f32 to vector<2x32xf32>
    %1009 = arith.subf %1008, %1004 : vector<2x32xf32>
    %1010 = arith.mulf %1009, %1007 : vector<2x32xf32>
    %1011 = arith.mulf %1004, %974 : vector<2x32xf32>
    %1012 = arith.addf %1010, %1011 : vector<2x32xf32>
    %c5_i32_454 = arith.constant 5 : i32
    %1013 = arith.index_cast %c5_i32_454 : i32 to index
    %c0_455 = arith.constant 0 : index
    %c0_456 = arith.constant 0 : index
    %1014 = vector.load %arg24[%1013, %c0_455, %c0_456] : memref<8x2x32xf32, #tpu.memory_space<vmem>>, vector<1x2x32xf32>
    %1015 = vector.shape_cast %1014 : vector<1x2x32xf32> to vector<2x32xf32>
    %1016 = arith.index_cast %c5_i32_454 : i32 to index
    %c0_457 = arith.constant 0 : index
    %c0_458 = arith.constant 0 : index
    %1017 = vector.load %arg25[%1016, %c0_457, %c0_458] : memref<8x2x32xf32, #tpu.memory_space<vmem>>, vector<1x2x32xf32>
    %1018 = vector.shape_cast %1017 : vector<1x2x32xf32> to vector<2x32xf32>
    %1019 = arith.index_cast %c5_i32_454 : i32 to index
    %c0_459 = arith.constant 0 : index
    %c0_460 = arith.constant 0 : index
    %1020 = vector.load %arg26[%1019, %c0_459, %c0_460] : memref<8x2x32xf32, #tpu.memory_space<vmem>>, vector<1x2x32xf32>
    %1021 = vector.shape_cast %1020 : vector<1x2x32xf32> to vector<2x32xf32>
    %cst_461 = arith.constant dense<0.000000e+00> : vector<2x32xf32>
    %1022 = tpu.matmul %1012, %812, %cst_461 {dimension_numbers = #tpu.dot_dimension_numbers<[1], [0], [0], [1], [0, 0, 1, 1], [], []>} : vector<2x32xf32>, vector<32x32xf32>, vector<2x32xf32> -> vector<2x32xf32>
    %1023 = vector.broadcast %818 : vector<1x32xf32> to vector<2x32xf32>
    %1024 = arith.addf %1022, %1023 : vector<2x32xf32>
    %cst_462 = arith.constant dense<0.000000e+00> : vector<2x32xf32>
    %1025 = tpu.matmul %1012, %814, %cst_462 {dimension_numbers = #tpu.dot_dimension_numbers<[1], [0], [0], [1], [0, 0, 1, 1], [], []>} : vector<2x32xf32>, vector<32x32xf32>, vector<2x32xf32> -> vector<2x32xf32>
    %1026 = vector.broadcast %820 : vector<1x32xf32> to vector<2x32xf32>
    %1027 = arith.addf %1025, %1026 : vector<2x32xf32>
    %cst_463 = arith.constant dense<0.000000e+00> : vector<2x32xf32>
    %1028 = tpu.matmul %1012, %816, %cst_463 {dimension_numbers = #tpu.dot_dimension_numbers<[1], [0], [0], [1], [0, 0, 1, 1], [], []>} : vector<2x32xf32>, vector<32x32xf32>, vector<2x32xf32> -> vector<2x32xf32>
    %1029 = vector.broadcast %822 : vector<1x32xf32> to vector<2x32xf32>
    %1030 = arith.addf %1028, %1029 : vector<2x32xf32>
    %1031 = arith.addf %1015, %1024 : vector<2x32xf32>
    %1032 = arith.negf %1031 : vector<2x32xf32>
    %1033 = math.exp %1032 : vector<2x32xf32>
    %cst_464 = arith.constant 1.000000e+00 : f32
    %1034 = vector.broadcast %cst_464 : f32 to vector<2x32xf32>
    %1035 = arith.addf %1034, %1033 : vector<2x32xf32>
    %1036 = arith.divf %1034, %1035 : vector<2x32xf32>
    %1037 = arith.addf %1018, %1027 : vector<2x32xf32>
    %1038 = arith.negf %1037 : vector<2x32xf32>
    %1039 = math.exp %1038 : vector<2x32xf32>
    %cst_465 = arith.constant 1.000000e+00 : f32
    %1040 = vector.broadcast %cst_465 : f32 to vector<2x32xf32>
    %1041 = arith.addf %1040, %1039 : vector<2x32xf32>
    %1042 = arith.divf %1040, %1041 : vector<2x32xf32>
    %1043 = arith.mulf %1036, %1030 : vector<2x32xf32>
    %1044 = arith.addf %1021, %1043 : vector<2x32xf32>
    %1045 = math.tanh %1044 : vector<2x32xf32>
    %cst_466 = arith.constant 1.000000e+00 : f32
    %1046 = vector.broadcast %cst_466 : f32 to vector<2x32xf32>
    %1047 = arith.subf %1046, %1042 : vector<2x32xf32>
    %1048 = arith.mulf %1047, %1045 : vector<2x32xf32>
    %1049 = arith.mulf %1042, %1012 : vector<2x32xf32>
    %1050 = arith.addf %1048, %1049 : vector<2x32xf32>
    %c6_i32_467 = arith.constant 6 : i32
    %1051 = arith.index_cast %c6_i32_467 : i32 to index
    %c0_468 = arith.constant 0 : index
    %c0_469 = arith.constant 0 : index
    %1052 = vector.load %arg24[%1051, %c0_468, %c0_469] : memref<8x2x32xf32, #tpu.memory_space<vmem>>, vector<1x2x32xf32>
    %1053 = vector.shape_cast %1052 : vector<1x2x32xf32> to vector<2x32xf32>
    %1054 = arith.index_cast %c6_i32_467 : i32 to index
    %c0_470 = arith.constant 0 : index
    %c0_471 = arith.constant 0 : index
    %1055 = vector.load %arg25[%1054, %c0_470, %c0_471] : memref<8x2x32xf32, #tpu.memory_space<vmem>>, vector<1x2x32xf32>
    %1056 = vector.shape_cast %1055 : vector<1x2x32xf32> to vector<2x32xf32>
    %1057 = arith.index_cast %c6_i32_467 : i32 to index
    %c0_472 = arith.constant 0 : index
    %c0_473 = arith.constant 0 : index
    %1058 = vector.load %arg26[%1057, %c0_472, %c0_473] : memref<8x2x32xf32, #tpu.memory_space<vmem>>, vector<1x2x32xf32>
    %1059 = vector.shape_cast %1058 : vector<1x2x32xf32> to vector<2x32xf32>
    %cst_474 = arith.constant dense<0.000000e+00> : vector<2x32xf32>
    %1060 = tpu.matmul %1050, %812, %cst_474 {dimension_numbers = #tpu.dot_dimension_numbers<[1], [0], [0], [1], [0, 0, 1, 1], [], []>} : vector<2x32xf32>, vector<32x32xf32>, vector<2x32xf32> -> vector<2x32xf32>
    %1061 = vector.broadcast %818 : vector<1x32xf32> to vector<2x32xf32>
    %1062 = arith.addf %1060, %1061 : vector<2x32xf32>
    %cst_475 = arith.constant dense<0.000000e+00> : vector<2x32xf32>
    %1063 = tpu.matmul %1050, %814, %cst_475 {dimension_numbers = #tpu.dot_dimension_numbers<[1], [0], [0], [1], [0, 0, 1, 1], [], []>} : vector<2x32xf32>, vector<32x32xf32>, vector<2x32xf32> -> vector<2x32xf32>
    %1064 = vector.broadcast %820 : vector<1x32xf32> to vector<2x32xf32>
    %1065 = arith.addf %1063, %1064 : vector<2x32xf32>
    %cst_476 = arith.constant dense<0.000000e+00> : vector<2x32xf32>
    %1066 = tpu.matmul %1050, %816, %cst_476 {dimension_numbers = #tpu.dot_dimension_numbers<[1], [0], [0], [1], [0, 0, 1, 1], [], []>} : vector<2x32xf32>, vector<32x32xf32>, vector<2x32xf32> -> vector<2x32xf32>
    %1067 = vector.broadcast %822 : vector<1x32xf32> to vector<2x32xf32>
    %1068 = arith.addf %1066, %1067 : vector<2x32xf32>
    %1069 = arith.addf %1053, %1062 : vector<2x32xf32>
    %1070 = arith.negf %1069 : vector<2x32xf32>
    %1071 = math.exp %1070 : vector<2x32xf32>
    %cst_477 = arith.constant 1.000000e+00 : f32
    %1072 = vector.broadcast %cst_477 : f32 to vector<2x32xf32>
    %1073 = arith.addf %1072, %1071 : vector<2x32xf32>
    %1074 = arith.divf %1072, %1073 : vector<2x32xf32>
    %1075 = arith.addf %1056, %1065 : vector<2x32xf32>
    %1076 = arith.negf %1075 : vector<2x32xf32>
    %1077 = math.exp %1076 : vector<2x32xf32>
    %cst_478 = arith.constant 1.000000e+00 : f32
    %1078 = vector.broadcast %cst_478 : f32 to vector<2x32xf32>
    %1079 = arith.addf %1078, %1077 : vector<2x32xf32>
    %1080 = arith.divf %1078, %1079 : vector<2x32xf32>
    %1081 = arith.mulf %1074, %1068 : vector<2x32xf32>
    %1082 = arith.addf %1059, %1081 : vector<2x32xf32>
    %1083 = math.tanh %1082 : vector<2x32xf32>
    %cst_479 = arith.constant 1.000000e+00 : f32
    %1084 = vector.broadcast %cst_479 : f32 to vector<2x32xf32>
    %1085 = arith.subf %1084, %1080 : vector<2x32xf32>
    %1086 = arith.mulf %1085, %1083 : vector<2x32xf32>
    %1087 = arith.mulf %1080, %1050 : vector<2x32xf32>
    %1088 = arith.addf %1086, %1087 : vector<2x32xf32>
    %c7_i32_480 = arith.constant 7 : i32
    %1089 = arith.index_cast %c7_i32_480 : i32 to index
    %c0_481 = arith.constant 0 : index
    %c0_482 = arith.constant 0 : index
    %1090 = vector.load %arg24[%1089, %c0_481, %c0_482] : memref<8x2x32xf32, #tpu.memory_space<vmem>>, vector<1x2x32xf32>
    %1091 = vector.shape_cast %1090 : vector<1x2x32xf32> to vector<2x32xf32>
    %1092 = arith.index_cast %c7_i32_480 : i32 to index
    %c0_483 = arith.constant 0 : index
    %c0_484 = arith.constant 0 : index
    %1093 = vector.load %arg25[%1092, %c0_483, %c0_484] : memref<8x2x32xf32, #tpu.memory_space<vmem>>, vector<1x2x32xf32>
    %1094 = vector.shape_cast %1093 : vector<1x2x32xf32> to vector<2x32xf32>
    %1095 = arith.index_cast %c7_i32_480 : i32 to index
    %c0_485 = arith.constant 0 : index
    %c0_486 = arith.constant 0 : index
    %1096 = vector.load %arg26[%1095, %c0_485, %c0_486] : memref<8x2x32xf32, #tpu.memory_space<vmem>>, vector<1x2x32xf32>
    %1097 = vector.shape_cast %1096 : vector<1x2x32xf32> to vector<2x32xf32>
    %cst_487 = arith.constant dense<0.000000e+00> : vector<2x32xf32>
    %1098 = tpu.matmul %1088, %812, %cst_487 {dimension_numbers = #tpu.dot_dimension_numbers<[1], [0], [0], [1], [0, 0, 1, 1], [], []>} : vector<2x32xf32>, vector<32x32xf32>, vector<2x32xf32> -> vector<2x32xf32>
    %1099 = vector.broadcast %818 : vector<1x32xf32> to vector<2x32xf32>
    %1100 = arith.addf %1098, %1099 : vector<2x32xf32>
    %cst_488 = arith.constant dense<0.000000e+00> : vector<2x32xf32>
    %1101 = tpu.matmul %1088, %814, %cst_488 {dimension_numbers = #tpu.dot_dimension_numbers<[1], [0], [0], [1], [0, 0, 1, 1], [], []>} : vector<2x32xf32>, vector<32x32xf32>, vector<2x32xf32> -> vector<2x32xf32>
    %1102 = vector.broadcast %820 : vector<1x32xf32> to vector<2x32xf32>
    %1103 = arith.addf %1101, %1102 : vector<2x32xf32>
    %cst_489 = arith.constant dense<0.000000e+00> : vector<2x32xf32>
    %1104 = tpu.matmul %1088, %816, %cst_489 {dimension_numbers = #tpu.dot_dimension_numbers<[1], [0], [0], [1], [0, 0, 1, 1], [], []>} : vector<2x32xf32>, vector<32x32xf32>, vector<2x32xf32> -> vector<2x32xf32>
    %1105 = vector.broadcast %822 : vector<1x32xf32> to vector<2x32xf32>
    %1106 = arith.addf %1104, %1105 : vector<2x32xf32>
    %1107 = arith.addf %1091, %1100 : vector<2x32xf32>
    %1108 = arith.negf %1107 : vector<2x32xf32>
    %1109 = math.exp %1108 : vector<2x32xf32>
    %cst_490 = arith.constant 1.000000e+00 : f32
    %1110 = vector.broadcast %cst_490 : f32 to vector<2x32xf32>
    %1111 = arith.addf %1110, %1109 : vector<2x32xf32>
    %1112 = arith.divf %1110, %1111 : vector<2x32xf32>
    %1113 = arith.addf %1094, %1103 : vector<2x32xf32>
    %1114 = arith.negf %1113 : vector<2x32xf32>
    %1115 = math.exp %1114 : vector<2x32xf32>
    %cst_491 = arith.constant 1.000000e+00 : f32
    %1116 = vector.broadcast %cst_491 : f32 to vector<2x32xf32>
    %1117 = arith.addf %1116, %1115 : vector<2x32xf32>
    %1118 = arith.divf %1116, %1117 : vector<2x32xf32>
    %1119 = arith.mulf %1112, %1106 : vector<2x32xf32>
    %1120 = arith.addf %1097, %1119 : vector<2x32xf32>
    %1121 = math.tanh %1120 : vector<2x32xf32>
    %cst_492 = arith.constant 1.000000e+00 : f32
    %1122 = vector.broadcast %cst_492 : f32 to vector<2x32xf32>
    %1123 = arith.subf %1122, %1118 : vector<2x32xf32>
    %1124 = arith.mulf %1123, %1121 : vector<2x32xf32>
    %1125 = arith.mulf %1118, %1088 : vector<2x32xf32>
    %1126 = arith.addf %1124, %1125 : vector<2x32xf32>
    %c8_i32_493 = arith.constant 8 : i32
    %c0_494 = arith.constant 0 : index
    %c0_495 = arith.constant 0 : index
    %c0_496 = arith.constant 0 : index
    %1127 = vector.load %arg13[%c0_494, %c0_495, %c0_496] : memref<3x64x32xbf16, #tpu.memory_space<vmem>>, vector<1x64x32xbf16>
    %1128 = vector.shape_cast %1127 : vector<1x64x32xbf16> to vector<64x32xbf16>
    %c0_497 = arith.constant 0 : index
    %c0_498 = arith.constant 0 : index
    %c0_499 = arith.constant 0 : index
    %1129 = vector.load %arg15[%c0_497, %c0_498, %c0_499] : memref<3x1x32xf32, #tpu.memory_space<vmem>>, vector<1x1x32xf32>
    %1130 = vector.shape_cast %1129 : vector<1x1x32xf32> to vector<1x32xf32>
    %1131 = vector.extract_strided_slice %1128 {offsets = [0, 0], sizes = [32, 32], strides = [1, 1]} : vector<64x32xbf16> to vector<32x32xbf16>
    %cst_500 = arith.constant dense<0.000000e+00> : vector<2x32xf32>
    %1132 = tpu.matmul %768, %1131, %cst_500 {dimension_numbers = #tpu.dot_dimension_numbers<[1], [0], [0], [1], [0, 0, 1, 1], [], []>} : vector<2x32xbf16>, vector<32x32xbf16>, vector<2x32xf32> -> vector<2x32xf32>
    %1133 = vector.broadcast %1130 : vector<1x32xf32> to vector<2x32xf32>
    %1134 = arith.addf %1133, %1132 : vector<2x32xf32>
    %1135 = vector.extract_strided_slice %1128 {offsets = [32, 0], sizes = [32, 32], strides = [1, 1]} : vector<64x32xbf16> to vector<32x32xbf16>
    %cst_501 = arith.constant dense<0.000000e+00> : vector<2x32xf32>
    %1136 = tpu.matmul %771, %1135, %cst_501 {dimension_numbers = #tpu.dot_dimension_numbers<[1], [0], [0], [1], [0, 0, 1, 1], [], []>} : vector<2x32xbf16>, vector<32x32xbf16>, vector<2x32xf32> -> vector<2x32xf32>
    %1137 = arith.addf %1134, %1136 : vector<2x32xf32>
    %c1_502 = arith.constant 1 : index
    %c0_503 = arith.constant 0 : index
    %c0_504 = arith.constant 0 : index
    %1138 = vector.load %arg13[%c1_502, %c0_503, %c0_504] : memref<3x64x32xbf16, #tpu.memory_space<vmem>>, vector<1x64x32xbf16>
    %1139 = vector.shape_cast %1138 : vector<1x64x32xbf16> to vector<64x32xbf16>
    %c1_505 = arith.constant 1 : index
    %c0_506 = arith.constant 0 : index
    %c0_507 = arith.constant 0 : index
    %1140 = vector.load %arg15[%c1_505, %c0_506, %c0_507] : memref<3x1x32xf32, #tpu.memory_space<vmem>>, vector<1x1x32xf32>
    %1141 = vector.shape_cast %1140 : vector<1x1x32xf32> to vector<1x32xf32>
    %1142 = vector.extract_strided_slice %1139 {offsets = [0, 0], sizes = [32, 32], strides = [1, 1]} : vector<64x32xbf16> to vector<32x32xbf16>
    %cst_508 = arith.constant dense<0.000000e+00> : vector<2x32xf32>
    %1143 = tpu.matmul %768, %1142, %cst_508 {dimension_numbers = #tpu.dot_dimension_numbers<[1], [0], [0], [1], [0, 0, 1, 1], [], []>} : vector<2x32xbf16>, vector<32x32xbf16>, vector<2x32xf32> -> vector<2x32xf32>
    %1144 = vector.broadcast %1141 : vector<1x32xf32> to vector<2x32xf32>
    %1145 = arith.addf %1144, %1143 : vector<2x32xf32>
    %1146 = vector.extract_strided_slice %1139 {offsets = [32, 0], sizes = [32, 32], strides = [1, 1]} : vector<64x32xbf16> to vector<32x32xbf16>
    %cst_509 = arith.constant dense<0.000000e+00> : vector<2x32xf32>
    %1147 = tpu.matmul %771, %1146, %cst_509 {dimension_numbers = #tpu.dot_dimension_numbers<[1], [0], [0], [1], [0, 0, 1, 1], [], []>} : vector<2x32xbf16>, vector<32x32xbf16>, vector<2x32xf32> -> vector<2x32xf32>
    %1148 = arith.addf %1145, %1147 : vector<2x32xf32>
    %c2_510 = arith.constant 2 : index
    %c0_511 = arith.constant 0 : index
    %c0_512 = arith.constant 0 : index
    %1149 = vector.load %arg13[%c2_510, %c0_511, %c0_512] : memref<3x64x32xbf16, #tpu.memory_space<vmem>>, vector<1x64x32xbf16>
    %1150 = vector.shape_cast %1149 : vector<1x64x32xbf16> to vector<64x32xbf16>
    %c2_513 = arith.constant 2 : index
    %c0_514 = arith.constant 0 : index
    %c0_515 = arith.constant 0 : index
    %1151 = vector.load %arg15[%c2_513, %c0_514, %c0_515] : memref<3x1x32xf32, #tpu.memory_space<vmem>>, vector<1x1x32xf32>
    %1152 = vector.shape_cast %1151 : vector<1x1x32xf32> to vector<1x32xf32>
    %1153 = vector.extract_strided_slice %1150 {offsets = [0, 0], sizes = [32, 32], strides = [1, 1]} : vector<64x32xbf16> to vector<32x32xbf16>
    %cst_516 = arith.constant dense<0.000000e+00> : vector<2x32xf32>
    %1154 = tpu.matmul %768, %1153, %cst_516 {dimension_numbers = #tpu.dot_dimension_numbers<[1], [0], [0], [1], [0, 0, 1, 1], [], []>} : vector<2x32xbf16>, vector<32x32xbf16>, vector<2x32xf32> -> vector<2x32xf32>
    %1155 = vector.broadcast %1152 : vector<1x32xf32> to vector<2x32xf32>
    %1156 = arith.addf %1155, %1154 : vector<2x32xf32>
    %1157 = vector.extract_strided_slice %1150 {offsets = [32, 0], sizes = [32, 32], strides = [1, 1]} : vector<64x32xbf16> to vector<32x32xbf16>
    %cst_517 = arith.constant dense<0.000000e+00> : vector<2x32xf32>
    %1158 = tpu.matmul %771, %1157, %cst_517 {dimension_numbers = #tpu.dot_dimension_numbers<[1], [0], [0], [1], [0, 0, 1, 1], [], []>} : vector<2x32xbf16>, vector<32x32xbf16>, vector<2x32xf32> -> vector<2x32xf32>
    %1159 = arith.addf %1156, %1158 : vector<2x32xf32>
    %c0_518 = arith.constant 0 : index
    %c0_519 = arith.constant 0 : index
    %c0_520 = arith.constant 0 : index
    %1160 = vector.load %arg16[%c0_518, %c0_519, %c0_520] : memref<3x1x32xf32, #tpu.memory_space<vmem>>, vector<1x1x32xf32>
    %1161 = vector.shape_cast %1160 : vector<1x1x32xf32> to vector<1x32xf32>
    %1162 = vector.broadcast %1161 : vector<1x32xf32> to vector<2x32xf32>
    %1163 = arith.addf %1137, %1162 : vector<2x32xf32>
    %1164 = arith.negf %1163 : vector<2x32xf32>
    %1165 = math.exp %1164 : vector<2x32xf32>
    %cst_521 = arith.constant 1.000000e+00 : f32
    %1166 = vector.broadcast %cst_521 : f32 to vector<2x32xf32>
    %1167 = arith.addf %1166, %1165 : vector<2x32xf32>
    %1168 = arith.divf %1166, %1167 : vector<2x32xf32>
    %c1_522 = arith.constant 1 : index
    %c0_523 = arith.constant 0 : index
    %c0_524 = arith.constant 0 : index
    %1169 = vector.load %arg16[%c1_522, %c0_523, %c0_524] : memref<3x1x32xf32, #tpu.memory_space<vmem>>, vector<1x1x32xf32>
    %1170 = vector.shape_cast %1169 : vector<1x1x32xf32> to vector<1x32xf32>
    %1171 = vector.broadcast %1170 : vector<1x32xf32> to vector<2x32xf32>
    %1172 = arith.addf %1148, %1171 : vector<2x32xf32>
    %1173 = arith.negf %1172 : vector<2x32xf32>
    %1174 = math.exp %1173 : vector<2x32xf32>
    %cst_525 = arith.constant 1.000000e+00 : f32
    %1175 = vector.broadcast %cst_525 : f32 to vector<2x32xf32>
    %1176 = arith.addf %1175, %1174 : vector<2x32xf32>
    %1177 = arith.divf %1175, %1176 : vector<2x32xf32>
    %c2_526 = arith.constant 2 : index
    %c0_527 = arith.constant 0 : index
    %c0_528 = arith.constant 0 : index
    %1178 = vector.load %arg16[%c2_526, %c0_527, %c0_528] : memref<3x1x32xf32, #tpu.memory_space<vmem>>, vector<1x1x32xf32>
    %1179 = vector.shape_cast %1178 : vector<1x1x32xf32> to vector<1x32xf32>
    %1180 = vector.broadcast %1179 : vector<1x32xf32> to vector<2x32xf32>
    %1181 = arith.mulf %1168, %1180 : vector<2x32xf32>
    %1182 = arith.addf %1159, %1181 : vector<2x32xf32>
    %1183 = math.tanh %1182 : vector<2x32xf32>
    %cst_529 = arith.constant 1.000000e+00 : f32
    %1184 = vector.broadcast %cst_529 : f32 to vector<2x32xf32>
    %1185 = arith.subf %1184, %1177 : vector<2x32xf32>
    %1186 = arith.mulf %1185, %1183 : vector<2x32xf32>
    %cst_530 = arith.constant 0.000000e+00 : f32
    %1187 = vector.broadcast %cst_530 : f32 to vector<2x32xf32>
    %1188 = arith.cmpf oge, %1126, %1187 : vector<2x32xf32>
    %cst_531 = arith.constant 1.000000e-01 : f32
    %1189 = vector.broadcast %cst_531 : f32 to vector<2x32xf32>
    %1190 = arith.mulf %1189, %1126 : vector<2x32xf32>
    %1191 = arith.select %1188, %1126, %1190 : vector<2x32xi1>, vector<2x32xf32>
    %cst_532 = arith.constant 0.000000e+00 : f32
    %1192 = vector.broadcast %cst_532 : f32 to vector<2x32xf32>
    %1193 = arith.cmpf oge, %1186, %1192 : vector<2x32xf32>
    %cst_533 = arith.constant 1.000000e-01 : f32
    %1194 = vector.broadcast %cst_533 : f32 to vector<2x32xf32>
    %1195 = arith.mulf %1194, %1186 : vector<2x32xf32>
    %1196 = arith.select %1193, %1186, %1195 : vector<2x32xi1>, vector<2x32xf32>
    %c0_534 = arith.constant 0 : index
    %c0_535 = arith.constant 0 : index
    %1197 = vector.load %arg17[%c0_534, %c0_535] : memref<64x32xf32, #tpu.memory_space<vmem>>, vector<64x32xf32>
    %1198 = vector.extract_strided_slice %1197 {offsets = [0, 0], sizes = [32, 32], strides = [1, 1]} : vector<64x32xf32> to vector<32x32xf32>
    %cst_536 = arith.constant dense<0.000000e+00> : vector<2x32xf32>
    %1199 = tpu.matmul %1191, %1198, %cst_536 {dimension_numbers = #tpu.dot_dimension_numbers<[1], [0], [0], [1], [0, 0, 1, 1], [], []>} : vector<2x32xf32>, vector<32x32xf32>, vector<2x32xf32> -> vector<2x32xf32>
    %1200 = vector.extract_strided_slice %1197 {offsets = [32, 0], sizes = [32, 32], strides = [1, 1]} : vector<64x32xf32> to vector<32x32xf32>
    %cst_537 = arith.constant dense<0.000000e+00> : vector<2x32xf32>
    %1201 = tpu.matmul %1196, %1200, %cst_537 {dimension_numbers = #tpu.dot_dimension_numbers<[1], [0], [0], [1], [0, 0, 1, 1], [], []>} : vector<2x32xf32>, vector<32x32xf32>, vector<2x32xf32> -> vector<2x32xf32>
    %1202 = arith.addf %1199, %1201 : vector<2x32xf32>
    %c0_538 = arith.constant 0 : index
    %c0_539 = arith.constant 0 : index
    %1203 = vector.load %arg18[%c0_538, %c0_539] : memref<1x32xf32, #tpu.memory_space<vmem>>, vector<1x32xf32>
    %1204 = vector.broadcast %1203 : vector<1x32xf32> to vector<2x32xf32>
    %1205 = arith.addf %1202, %1204 : vector<2x32xf32>
    %cst_540 = arith.constant 0.000000e+00 : f32
    %1206 = vector.broadcast %cst_540 : f32 to vector<2x32xf32>
    %1207 = arith.cmpf oge, %1205, %1206 : vector<2x32xf32>
    %cst_541 = arith.constant 1.000000e-01 : f32
    %1208 = vector.broadcast %cst_541 : f32 to vector<2x32xf32>
    %1209 = arith.mulf %1208, %1205 : vector<2x32xf32>
    %1210 = arith.select %1207, %1205, %1209 : vector<2x32xi1>, vector<2x32xf32>
    %c0_542 = arith.constant 0 : index
    %c0_543 = arith.constant 0 : index
    %1211 = vector.load %arg19[%c0_542, %c0_543] : memref<32x10xf32, #tpu.memory_space<vmem>>, vector<32x10xf32>
    %cst_544 = arith.constant dense<0.000000e+00> : vector<2x10xf32>
    %1212 = tpu.matmul %1210, %1211, %cst_544 {dimension_numbers = #tpu.dot_dimension_numbers<[1], [0], [0], [1], [0, 0, 1, 1], [], []>} : vector<2x32xf32>, vector<32x10xf32>, vector<2x10xf32> -> vector<2x10xf32>
    %c0_545 = arith.constant 0 : index
    %c0_546 = arith.constant 0 : index
    %1213 = vector.load %arg20[%c0_545, %c0_546] : memref<1x10xf32, #tpu.memory_space<vmem>>, vector<1x10xf32>
    %1214 = vector.broadcast %1213 : vector<1x10xf32> to vector<2x10xf32>
    %1215 = arith.addf %1212, %1214 : vector<2x10xf32>
    %c0_547 = arith.constant 0 : index
    %c0_548 = arith.constant 0 : index
    %1216 = vector.load %arg21[%c0_547, %c0_548] : memref<2x10xf32, #tpu.memory_space<vmem>>, vector<2x10xf32>
    tpu.vector_store %arg21[%c0_547, %c0_548], %1215 {strides = array<i32>} : memref<2x10xf32, #tpu.memory_space<vmem>>, vector<2x10xf32>,
    return
  }
}

</mosaic_0001>

<llo_original>
// kernel: tpu_custom_call.1
$region0: #{tpu_custom_call.1}
  #allocation0 [shape = 'u32[]', space=smem, size = 0x4, offset = 0x4, fixed_abs, tag = 'smem constant byte address 0x4 - core index']
  #allocation1 [shape = 'u32[144,128]{1,0:T(1,128)}', space=vmem, size = 0x12000, scoped, tag = 'internal scratch']
  #allocation2 [shape = 'f32[8,2,32]{2,1,0:T(2,128)}', space=vmem, size = 0x2000, scoped, tag = 'scratch operand']
  #allocation3 [shape = 'f32[8,2,32]{2,1,0:T(2,128)}', space=vmem, size = 0x2000, scoped, tag = 'scratch operand']
  #allocation4 [shape = 'f32[8,2,32]{2,1,0:T(2,128)}', space=vmem, size = 0x2000, scoped, tag = 'scratch operand']
  #allocation5 [shape = 'f32[8,2,32]{2,1,0:T(2,128)}', space=vmem, size = 0x2000, scoped, tag = 'scratch operand']
  #allocation6 [shape = 'f32[8,2,32]{2,1,0:T(2,128)}', space=vmem, size = 0x2000, scoped, tag = 'scratch operand']
  #allocation7 [shape = 'f32[8,2,32]{2,1,0:T(2,128)}', space=vmem, size = 0x2000, scoped, tag = 'scratch operand']
  #allocation8 [shape = 'f32[8,2,32]{2,1,0:T(2,128)}', space=vmem, size = 0x2000, scoped, tag = 'scratch operand']
  #allocation9 [shape = 'f32[8,2,32]{2,1,0:T(2,128)}', space=vmem, size = 0x2000, scoped, tag = 'scratch operand']
  %s0 = inlined_call_operand.vmem [shape: bf16[16,300], index: 0, kind: input, shape index: {}]
  %s1 = inlined_call_operand.vmem [shape: bf16[3,300,32], index: 1, kind: input, shape index: {}]
  %s2 = inlined_call_operand.vmem [shape: f32[3,32,32], index: 2, kind: input, shape index: {}]
  %s3 = inlined_call_operand.vmem [shape: f32[3,1,32], index: 3, kind: input, shape index: {}]
  %s4 = inlined_call_operand.vmem [shape: f32[3,1,32], index: 4, kind: input, shape index: {}]
  %s5 = inlined_call_operand.vmem [shape: bf16[3,300,32], index: 5, kind: input, shape index: {}]
  %s6 = inlined_call_operand.vmem [shape: f32[3,32,32], index: 6, kind: input, shape index: {}]
  %s7 = inlined_call_operand.vmem [shape: f32[3,1,32], index: 7, kind: input, shape index: {}]
  %s8 = inlined_call_operand.vmem [shape: f32[3,1,32], index: 8, kind: input, shape index: {}]
  %s9 = inlined_call_operand.vmem [shape: bf16[3,64,32], index: 9, kind: input, shape index: {}]
  %s10 = inlined_call_operand.vmem [shape: f32[3,32,32], index: 10, kind: input, shape index: {}]
  %s11 = inlined_call_operand.vmem [shape: f32[3,1,32], index: 11, kind: input, shape index: {}]
  %s12 = inlined_call_operand.vmem [shape: f32[3,1,32], index: 12, kind: input, shape index: {}]
  %s13 = inlined_call_operand.vmem [shape: bf16[3,64,32], index: 13, kind: input, shape index: {}]
  %s14 = inlined_call_operand.vmem [shape: f32[3,32,32], index: 14, kind: input, shape index: {}]
  %s15 = inlined_call_operand.vmem [shape: f32[3,1,32], index: 15, kind: input, shape index: {}]
  %s16 = inlined_call_operand.vmem [shape: f32[3,1,32], index: 16, kind: input, shape index: {}]
  %s17 = inlined_call_operand.vmem [shape: f32[64,32], index: 17, kind: input, shape index: {}]
  %s18 = inlined_call_operand.vmem [shape: f32[1,32], index: 18, kind: input, shape index: {}]
  %s19 = inlined_call_operand.vmem [shape: f32[32,10], index: 19, kind: input, shape index: {}]
  %s20 = inlined_call_operand.vmem [shape: f32[1,10], index: 20, kind: input, shape index: {}]
  %s21 = inlined_call_operand.hbm [shape: f32[2,10], index: 21, kind: output, shape index: {}]
  %s22 = sld [smem:[#allocation0]]
  $region94: #{tpu_custom_call.1} parent=0
    _
  %s24 = ssub.s32 1, %s22
  %s25 = scalar_select 0, %s24, %s22
  $region1: #{tpu_custom_call.1} parent=0
    #allocation10 [shape = 'u8[1024]{0}', space=vmem, size = 0x400, scoped, tag = 'output window, operand 0, single buffered']
    #allocation11 [shape = 's32[1]{0}', space=sflag, size = 0x4, scoped, tag = 'scoped memory for tpu_custom_call.1']
    %26 = vsyncpa [#allocation11], 0
    // Predicated region
    $region2: #{tpu_custom_call.1} parent=1 // pred_check
      _
    $region3: #{tpu_custom_call.1} parent=1 // pred_check_branch
      %28 = sbr.rel (0) target = $region5
    $region4: #{tpu_custom_call.1} parent=1 // pred_region
      _
    $region5: #{tpu_custom_call.1} parent=1 // pred_fallthru
      _
    // Predicated region
    $region6: #{tpu_custom_call.1} parent=1 // pred_check
      _
    $region7: #{tpu_custom_call.1} parent=1 // pred_check_branch
      %30 = sbr.rel (0) target = $region9
    $region8: #{tpu_custom_call.1} parent=1 // pred_region
      _
    $region9: #{tpu_custom_call.1} parent=1 // pred_fallthru
      _
    // Predicated region
    $region10: #{tpu_custom_call.1} parent=1 // pred_check
      _
    $region11: #{tpu_custom_call.1} parent=1 // pred_check_branch
      %32 = sbr.rel (0) target = $region13
    $region12: #{tpu_custom_call.1} parent=1 // pred_region
      _
    $region13: #{tpu_custom_call.1} parent=1 // pred_fallthru
      _
    // Predicated region
    $region14: #{tpu_custom_call.1} parent=1 // pred_check
      _
    $region15: #{tpu_custom_call.1} parent=1 // pred_check_branch
      %34 = sbr.rel (0) target = $region17
    $region16: #{tpu_custom_call.1} parent=1 // pred_region
      _
    $region17: #{tpu_custom_call.1} parent=1 // pred_fallthru
      _
    // Predicated region
    $region18: #{tpu_custom_call.1} parent=1 // pred_check
      _
    $region19: #{tpu_custom_call.1} parent=1 // pred_check_branch
      %36 = sbr.rel (0) target = $region21
    $region20: #{tpu_custom_call.1} parent=1 // pred_region
      _
    $region21: #{tpu_custom_call.1} parent=1 // pred_fallthru
      _
    // Predicated region
    $region22: #{tpu_custom_call.1} parent=1 // pred_check
      _
    $region23: #{tpu_custom_call.1} parent=1 // pred_check_branch
      %38 = sbr.rel (0) target = $region25
    $region24: #{tpu_custom_call.1} parent=1 // pred_region
      _
    $region25: #{tpu_custom_call.1} parent=1 // pred_fallthru
      _
    // Predicated region
    $region26: #{tpu_custom_call.1} parent=1 // pred_check
      _
    $region27: #{tpu_custom_call.1} parent=1 // pred_check_branch
      %40 = sbr.rel (0) target = $region29
    $region28: #{tpu_custom_call.1} parent=1 // pred_region
      _
    $region29: #{tpu_custom_call.1} parent=1 // pred_fallthru
      _
    // Predicated region
    $region30: #{tpu_custom_call.1} parent=1 // pred_check
      _
    $region31: #{tpu_custom_call.1} parent=1 // pred_check_branch
      %42 = sbr.rel (0) target = $region33
    $region32: #{tpu_custom_call.1} parent=1 // pred_region
      _
    $region33: #{tpu_custom_call.1} parent=1 // pred_fallthru
      _
    // Predicated region
    $region34: #{tpu_custom_call.1} parent=1 // pred_check
      _
    $region35: #{tpu_custom_call.1} parent=1 // pred_check_branch
      %44 = sbr.rel (0) target = $region37
    $region36: #{tpu_custom_call.1} parent=1 // pred_region
      _
    $region37: #{tpu_custom_call.1} parent=1 // pred_fallthru
      _
    // Predicated region
    $region38: #{tpu_custom_call.1} parent=1 // pred_check
      _
    $region39: #{tpu_custom_call.1} parent=1 // pred_check_branch
      %46 = sbr.rel (0) target = $region41
    $region40: #{tpu_custom_call.1} parent=1 // pred_region
      _
    $region41: #{tpu_custom_call.1} parent=1 // pred_fallthru
      _
    // Predicated region
    $region42: #{tpu_custom_call.1} parent=1 // pred_check
      _
    $region43: #{tpu_custom_call.1} parent=1 // pred_check_branch
      %48 = sbr.rel (0) target = $region45
    $region44: #{tpu_custom_call.1} parent=1 // pred_region
      _
    $region45: #{tpu_custom_call.1} parent=1 // pred_fallthru
      _
    // Predicated region
    $region46: #{tpu_custom_call.1} parent=1 // pred_check
      _
    $region47: #{tpu_custom_call.1} parent=1 // pred_check_branch
      %50 = sbr.rel (0) target = $region49
    $region48: #{tpu_custom_call.1} parent=1 // pred_region
      _
    $region49: #{tpu_custom_call.1} parent=1 // pred_fallthru
      _
    // Predicated region
    $region50: #{tpu_custom_call.1} parent=1 // pred_check
      _
    $region51: #{tpu_custom_call.1} parent=1 // pred_check_branch
      %52 = sbr.rel (0) target = $region53
    $region52: #{tpu_custom_call.1} parent=1 // pred_region
      _
    $region53: #{tpu_custom_call.1} parent=1 // pred_fallthru
      _
    // Predicated region
    $region54: #{tpu_custom_call.1} parent=1 // pred_check
      _
    $region55: #{tpu_custom_call.1} parent=1 // pred_check_branch
      %54 = sbr.rel (0) target = $region57
    $region56: #{tpu_custom_call.1} parent=1 // pred_region
      _
    $region57: #{tpu_custom_call.1} parent=1 // pred_fallthru
      _
    // Predicated region
    $region58: #{tpu_custom_call.1} parent=1 // pred_check
      _
    $region59: #{tpu_custom_call.1} parent=1 // pred_check_branch
      %56 = sbr.rel (0) target = $region61
    $region60: #{tpu_custom_call.1} parent=1 // pred_region
      _
    $region61: #{tpu_custom_call.1} parent=1 // pred_fallthru
      _
    // Predicated region
    $region62: #{tpu_custom_call.1} parent=1 // pred_check
      _
    $region63: #{tpu_custom_call.1} parent=1 // pred_check_branch
      %58 = sbr.rel (0) target = $region65
    $region64: #{tpu_custom_call.1} parent=1 // pred_region
      _
    $region65: #{tpu_custom_call.1} parent=1 // pred_fallthru
      _
    // Predicated region
    $region66: #{tpu_custom_call.1} parent=1 // pred_check
      _
    $region67: #{tpu_custom_call.1} parent=1 // pred_check_branch
      %60 = sbr.rel (0) target = $region69
    $region68: #{tpu_custom_call.1} parent=1 // pred_region
      _
    $region69: #{tpu_custom_call.1} parent=1 // pred_fallthru
      _
    // Predicated region
    $region70: #{tpu_custom_call.1} parent=1 // pred_check
      _
    $region71: #{tpu_custom_call.1} parent=1 // pred_check_branch
      %62 = sbr.rel (0) target = $region73
    $region72: #{tpu_custom_call.1} parent=1 // pred_region
      _
    $region73: #{tpu_custom_call.1} parent=1 // pred_fallthru
      _
    // Predicated region
    $region74: #{tpu_custom_call.1} parent=1 // pred_check
      _
    $region75: #{tpu_custom_call.1} parent=1 // pred_check_branch
      %64 = sbr.rel (0) target = $region77
    $region76: #{tpu_custom_call.1} parent=1 // pred_region
      _
    $region77: #{tpu_custom_call.1} parent=1 // pred_fallthru
      _
    // Predicated region
    $region78: #{tpu_custom_call.1} parent=1 // pred_check
      _
    $region79: #{tpu_custom_call.1} parent=1 // pred_check_branch
      %66 = sbr.rel (0) target = $region81
    $region80: #{tpu_custom_call.1} parent=1 // pred_region
      _
    $region81: #{tpu_custom_call.1} parent=1 // pred_fallthru
      _
    // Predicated region
    $region82: #{tpu_custom_call.1} parent=1 // pred_check
      _
    $region83: #{tpu_custom_call.1} parent=1 // pred_check_branch
      %68 = sbr.rel (0) target = $region85
    $region84: #{tpu_custom_call.1} parent=1 // pred_region
      _
    $region85: #{tpu_custom_call.1} parent=1 // pred_fallthru
      _
    %v70 = vld [vmem:[%s0] sm:$0xff]
    %v71 = vld [vmem:[%s0 + $0x8] sm:$0xf]
    %v72 = vld [vmem:[%s0 + $0xc] sm:$0xff]
    %v73 = vld [vmem:[%s0 + $0x14] sm:$0xf]
    %v74 = vld [vmem:[%s1] sm:$0xf]
    %v75 = vld [vmem:[%s1 + $0x4] sm:$0xf]
    %v76 = vld [vmem:[%s1 + $0x8] sm:$0xf]
    %v77 = vld [vmem:[%s1 + $0xc] sm:$0xf]
    %v78 = vld [vmem:[%s1 + $0x10] sm:$0xf]
    %v79 = vld [vmem:[%s1 + $0x14] sm:$0xf]
    %v80 = vld [vmem:[%s1 + $0x18] sm:$0xf]
    %v81 = vld [vmem:[%s1 + $0x1c] sm:$0xf]
    %v82 = vld [vmem:[%s1 + $0x20] sm:$0xf]
    %v83 = vld [vmem:[%s1 + $0x24] sm:$0xf]
    %v84 = vld [vmem:[%s1 + $0x28] sm:$0xf]
    %v85 = vld [vmem:[%s1 + $0x2c] sm:$0xf]
    %v86 = vld [vmem:[%s1 + $0x30] sm:$0xf]
    %v87 = vld [vmem:[%s1 + $0x34] sm:$0xf]
    %v88 = vld [vmem:[%s1 + $0x38] sm:$0xf]
    %v89 = vld [vmem:[%s1 + $0x3c] sm:$0xf]
    %v90 = vld [vmem:[%s1 + $0x40] sm:$0xf]
    %v91 = vld [vmem:[%s1 + $0x44] sm:$0xf]
    %v92 = vld [vmem:[%s1 + $0x48] sm:$0xf]
    %v93 = vld [vmem:[%s1 + $0x4c] sm:$0xf]
    %v94 = vld [vmem:[%s1 + $0x50] sm:$0xf]
    %v95 = vld [vmem:[%s1 + $0x54] sm:$0xf]
    %v96 = vld [vmem:[%s1 + $0x58] sm:$0xf]
    %v97 = vld [vmem:[%s1 + $0x5c] sm:$0xf]
    %v98 = vld [vmem:[%s1 + $0x60] sm:$0xf]
    %v99 = vld [vmem:[%s1 + $0x64] sm:$0xf]
    %v100 = vld [vmem:[%s1 + $0x68] sm:$0xf]
    %v101 = vld [vmem:[%s1 + $0x6c] sm:$0xf]
    %v102 = vld [vmem:[%s1 + $0x70] sm:$0xf]
    %v103 = vld [vmem:[%s1 + $0x74] sm:$0xf]
    %v104 = vld [vmem:[%s1 + $0x78] sm:$0xf]
    %v105 = vld [vmem:[%s1 + $0x7c] sm:$0xf]
    %v106 = vld [vmem:[%s1 + $0x80] sm:$0xf]
    %v107 = vld [vmem:[%s1 + $0x84] sm:$0xf]
    %v108 = vld [vmem:[%s1 + $0x88] sm:$0xf]
    %v109 = vld [vmem:[%s1 + $0x8c] sm:$0xf]
    %v110 = vld [vmem:[%s1 + $0x90] sm:$0xf]
    %v111 = vld [vmem:[%s1 + $0x94] sm:$0x3]
    %v112 = vld [vmem:[%s3] sm:$0x1]
    %v117 = vunpack.c.l.b16 %v70
    %v118 = vunpack.c.h.b16 %v70
    %v119 = vunpack.c.l.b16 %v71
    %v120 = vunpack.c.l.b16 %v72
    %v121 = vunpack.c.h.b16 %v72
    %v122 = vunpack.c.l.b16 %v73
    %v123 = vpack.c.b16 %v120, %v117
    %v124 = vpack.c.b16 %v121, %v118
    %v125 = vpack.c.b16 %v122, %v119
    %v166 = vunpack.c.l.b16 %v74
    %v167 = vunpack.c.l.b16 %v75
    %v168 = vunpack.c.l.b16 %v76
    %v169 = vunpack.c.l.b16 %v77
    %v170 = vunpack.c.l.b16 %v78
    %v171 = vunpack.c.l.b16 %v79
    %v172 = vunpack.c.l.b16 %v80
    %v173 = vunpack.c.l.b16 %v81
    %v174 = vunpack.c.l.b16 %v82
    %v175 = vunpack.c.l.b16 %v83
    %v176 = vunpack.c.l.b16 %v84
    %v177 = vunpack.c.l.b16 %v85
    %v178 = vunpack.c.l.b16 %v86
    %v179 = vunpack.c.l.b16 %v87
    %v180 = vunpack.c.l.b16 %v88
    %v181 = vunpack.c.l.b16 %v89
    %v182 = vunpack.c.l.b16 %v90
    %v183 = vunpack.c.l.b16 %v91
    %v184 = vunpack.c.l.b16 %v92
    %v185 = vunpack.c.l.b16 %v93
    %v186 = vunpack.c.l.b16 %v94
    %v187 = vunpack.c.l.b16 %v95
    %v188 = vunpack.c.l.b16 %v96
    %v189 = vunpack.c.l.b16 %v97
    %v190 = vunpack.c.l.b16 %v98
    %v191 = vunpack.c.l.b16 %v99
    %v192 = vunpack.c.l.b16 %v100
    %v193 = vunpack.c.l.b16 %v101
    %v194 = vunpack.c.l.b16 %v102
    %v195 = vunpack.c.l.b16 %v103
    %v196 = vunpack.c.l.b16 %v104
    %v197 = vunpack.c.l.b16 %v105
    %v198 = vunpack.c.l.b16 %v106
    %v199 = vunpack.c.l.b16 %v107
    %v200 = vunpack.c.l.b16 %v108
    %v201 = vunpack.c.l.b16 %v109
    %v202 = vunpack.c.l.b16 %v110
    %v203 = vunpack.c.l.b16 %v111
    %v204 = vpack.c.b16 %v167, %v166
    %v205 = vpack.c.b16 %v169, %v168
    %v206 = vpack.c.b16 %v171, %v170
    %v207 = vpack.c.b16 %v173, %v172
    %v208 = vpack.c.b16 %v175, %v174
    %v209 = vpack.c.b16 %v177, %v176
    %v210 = vpack.c.b16 %v179, %v178
    %v211 = vpack.c.b16 %v181, %v180
    %v212 = vpack.c.b16 %v183, %v182
    %v213 = vpack.c.b16 %v185, %v184
    %v214 = vpack.c.b16 %v187, %v186
    %v215 = vpack.c.b16 %v189, %v188
    %v216 = vpack.c.b16 %v191, %v190
    %v217 = vpack.c.b16 %v193, %v192
    %v218 = vpack.c.b16 %v195, %v194
    %v219 = vpack.c.b16 %v197, %v196
    %v220 = vpack.c.b16 %v199, %v198
    %v221 = vpack.c.b16 %v201, %v200
    %v222 = vpack.c.b16 %v203, %v202
    %vm241 = vcmask 359424
    %v243 = vsel %vm241, %v125, 0
    %vm245 = vcmask 1045504
    %v247 = vsel %vm245, %v222, 0
    %249 = vmatprep.subr.bf16.mxu0 0
    %250 = vmatpush1.bf16.msra.mxu0 %v204
    %251 = vmatprep.subr.bf16.mxu0 0
    %252 = vmatpush1.bf16.msra.mxu0 %v205
    %253 = vmatprep.subr.bf16.mxu0 0
    %254 = vmatpush1.bf16.msra.mxu0 %v206
    %255 = vmatprep.subr.bf16.mxu0 0
    %256 = vmatpush1.bf16.msra.mxu0 %v207
    %257 = vmatprep.subr.bf16.mxu0 0
    %258 = vmatpush1.bf16.msra.mxu0 %v208
    %259 = vmatprep.subr.bf16.mxu0 0
    %260 = vmatpush1.bf16.msra.mxu0 %v209
    %261 = vmatprep.subr.bf16.mxu0 0
    %262 = vmatpush1.bf16.msra.mxu0 %v210
    %263 = vmatprep.subr.bf16.mxu0 0
    %264 = vmatpush1.bf16.msra.mxu0 %v211
    %265 = vmatprep.subr.bf16.mxu0 0
    %266 = vmatpush1.bf16.msra.mxu0 %v212
    %267 = vmatprep.subr.bf16.mxu0 0
    %268 = vmatpush1.bf16.msra.mxu0 %v213
    %269 = vmatprep.subr.bf16.mxu0 0
    %270 = vmatpush1.bf16.msra.mxu0 %v214
    %271 = vmatprep.subr.bf16.mxu0 0
    %272 = vmatpush1.bf16.msra.mxu0 %v215
    %273 = vmatprep.subr.bf16.mxu0 0
    %274 = vmatpush1.bf16.msra.mxu0 %v216
    %275 = vmatprep.subr.bf16.mxu0 0
    %276 = vmatpush1.bf16.msra.mxu0 %v217
    %277 = vmatprep.subr.bf16.mxu0 0
    %278 = vmatpush1.bf16.msra.mxu0 %v218
    %279 = vmatprep.subr.bf16.mxu0 0
    %280 = vmatpush1.bf16.msra.mxu0 %v219
    %281 = vmatprep.mubr.bf16.mxu0 %v124
    %282 = vmatmul.mubr.bf16.gmra.mrb[0].mxu0 %v123
    %v283 = vpop.f32.mrb[0].mxu0
    %v284 = vadd.f32 0.0, %v283
    %v285 = vpop.f32.mrb[0].mxu0
    %v286 = vpop.f32.mrb[0].mxu0
    %v287 = vadd.f32 0.0, %v286
    %v288 = vpop.f32.mrb[0].mxu0
    %289 = vdwg.mxu0
    %290 = vmatprep.subr.bf16.mxu0 0
    %291 = vmatpush1.bf16.msra.mxu0 %v220
    %292 = vmatprep.subr.bf16.mxu0 0
    %293 = vmatpush1.bf16.msra.mxu0 %v221
    %294 = vmatprep.subr.bf16.mxu0 0
    %295 = vmatpush1.bf16.msra.mxu0 %v247
    %296 = vmatprep.subr.bf16.mxu0 0
    %297 = vmatpush1.bf16.msra.mxu0 0
    %298 = vmatprep.subr.bf16.mxu0 0
    %299 = vmatpush1.bf16.msra.mxu0 0
    %300 = vmatprep.subr.bf16.mxu0 0
    %301 = vmatpush1.bf16.msra.mxu0 0
    %302 = vmatprep.subr.bf16.mxu0 0
    %303 = vmatpush1.bf16.msra.mxu0 0
    %304 = vmatprep.subr.bf16.mxu0 0
    %305 = vmatpush1.bf16.msra.mxu0 0
    %306 = vmatprep.subr.bf16.mxu0 0
    %307 = vmatpush1.bf16.msra.mxu0 0
    %308 = vmatprep.subr.bf16.mxu0 0
    %309 = vmatpush1.bf16.msra.mxu0 0
    %310 = vmatprep.subr.bf16.mxu0 0
    %311 = vmatpush1.bf16.msra.mxu0 0
    %312 = vmatprep.subr.bf16.mxu0 0
    %313 = vmatpush1.bf16.msra.mxu0 0
    %314 = vmatprep.subr.bf16.mxu0 0
    %315 = vmatpush1.bf16.msra.mxu0 0
    %316 = vmatprep.subr.bf16.mxu0 0
    %317 = vmatpush1.bf16.msra.mxu0 0
    %318 = vmatprep.subr.bf16.mxu0 0
    %319 = vmatpush1.bf16.msra.mxu0 0
    %320 = vmatprep.subr.bf16.mxu0 0
    %321 = vmatpush1.bf16.msra.mxu0 0
    %322 = vmatprep.mubr.bf16.mxu0 0
    %323 = vmatmul.mubr.bf16.gmra.mrb[0].mxu0 %v243
    %v324 = vpop.f32.mrb[0].mxu0
    %v325 = vadd.f32 %v284, %v324
    %v326 = vpop.f32.mrb[0].mxu0
    %v327 = vpop.f32.mrb[0].mxu0
    %v328 = vadd.f32 %v287, %v327
    %v329 = vpop.f32.mrb[0].mxu0
    %330 = vdwg.mxu0
    %v332 = vlaneseq
    %v333 = vshrl.u32 %v332, 7
    %v334 = vsub.s32 0, %v333
    %v335 = vrot.slane %v112, %v334
    %v337 = vadd.f32 %v335, %v325
    %v338 = vadd.f32 %v335, %v328
    %v341 = vcombine.high %v337, %v337
    %v343 = vunpack.c.l.s4 1983009808
    %v344 = vunpack.c.0.s8 %v343
    %v345 = vlaneseq
    %v346 = vshrl.u32 %v345, 7
    %v347 = vsub.s32 %v344, %v346
    %v348 = vrot.slane %v337, %v347
    %v350 = vunpack.c.l.s4 1983009808
    %v351 = vunpack.c.0.s8 %v350
    %v352 = vlaneseq
    %v353 = vshrl.u32 %v352, 7
    %v354 = vsub.s32 %v351, %v353
    %v355 = vrot.slane %v341, %v354
    %v356 = vcombine.high %v348, %v348
    %v357 = vcombine.high %v355, %v355
    %v358 = vcombine.high %v338, %v338
    %v360 = vunpack.c.l.s4 1983009808
    %v361 = vunpack.c.0.s8 %v360
    %v362 = vlaneseq
    %v363 = vshrl.u32 %v362, 7
    %v364 = vsub.s32 %v361, %v363
    %v365 = vrot.slane %v338, %v364
    %v367 = vunpack.c.l.s4 1983009808
    %v368 = vunpack.c.0.s8 %v367
    %v369 = vlaneseq
    %v370 = vshrl.u32 %v369, 7
    %v371 = vsub.s32 %v368, %v370
    %v372 = vrot.slane %v358, %v371
    %v373 = vcombine.high %v365, %v365
    %v374 = vcombine.high %v372, %v372
    %vm383 = vcmask 254976
    %384 = vst.msk [vmem:[#allocation4] sm:$0x3] %vm383, %v348
    %385 = vst.msk [vmem:[#allocation4 + $0x2] sm:$0x3] %vm383, %v356
    %386 = vst.msk [vmem:[#allocation4 + $0x4] sm:$0x3] %vm383, %v355
    %387 = vst.msk [vmem:[#allocation4 + $0x6] sm:$0x3] %vm383, %v357
    %388 = vst.msk [vmem:[#allocation4 + $0x8] sm:$0x3] %vm383, %v365
    %389 = vst.msk [vmem:[#allocation4 + $0xa] sm:$0x3] %vm383, %v373
    %390 = vst.msk [vmem:[#allocation4 + $0xc] sm:$0x3] %vm383, %v372
    %391 = vst.msk [vmem:[#allocation4 + $0xe] sm:$0x3] %vm383, %v374
    %s392 = scalar_lea.vmem %s1, 152
    %v393 = vld [vmem:[%s392] sm:$0xf]
    %v394 = vld [vmem:[%s392 + $0x4] sm:$0xf]
    %v395 = vld [vmem:[%s392 + $0x8] sm:$0xf]
    %v396 = vld [vmem:[%s392 + $0xc] sm:$0xf]
    %v397 = vld [vmem:[%s392 + $0x10] sm:$0xf]
    %v398 = vld [vmem:[%s392 + $0x14] sm:$0xf]
    %v399 = vld [vmem:[%s392 + $0x18] sm:$0xf]
    %v400 = vld [vmem:[%s392 + $0x1c] sm:$0xf]
    %v401 = vld [vmem:[%s392 + $0x20] sm:$0xf]
    %v402 = vld [vmem:[%s392 + $0x24] sm:$0xf]
    %v403 = vld [vmem:[%s392 + $0x28] sm:$0xf]
    %v404 = vld [vmem:[%s392 + $0x2c] sm:$0xf]
    %v405 = vld [vmem:[%s392 + $0x30] sm:$0xf]
    %v406 = vld [vmem:[%s392 + $0x34] sm:$0xf]
    %v407 = vld [vmem:[%s392 + $0x38] sm:$0xf]
    %v408 = vld [vmem:[%s392 + $0x3c] sm:$0xf]
    %v409 = vld [vmem:[%s392 + $0x40] sm:$0xf]
    %v410 = vld [vmem:[%s392 + $0x44] sm:$0xf]
    %v411 = vld [vmem:[%s392 + $0x48] sm:$0xf]
    %v412 = vld [vmem:[%s392 + $0x4c] sm:$0xf]
    %v413 = vld [vmem:[%s392 + $0x50] sm:$0xf]
    %v414 = vld [vmem:[%s392 + $0x54] sm:$0xf]
    %v415 = vld [vmem:[%s392 + $0x58] sm:$0xf]
    %v416 = vld [vmem:[%s392 + $0x5c] sm:$0xf]
    %v417 = vld [vmem:[%s392 + $0x60] sm:$0xf]
    %v418 = vld [vmem:[%s392 + $0x64] sm:$0xf]
    %v419 = vld [vmem:[%s392 + $0x68] sm:$0xf]
    %v420 = vld [vmem:[%s392 + $0x6c] sm:$0xf]
    %v421 = vld [vmem:[%s392 + $0x70] sm:$0xf]
    %v422 = vld [vmem:[%s392 + $0x74] sm:$0xf]
    %v423 = vld [vmem:[%s392 + $0x78] sm:$0xf]
    %v424 = vld [vmem:[%s392 + $0x7c] sm:$0xf]
    %v425 = vld [vmem:[%s392 + $0x80] sm:$0xf]
    %v426 = vld [vmem:[%s392 + $0x84] sm:$0xf]
    %v427 = vld [vmem:[%s392 + $0x88] sm:$0xf]
    %v428 = vld [vmem:[%s392 + $0x8c] sm:$0xf]
    %v429 = vld [vmem:[%s392 + $0x90] sm:$0xf]
    %v430 = vld [vmem:[%s392 + $0x94] sm:$0x3]
    %s431 = scalar_lea.vmem %s3, 1
    %v432 = vld [vmem:[%s431] sm:$0x1]
    %v471 = vunpack.c.l.b16 %v393
    %v472 = vunpack.c.l.b16 %v394
    %v473 = vunpack.c.l.b16 %v395
    %v474 = vunpack.c.l.b16 %v396
    %v475 = vunpack.c.l.b16 %v397
    %v476 = vunpack.c.l.b16 %v398
    %v477 = vunpack.c.l.b16 %v399
    %v478 = vunpack.c.l.b16 %v400
    %v479 = vunpack.c.l.b16 %v401
    %v480 = vunpack.c.l.b16 %v402
    %v481 = vunpack.c.l.b16 %v403
    %v482 = vunpack.c.l.b16 %v404
    %v483 = vunpack.c.l.b16 %v405
    %v484 = vunpack.c.l.b16 %v406
    %v485 = vunpack.c.l.b16 %v407
    %v486 = vunpack.c.l.b16 %v408
    %v487 = vunpack.c.l.b16 %v409
    %v488 = vunpack.c.l.b16 %v410
    %v489 = vunpack.c.l.b16 %v411
    %v490 = vunpack.c.l.b16 %v412
    %v491 = vunpack.c.l.b16 %v413
    %v492 = vunpack.c.l.b16 %v414
    %v493 = vunpack.c.l.b16 %v415
    %v494 = vunpack.c.l.b16 %v416
    %v495 = vunpack.c.l.b16 %v417
    %v496 = vunpack.c.l.b16 %v418
    %v497 = vunpack.c.l.b16 %v419
    %v498 = vunpack.c.l.b16 %v420
    %v499 = vunpack.c.l.b16 %v421
    %v500 = vunpack.c.l.b16 %v422
    %v501 = vunpack.c.l.b16 %v423
    %v502 = vunpack.c.l.b16 %v424
    %v503 = vunpack.c.l.b16 %v425
    %v504 = vunpack.c.l.b16 %v426
    %v505 = vunpack.c.l.b16 %v427
    %v506 = vunpack.c.l.b16 %v428
    %v507 = vunpack.c.l.b16 %v429
    %v508 = vunpack.c.l.b16 %v430
    %v509 = vpack.c.b16 %v472, %v471
    %v510 = vpack.c.b16 %v474, %v473
    %v511 = vpack.c.b16 %v476, %v475
    %v512 = vpack.c.b16 %v478, %v477
    %v513 = vpack.c.b16 %v480, %v479
    %v514 = vpack.c.b16 %v482, %v481
    %v515 = vpack.c.b16 %v484, %v483
    %v516 = vpack.c.b16 %v486, %v485
    %v517 = vpack.c.b16 %v488, %v487
    %v518 = vpack.c.b16 %v490, %v489
    %v519 = vpack.c.b16 %v492, %v491
    %v520 = vpack.c.b16 %v494, %v493
    %v521 = vpack.c.b16 %v496, %v495
    %v522 = vpack.c.b16 %v498, %v497
    %v523 = vpack.c.b16 %v500, %v499
    %v524 = vpack.c.b16 %v502, %v501
    %v525 = vpack.c.b16 %v504, %v503
    %v526 = vpack.c.b16 %v506, %v505
    %v527 = vpack.c.b16 %v508, %v507
    %v547 = vsel %vm245, %v527, 0
    %549 = vmatprep.subr.bf16.mxu0 0
    %550 = vmatpush1.bf16.msra.mxu0 %v509
    %551 = vmatprep.subr.bf16.mxu0 0
    %552 = vmatpush1.bf16.msra.mxu0 %v510
    %553 = vmatprep.subr.bf16.mxu0 0
    %554 = vmatpush1.bf16.msra.mxu0 %v511
    %555 = vmatprep.subr.bf16.mxu0 0
    %556 = vmatpush1.bf16.msra.mxu0 %v512
    %557 = vmatprep.subr.bf16.mxu0 0
    %558 = vmatpush1.bf16.msra.mxu0 %v513
    %559 = vmatprep.subr.bf16.mxu0 0
    %560 = vmatpush1.bf16.msra.mxu0 %v514
    %561 = vmatprep.subr.bf16.mxu0 0
    %562 = vmatpush1.bf16.msra.mxu0 %v515
    %563 = vmatprep.subr.bf16.mxu0 0
    %564 = vmatpush1.bf16.msra.mxu0 %v516
    %565 = vmatprep.subr.bf16.mxu0 0
    %566 = vmatpush1.bf16.msra.mxu0 %v517
    %567 = vmatprep.subr.bf16.mxu0 0
    %568 = vmatpush1.bf16.msra.mxu0 %v518
    %569 = vmatprep.subr.bf16.mxu0 0
    %570 = vmatpush1.bf16.msra.mxu0 %v519
    %571 = vmatprep.subr.bf16.mxu0 0
    %572 = vmatpush1.bf16.msra.mxu0 %v520
    %573 = vmatprep.subr.bf16.mxu0 0
    %574 = vmatpush1.bf16.msra.mxu0 %v521
    %575 = vmatprep.subr.bf16.mxu0 0
    %576 = vmatpush1.bf16.msra.mxu0 %v522
    %577 = vmatprep.subr.bf16.mxu0 0
    %578 = vmatpush1.bf16.msra.mxu0 %v523
    %579 = vmatprep.subr.bf16.mxu0 0
    %580 = vmatpush1.bf16.msra.mxu0 %v524
    %581 = vmatprep.mubr.bf16.mxu0 %v124
    %582 = vmatmul.mubr.bf16.gmra.mrb[0].mxu0 %v123
    %v583 = vpop.f32.mrb[0].mxu0
    %v584 = vadd.f32 0.0, %v583
    %v585 = vpop.f32.mrb[0].mxu0
    %v586 = vpop.f32.mrb[0].mxu0
    %v587 = vadd.f32 0.0, %v586
    %v588 = vpop.f32.mrb[0].mxu0
    %589 = vdwg.mxu0
    %590 = vmatprep.subr.bf16.mxu0 0
    %591 = vmatpush1.bf16.msra.mxu0 %v525
    %592 = vmatprep.subr.bf16.mxu0 0
    %593 = vmatpush1.bf16.msra.mxu0 %v526
    %594 = vmatprep.subr.bf16.mxu0 0
    %595 = vmatpush1.bf16.msra.mxu0 %v547
    %596 = vmatprep.subr.bf16.mxu0 0
    %597 = vmatpush1.bf16.msra.mxu0 0
    %598 = vmatprep.subr.bf16.mxu0 0
    %599 = vmatpush1.bf16.msra.mxu0 0
    %600 = vmatprep.subr.bf16.mxu0 0
    %601 = vmatpush1.bf16.msra.mxu0 0
    %602 = vmatprep.subr.bf16.mxu0 0
    %603 = vmatpush1.bf16.msra.mxu0 0
    %604 = vmatprep.subr.bf16.mxu0 0
    %605 = vmatpush1.bf16.msra.mxu0 0
    %606 = vmatprep.subr.bf16.mxu0 0
    %607 = vmatpush1.bf16.msra.mxu0 0
    %608 = vmatprep.subr.bf16.mxu0 0
    %609 = vmatpush1.bf16.msra.mxu0 0
    %610 = vmatprep.subr.bf16.mxu0 0
    %611 = vmatpush1.bf16.msra.mxu0 0
    %612 = vmatprep.subr.bf16.mxu0 0
    %613 = vmatpush1.bf16.msra.mxu0 0
    %614 = vmatprep.subr.bf16.mxu0 0
    %615 = vmatpush1.bf16.msra.mxu0 0
    %616 = vmatprep.subr.bf16.mxu0 0
    %617 = vmatpush1.bf16.msra.mxu0 0
    %618 = vmatprep.subr.bf16.mxu0 0
    %619 = vmatpush1.bf16.msra.mxu0 0
    %620 = vmatprep.subr.bf16.mxu0 0
    %621 = vmatpush1.bf16.msra.mxu0 0
    %622 = vmatprep.mubr.bf16.mxu0 0
    %623 = vmatmul.mubr.bf16.gmra.mrb[0].mxu0 %v243
    %v624 = vpop.f32.mrb[0].mxu0
    %v625 = vadd.f32 %v584, %v624
    %v626 = vpop.f32.mrb[0].mxu0
    %v627 = vpop.f32.mrb[0].mxu0
    %v628 = vadd.f32 %v587, %v627
    %v629 = vpop.f32.mrb[0].mxu0
    %630 = vdwg.mxu0
    %v632 = vlaneseq
    %v633 = vshrl.u32 %v632, 7
    %v634 = vsub.s32 0, %v633
    %v635 = vrot.slane %v432, %v634
    %v637 = vadd.f32 %v635, %v625
    %v638 = vadd.f32 %v635, %v628
    %v641 = vcombine.high %v637, %v637
    %v643 = vunpack.c.l.s4 1983009808
    %v644 = vunpack.c.0.s8 %v643
    %v645 = vlaneseq
    %v646 = vshrl.u32 %v645, 7
    %v647 = vsub.s32 %v644, %v646
    %v648 = vrot.slane %v637, %v647
    %v650 = vunpack.c.l.s4 1983009808
    %v651 = vunpack.c.0.s8 %v650
    %v652 = vlaneseq
    %v653 = vshrl.u32 %v652, 7
    %v654 = vsub.s32 %v651, %v653
    %v655 = vrot.slane %v641, %v654
    %v656 = vcombine.high %v648, %v648
    %v657 = vcombine.high %v655, %v655
    %v658 = vcombine.high %v638, %v638
    %v660 = vunpack.c.l.s4 1983009808
    %v661 = vunpack.c.0.s8 %v660
    %v662 = vlaneseq
    %v663 = vshrl.u32 %v662, 7
    %v664 = vsub.s32 %v661, %v663
    %v665 = vrot.slane %v638, %v664
    %v667 = vunpack.c.l.s4 1983009808
    %v668 = vunpack.c.0.s8 %v667
    %v669 = vlaneseq
    %v670 = vshrl.u32 %v669, 7
    %v671 = vsub.s32 %v668, %v670
    %v672 = vrot.slane %v658, %v671
    %v673 = vcombine.high %v665, %v665
    %v674 = vcombine.high %v672, %v672
    %683 = vst.msk [vmem:[#allocation5] sm:$0x3] %vm383, %v648
    %684 = vst.msk [vmem:[#allocation5 + $0x2] sm:$0x3] %vm383, %v656
    %685 = vst.msk [vmem:[#allocation5 + $0x4] sm:$0x3] %vm383, %v655
    %686 = vst.msk [vmem:[#allocation5 + $0x6] sm:$0x3] %vm383, %v657
    %687 = vst.msk [vmem:[#allocation5 + $0x8] sm:$0x3] %vm383, %v665
    %688 = vst.msk [vmem:[#allocation5 + $0xa] sm:$0x3] %vm383, %v673
    %689 = vst.msk [vmem:[#allocation5 + $0xc] sm:$0x3] %vm383, %v672
    %690 = vst.msk [vmem:[#allocation5 + $0xe] sm:$0x3] %vm383, %v674
    %s691 = scalar_lea.vmem %s1, 304
    %v692 = vld [vmem:[%s691] sm:$0xf]
    %v693 = vld [vmem:[%s691 + $0x4] sm:$0xf]
    %v694 = vld [vmem:[%s691 + $0x8] sm:$0xf]
    %v695 = vld [vmem:[%s691 + $0xc] sm:$0xf]
    %v696 = vld [vmem:[%s691 + $0x10] sm:$0xf]
    %v697 = vld [vmem:[%s691 + $0x14] sm:$0xf]
    %v698 = vld [vmem:[%s691 + $0x18] sm:$0xf]
    %v699 = vld [vmem:[%s691 + $0x1c] sm:$0xf]
    %v700 = vld [vmem:[%s691 + $0x20] sm:$0xf]
    %v701 = vld [vmem:[%s691 + $0x24] sm:$0xf]
    %v702 = vld [vmem:[%s691 + $0x28] sm:$0xf]
    %v703 = vld [vmem:[%s691 + $0x2c] sm:$0xf]
    %v704 = vld [vmem:[%s691 + $0x30] sm:$0xf]
    %v705 = vld [vmem:[%s691 + $0x34] sm:$0xf]
    %v706 = vld [vmem:[%s691 + $0x38] sm:$0xf]
    %v707 = vld [vmem:[%s691 + $0x3c] sm:$0xf]
    %v708 = vld [vmem:[%s691 + $0x40] sm:$0xf]
    %v709 = vld [vmem:[%s691 + $0x44] sm:$0xf]
    %v710 = vld [vmem:[%s691 + $0x48] sm:$0xf]
    %v711 = vld [vmem:[%s691 + $0x4c] sm:$0xf]
    %v712 = vld [vmem:[%s691 + $0x50] sm:$0xf]
    %v713 = vld [vmem:[%s691 + $0x54] sm:$0xf]
    %v714 = vld [vmem:[%s691 + $0x58] sm:$0xf]
    %v715 = vld [vmem:[%s691 + $0x5c] sm:$0xf]
    %v716 = vld [vmem:[%s691 + $0x60] sm:$0xf]
    %v717 = vld [vmem:[%s691 + $0x64] sm:$0xf]
    %v718 = vld [vmem:[%s691 + $0x68] sm:$0xf]
    %v719 = vld [vmem:[%s691 + $0x6c] sm:$0xf]
    %v720 = vld [vmem:[%s691 + $0x70] sm:$0xf]
    %v721 = vld [vmem:[%s691 + $0x74] sm:$0xf]
    %v722 = vld [vmem:[%s691 + $0x78] sm:$0xf]
    %v723 = vld [vmem:[%s691 + $0x7c] sm:$0xf]
    %v724 = vld [vmem:[%s691 + $0x80] sm:$0xf]
    %v725 = vld [vmem:[%s691 + $0x84] sm:$0xf]
    %v726 = vld [vmem:[%s691 + $0x88] sm:$0xf]
    %v727 = vld [vmem:[%s691 + $0x8c] sm:$0xf]
    %v728 = vld [vmem:[%s691 + $0x90] sm:$0xf]
    %v729 = vld [vmem:[%s691 + $0x94] sm:$0x3]
    %s730 = scalar_lea.vmem %s3, 2
    %v731 = vld [vmem:[%s730] sm:$0x1]
    %v770 = vunpack.c.l.b16 %v692
    %v771 = vunpack.c.l.b16 %v693
    %v772 = vunpack.c.l.b16 %v694
    %v773 = vunpack.c.l.b16 %v695
    %v774 = vunpack.c.l.b16 %v696
    %v775 = vunpack.c.l.b16 %v697
    %v776 = vunpack.c.l.b16 %v698
    %v777 = vunpack.c.l.b16 %v699
    %v778 = vunpack.c.l.b16 %v700
    %v779 = vunpack.c.l.b16 %v701
    %v780 = vunpack.c.l.b16 %v702
    %v781 = vunpack.c.l.b16 %v703
    %v782 = vunpack.c.l.b16 %v704
    %v783 = vunpack.c.l.b16 %v705
    %v784 = vunpack.c.l.b16 %v706
    %v785 = vunpack.c.l.b16 %v707
    %v786 = vunpack.c.l.b16 %v708
    %v787 = vunpack.c.l.b16 %v709
    %v788 = vunpack.c.l.b16 %v710
    %v789 = vunpack.c.l.b16 %v711
    %v790 = vunpack.c.l.b16 %v712
    %v791 = vunpack.c.l.b16 %v713
    %v792 = vunpack.c.l.b16 %v714
    %v793 = vunpack.c.l.b16 %v715
    %v794 = vunpack.c.l.b16 %v716
    %v795 = vunpack.c.l.b16 %v717
    %v796 = vunpack.c.l.b16 %v718
    %v797 = vunpack.c.l.b16 %v719
    %v798 = vunpack.c.l.b16 %v720
    %v799 = vunpack.c.l.b16 %v721
    %v800 = vunpack.c.l.b16 %v722
    %v801 = vunpack.c.l.b16 %v723
    %v802 = vunpack.c.l.b16 %v724
    %v803 = vunpack.c.l.b16 %v725
    %v804 = vunpack.c.l.b16 %v726
    %v805 = vunpack.c.l.b16 %v727
    %v806 = vunpack.c.l.b16 %v728
    %v807 = vunpack.c.l.b16 %v729
    %v808 = vpack.c.b16 %v771, %v770
    %v809 = vpack.c.b16 %v773, %v772
    %v810 = vpack.c.b16 %v775, %v774
    %v811 = vpack.c.b16 %v777, %v776
    %v812 = vpack.c.b16 %v779, %v778
    %v813 = vpack.c.b16 %v781, %v780
    %v814 = vpack.c.b16 %v783, %v782
    %v815 = vpack.c.b16 %v785, %v784
    %v816 = vpack.c.b16 %v787, %v786
    %v817 = vpack.c.b16 %v789, %v788
    %v818 = vpack.c.b16 %v791, %v790
    %v819 = vpack.c.b16 %v793, %v792
    %v820 = vpack.c.b16 %v795, %v794
    %v821 = vpack.c.b16 %v797, %v796
    %v822 = vpack.c.b16 %v799, %v798
    %v823 = vpack.c.b16 %v801, %v800
    %v824 = vpack.c.b16 %v803, %v802
    %v825 = vpack.c.b16 %v805, %v804
    %v826 = vpack.c.b16 %v807, %v806
    %v846 = vsel %vm245, %v826, 0
    %848 = vmatprep.subr.bf16.mxu0 0
    %849 = vmatpush1.bf16.msra.mxu0 %v808
    %850 = vmatprep.subr.bf16.mxu0 0
    %851 = vmatpush1.bf16.msra.mxu0 %v809
    %852 = vmatprep.subr.bf16.mxu0 0
    %853 = vmatpush1.bf16.msra.mxu0 %v810
    %854 = vmatprep.subr.bf16.mxu0 0
    %855 = vmatpush1.bf16.msra.mxu0 %v811
    %856 = vmatprep.subr.bf16.mxu0 0
    %857 = vmatpush1.bf16.msra.mxu0 %v812
    %858 = vmatprep.subr.bf16.mxu0 0
    %859 = vmatpush1.bf16.msra.mxu0 %v813
    %860 = vmatprep.subr.bf16.mxu0 0
    %861 = vmatpush1.bf16.msra.mxu0 %v814
    %862 = vmatprep.subr.bf16.mxu0 0
    %863 = vmatpush1.bf16.msra.mxu0 %v815
    %864 = vmatprep.subr.bf16.mxu0 0
    %865 = vmatpush1.bf16.msra.mxu0 %v816
    %866 = vmatprep.subr.bf16.mxu0 0
    %867 = vmatpush1.bf16.msra.mxu0 %v817
    %868 = vmatprep.subr.bf16.mxu0 0
    %869 = vmatpush1.bf16.msra.mxu0 %v818
    %870 = vmatprep.subr.bf16.mxu0 0
    %871 = vmatpush1.bf16.msra.mxu0 %v819
    %872 = vmatprep.subr.bf16.mxu0 0
    %873 = vmatpush1.bf16.msra.mxu0 %v820
    %874 = vmatprep.subr.bf16.mxu0 0
    %875 = vmatpush1.bf16.msra.mxu0 %v821
    %876 = vmatprep.subr.bf16.mxu0 0
    %877 = vmatpush1.bf16.msra.mxu0 %v822
    %878 = vmatprep.subr.bf16.mxu0 0
    %879 = vmatpush1.bf16.msra.mxu0 %v823
    %880 = vmatprep.mubr.bf16.mxu0 %v124
    %881 = vmatmul.mubr.bf16.gmra.mrb[0].mxu0 %v123
    %v882 = vpop.f32.mrb[0].mxu0
    %v883 = vadd.f32 0.0, %v882
    %v884 = vpop.f32.mrb[0].mxu0
    %v885 = vpop.f32.mrb[0].mxu0
    %v886 = vadd.f32 0.0, %v885
    %v887 = vpop.f32.mrb[0].mxu0
    %888 = vdwg.mxu0
    %889 = vmatprep.subr.bf16.mxu0 0
    %890 = vmatpush1.bf16.msra.mxu0 %v824
    %891 = vmatprep.subr.bf16.mxu0 0
    %892 = vmatpush1.bf16.msra.mxu0 %v825
    %893 = vmatprep.subr.bf16.mxu0 0
    %894 = vmatpush1.bf16.msra.mxu0 %v846
    %895 = vmatprep.subr.bf16.mxu0 0
    %896 = vmatpush1.bf16.msra.mxu0 0
    %897 = vmatprep.subr.bf16.mxu0 0
    %898 = vmatpush1.bf16.msra.mxu0 0
    %899 = vmatprep.subr.bf16.mxu0 0
    %900 = vmatpush1.bf16.msra.mxu0 0
    %901 = vmatprep.subr.bf16.mxu0 0
    %902 = vmatpush1.bf16.msra.mxu0 0
    %903 = vmatprep.subr.bf16.mxu0 0
    %904 = vmatpush1.bf16.msra.mxu0 0
    %905 = vmatprep.subr.bf16.mxu0 0
    %906 = vmatpush1.bf16.msra.mxu0 0
    %907 = vmatprep.subr.bf16.mxu0 0
    %908 = vmatpush1.bf16.msra.mxu0 0
    %909 = vmatprep.subr.bf16.mxu0 0
    %910 = vmatpush1.bf16.msra.mxu0 0
    %911 = vmatprep.subr.bf16.mxu0 0
    %912 = vmatpush1.bf16.msra.mxu0 0
    %913 = vmatprep.subr.bf16.mxu0 0
    %914 = vmatpush1.bf16.msra.mxu0 0
    %915 = vmatprep.subr.bf16.mxu0 0
    %916 = vmatpush1.bf16.msra.mxu0 0
    %917 = vmatprep.subr.bf16.mxu0 0
    %918 = vmatpush1.bf16.msra.mxu0 0
    %919 = vmatprep.subr.bf16.mxu0 0
    %920 = vmatpush1.bf16.msra.mxu0 0
    %921 = vmatprep.mubr.bf16.mxu0 0
    %922 = vmatmul.mubr.bf16.gmra.mrb[0].mxu0 %v243
    %v923 = vpop.f32.mrb[0].mxu0
    %v924 = vadd.f32 %v883, %v923
    %v925 = vpop.f32.mrb[0].mxu0
    %v926 = vpop.f32.mrb[0].mxu0
    %v927 = vadd.f32 %v886, %v926
    %v928 = vpop.f32.mrb[0].mxu0
    %929 = vdwg.mxu0
    %v931 = vlaneseq
    %v932 = vshrl.u32 %v931, 7
    %v933 = vsub.s32 0, %v932
    %v934 = vrot.slane %v731, %v933
    %v936 = vadd.f32 %v934, %v924
    %v937 = vadd.f32 %v934, %v927
    %v940 = vcombine.high %v936, %v936
    %v942 = vunpack.c.l.s4 1983009808
    %v943 = vunpack.c.0.s8 %v942
    %v944 = vlaneseq
    %v945 = vshrl.u32 %v944, 7
    %v946 = vsub.s32 %v943, %v945
    %v947 = vrot.slane %v936, %v946
    %v949 = vunpack.c.l.s4 1983009808
    %v950 = vunpack.c.0.s8 %v949
    %v951 = vlaneseq
    %v952 = vshrl.u32 %v951, 7
    %v953 = vsub.s32 %v950, %v952
    %v954 = vrot.slane %v940, %v953
    %v955 = vcombine.high %v947, %v947
    %v956 = vcombine.high %v954, %v954
    %v957 = vcombine.high %v937, %v937
    %v959 = vunpack.c.l.s4 1983009808
    %v960 = vunpack.c.0.s8 %v959
    %v961 = vlaneseq
    %v962 = vshrl.u32 %v961, 7
    %v963 = vsub.s32 %v960, %v962
    %v964 = vrot.slane %v937, %v963
    %v966 = vunpack.c.l.s4 1983009808
    %v967 = vunpack.c.0.s8 %v966
    %v968 = vlaneseq
    %v969 = vshrl.u32 %v968, 7
    %v970 = vsub.s32 %v967, %v969
    %v971 = vrot.slane %v957, %v970
    %v972 = vcombine.high %v964, %v964
    %v973 = vcombine.high %v971, %v971
    %982 = vst.msk [vmem:[#allocation6] sm:$0x3] %vm383, %v947
    %983 = vst.msk [vmem:[#allocation6 + $0x2] sm:$0x3] %vm383, %v955
    %984 = vst.msk [vmem:[#allocation6 + $0x4] sm:$0x3] %vm383, %v954
    %985 = vst.msk [vmem:[#allocation6 + $0x6] sm:$0x3] %vm383, %v956
    %986 = vst.msk [vmem:[#allocation6 + $0x8] sm:$0x3] %vm383, %v964
    %987 = vst.msk [vmem:[#allocation6 + $0xa] sm:$0x3] %vm383, %v972
    %988 = vst.msk [vmem:[#allocation6 + $0xc] sm:$0x3] %vm383, %v971
    %989 = vst.msk [vmem:[#allocation6 + $0xe] sm:$0x3] %vm383, %v973
    %v990 = vld [vmem:[%s5] sm:$0xf]
    %v991 = vld [vmem:[%s5 + $0x4] sm:$0xf]
    %v992 = vld [vmem:[%s5 + $0x8] sm:$0xf]
    %v993 = vld [vmem:[%s5 + $0xc] sm:$0xf]
    %v994 = vld [vmem:[%s5 + $0x10] sm:$0xf]
    %v995 = vld [vmem:[%s5 + $0x14] sm:$0xf]
    %v996 = vld [vmem:[%s5 + $0x18] sm:$0xf]
    %v997 = vld [vmem:[%s5 + $0x1c] sm:$0xf]
    %v998 = vld [vmem:[%s5 + $0x20] sm:$0xf]
    %v999 = vld [vmem:[%s5 + $0x24] sm:$0xf]
    %v1000 = vld [vmem:[%s5 + $0x28] sm:$0xf]
    %v1001 = vld [vmem:[%s5 + $0x2c] sm:$0xf]
    %v1002 = vld [vmem:[%s5 + $0x30] sm:$0xf]
    %v1003 = vld [vmem:[%s5 + $0x34] sm:$0xf]
    %v1004 = vld [vmem:[%s5 + $0x38] sm:$0xf]
    %v1005 = vld [vmem:[%s5 + $0x3c] sm:$0xf]
    %v1006 = vld [vmem:[%s5 + $0x40] sm:$0xf]
    %v1007 = vld [vmem:[%s5 + $0x44] sm:$0xf]
    %v1008 = vld [vmem:[%s5 + $0x48] sm:$0xf]
    %v1009 = vld [vmem:[%s5 + $0x4c] sm:$0xf]
    %v1010 = vld [vmem:[%s5 + $0x50] sm:$0xf]
    %v1011 = vld [vmem:[%s5 + $0x54] sm:$0xf]
    %v1012 = vld [vmem:[%s5 + $0x58] sm:$0xf]
    %v1013 = vld [vmem:[%s5 + $0x5c] sm:$0xf]
    %v1014 = vld [vmem:[%s5 + $0x60] sm:$0xf]
    %v1015 = vld [vmem:[%s5 + $0x64] sm:$0xf]
    %v1016 = vld [vmem:[%s5 + $0x68] sm:$0xf]
    %v1017 = vld [vmem:[%s5 + $0x6c] sm:$0xf]
    %v1018 = vld [vmem:[%s5 + $0x70] sm:$0xf]
    %v1019 = vld [vmem:[%s5 + $0x74] sm:$0xf]
    %v1020 = vld [vmem:[%s5 + $0x78] sm:$0xf]
    %v1021 = vld [vmem:[%s5 + $0x7c] sm:$0xf]
    %v1022 = vld [vmem:[%s5 + $0x80] sm:$0xf]
    %v1023 = vld [vmem:[%s5 + $0x84] sm:$0xf]
    %v1024 = vld [vmem:[%s5 + $0x88] sm:$0xf]
    %v1025 = vld [vmem:[%s5 + $0x8c] sm:$0xf]
    %v1026 = vld [vmem:[%s5 + $0x90] sm:$0xf]
    %v1027 = vld [vmem:[%s5 + $0x94] sm:$0x3]
    %v1028 = vld [vmem:[%s7] sm:$0x1]
    %v1067 = vunpack.c.l.b16 %v990
    %v1068 = vunpack.c.l.b16 %v991
    %v1069 = vunpack.c.l.b16 %v992
    %v1070 = vunpack.c.l.b16 %v993
    %v1071 = vunpack.c.l.b16 %v994
    %v1072 = vunpack.c.l.b16 %v995
    %v1073 = vunpack.c.l.b16 %v996
    %v1074 = vunpack.c.l.b16 %v997
    %v1075 = vunpack.c.l.b16 %v998
    %v1076 = vunpack.c.l.b16 %v999
    %v1077 = vunpack.c.l.b16 %v1000
    %v1078 = vunpack.c.l.b16 %v1001
    %v1079 = vunpack.c.l.b16 %v1002
    %v1080 = vunpack.c.l.b16 %v1003
    %v1081 = vunpack.c.l.b16 %v1004
    %v1082 = vunpack.c.l.b16 %v1005
    %v1083 = vunpack.c.l.b16 %v1006
    %v1084 = vunpack.c.l.b16 %v1007
    %v1085 = vunpack.c.l.b16 %v1008
    %v1086 = vunpack.c.l.b16 %v1009
    %v1087 = vunpack.c.l.b16 %v1010
    %v1088 = vunpack.c.l.b16 %v1011
    %v1089 = vunpack.c.l.b16 %v1012
    %v1090 = vunpack.c.l.b16 %v1013
    %v1091 = vunpack.c.l.b16 %v1014
    %v1092 = vunpack.c.l.b16 %v1015
    %v1093 = vunpack.c.l.b16 %v1016
    %v1094 = vunpack.c.l.b16 %v1017
    %v1095 = vunpack.c.l.b16 %v1018
    %v1096 = vunpack.c.l.b16 %v1019
    %v1097 = vunpack.c.l.b16 %v1020
    %v1098 = vunpack.c.l.b16 %v1021
    %v1099 = vunpack.c.l.b16 %v1022
    %v1100 = vunpack.c.l.b16 %v1023
    %v1101 = vunpack.c.l.b16 %v1024
    %v1102 = vunpack.c.l.b16 %v1025
    %v1103 = vunpack.c.l.b16 %v1026
    %v1104 = vunpack.c.l.b16 %v1027
    %v1105 = vpack.c.b16 %v1068, %v1067
    %v1106 = vpack.c.b16 %v1070, %v1069
    %v1107 = vpack.c.b16 %v1072, %v1071
    %v1108 = vpack.c.b16 %v1074, %v1073
    %v1109 = vpack.c.b16 %v1076, %v1075
    %v1110 = vpack.c.b16 %v1078, %v1077
    %v1111 = vpack.c.b16 %v1080, %v1079
    %v1112 = vpack.c.b16 %v1082, %v1081
    %v1113 = vpack.c.b16 %v1084, %v1083
    %v1114 = vpack.c.b16 %v1086, %v1085
    %v1115 = vpack.c.b16 %v1088, %v1087
    %v1116 = vpack.c.b16 %v1090, %v1089
    %v1117 = vpack.c.b16 %v1092, %v1091
    %v1118 = vpack.c.b16 %v1094, %v1093
    %v1119 = vpack.c.b16 %v1096, %v1095
    %v1120 = vpack.c.b16 %v1098, %v1097
    %v1121 = vpack.c.b16 %v1100, %v1099
    %v1122 = vpack.c.b16 %v1102, %v1101
    %v1123 = vpack.c.b16 %v1104, %v1103
    %v1143 = vsel %vm245, %v1123, 0
    %1145 = vmatprep.subr.bf16.mxu0 0
    %1146 = vmatpush1.bf16.msra.mxu0 %v1105
    %1147 = vmatprep.subr.bf16.mxu0 0
    %1148 = vmatpush1.bf16.msra.mxu0 %v1106
    %1149 = vmatprep.subr.bf16.mxu0 0
    %1150 = vmatpush1.bf16.msra.mxu0 %v1107
    %1151 = vmatprep.subr.bf16.mxu0 0
    %1152 = vmatpush1.bf16.msra.mxu0 %v1108
    %1153 = vmatprep.subr.bf16.mxu0 0
    %1154 = vmatpush1.bf16.msra.mxu0 %v1109
    %1155 = vmatprep.subr.bf16.mxu0 0
    %1156 = vmatpush1.bf16.msra.mxu0 %v1110
    %1157 = vmatprep.subr.bf16.mxu0 0
    %1158 = vmatpush1.bf16.msra.mxu0 %v1111
    %1159 = vmatprep.subr.bf16.mxu0 0
    %1160 = vmatpush1.bf16.msra.mxu0 %v1112
    %1161 = vmatprep.subr.bf16.mxu0 0
    %1162 = vmatpush1.bf16.msra.mxu0 %v1113
    %1163 = vmatprep.subr.bf16.mxu0 0
    %1164 = vmatpush1.bf16.msra.mxu0 %v1114
    %1165 = vmatprep.subr.bf16.mxu0 0
    %1166 = vmatpush1.bf16.msra.mxu0 %v1115
    %1167 = vmatprep.subr.bf16.mxu0 0
    %1168 = vmatpush1.bf16.msra.mxu0 %v1116
    %1169 = vmatprep.subr.bf16.mxu0 0
    %1170 = vmatpush1.bf16.msra.mxu0 %v1117
    %1171 = vmatprep.subr.bf16.mxu0 0
    %1172 = vmatpush1.bf16.msra.mxu0 %v1118
    %1173 = vmatprep.subr.bf16.mxu0 0
    %1174 = vmatpush1.bf16.msra.mxu0 %v1119
    %1175 = vmatprep.subr.bf16.mxu0 0
    %1176 = vmatpush1.bf16.msra.mxu0 %v1120
    %1177 = vmatprep.mubr.bf16.mxu0 %v124
    %1178 = vmatmul.mubr.bf16.gmra.mrb[0].mxu0 %v123
    %v1179 = vpop.f32.mrb[0].mxu0
    %v1180 = vadd.f32 0.0, %v1179
    %v1181 = vpop.f32.mrb[0].mxu0
    %v1182 = vpop.f32.mrb[0].mxu0
    %v1183 = vadd.f32 0.0, %v1182
    %v1184 = vpop.f32.mrb[0].mxu0
    %1185 = vdwg.mxu0
    %1186 = vmatprep.subr.bf16.mxu0 0
    %1187 = vmatpush1.bf16.msra.mxu0 %v1121
    %1188 = vmatprep.subr.bf16.mxu0 0
    %1189 = vmatpush1.bf16.msra.mxu0 %v1122
    %1190 = vmatprep.subr.bf16.mxu0 0
    %1191 = vmatpush1.bf16.msra.mxu0 %v1143
    %1192 = vmatprep.subr.bf16.mxu0 0
    %1193 = vmatpush1.bf16.msra.mxu0 0
    %1194 = vmatprep.subr.bf16.mxu0 0
    %1195 = vmatpush1.bf16.msra.mxu0 0
    %1196 = vmatprep.subr.bf16.mxu0 0
    %1197 = vmatpush1.bf16.msra.mxu0 0
    %1198 = vmatprep.subr.bf16.mxu0 0
    %1199 = vmatpush1.bf16.msra.mxu0 0
    %1200 = vmatprep.subr.bf16.mxu0 0
    %1201 = vmatpush1.bf16.msra.mxu0 0
    %1202 = vmatprep.subr.bf16.mxu0 0
    %1203 = vmatpush1.bf16.msra.mxu0 0
    %1204 = vmatprep.subr.bf16.mxu0 0
    %1205 = vmatpush1.bf16.msra.mxu0 0
    %1206 = vmatprep.subr.bf16.mxu0 0
    %1207 = vmatpush1.bf16.msra.mxu0 0
    %1208 = vmatprep.subr.bf16.mxu0 0
    %1209 = vmatpush1.bf16.msra.mxu0 0
    %1210 = vmatprep.subr.bf16.mxu0 0
    %1211 = vmatpush1.bf16.msra.mxu0 0
    %1212 = vmatprep.subr.bf16.mxu0 0
    %1213 = vmatpush1.bf16.msra.mxu0 0
    %1214 = vmatprep.subr.bf16.mxu0 0
    %1215 = vmatpush1.bf16.msra.mxu0 0
    %1216 = vmatprep.subr.bf16.mxu0 0
    %1217 = vmatpush1.bf16.msra.mxu0 0
    %1218 = vmatprep.mubr.bf16.mxu0 0
    %1219 = vmatmul.mubr.bf16.gmra.mrb[0].mxu0 %v243
    %v1220 = vpop.f32.mrb[0].mxu0
    %v1221 = vadd.f32 %v1180, %v1220
    %v1222 = vpop.f32.mrb[0].mxu0
    %v1223 = vpop.f32.mrb[0].mxu0
    %v1224 = vadd.f32 %v1183, %v1223
    %v1225 = vpop.f32.mrb[0].mxu0
    %1226 = vdwg.mxu0
    %v1228 = vlaneseq
    %v1229 = vshrl.u32 %v1228, 7
    %v1230 = vsub.s32 0, %v1229
    %v1231 = vrot.slane %v1028, %v1230
    %v1233 = vadd.f32 %v1231, %v1221
    %v1234 = vadd.f32 %v1231, %v1224
    %v1237 = vcombine.high %v1233, %v1233
    %v1239 = vunpack.c.l.s4 1983009808
    %v1240 = vunpack.c.0.s8 %v1239
    %v1241 = vlaneseq
    %v1242 = vshrl.u32 %v1241, 7
    %v1243 = vsub.s32 %v1240, %v1242
    %v1244 = vrot.slane %v1233, %v1243
    %v1246 = vunpack.c.l.s4 1983009808
    %v1247 = vunpack.c.0.s8 %v1246
    %v1248 = vlaneseq
    %v1249 = vshrl.u32 %v1248, 7
    %v1250 = vsub.s32 %v1247, %v1249
    %v1251 = vrot.slane %v1237, %v1250
    %v1252 = vcombine.high %v1244, %v1244
    %v1253 = vcombine.high %v1251, %v1251
    %v1254 = vcombine.high %v1234, %v1234
    %v1256 = vunpack.c.l.s4 1983009808
    %v1257 = vunpack.c.0.s8 %v1256
    %v1258 = vlaneseq
    %v1259 = vshrl.u32 %v1258, 7
    %v1260 = vsub.s32 %v1257, %v1259
    %v1261 = vrot.slane %v1234, %v1260
    %v1263 = vunpack.c.l.s4 1983009808
    %v1264 = vunpack.c.0.s8 %v1263
    %v1265 = vlaneseq
    %v1266 = vshrl.u32 %v1265, 7
    %v1267 = vsub.s32 %v1264, %v1266
    %v1268 = vrot.slane %v1254, %v1267
    %v1269 = vcombine.high %v1261, %v1261
    %v1270 = vcombine.high %v1268, %v1268
    %1279 = vst.msk [vmem:[#allocation7] sm:$0x3] %vm383, %v1244
    %1280 = vst.msk [vmem:[#allocation7 + $0x2] sm:$0x3] %vm383, %v1252
    %1281 = vst.msk [vmem:[#allocation7 + $0x4] sm:$0x3] %vm383, %v1251
    %1282 = vst.msk [vmem:[#allocation7 + $0x6] sm:$0x3] %vm383, %v1253
    %1283 = vst.msk [vmem:[#allocation7 + $0x8] sm:$0x3] %vm383, %v1261
    %1284 = vst.msk [vmem:[#allocation7 + $0xa] sm:$0x3] %vm383, %v1269
    %1285 = vst.msk [vmem:[#allocation7 + $0xc] sm:$0x3] %vm383, %v1268
    %1286 = vst.msk [vmem:[#allocation7 + $0xe] sm:$0x3] %vm383, %v1270
    %s1287 = scalar_lea.vmem %s5, 152
    %v1288 = vld [vmem:[%s1287] sm:$0xf]
    %v1289 = vld [vmem:[%s1287 + $0x4] sm:$0xf]
    %v1290 = vld [vmem:[%s1287 + $0x8] sm:$0xf]
    %v1291 = vld [vmem:[%s1287 + $0xc] sm:$0xf]
    %v1292 = vld [vmem:[%s1287 + $0x10] sm:$0xf]
    %v1293 = vld [vmem:[%s1287 + $0x14] sm:$0xf]
    %v1294 = vld [vmem:[%s1287 + $0x18] sm:$0xf]
    %v1295 = vld [vmem:[%s1287 + $0x1c] sm:$0xf]
    %v1296 = vld [vmem:[%s1287 + $0x20] sm:$0xf]
    %v1297 = vld [vmem:[%s1287 + $0x24] sm:$0xf]
    %v1298 = vld [vmem:[%s1287 + $0x28] sm:$0xf]
    %v1299 = vld [vmem:[%s1287 + $0x2c] sm:$0xf]
    %v1300 = vld [vmem:[%s1287 + $0x30] sm:$0xf]
    %v1301 = vld [vmem:[%s1287 + $0x34] sm:$0xf]
    %v1302 = vld [vmem:[%s1287 + $0x38] sm:$0xf]
    %v1303 = vld [vmem:[%s1287 + $0x3c] sm:$0xf]
    %v1304 = vld [vmem:[%s1287 + $0x40] sm:$0xf]
    %v1305 = vld [vmem:[%s1287 + $0x44] sm:$0xf]
    %v1306 = vld [vmem:[%s1287 + $0x48] sm:$0xf]
    %v1307 = vld [vmem:[%s1287 + $0x4c] sm:$0xf]
    %v1308 = vld [vmem:[%s1287 + $0x50] sm:$0xf]
    %v1309 = vld [vmem:[%s1287 + $0x54] sm:$0xf]
    %v1310 = vld [vmem:[%s1287 + $0x58] sm:$0xf]
    %v1311 = vld [vmem:[%s1287 + $0x5c] sm:$0xf]
    %v1312 = vld [vmem:[%s1287 + $0x60] sm:$0xf]
    %v1313 = vld [vmem:[%s1287 + $0x64] sm:$0xf]
    %v1314 = vld [vmem:[%s1287 + $0x68] sm:$0xf]
    %v1315 = vld [vmem:[%s1287 + $0x6c] sm:$0xf]
    %v1316 = vld [vmem:[%s1287 + $0x70] sm:$0xf]
    %v1317 = vld [vmem:[%s1287 + $0x74] sm:$0xf]
    %v1318 = vld [vmem:[%s1287 + $0x78] sm:$0xf]
    %v1319 = vld [vmem:[%s1287 + $0x7c] sm:$0xf]
    %v1320 = vld [vmem:[%s1287 + $0x80] sm:$0xf]
    %v1321 = vld [vmem:[%s1287 + $0x84] sm:$0xf]
    %v1322 = vld [vmem:[%s1287 + $0x88] sm:$0xf]
    %v1323 = vld [vmem:[%s1287 + $0x8c] sm:$0xf]
    %v1324 = vld [vmem:[%s1287 + $0x90] sm:$0xf]
    %v1325 = vld [vmem:[%s1287 + $0x94] sm:$0x3]
    %s1326 = scalar_lea.vmem %s7, 1
    %v1327 = vld [vmem:[%s1326] sm:$0x1]
    %v1366 = vunpack.c.l.b16 %v1288
    %v1367 = vunpack.c.l.b16 %v1289
    %v1368 = vunpack.c.l.b16 %v1290
    %v1369 = vunpack.c.l.b16 %v1291
    %v1370 = vunpack.c.l.b16 %v1292
    %v1371 = vunpack.c.l.b16 %v1293
    %v1372 = vunpack.c.l.b16 %v1294
    %v1373 = vunpack.c.l.b16 %v1295
    %v1374 = vunpack.c.l.b16 %v1296
    %v1375 = vunpack.c.l.b16 %v1297
    %v1376 = vunpack.c.l.b16 %v1298
    %v1377 = vunpack.c.l.b16 %v1299
    %v1378 = vunpack.c.l.b16 %v1300
    %v1379 = vunpack.c.l.b16 %v1301
    %v1380 = vunpack.c.l.b16 %v1302
    %v1381 = vunpack.c.l.b16 %v1303
    %v1382 = vunpack.c.l.b16 %v1304
    %v1383 = vunpack.c.l.b16 %v1305
    %v1384 = vunpack.c.l.b16 %v1306
    %v1385 = vunpack.c.l.b16 %v1307
    %v1386 = vunpack.c.l.b16 %v1308
    %v1387 = vunpack.c.l.b16 %v1309
    %v1388 = vunpack.c.l.b16 %v1310
    %v1389 = vunpack.c.l.b16 %v1311
    %v1390 = vunpack.c.l.b16 %v1312
    %v1391 = vunpack.c.l.b16 %v1313
    %v1392 = vunpack.c.l.b16 %v1314
    %v1393 = vunpack.c.l.b16 %v1315
    %v1394 = vunpack.c.l.b16 %v1316
    %v1395 = vunpack.c.l.b16 %v1317
    %v1396 = vunpack.c.l.b16 %v1318
    %v1397 = vunpack.c.l.b16 %v1319
    %v1398 = vunpack.c.l.b16 %v1320
    %v1399 = vunpack.c.l.b16 %v1321
    %v1400 = vunpack.c.l.b16 %v1322
    %v1401 = vunpack.c.l.b16 %v1323
    %v1402 = vunpack.c.l.b16 %v1324
    %v1403 = vunpack.c.l.b16 %v1325
    %v1404 = vpack.c.b16 %v1367, %v1366
    %v1405 = vpack.c.b16 %v1369, %v1368
    %v1406 = vpack.c.b16 %v1371, %v1370
    %v1407 = vpack.c.b16 %v1373, %v1372
    %v1408 = vpack.c.b16 %v1375, %v1374
    %v1409 = vpack.c.b16 %v1377, %v1376
    %v1410 = vpack.c.b16 %v1379, %v1378
    %v1411 = vpack.c.b16 %v1381, %v1380
    %v1412 = vpack.c.b16 %v1383, %v1382
    %v1413 = vpack.c.b16 %v1385, %v1384
    %v1414 = vpack.c.b16 %v1387, %v1386
    %v1415 = vpack.c.b16 %v1389, %v1388
    %v1416 = vpack.c.b16 %v1391, %v1390
    %v1417 = vpack.c.b16 %v1393, %v1392
    %v1418 = vpack.c.b16 %v1395, %v1394
    %v1419 = vpack.c.b16 %v1397, %v1396
    %v1420 = vpack.c.b16 %v1399, %v1398
    %v1421 = vpack.c.b16 %v1401, %v1400
    %v1422 = vpack.c.b16 %v1403, %v1402
    %v1442 = vsel %vm245, %v1422, 0
    %1444 = vmatprep.subr.bf16.mxu0 0
    %1445 = vmatpush1.bf16.msra.mxu0 %v1404
    %1446 = vmatprep.subr.bf16.mxu0 0
    %1447 = vmatpush1.bf16.msra.mxu0 %v1405
    %1448 = vmatprep.subr.bf16.mxu0 0
    %1449 = vmatpush1.bf16.msra.mxu0 %v1406
    %1450 = vmatprep.subr.bf16.mxu0 0
    %1451 = vmatpush1.bf16.msra.mxu0 %v1407
    %1452 = vmatprep.subr.bf16.mxu0 0
    %1453 = vmatpush1.bf16.msra.mxu0 %v1408
    %1454 = vmatprep.subr.bf16.mxu0 0
    %1455 = vmatpush1.bf16.msra.mxu0 %v1409
    %1456 = vmatprep.subr.bf16.mxu0 0
    %1457 = vmatpush1.bf16.msra.mxu0 %v1410
    %1458 = vmatprep.subr.bf16.mxu0 0
    %1459 = vmatpush1.bf16.msra.mxu0 %v1411
    %1460 = vmatprep.subr.bf16.mxu0 0
    %1461 = vmatpush1.bf16.msra.mxu0 %v1412
    %1462 = vmatprep.subr.bf16.mxu0 0
    %1463 = vmatpush1.bf16.msra.mxu0 %v1413
    %1464 = vmatprep.subr.bf16.mxu0 0
    %1465 = vmatpush1.bf16.msra.mxu0 %v1414
    %1466 = vmatprep.subr.bf16.mxu0 0
    %1467 = vmatpush1.bf16.msra.mxu0 %v1415
    %1468 = vmatprep.subr.bf16.mxu0 0
    %1469 = vmatpush1.bf16.msra.mxu0 %v1416
    %1470 = vmatprep.subr.bf16.mxu0 0
    %1471 = vmatpush1.bf16.msra.mxu0 %v1417
    %1472 = vmatprep.subr.bf16.mxu0 0
    %1473 = vmatpush1.bf16.msra.mxu0 %v1418
    %1474 = vmatprep.subr.bf16.mxu0 0
    %1475 = vmatpush1.bf16.msra.mxu0 %v1419
    %1476 = vmatprep.mubr.bf16.mxu0 %v124
    %1477 = vmatmul.mubr.bf16.gmra.mrb[0].mxu0 %v123
    %v1478 = vpop.f32.mrb[0].mxu0
    %v1479 = vadd.f32 0.0, %v1478
    %v1480 = vpop.f32.mrb[0].mxu0
    %v1481 = vpop.f32.mrb[0].mxu0
    %v1482 = vadd.f32 0.0, %v1481
    %v1483 = vpop.f32.mrb[0].mxu0
    %1484 = vdwg.mxu0
    %1485 = vmatprep.subr.bf16.mxu0 0
    %1486 = vmatpush1.bf16.msra.mxu0 %v1420
    %1487 = vmatprep.subr.bf16.mxu0 0
    %1488 = vmatpush1.bf16.msra.mxu0 %v1421
    %1489 = vmatprep.subr.bf16.mxu0 0
    %1490 = vmatpush1.bf16.msra.mxu0 %v1442
    %1491 = vmatprep.subr.bf16.mxu0 0
    %1492 = vmatpush1.bf16.msra.mxu0 0
    %1493 = vmatprep.subr.bf16.mxu0 0
    %1494 = vmatpush1.bf16.msra.mxu0 0
    %1495 = vmatprep.subr.bf16.mxu0 0
    %1496 = vmatpush1.bf16.msra.mxu0 0
    %1497 = vmatprep.subr.bf16.mxu0 0
    %1498 = vmatpush1.bf16.msra.mxu0 0
    %1499 = vmatprep.subr.bf16.mxu0 0
    %1500 = vmatpush1.bf16.msra.mxu0 0
    %1501 = vmatprep.subr.bf16.mxu0 0
    %1502 = vmatpush1.bf16.msra.mxu0 0
    %1503 = vmatprep.subr.bf16.mxu0 0
    %1504 = vmatpush1.bf16.msra.mxu0 0
    %1505 = vmatprep.subr.bf16.mxu0 0
    %1506 = vmatpush1.bf16.msra.mxu0 0
    %1507 = vmatprep.subr.bf16.mxu0 0
    %1508 = vmatpush1.bf16.msra.mxu0 0
    %1509 = vmatprep.subr.bf16.mxu0 0
    %1510 = vmatpush1.bf16.msra.mxu0 0
    %1511 = vmatprep.subr.bf16.mxu0 0
    %1512 = vmatpush1.bf16.msra.mxu0 0
    %1513 = vmatprep.subr.bf16.mxu0 0
    %1514 = vmatpush1.bf16.msra.mxu0 0
    %1515 = vmatprep.subr.bf16.mxu0 0
    %1516 = vmatpush1.bf16.msra.mxu0 0
    %1517 = vmatprep.mubr.bf16.mxu0 0
    %1518 = vmatmul.mubr.bf16.gmra.mrb[0].mxu0 %v243
    %v1519 = vpop.f32.mrb[0].mxu0
    %v1520 = vadd.f32 %v1479, %v1519
    %v1521 = vpop.f32.mrb[0].mxu0
    %v1522 = vpop.f32.mrb[0].mxu0
    %v1523 = vadd.f32 %v1482, %v1522
    %v1524 = vpop.f32.mrb[0].mxu0
    %1525 = vdwg.mxu0
    %v1527 = vlaneseq
    %v1528 = vshrl.u32 %v1527, 7
    %v1529 = vsub.s32 0, %v1528
    %v1530 = vrot.slane %v1327, %v1529
    %v1532 = vadd.f32 %v1530, %v1520
    %v1533 = vadd.f32 %v1530, %v1523
    %v1536 = vcombine.high %v1532, %v1532
    %v1538 = vunpack.c.l.s4 1983009808
    %v1539 = vunpack.c.0.s8 %v1538
    %v1540 = vlaneseq
    %v1541 = vshrl.u32 %v1540, 7
    %v1542 = vsub.s32 %v1539, %v1541
    %v1543 = vrot.slane %v1532, %v1542
    %v1545 = vunpack.c.l.s4 1983009808
    %v1546 = vunpack.c.0.s8 %v1545
    %v1547 = vlaneseq
    %v1548 = vshrl.u32 %v1547, 7
    %v1549 = vsub.s32 %v1546, %v1548
    %v1550 = vrot.slane %v1536, %v1549
    %v1551 = vcombine.high %v1543, %v1543
    %v1552 = vcombine.high %v1550, %v1550
    %v1553 = vcombine.high %v1533, %v1533
    %v1555 = vunpack.c.l.s4 1983009808
    %v1556 = vunpack.c.0.s8 %v1555
    %v1557 = vlaneseq
    %v1558 = vshrl.u32 %v1557, 7
    %v1559 = vsub.s32 %v1556, %v1558
    %v1560 = vrot.slane %v1533, %v1559
    %v1562 = vunpack.c.l.s4 1983009808
    %v1563 = vunpack.c.0.s8 %v1562
    %v1564 = vlaneseq
    %v1565 = vshrl.u32 %v1564, 7
    %v1566 = vsub.s32 %v1563, %v1565
    %v1567 = vrot.slane %v1553, %v1566
    %v1568 = vcombine.high %v1560, %v1560
    %v1569 = vcombine.high %v1567, %v1567
    %1578 = vst.msk [vmem:[#allocation8] sm:$0x3] %vm383, %v1543
    %1579 = vst.msk [vmem:[#allocation8 + $0x2] sm:$0x3] %vm383, %v1551
    %1580 = vst.msk [vmem:[#allocation8 + $0x4] sm:$0x3] %vm383, %v1550
    %1581 = vst.msk [vmem:[#allocation8 + $0x6] sm:$0x3] %vm383, %v1552
    %1582 = vst.msk [vmem:[#allocation8 + $0x8] sm:$0x3] %vm383, %v1560
    %1583 = vst.msk [vmem:[#allocation8 + $0xa] sm:$0x3] %vm383, %v1568
    %1584 = vst.msk [vmem:[#allocation8 + $0xc] sm:$0x3] %vm383, %v1567
    %1585 = vst.msk [vmem:[#allocation8 + $0xe] sm:$0x3] %vm383, %v1569
    %s1586 = scalar_lea.vmem %s5, 304
    %v1587 = vld [vmem:[%s1586] sm:$0xf]
    %v1588 = vld [vmem:[%s1586 + $0x4] sm:$0xf]
    %v1589 = vld [vmem:[%s1586 + $0x8] sm:$0xf]
    %v1590 = vld [vmem:[%s1586 + $0xc] sm:$0xf]
    %v1591 = vld [vmem:[%s1586 + $0x10] sm:$0xf]
    %v1592 = vld [vmem:[%s1586 + $0x14] sm:$0xf]
    %v1593 = vld [vmem:[%s1586 + $0x18] sm:$0xf]
    %v1594 = vld [vmem:[%s1586 + $0x1c] sm:$0xf]
    %v1595 = vld [vmem:[%s1586 + $0x20] sm:$0xf]
    %v1596 = vld [vmem:[%s1586 + $0x24] sm:$0xf]
    %v1597 = vld [vmem:[%s1586 + $0x28] sm:$0xf]
    %v1598 = vld [vmem:[%s1586 + $0x2c] sm:$0xf]
    %v1599 = vld [vmem:[%s1586 + $0x30] sm:$0xf]
    %v1600 = vld [vmem:[%s1586 + $0x34] sm:$0xf]
    %v1601 = vld [vmem:[%s1586 + $0x38] sm:$0xf]
    %v1602 = vld [vmem:[%s1586 + $0x3c] sm:$0xf]
    %v1603 = vld [vmem:[%s1586 + $0x40] sm:$0xf]
    %v1604 = vld [vmem:[%s1586 + $0x44] sm:$0xf]
    %v1605 = vld [vmem:[%s1586 + $0x48] sm:$0xf]
    %v1606 = vld [vmem:[%s1586 + $0x4c] sm:$0xf]
    %v1607 = vld [vmem:[%s1586 + $0x50] sm:$0xf]
    %v1608 = vld [vmem:[%s1586 + $0x54] sm:$0xf]
    %v1609 = vld [vmem:[%s1586 + $0x58] sm:$0xf]
    %v1610 = vld [vmem:[%s1586 + $0x5c] sm:$0xf]
    %v1611 = vld [vmem:[%s1586 + $0x60] sm:$0xf]
    %v1612 = vld [vmem:[%s1586 + $0x64] sm:$0xf]
    %v1613 = vld [vmem:[%s1586 + $0x68] sm:$0xf]
    %v1614 = vld [vmem:[%s1586 + $0x6c] sm:$0xf]
    %v1615 = vld [vmem:[%s1586 + $0x70] sm:$0xf]
    %v1616 = vld [vmem:[%s1586 + $0x74] sm:$0xf]
    %v1617 = vld [vmem:[%s1586 + $0x78] sm:$0xf]
    %v1618 = vld [vmem:[%s1586 + $0x7c] sm:$0xf]
    %v1619 = vld [vmem:[%s1586 + $0x80] sm:$0xf]
    %v1620 = vld [vmem:[%s1586 + $0x84] sm:$0xf]
    %v1621 = vld [vmem:[%s1586 + $0x88] sm:$0xf]
    %v1622 = vld [vmem:[%s1586 + $0x8c] sm:$0xf]
    %v1623 = vld [vmem:[%s1586 + $0x90] sm:$0xf]
    %v1624 = vld [vmem:[%s1586 + $0x94] sm:$0x3]
    %s1625 = scalar_lea.vmem %s7, 2
    %v1626 = vld [vmem:[%s1625] sm:$0x1]
    %v1665 = vunpack.c.l.b16 %v1587
    %v1666 = vunpack.c.l.b16 %v1588
    %v1667 = vunpack.c.l.b16 %v1589
    %v1668 = vunpack.c.l.b16 %v1590
    %v1669 = vunpack.c.l.b16 %v1591
    %v1670 = vunpack.c.l.b16 %v1592
    %v1671 = vunpack.c.l.b16 %v1593
    %v1672 = vunpack.c.l.b16 %v1594
    %v1673 = vunpack.c.l.b16 %v1595
    %v1674 = vunpack.c.l.b16 %v1596
    %v1675 = vunpack.c.l.b16 %v1597
    %v1676 = vunpack.c.l.b16 %v1598
    %v1677 = vunpack.c.l.b16 %v1599
    %v1678 = vunpack.c.l.b16 %v1600
    %v1679 = vunpack.c.l.b16 %v1601
    %v1680 = vunpack.c.l.b16 %v1602
    %v1681 = vunpack.c.l.b16 %v1603
    %v1682 = vunpack.c.l.b16 %v1604
    %v1683 = vunpack.c.l.b16 %v1605
    %v1684 = vunpack.c.l.b16 %v1606
    %v1685 = vunpack.c.l.b16 %v1607
    %v1686 = vunpack.c.l.b16 %v1608
    %v1687 = vunpack.c.l.b16 %v1609
    %v1688 = vunpack.c.l.b16 %v1610
    %v1689 = vunpack.c.l.b16 %v1611
    %v1690 = vunpack.c.l.b16 %v1612
    %v1691 = vunpack.c.l.b16 %v1613
    %v1692 = vunpack.c.l.b16 %v1614
    %v1693 = vunpack.c.l.b16 %v1615
    %v1694 = vunpack.c.l.b16 %v1616
    %v1695 = vunpack.c.l.b16 %v1617
    %v1696 = vunpack.c.l.b16 %v1618
    %v1697 = vunpack.c.l.b16 %v1619
    %v1698 = vunpack.c.l.b16 %v1620
    %v1699 = vunpack.c.l.b16 %v1621
    %v1700 = vunpack.c.l.b16 %v1622
    %v1701 = vunpack.c.l.b16 %v1623
    %v1702 = vunpack.c.l.b16 %v1624
    %v1703 = vpack.c.b16 %v1666, %v1665
    %v1704 = vpack.c.b16 %v1668, %v1667
    %v1705 = vpack.c.b16 %v1670, %v1669
    %v1706 = vpack.c.b16 %v1672, %v1671
    %v1707 = vpack.c.b16 %v1674, %v1673
    %v1708 = vpack.c.b16 %v1676, %v1675
    %v1709 = vpack.c.b16 %v1678, %v1677
    %v1710 = vpack.c.b16 %v1680, %v1679
    %v1711 = vpack.c.b16 %v1682, %v1681
    %v1712 = vpack.c.b16 %v1684, %v1683
    %v1713 = vpack.c.b16 %v1686, %v1685
    %v1714 = vpack.c.b16 %v1688, %v1687
    %v1715 = vpack.c.b16 %v1690, %v1689
    %v1716 = vpack.c.b16 %v1692, %v1691
    %v1717 = vpack.c.b16 %v1694, %v1693
    %v1718 = vpack.c.b16 %v1696, %v1695
    %v1719 = vpack.c.b16 %v1698, %v1697
    %v1720 = vpack.c.b16 %v1700, %v1699
    %v1721 = vpack.c.b16 %v1702, %v1701
    %v1741 = vsel %vm245, %v1721, 0
    %1743 = vmatprep.subr.bf16.mxu0 0
    %1744 = vmatpush1.bf16.msra.mxu0 %v1703
    %1745 = vmatprep.subr.bf16.mxu0 0
    %1746 = vmatpush1.bf16.msra.mxu0 %v1704
    %1747 = vmatprep.subr.bf16.mxu0 0
    %1748 = vmatpush1.bf16.msra.mxu0 %v1705
    %1749 = vmatprep.subr.bf16.mxu0 0
    %1750 = vmatpush1.bf16.msra.mxu0 %v1706
    %1751 = vmatprep.subr.bf16.mxu0 0
    %1752 = vmatpush1.bf16.msra.mxu0 %v1707
    %1753 = vmatprep.subr.bf16.mxu0 0
    %1754 = vmatpush1.bf16.msra.mxu0 %v1708
    %1755 = vmatprep.subr.bf16.mxu0 0
    %1756 = vmatpush1.bf16.msra.mxu0 %v1709
    %1757 = vmatprep.subr.bf16.mxu0 0
    %1758 = vmatpush1.bf16.msra.mxu0 %v1710
    %1759 = vmatprep.subr.bf16.mxu0 0
    %1760 = vmatpush1.bf16.msra.mxu0 %v1711
    %1761 = vmatprep.subr.bf16.mxu0 0
    %1762 = vmatpush1.bf16.msra.mxu0 %v1712
    %1763 = vmatprep.subr.bf16.mxu0 0
    %1764 = vmatpush1.bf16.msra.mxu0 %v1713
    %1765 = vmatprep.subr.bf16.mxu0 0
    %1766 = vmatpush1.bf16.msra.mxu0 %v1714
    %1767 = vmatprep.subr.bf16.mxu0 0
    %1768 = vmatpush1.bf16.msra.mxu0 %v1715
    %1769 = vmatprep.subr.bf16.mxu0 0
    %1770 = vmatpush1.bf16.msra.mxu0 %v1716
    %1771 = vmatprep.subr.bf16.mxu0 0
    %1772 = vmatpush1.bf16.msra.mxu0 %v1717
    %1773 = vmatprep.subr.bf16.mxu0 0
    %1774 = vmatpush1.bf16.msra.mxu0 %v1718
    %1775 = vmatprep.mubr.bf16.mxu0 %v124
    %1776 = vmatmul.mubr.bf16.gmra.mrb[0].mxu0 %v123
    %v1777 = vpop.f32.mrb[0].mxu0
    %v1778 = vadd.f32 0.0, %v1777
    %v1779 = vpop.f32.mrb[0].mxu0
    %v1780 = vpop.f32.mrb[0].mxu0
    %v1781 = vadd.f32 0.0, %v1780
    %v1782 = vpop.f32.mrb[0].mxu0
    %1783 = vdwg.mxu0
    %1784 = vmatprep.subr.bf16.mxu0 0
    %1785 = vmatpush1.bf16.msra.mxu0 %v1719
    %1786 = vmatprep.subr.bf16.mxu0 0
    %1787 = vmatpush1.bf16.msra.mxu0 %v1720
    %1788 = vmatprep.subr.bf16.mxu0 0
    %1789 = vmatpush1.bf16.msra.mxu0 %v1741
    %1790 = vmatprep.subr.bf16.mxu0 0
    %1791 = vmatpush1.bf16.msra.mxu0 0
    %1792 = vmatprep.subr.bf16.mxu0 0
    %1793 = vmatpush1.bf16.msra.mxu0 0
    %1794 = vmatprep.subr.bf16.mxu0 0
    %1795 = vmatpush1.bf16.msra.mxu0 0
    %1796 = vmatprep.subr.bf16.mxu0 0
    %1797 = vmatpush1.bf16.msra.mxu0 0
    %1798 = vmatprep.subr.bf16.mxu0 0
    %1799 = vmatpush1.bf16.msra.mxu0 0
    %1800 = vmatprep.subr.bf16.mxu0 0
    %1801 = vmatpush1.bf16.msra.mxu0 0
    %1802 = vmatprep.subr.bf16.mxu0 0
    %1803 = vmatpush1.bf16.msra.mxu0 0
    %1804 = vmatprep.subr.bf16.mxu0 0
    %1805 = vmatpush1.bf16.msra.mxu0 0
    %1806 = vmatprep.subr.bf16.mxu0 0
    %1807 = vmatpush1.bf16.msra.mxu0 0
    %1808 = vmatprep.subr.bf16.mxu0 0
    %1809 = vmatpush1.bf16.msra.mxu0 0
    %1810 = vmatprep.subr.bf16.mxu0 0
    %1811 = vmatpush1.bf16.msra.mxu0 0
    %1812 = vmatprep.subr.bf16.mxu0 0
    %1813 = vmatpush1.bf16.msra.mxu0 0
    %1814 = vmatprep.subr.bf16.mxu0 0
    %1815 = vmatpush1.bf16.msra.mxu0 0
    %1816 = vmatprep.mubr.bf16.mxu0 0
    %1817 = vmatmul.mubr.bf16.gmra.mrb[0].mxu0 %v243
    %v1818 = vpop.f32.mrb[0].mxu0
    %v1819 = vadd.f32 %v1778, %v1818
    %v1820 = vpop.f32.mrb[0].mxu0
    %v1821 = vpop.f32.mrb[0].mxu0
    %v1822 = vadd.f32 %v1781, %v1821
    %v1823 = vpop.f32.mrb[0].mxu0
    %1824 = vdwg.mxu0
    %v1826 = vlaneseq
    %v1827 = vshrl.u32 %v1826, 7
    %v1828 = vsub.s32 0, %v1827
    %v1829 = vrot.slane %v1626, %v1828
    %v1831 = vadd.f32 %v1829, %v1819
    %v1832 = vadd.f32 %v1829, %v1822
    %v1835 = vcombine.high %v1831, %v1831
    %v1837 = vunpack.c.l.s4 1983009808
    %v1838 = vunpack.c.0.s8 %v1837
    %v1839 = vlaneseq
    %v1840 = vshrl.u32 %v1839, 7
    %v1841 = vsub.s32 %v1838, %v1840
    %v1842 = vrot.slane %v1831, %v1841
    %v1844 = vunpack.c.l.s4 1983009808
    %v1845 = vunpack.c.0.s8 %v1844
    %v1846 = vlaneseq
    %v1847 = vshrl.u32 %v1846, 7
    %v1848 = vsub.s32 %v1845, %v1847
    %v1849 = vrot.slane %v1835, %v1848
    %v1850 = vcombine.high %v1842, %v1842
    %v1851 = vcombine.high %v1849, %v1849
    %v1852 = vcombine.high %v1832, %v1832
    %v1854 = vunpack.c.l.s4 1983009808
    %v1855 = vunpack.c.0.s8 %v1854
    %v1856 = vlaneseq
    %v1857 = vshrl.u32 %v1856, 7
    %v1858 = vsub.s32 %v1855, %v1857
    %v1859 = vrot.slane %v1832, %v1858
    %v1861 = vunpack.c.l.s4 1983009808
    %v1862 = vunpack.c.0.s8 %v1861
    %v1863 = vlaneseq
    %v1864 = vshrl.u32 %v1863, 7
    %v1865 = vsub.s32 %v1862, %v1864
    %v1866 = vrot.slane %v1852, %v1865
    %v1867 = vcombine.high %v1859, %v1859
    %v1868 = vcombine.high %v1866, %v1866
    %1877 = vst.msk [vmem:[#allocation9] sm:$0x3] %vm383, %v1842
    %1878 = vst.msk [vmem:[#allocation9 + $0x2] sm:$0x3] %vm383, %v1850
    %1879 = vst.msk [vmem:[#allocation9 + $0x4] sm:$0x3] %vm383, %v1849
    %1880 = vst.msk [vmem:[#allocation9 + $0x6] sm:$0x3] %vm383, %v1851
    %1881 = vst.msk [vmem:[#allocation9 + $0x8] sm:$0x3] %vm383, %v1859
    %1882 = vst.msk [vmem:[#allocation9 + $0xa] sm:$0x3] %vm383, %v1867
    %1883 = vst.msk [vmem:[#allocation9 + $0xc] sm:$0x3] %vm383, %v1866
    %1884 = vst.msk [vmem:[#allocation9 + $0xe] sm:$0x3] %vm383, %v1868
    %v1885 = vld [vmem:[%s2] sm:$0xff]
    %v1886 = vld [vmem:[%s2 + $0x8] sm:$0xff]
    %v1887 = vld [vmem:[%s2 + $0x10] sm:$0xff]
    %v1888 = vld [vmem:[%s2 + $0x18] sm:$0xff]
    %s1889 = scalar_lea.vmem %s2, 32
    %v1890 = vld [vmem:[%s1889] sm:$0xff]
    %v1891 = vld [vmem:[%s1889 + $0x8] sm:$0xff]
    %v1892 = vld [vmem:[%s1889 + $0x10] sm:$0xff]
    %v1893 = vld [vmem:[%s1889 + $0x18] sm:$0xff]
    %s1894 = scalar_lea.vmem %s2, 64
    %v1895 = vld [vmem:[%s1894] sm:$0xff]
    %v1896 = vld [vmem:[%s1894 + $0x8] sm:$0xff]
    %v1897 = vld [vmem:[%s1894 + $0x10] sm:$0xff]
    %v1898 = vld [vmem:[%s1894 + $0x18] sm:$0xff]
    %v1899 = vld [vmem:[%s4] sm:$0x1]
    %s1900 = scalar_lea.vmem %s4, 1
    %v1901 = vld [vmem:[%s1900] sm:$0x1]
    %s1902 = scalar_lea.vmem %s4, 2
    %v1903 = vld [vmem:[%s1902] sm:$0x1]
    %v1904 = vld [vmem:[%s6] sm:$0xff]
    %v1905 = vld [vmem:[%s6 + $0x8] sm:$0xff]
    %v1906 = vld [vmem:[%s6 + $0x10] sm:$0xff]
    %v1907 = vld [vmem:[%s6 + $0x18] sm:$0xff]
    %s1908 = scalar_lea.vmem %s6, 32
    %v1909 = vld [vmem:[%s1908] sm:$0xff]
    %v1910 = vld [vmem:[%s1908 + $0x8] sm:$0xff]
    %v1911 = vld [vmem:[%s1908 + $0x10] sm:$0xff]
    %v1912 = vld [vmem:[%s1908 + $0x18] sm:$0xff]
    %s1913 = scalar_lea.vmem %s6, 64
    %v1914 = vld [vmem:[%s1913] sm:$0xff]
    %v1915 = vld [vmem:[%s1913 + $0x8] sm:$0xff]
    %v1916 = vld [vmem:[%s1913 + $0x10] sm:$0xff]
    %v1917 = vld [vmem:[%s1913 + $0x18] sm:$0xff]
    %v1918 = vld [vmem:[%s8] sm:$0x1]
    %s1919 = scalar_lea.vmem %s8, 1
    %v1920 = vld [vmem:[%s1919] sm:$0x1]
    %s1921 = scalar_lea.vmem %s8, 2
    %v1922 = vld [vmem:[%s1921] sm:$0x1]
    %v1923 = vld [vmem:[#allocation4] sm:$0x3]
    %v1924 = vld [vmem:[#allocation5] sm:$0x3]
    %v1925 = vld [vmem:[#allocation6] sm:$0x3]
    %v1927 = vlaneseq
    %v1928 = vshrl.u32 %v1927, 7
    %v1929 = vsub.s32 0, %v1928
    %v1930 = vrot.slane %v1899, %v1929
    %vm1932 = vcmask 261120
    %v1934 = vsel %vm1932, 0.0, 0
    %1936 = vmatprep.subr.mxu0 0.0
    %1937 = vmatpush1.msra.mxu0 %v1885
    %1938 = vmatprep.subr.mxu0 0.0
    %1939 = vmatpush1.msra.mxu0 %v1886
    %1940 = vmatprep.subr.mxu0 0.0
    %1941 = vmatpush1.msra.mxu0 %v1887
    %1942 = vmatprep.subr.mxu0 0.0
    %1943 = vmatpush1.msra.mxu0 %v1888
    %1944 = vmatprep.subr.mxu0 0.0
    %1945 = vmatpush1.msra.mxu0 0.0
    %1946 = vmatprep.subr.mxu0 0.0
    %1947 = vmatpush1.msra.mxu0 0.0
    %1948 = vmatprep.subr.mxu0 0.0
    %1949 = vmatpush1.msra.mxu0 0.0
    %1950 = vmatprep.subr.mxu0 0.0
    %1951 = vmatpush1.msra.mxu0 0.0
    %1952 = vmatprep.subr.mxu0 0.0
    %1953 = vmatpush1.msra.mxu0 0.0
    %1954 = vmatprep.subr.mxu0 0.0
    %1955 = vmatpush1.msra.mxu0 0.0
    %1956 = vmatprep.subr.mxu0 0.0
    %1957 = vmatpush1.msra.mxu0 0.0
    %1958 = vmatprep.subr.mxu0 0.0
    %1959 = vmatpush1.msra.mxu0 0.0
    %1960 = vmatprep.subr.mxu0 0.0
    %1961 = vmatpush1.msra.mxu0 0.0
    %1962 = vmatprep.subr.mxu0 0.0
    %1963 = vmatpush1.msra.mxu0 0.0
    %1964 = vmatprep.subr.mxu0 0.0
    %1965 = vmatpush1.msra.mxu0 0.0
    %1966 = vmatprep.subr.mxu0 0.0
    %1967 = vmatpush1.msra.mxu0 0.0
    %1968 = vmatprep.subr.mxu0 0.0
    %1969 = vmatpush1.msra.mxu0 0.0
    %1970 = vmatprep.subr.mxu0 0.0
    %1971 = vmatpush1.msra.mxu0 0.0
    %1972 = vmatprep.subr.mxu0 0.0
    %1973 = vmatpush1.msra.mxu0 0.0
    %1974 = vmatprep.subr.mxu0 0.0
    %1975 = vmatpush1.msra.mxu0 0.0
    %1976 = vmatprep.subr.mxu0 0.0
    %1977 = vmatpush1.msra.mxu0 0.0
    %1978 = vmatprep.subr.mxu0 0.0
    %1979 = vmatpush1.msra.mxu0 0.0
    %1980 = vmatprep.subr.mxu0 0.0
    %1981 = vmatpush1.msra.mxu0 0.0
    %1982 = vmatprep.subr.mxu0 0.0
    %1983 = vmatpush1.msra.mxu0 0.0
    %1984 = vmatprep.subr.mxu0 0.0
    %1985 = vmatpush1.msra.mxu0 0.0
    %1986 = vmatprep.subr.mxu0 0.0
    %1987 = vmatpush1.msra.mxu0 0.0
    %1988 = vmatprep.subr.mxu0 0.0
    %1989 = vmatpush1.msra.mxu0 0.0
    %1990 = vmatprep.subr.mxu0 0.0
    %1991 = vmatpush1.msra.mxu0 0.0
    %1992 = vmatprep.subr.mxu0 0.0
    %1993 = vmatpush1.msra.mxu0 0.0
    %1994 = vmatprep.subr.mxu0 0.0
    %1995 = vmatpush1.msra.mxu0 0.0
    %1996 = vmatprep.subr.mxu0 0.0
    %1997 = vmatpush1.msra.mxu0 0.0
    %1998 = vmatprep.subr.mxu0 0.0
    %1999 = vmatpush1.msra.mxu0 0.0
    %2000 = vmatprep.mubr.f32.mxu0 0.0
    %2001 = vmatmul.mubr.f32.gmra.mrb[0].mxu0 %v1934
    %v2002 = vpop.f32.mrb[0].mxu0
    %v2003 = vadd.f32 %v1930, %v2002
    %v2004 = vpop.f32.mrb[0].mxu0
    %2005 = vdwg.mxu0
    %v2007 = vlaneseq
    %v2008 = vshrl.u32 %v2007, 7
    %v2009 = vsub.s32 0, %v2008
    %v2010 = vrot.slane %v1901, %v2009
    %2012 = vmatprep.subr.mxu0 0.0
    %2013 = vmatpush1.msra.mxu0 %v1890
    %2014 = vmatprep.subr.mxu0 0.0
    %2015 = vmatpush1.msra.mxu0 %v1891
    %2016 = vmatprep.subr.mxu0 0.0
    %2017 = vmatpush1.msra.mxu0 %v1892
    %2018 = vmatprep.subr.mxu0 0.0
    %2019 = vmatpush1.msra.mxu0 %v1893
    %2020 = vmatprep.subr.mxu0 0.0
    %2021 = vmatpush1.msra.mxu0 0.0
    %2022 = vmatprep.subr.mxu0 0.0
    %2023 = vmatpush1.msra.mxu0 0.0
    %2024 = vmatprep.subr.mxu0 0.0
    %2025 = vmatpush1.msra.mxu0 0.0
    %2026 = vmatprep.subr.mxu0 0.0
    %2027 = vmatpush1.msra.mxu0 0.0
    %2028 = vmatprep.subr.mxu0 0.0
    %2029 = vmatpush1.msra.mxu0 0.0
    %2030 = vmatprep.subr.mxu0 0.0
    %2031 = vmatpush1.msra.mxu0 0.0
    %2032 = vmatprep.subr.mxu0 0.0
    %2033 = vmatpush1.msra.mxu0 0.0
    %2034 = vmatprep.subr.mxu0 0.0
    %2035 = vmatpush1.msra.mxu0 0.0
    %2036 = vmatprep.subr.mxu0 0.0
    %2037 = vmatpush1.msra.mxu0 0.0
    %2038 = vmatprep.subr.mxu0 0.0
    %2039 = vmatpush1.msra.mxu0 0.0
    %2040 = vmatprep.subr.mxu0 0.0
    %2041 = vmatpush1.msra.mxu0 0.0
    %2042 = vmatprep.subr.mxu0 0.0
    %2043 = vmatpush1.msra.mxu0 0.0
    %2044 = vmatprep.subr.mxu0 0.0
    %2045 = vmatpush1.msra.mxu0 0.0
    %2046 = vmatprep.subr.mxu0 0.0
    %2047 = vmatpush1.msra.mxu0 0.0
    %2048 = vmatprep.subr.mxu0 0.0
    %2049 = vmatpush1.msra.mxu0 0.0
    %2050 = vmatprep.subr.mxu0 0.0
    %2051 = vmatpush1.msra.mxu0 0.0
    %2052 = vmatprep.subr.mxu0 0.0
    %2053 = vmatpush1.msra.mxu0 0.0
    %2054 = vmatprep.subr.mxu0 0.0
    %2055 = vmatpush1.msra.mxu0 0.0
    %2056 = vmatprep.subr.mxu0 0.0
    %2057 = vmatpush1.msra.mxu0 0.0
    %2058 = vmatprep.subr.mxu0 0.0
    %2059 = vmatpush1.msra.mxu0 0.0
    %2060 = vmatprep.subr.mxu0 0.0
    %2061 = vmatpush1.msra.mxu0 0.0
    %2062 = vmatprep.subr.mxu0 0.0
    %2063 = vmatpush1.msra.mxu0 0.0
    %2064 = vmatprep.subr.mxu0 0.0
    %2065 = vmatpush1.msra.mxu0 0.0
    %2066 = vmatprep.subr.mxu0 0.0
    %2067 = vmatpush1.msra.mxu0 0.0
    %2068 = vmatprep.subr.mxu0 0.0
    %2069 = vmatpush1.msra.mxu0 0.0
    %2070 = vmatprep.subr.mxu0 0.0
    %2071 = vmatpush1.msra.mxu0 0.0
    %2072 = vmatprep.subr.mxu0 0.0
    %2073 = vmatpush1.msra.mxu0 0.0
    %2074 = vmatprep.subr.mxu0 0.0
    %2075 = vmatpush1.msra.mxu0 0.0
    %2076 = vmatprep.mubr.f32.mxu0 0.0
    %2077 = vmatmul.mubr.f32.gmra.mrb[0].mxu0 %v1934
    %v2078 = vpop.f32.mrb[0].mxu0
    %v2079 = vadd.f32 %v2010, %v2078
    %v2080 = vpop.f32.mrb[0].mxu0
    %2081 = vdwg.mxu0
    %v2083 = vlaneseq
    %v2084 = vshrl.u32 %v2083, 7
    %v2085 = vsub.s32 0, %v2084
    %v2086 = vrot.slane %v1903, %v2085
    %2088 = vmatprep.subr.mxu0 0.0
    %2089 = vmatpush1.msra.mxu0 %v1895
    %2090 = vmatprep.subr.mxu0 0.0
    %2091 = vmatpush1.msra.mxu0 %v1896
    %2092 = vmatprep.subr.mxu0 0.0
    %2093 = vmatpush1.msra.mxu0 %v1897
    %2094 = vmatprep.subr.mxu0 0.0
    %2095 = vmatpush1.msra.mxu0 %v1898
    %2096 = vmatprep.subr.mxu0 0.0
    %2097 = vmatpush1.msra.mxu0 0.0
    %2098 = vmatprep.subr.mxu0 0.0
    %2099 = vmatpush1.msra.mxu0 0.0
    %2100 = vmatprep.subr.mxu0 0.0
    %2101 = vmatpush1.msra.mxu0 0.0
    %2102 = vmatprep.subr.mxu0 0.0
    %2103 = vmatpush1.msra.mxu0 0.0
    %2104 = vmatprep.subr.mxu0 0.0
    %2105 = vmatpush1.msra.mxu0 0.0
    %2106 = vmatprep.subr.mxu0 0.0
    %2107 = vmatpush1.msra.mxu0 0.0
    %2108 = vmatprep.subr.mxu0 0.0
    %2109 = vmatpush1.msra.mxu0 0.0
    %2110 = vmatprep.subr.mxu0 0.0
    %2111 = vmatpush1.msra.mxu0 0.0
    %2112 = vmatprep.subr.mxu0 0.0
    %2113 = vmatpush1.msra.mxu0 0.0
    %2114 = vmatprep.subr.mxu0 0.0
    %2115 = vmatpush1.msra.mxu0 0.0
    %2116 = vmatprep.subr.mxu0 0.0
    %2117 = vmatpush1.msra.mxu0 0.0
    %2118 = vmatprep.subr.mxu0 0.0
    %2119 = vmatpush1.msra.mxu0 0.0
    %2120 = vmatprep.subr.mxu0 0.0
    %2121 = vmatpush1.msra.mxu0 0.0
    %2122 = vmatprep.subr.mxu0 0.0
    %2123 = vmatpush1.msra.mxu0 0.0
    %2124 = vmatprep.subr.mxu0 0.0
    %2125 = vmatpush1.msra.mxu0 0.0
    %2126 = vmatprep.subr.mxu0 0.0
    %2127 = vmatpush1.msra.mxu0 0.0
    %2128 = vmatprep.subr.mxu0 0.0
    %2129 = vmatpush1.msra.mxu0 0.0
    %2130 = vmatprep.subr.mxu0 0.0
    %2131 = vmatpush1.msra.mxu0 0.0
    %2132 = vmatprep.subr.mxu0 0.0
    %2133 = vmatpush1.msra.mxu0 0.0
    %2134 = vmatprep.subr.mxu0 0.0
    %2135 = vmatpush1.msra.mxu0 0.0
    %2136 = vmatprep.subr.mxu0 0.0
    %2137 = vmatpush1.msra.mxu0 0.0
    %2138 = vmatprep.subr.mxu0 0.0
    %2139 = vmatpush1.msra.mxu0 0.0
    %2140 = vmatprep.subr.mxu0 0.0
    %2141 = vmatpush1.msra.mxu0 0.0
    %2142 = vmatprep.subr.mxu0 0.0
    %2143 = vmatpush1.msra.mxu0 0.0
    %2144 = vmatprep.subr.mxu0 0.0
    %2145 = vmatpush1.msra.mxu0 0.0
    %2146 = vmatprep.subr.mxu0 0.0
    %2147 = vmatpush1.msra.mxu0 0.0
    %2148 = vmatprep.subr.mxu0 0.0
    %2149 = vmatpush1.msra.mxu0 0.0
    %2150 = vmatprep.subr.mxu0 0.0
    %2151 = vmatpush1.msra.mxu0 0.0
    %2152 = vmatprep.mubr.f32.mxu0 0.0
    %2153 = vmatmul.mubr.f32.gmra.mrb[0].mxu0 %v1934
    %v2154 = vpop.f32.mrb[0].mxu0
    %v2155 = vadd.f32 %v2086, %v2154
    %v2156 = vpop.f32.mrb[0].mxu0
    %2157 = vdwg.mxu0
    %v2158 = vadd.f32 %v1923, %v2003
    %v2159 = vxor.u32 %v2158, 2147483648
    %v2160 = vmul.f32 %v2159, 1.442695
    %v2161 = vpow.pop %v2160
    %v2162 = vadd.f32 %v2161, 1.0
    %v2163 = vrcp.pop %v2162
    %v2164 = vmul.f32 1.0, %v2163
    %v2165 = vadd.f32 %v1924, %v2079
    %v2166 = vxor.u32 %v2165, 2147483648
    %v2167 = vmul.f32 %v2166, 1.442695
    %v2168 = vpow.pop %v2167
    %v2169 = vadd.f32 %v2168, 1.0
    %v2170 = vrcp.pop %v2169
    %v2171 = vmul.f32 1.0, %v2170
    %v2172 = vmul.f32 %v2164, %v2155
    %v2173 = vadd.f32 %v1925, %v2172
    %v2174 = vtanh.pop %v2173
    %v2175 = vsub.f32 1.0, %v2171
    %v2176 = vmul.f32 %v2175, %v2174
    %v2177 = vmul.f32 %v2171, 0.0
    %v2178 = vadd.f32 %v2176, %v2177
    %s2179 = scalar_lea.vmem [#allocation7], 14
    %v2180 = vld [vmem:[%s2179] sm:$0x3]
    %s2181 = scalar_lea.vmem [#allocation8], 14
    %v2182 = vld [vmem:[%s2181] sm:$0x3]
    %s2183 = scalar_lea.vmem [#allocation9], 14
    %v2184 = vld [vmem:[%s2183] sm:$0x3]
    %v2186 = vlaneseq
    %v2187 = vshrl.u32 %v2186, 7
    %v2188 = vsub.s32 0, %v2187
    %v2189 = vrot.slane %v1918, %v2188
    %2191 = vmatprep.subr.mxu0 0.0
    %2192 = vmatpush1.msra.mxu0 %v1904
    %2193 = vmatprep.subr.mxu0 0.0
    %2194 = vmatpush1.msra.mxu0 %v1905
    %2195 = vmatprep.subr.mxu0 0.0
    %2196 = vmatpush1.msra.mxu0 %v1906
    %2197 = vmatprep.subr.mxu0 0.0
    %2198 = vmatpush1.msra.mxu0 %v1907
    %2199 = vmatprep.subr.mxu0 0.0
    %2200 = vmatpush1.msra.mxu0 0.0
    %2201 = vmatprep.subr.mxu0 0.0
    %2202 = vmatpush1.msra.mxu0 0.0
    %2203 = vmatprep.subr.mxu0 0.0
    %2204 = vmatpush1.msra.mxu0 0.0
    %2205 = vmatprep.subr.mxu0 0.0
    %2206 = vmatpush1.msra.mxu0 0.0
    %2207 = vmatprep.subr.mxu0 0.0
    %2208 = vmatpush1.msra.mxu0 0.0
    %2209 = vmatprep.subr.mxu0 0.0
    %2210 = vmatpush1.msra.mxu0 0.0
    %2211 = vmatprep.subr.mxu0 0.0
    %2212 = vmatpush1.msra.mxu0 0.0
    %2213 = vmatprep.subr.mxu0 0.0
    %2214 = vmatpush1.msra.mxu0 0.0
    %2215 = vmatprep.subr.mxu0 0.0
    %2216 = vmatpush1.msra.mxu0 0.0
    %2217 = vmatprep.subr.mxu0 0.0
    %2218 = vmatpush1.msra.mxu0 0.0
    %2219 = vmatprep.subr.mxu0 0.0
    %2220 = vmatpush1.msra.mxu0 0.0
    %2221 = vmatprep.subr.mxu0 0.0
    %2222 = vmatpush1.msra.mxu0 0.0
    %2223 = vmatprep.subr.mxu0 0.0
    %2224 = vmatpush1.msra.mxu0 0.0
    %2225 = vmatprep.subr.mxu0 0.0
    %2226 = vmatpush1.msra.mxu0 0.0
    %2227 = vmatprep.subr.mxu0 0.0
    %2228 = vmatpush1.msra.mxu0 0.0
    %2229 = vmatprep.subr.mxu0 0.0
    %2230 = vmatpush1.msra.mxu0 0.0
    %2231 = vmatprep.subr.mxu0 0.0
    %2232 = vmatpush1.msra.mxu0 0.0
    %2233 = vmatprep.subr.mxu0 0.0
    %2234 = vmatpush1.msra.mxu0 0.0
    %2235 = vmatprep.subr.mxu0 0.0
    %2236 = vmatpush1.msra.mxu0 0.0
    %2237 = vmatprep.subr.mxu0 0.0
    %2238 = vmatpush1.msra.mxu0 0.0
    %2239 = vmatprep.subr.mxu0 0.0
    %2240 = vmatpush1.msra.mxu0 0.0
    %2241 = vmatprep.subr.mxu0 0.0
    %2242 = vmatpush1.msra.mxu0 0.0
    %2243 = vmatprep.subr.mxu0 0.0
    %2244 = vmatpush1.msra.mxu0 0.0
    %2245 = vmatprep.subr.mxu0 0.0
    %2246 = vmatpush1.msra.mxu0 0.0
    %2247 = vmatprep.subr.mxu0 0.0
    %2248 = vmatpush1.msra.mxu0 0.0
    %2249 = vmatprep.subr.mxu0 0.0
    %2250 = vmatpush1.msra.mxu0 0.0
    %2251 = vmatprep.subr.mxu0 0.0
    %2252 = vmatpush1.msra.mxu0 0.0
    %2253 = vmatprep.subr.mxu0 0.0
    %2254 = vmatpush1.msra.mxu0 0.0
    %2255 = vmatprep.mubr.f32.mxu0 0.0
    %2256 = vmatmul.mubr.f32.gmra.mrb[0].mxu0 %v1934
    %v2257 = vpop.f32.mrb[0].mxu0
    %v2258 = vadd.f32 %v2189, %v2257
    %v2259 = vpop.f32.mrb[0].mxu0
    %2260 = vdwg.mxu0
    %v2262 = vlaneseq
    %v2263 = vshrl.u32 %v2262, 7
    %v2264 = vsub.s32 0, %v2263
    %v2265 = vrot.slane %v1920, %v2264
    %2267 = vmatprep.subr.mxu0 0.0
    %2268 = vmatpush1.msra.mxu0 %v1909
    %2269 = vmatprep.subr.mxu0 0.0
    %2270 = vmatpush1.msra.mxu0 %v1910
    %2271 = vmatprep.subr.mxu0 0.0
    %2272 = vmatpush1.msra.mxu0 %v1911
    %2273 = vmatprep.subr.mxu0 0.0
    %2274 = vmatpush1.msra.mxu0 %v1912
    %2275 = vmatprep.subr.mxu0 0.0
    %2276 = vmatpush1.msra.mxu0 0.0
    %2277 = vmatprep.subr.mxu0 0.0
    %2278 = vmatpush1.msra.mxu0 0.0
    %2279 = vmatprep.subr.mxu0 0.0
    %2280 = vmatpush1.msra.mxu0 0.0
    %2281 = vmatprep.subr.mxu0 0.0
    %2282 = vmatpush1.msra.mxu0 0.0
    %2283 = vmatprep.subr.mxu0 0.0
    %2284 = vmatpush1.msra.mxu0 0.0
    %2285 = vmatprep.subr.mxu0 0.0
    %2286 = vmatpush1.msra.mxu0 0.0
    %2287 = vmatprep.subr.mxu0 0.0
    %2288 = vmatpush1.msra.mxu0 0.0
    %2289 = vmatprep.subr.mxu0 0.0
    %2290 = vmatpush1.msra.mxu0 0.0
    %2291 = vmatprep.subr.mxu0 0.0
    %2292 = vmatpush1.msra.mxu0 0.0
    %2293 = vmatprep.subr.mxu0 0.0
    %2294 = vmatpush1.msra.mxu0 0.0
    %2295 = vmatprep.subr.mxu0 0.0
    %2296 = vmatpush1.msra.mxu0 0.0
    %2297 = vmatprep.subr.mxu0 0.0
    %2298 = vmatpush1.msra.mxu0 0.0
    %2299 = vmatprep.subr.mxu0 0.0
    %2300 = vmatpush1.msra.mxu0 0.0
    %2301 = vmatprep.subr.mxu0 0.0
    %2302 = vmatpush1.msra.mxu0 0.0
    %2303 = vmatprep.subr.mxu0 0.0
    %2304 = vmatpush1.msra.mxu0 0.0
    %2305 = vmatprep.subr.mxu0 0.0
    %2306 = vmatpush1.msra.mxu0 0.0
    %2307 = vmatprep.subr.mxu0 0.0
    %2308 = vmatpush1.msra.mxu0 0.0
    %2309 = vmatprep.subr.mxu0 0.0
    %2310 = vmatpush1.msra.mxu0 0.0
    %2311 = vmatprep.subr.mxu0 0.0
    %2312 = vmatpush1.msra.mxu0 0.0
    %2313 = vmatprep.subr.mxu0 0.0
    %2314 = vmatpush1.msra.mxu0 0.0
    %2315 = vmatprep.subr.mxu0 0.0
    %2316 = vmatpush1.msra.mxu0 0.0
    %2317 = vmatprep.subr.mxu0 0.0
    %2318 = vmatpush1.msra.mxu0 0.0
    %2319 = vmatprep.subr.mxu0 0.0
    %2320 = vmatpush1.msra.mxu0 0.0
    %2321 = vmatprep.subr.mxu0 0.0
    %2322 = vmatpush1.msra.mxu0 0.0
    %2323 = vmatprep.subr.mxu0 0.0
    %2324 = vmatpush1.msra.mxu0 0.0
    %2325 = vmatprep.subr.mxu0 0.0
    %2326 = vmatpush1.msra.mxu0 0.0
    %2327 = vmatprep.subr.mxu0 0.0
    %2328 = vmatpush1.msra.mxu0 0.0
    %2329 = vmatprep.subr.mxu0 0.0
    %2330 = vmatpush1.msra.mxu0 0.0
    %2331 = vmatprep.mubr.f32.mxu0 0.0
    %2332 = vmatmul.mubr.f32.gmra.mrb[0].mxu0 %v1934
    %v2333 = vpop.f32.mrb[0].mxu0
    %v2334 = vadd.f32 %v2265, %v2333
    %v2335 = vpop.f32.mrb[0].mxu0
    %2336 = vdwg.mxu0
    %v2338 = vlaneseq
    %v2339 = vshrl.u32 %v2338, 7
    %v2340 = vsub.s32 0, %v2339
    %v2341 = vrot.slane %v1922, %v2340
    %2343 = vmatprep.subr.mxu0 0.0
    %2344 = vmatpush1.msra.mxu0 %v1914
    %2345 = vmatprep.subr.mxu0 0.0
    %2346 = vmatpush1.msra.mxu0 %v1915
    %2347 = vmatprep.subr.mxu0 0.0
    %2348 = vmatpush1.msra.mxu0 %v1916
    %2349 = vmatprep.subr.mxu0 0.0
    %2350 = vmatpush1.msra.mxu0 %v1917
    %2351 = vmatprep.subr.mxu0 0.0
    %2352 = vmatpush1.msra.mxu0 0.0
    %2353 = vmatprep.subr.mxu0 0.0
    %2354 = vmatpush1.msra.mxu0 0.0
    %2355 = vmatprep.subr.mxu0 0.0
    %2356 = vmatpush1.msra.mxu0 0.0
    %2357 = vmatprep.subr.mxu0 0.0
    %2358 = vmatpush1.msra.mxu0 0.0
    %2359 = vmatprep.subr.mxu0 0.0
    %2360 = vmatpush1.msra.mxu0 0.0
    %2361 = vmatprep.subr.mxu0 0.0
    %2362 = vmatpush1.msra.mxu0 0.0
    %2363 = vmatprep.subr.mxu0 0.0
    %2364 = vmatpush1.msra.mxu0 0.0
    %2365 = vmatprep.subr.mxu0 0.0
    %2366 = vmatpush1.msra.mxu0 0.0
    %2367 = vmatprep.subr.mxu0 0.0
    %2368 = vmatpush1.msra.mxu0 0.0
    %2369 = vmatprep.subr.mxu0 0.0
    %2370 = vmatpush1.msra.mxu0 0.0
    %2371 = vmatprep.subr.mxu0 0.0
    %2372 = vmatpush1.msra.mxu0 0.0
    %2373 = vmatprep.subr.mxu0 0.0
    %2374 = vmatpush1.msra.mxu0 0.0
    %2375 = vmatprep.subr.mxu0 0.0
    %2376 = vmatpush1.msra.mxu0 0.0
    %2377 = vmatprep.subr.mxu0 0.0
    %2378 = vmatpush1.msra.mxu0 0.0
    %2379 = vmatprep.subr.mxu0 0.0
    %2380 = vmatpush1.msra.mxu0 0.0
    %2381 = vmatprep.subr.mxu0 0.0
    %2382 = vmatpush1.msra.mxu0 0.0
    %2383 = vmatprep.subr.mxu0 0.0
    %2384 = vmatpush1.msra.mxu0 0.0
    %2385 = vmatprep.subr.mxu0 0.0
    %2386 = vmatpush1.msra.mxu0 0.0
    %2387 = vmatprep.subr.mxu0 0.0
    %2388 = vmatpush1.msra.mxu0 0.0
    %2389 = vmatprep.subr.mxu0 0.0
    %2390 = vmatpush1.msra.mxu0 0.0
    %2391 = vmatprep.subr.mxu0 0.0
    %2392 = vmatpush1.msra.mxu0 0.0
    %2393 = vmatprep.subr.mxu0 0.0
    %2394 = vmatpush1.msra.mxu0 0.0
    %2395 = vmatprep.subr.mxu0 0.0
    %2396 = vmatpush1.msra.mxu0 0.0
    %2397 = vmatprep.subr.mxu0 0.0
    %2398 = vmatpush1.msra.mxu0 0.0
    %2399 = vmatprep.subr.mxu0 0.0
    %2400 = vmatpush1.msra.mxu0 0.0
    %2401 = vmatprep.subr.mxu0 0.0
    %2402 = vmatpush1.msra.mxu0 0.0
    %2403 = vmatprep.subr.mxu0 0.0
    %2404 = vmatpush1.msra.mxu0 0.0
    %2405 = vmatprep.subr.mxu0 0.0
    %2406 = vmatpush1.msra.mxu0 0.0
    %2407 = vmatprep.mubr.f32.mxu0 0.0
    %2408 = vmatmul.mubr.f32.gmra.mrb[0].mxu0 %v1934
    %v2409 = vpop.f32.mrb[0].mxu0
    %v2410 = vadd.f32 %v2341, %v2409
    %v2411 = vpop.f32.mrb[0].mxu0
    %2412 = vdwg.mxu0
    %v2413 = vadd.f32 %v2180, %v2258
    %v2414 = vxor.u32 %v2413, 2147483648
    %v2415 = vmul.f32 %v2414, 1.442695
    %v2416 = vpow.pop %v2415
    %v2417 = vadd.f32 %v2416, 1.0
    %v2418 = vrcp.pop %v2417
    %v2419 = vmul.f32 1.0, %v2418
    %v2420 = vadd.f32 %v2182, %v2334
    %v2421 = vxor.u32 %v2420, 2147483648
    %v2422 = vmul.f32 %v2421, 1.442695
    %v2423 = vpow.pop %v2422
    %v2424 = vadd.f32 %v2423, 1.0
    %v2425 = vrcp.pop %v2424
    %v2426 = vmul.f32 1.0, %v2425
    %v2427 = vmul.f32 %v2419, %v2410
    %v2428 = vadd.f32 %v2184, %v2427
    %v2429 = vtanh.pop %v2428
    %v2430 = vsub.f32 1.0, %v2426
    %v2431 = vmul.f32 %v2430, %v2429
    %v2432 = vmul.f32 %v2426, 0.0
    %v2433 = vadd.f32 %v2431, %v2432
    %2434 = vst.msk [vmem:[#allocation2] sm:$0x3] %vm383, %v2178
    %s2435 = scalar_lea.vmem [#allocation3], 14
    %2436 = vst.msk [vmem:[%s2435] sm:$0x3] %vm383, %v2433
    %s2437 = scalar_lea.vmem [#allocation4], 2
    %v2438 = vld [vmem:[%s2437] sm:$0x3]
    %s2439 = scalar_lea.vmem [#allocation5], 2
    %v2440 = vld [vmem:[%s2439] sm:$0x3]
    %s2441 = scalar_lea.vmem [#allocation6], 2
    %v2442 = vld [vmem:[%s2441] sm:$0x3]
    %v2444 = vsel %vm1932, %v2178, 0
    %2446 = vmatprep.subr.mxu0 0.0
    %2447 = vmatpush1.msra.mxu0 %v1885
    %2448 = vmatprep.subr.mxu0 0.0
    %2449 = vmatpush1.msra.mxu0 %v1886
    %2450 = vmatprep.subr.mxu0 0.0
    %2451 = vmatpush1.msra.mxu0 %v1887
    %2452 = vmatprep.subr.mxu0 0.0
    %2453 = vmatpush1.msra.mxu0 %v1888
    %2454 = vmatprep.subr.mxu0 0.0
    %2455 = vmatpush1.msra.mxu0 0.0
    %2456 = vmatprep.subr.mxu0 0.0
    %2457 = vmatpush1.msra.mxu0 0.0
    %2458 = vmatprep.subr.mxu0 0.0
    %2459 = vmatpush1.msra.mxu0 0.0
    %2460 = vmatprep.subr.mxu0 0.0
    %2461 = vmatpush1.msra.mxu0 0.0
    %2462 = vmatprep.subr.mxu0 0.0
    %2463 = vmatpush1.msra.mxu0 0.0
    %2464 = vmatprep.subr.mxu0 0.0
    %2465 = vmatpush1.msra.mxu0 0.0
    %2466 = vmatprep.subr.mxu0 0.0
    %2467 = vmatpush1.msra.mxu0 0.0
    %2468 = vmatprep.subr.mxu0 0.0
    %2469 = vmatpush1.msra.mxu0 0.0
    %2470 = vmatprep.subr.mxu0 0.0
    %2471 = vmatpush1.msra.mxu0 0.0
    %2472 = vmatprep.subr.mxu0 0.0
    %2473 = vmatpush1.msra.mxu0 0.0
    %2474 = vmatprep.subr.mxu0 0.0
    %2475 = vmatpush1.msra.mxu0 0.0
    %2476 = vmatprep.subr.mxu0 0.0
    %2477 = vmatpush1.msra.mxu0 0.0
    %2478 = vmatprep.subr.mxu0 0.0
    %2479 = vmatpush1.msra.mxu0 0.0
    %2480 = vmatprep.subr.mxu0 0.0
    %2481 = vmatpush1.msra.mxu0 0.0
    %2482 = vmatprep.subr.mxu0 0.0
    %2483 = vmatpush1.msra.mxu0 0.0
    %2484 = vmatprep.subr.mxu0 0.0
    %2485 = vmatpush1.msra.mxu0 0.0
    %2486 = vmatprep.subr.mxu0 0.0
    %2487 = vmatpush1.msra.mxu0 0.0
    %2488 = vmatprep.subr.mxu0 0.0
    %2489 = vmatpush1.msra.mxu0 0.0
    %2490 = vmatprep.subr.mxu0 0.0
    %2491 = vmatpush1.msra.mxu0 0.0
    %2492 = vmatprep.subr.mxu0 0.0
    %2493 = vmatpush1.msra.mxu0 0.0
    %2494 = vmatprep.subr.mxu0 0.0
    %2495 = vmatpush1.msra.mxu0 0.0
    %2496 = vmatprep.subr.mxu0 0.0
    %2497 = vmatpush1.msra.mxu0 0.0
    %2498 = vmatprep.subr.mxu0 0.0
    %2499 = vmatpush1.msra.mxu0 0.0
    %2500 = vmatprep.subr.mxu0 0.0
    %2501 = vmatpush1.msra.mxu0 0.0
    %2502 = vmatprep.subr.mxu0 0.0
    %2503 = vmatpush1.msra.mxu0 0.0
    %2504 = vmatprep.subr.mxu0 0.0
    %2505 = vmatpush1.msra.mxu0 0.0
    %2506 = vmatprep.subr.mxu0 0.0
    %2507 = vmatpush1.msra.mxu0 0.0
    %2508 = vmatprep.subr.mxu0 0.0
    %2509 = vmatpush1.msra.mxu0 0.0
    %2510 = vmatprep.mubr.f32.mxu0 0.0
    %2511 = vmatmul.mubr.f32.gmra.mrb[0].mxu0 %v2444
    %v2512 = vpop.f32.mrb[0].mxu0
    %v2513 = vadd.f32 %v1930, %v2512
    %v2514 = vpop.f32.mrb[0].mxu0
    %2515 = vdwg.mxu0
    %2516 = vmatprep.subr.mxu0 0.0
    %2517 = vmatpush1.msra.mxu0 %v1890
    %2518 = vmatprep.subr.mxu0 0.0
    %2519 = vmatpush1.msra.mxu0 %v1891
    %2520 = vmatprep.subr.mxu0 0.0
    %2521 = vmatpush1.msra.mxu0 %v1892
    %2522 = vmatprep.subr.mxu0 0.0
    %2523 = vmatpush1.msra.mxu0 %v1893
    %2524 = vmatprep.subr.mxu0 0.0
    %2525 = vmatpush1.msra.mxu0 0.0
    %2526 = vmatprep.subr.mxu0 0.0
    %2527 = vmatpush1.msra.mxu0 0.0
    %2528 = vmatprep.subr.mxu0 0.0
    %2529 = vmatpush1.msra.mxu0 0.0
    %2530 = vmatprep.subr.mxu0 0.0
    %2531 = vmatpush1.msra.mxu0 0.0
    %2532 = vmatprep.subr.mxu0 0.0
    %2533 = vmatpush1.msra.mxu0 0.0
    %2534 = vmatprep.subr.mxu0 0.0
    %2535 = vmatpush1.msra.mxu0 0.0
    %2536 = vmatprep.subr.mxu0 0.0
    %2537 = vmatpush1.msra.mxu0 0.0
    %2538 = vmatprep.subr.mxu0 0.0
    %2539 = vmatpush1.msra.mxu0 0.0
    %2540 = vmatprep.subr.mxu0 0.0
    %2541 = vmatpush1.msra.mxu0 0.0
    %2542 = vmatprep.subr.mxu0 0.0
    %2543 = vmatpush1.msra.mxu0 0.0
    %2544 = vmatprep.subr.mxu0 0.0
    %2545 = vmatpush1.msra.mxu0 0.0
    %2546 = vmatprep.subr.mxu0 0.0
    %2547 = vmatpush1.msra.mxu0 0.0
    %2548 = vmatprep.subr.mxu0 0.0
    %2549 = vmatpush1.msra.mxu0 0.0
    %2550 = vmatprep.subr.mxu0 0.0
    %2551 = vmatpush1.msra.mxu0 0.0
    %2552 = vmatprep.subr.mxu0 0.0
    %2553 = vmatpush1.msra.mxu0 0.0
    %2554 = vmatprep.subr.mxu0 0.0
    %2555 = vmatpush1.msra.mxu0 0.0
    %2556 = vmatprep.subr.mxu0 0.0
    %2557 = vmatpush1.msra.mxu0 0.0
    %2558 = vmatprep.subr.mxu0 0.0
    %2559 = vmatpush1.msra.mxu0 0.0
    %2560 = vmatprep.subr.mxu0 0.0
    %2561 = vmatpush1.msra.mxu0 0.0
    %2562 = vmatprep.subr.mxu0 0.0
    %2563 = vmatpush1.msra.mxu0 0.0
    %2564 = vmatprep.subr.mxu0 0.0
    %2565 = vmatpush1.msra.mxu0 0.0
    %2566 = vmatprep.subr.mxu0 0.0
    %2567 = vmatpush1.msra.mxu0 0.0
    %2568 = vmatprep.subr.mxu0 0.0
    %2569 = vmatpush1.msra.mxu0 0.0
    %2570 = vmatprep.subr.mxu0 0.0
    %2571 = vmatpush1.msra.mxu0 0.0
    %2572 = vmatprep.subr.mxu0 0.0
    %2573 = vmatpush1.msra.mxu0 0.0
    %2574 = vmatprep.subr.mxu0 0.0
    %2575 = vmatpush1.msra.mxu0 0.0
    %2576 = vmatprep.subr.mxu0 0.0
    %2577 = vmatpush1.msra.mxu0 0.0
    %2578 = vmatprep.subr.mxu0 0.0
    %2579 = vmatpush1.msra.mxu0 0.0
    %2580 = vmatprep.mubr.f32.mxu0 0.0
    %2581 = vmatmul.mubr.f32.gmra.mrb[0].mxu0 %v2444
    %v2582 = vpop.f32.mrb[0].mxu0
    %v2583 = vadd.f32 %v2010, %v2582
    %v2584 = vpop.f32.mrb[0].mxu0
    %2585 = vdwg.mxu0
    %2586 = vmatprep.subr.mxu0 0.0
    %2587 = vmatpush1.msra.mxu0 %v1895
    %2588 = vmatprep.subr.mxu0 0.0
    %2589 = vmatpush1.msra.mxu0 %v1896
    %2590 = vmatprep.subr.mxu0 0.0
    %2591 = vmatpush1.msra.mxu0 %v1897
    %2592 = vmatprep.subr.mxu0 0.0
    %2593 = vmatpush1.msra.mxu0 %v1898
    %2594 = vmatprep.subr.mxu0 0.0
    %2595 = vmatpush1.msra.mxu0 0.0
    %2596 = vmatprep.subr.mxu0 0.0
    %2597 = vmatpush1.msra.mxu0 0.0
    %2598 = vmatprep.subr.mxu0 0.0
    %2599 = vmatpush1.msra.mxu0 0.0
    %2600 = vmatprep.subr.mxu0 0.0
    %2601 = vmatpush1.msra.mxu0 0.0
    %2602 = vmatprep.subr.mxu0 0.0
    %2603 = vmatpush1.msra.mxu0 0.0
    %2604 = vmatprep.subr.mxu0 0.0
    %2605 = vmatpush1.msra.mxu0 0.0
    %2606 = vmatprep.subr.mxu0 0.0
    %2607 = vmatpush1.msra.mxu0 0.0
    %2608 = vmatprep.subr.mxu0 0.0
    %2609 = vmatpush1.msra.mxu0 0.0
    %2610 = vmatprep.subr.mxu0 0.0
    %2611 = vmatpush1.msra.mxu0 0.0
    %2612 = vmatprep.subr.mxu0 0.0
    %2613 = vmatpush1.msra.mxu0 0.0
    %2614 = vmatprep.subr.mxu0 0.0
    %2615 = vmatpush1.msra.mxu0 0.0
    %2616 = vmatprep.subr.mxu0 0.0
    %2617 = vmatpush1.msra.mxu0 0.0
    %2618 = vmatprep.subr.mxu0 0.0
    %2619 = vmatpush1.msra.mxu0 0.0
    %2620 = vmatprep.subr.mxu0 0.0
    %2621 = vmatpush1.msra.mxu0 0.0
    %2622 = vmatprep.subr.mxu0 0.0
    %2623 = vmatpush1.msra.mxu0 0.0
    %2624 = vmatprep.subr.mxu0 0.0
    %2625 = vmatpush1.msra.mxu0 0.0
    %2626 = vmatprep.subr.mxu0 0.0
    %2627 = vmatpush1.msra.mxu0 0.0
    %2628 = vmatprep.subr.mxu0 0.0
    %2629 = vmatpush1.msra.mxu0 0.0
    %2630 = vmatprep.subr.mxu0 0.0
    %2631 = vmatpush1.msra.mxu0 0.0
    %2632 = vmatprep.subr.mxu0 0.0
    %2633 = vmatpush1.msra.mxu0 0.0
    %2634 = vmatprep.subr.mxu0 0.0
    %2635 = vmatpush1.msra.mxu0 0.0
    %2636 = vmatprep.subr.mxu0 0.0
    %2637 = vmatpush1.msra.mxu0 0.0
    %2638 = vmatprep.subr.mxu0 0.0
    %2639 = vmatpush1.msra.mxu0 0.0
    %2640 = vmatprep.subr.mxu0 0.0
    %2641 = vmatpush1.msra.mxu0 0.0
    %2642 = vmatprep.subr.mxu0 0.0
    %2643 = vmatpush1.msra.mxu0 0.0
    %2644 = vmatprep.subr.mxu0 0.0
    %2645 = vmatpush1.msra.mxu0 0.0
    %2646 = vmatprep.subr.mxu0 0.0
    %2647 = vmatpush1.msra.mxu0 0.0
    %2648 = vmatprep.subr.mxu0 0.0
    %2649 = vmatpush1.msra.mxu0 0.0
    %2650 = vmatprep.mubr.f32.mxu0 0.0
    %2651 = vmatmul.mubr.f32.gmra.mrb[0].mxu0 %v2444
    %v2652 = vpop.f32.mrb[0].mxu0
    %v2653 = vadd.f32 %v2086, %v2652
    %v2654 = vpop.f32.mrb[0].mxu0
    %2655 = vdwg.mxu0
    %v2656 = vadd.f32 %v2438, %v2513
    %v2657 = vxor.u32 %v2656, 2147483648
    %v2658 = vmul.f32 %v2657, 1.442695
    %v2659 = vpow.pop %v2658
    %v2660 = vadd.f32 %v2659, 1.0
    %v2661 = vrcp.pop %v2660
    %v2662 = vmul.f32 1.0, %v2661
    %v2663 = vadd.f32 %v2440, %v2583
    %v2664 = vxor.u32 %v2663, 2147483648
    %v2665 = vmul.f32 %v2664, 1.442695
    %v2666 = vpow.pop %v2665
    %v2667 = vadd.f32 %v2666, 1.0
    %v2668 = vrcp.pop %v2667
    %v2669 = vmul.f32 1.0, %v2668
    %v2670 = vmul.f32 %v2662, %v2653
    %v2671 = vadd.f32 %v2442, %v2670
    %v2672 = vtanh.pop %v2671
    %v2673 = vsub.f32 1.0, %v2669
    %v2674 = vmul.f32 %v2673, %v2672
    %v2675 = vmul.f32 %v2669, %v2178
    %v2676 = vadd.f32 %v2674, %v2675
    %s2677 = scalar_lea.vmem [#allocation7], 12
    %v2678 = vld [vmem:[%s2677] sm:$0x3]
    %s2679 = scalar_lea.vmem [#allocation8], 12
    %v2680 = vld [vmem:[%s2679] sm:$0x3]
    %s2681 = scalar_lea.vmem [#allocation9], 12
    %v2682 = vld [vmem:[%s2681] sm:$0x3]
    %v2684 = vsel %vm1932, %v2433, 0
    %2686 = vmatprep.subr.mxu0 0.0
    %2687 = vmatpush1.msra.mxu0 %v1904
    %2688 = vmatprep.subr.mxu0 0.0
    %2689 = vmatpush1.msra.mxu0 %v1905
    %2690 = vmatprep.subr.mxu0 0.0
    %2691 = vmatpush1.msra.mxu0 %v1906
    %2692 = vmatprep.subr.mxu0 0.0
    %2693 = vmatpush1.msra.mxu0 %v1907
    %2694 = vmatprep.subr.mxu0 0.0
    %2695 = vmatpush1.msra.mxu0 0.0
    %2696 = vmatprep.subr.mxu0 0.0
    %2697 = vmatpush1.msra.mxu0 0.0
    %2698 = vmatprep.subr.mxu0 0.0
    %2699 = vmatpush1.msra.mxu0 0.0
    %2700 = vmatprep.subr.mxu0 0.0
    %2701 = vmatpush1.msra.mxu0 0.0
    %2702 = vmatprep.subr.mxu0 0.0
    %2703 = vmatpush1.msra.mxu0 0.0
    %2704 = vmatprep.subr.mxu0 0.0
    %2705 = vmatpush1.msra.mxu0 0.0
    %2706 = vmatprep.subr.mxu0 0.0
    %2707 = vmatpush1.msra.mxu0 0.0
    %2708 = vmatprep.subr.mxu0 0.0
    %2709 = vmatpush1.msra.mxu0 0.0
    %2710 = vmatprep.subr.mxu0 0.0
    %2711 = vmatpush1.msra.mxu0 0.0
    %2712 = vmatprep.subr.mxu0 0.0
    %2713 = vmatpush1.msra.mxu0 0.0
    %2714 = vmatprep.subr.mxu0 0.0
    %2715 = vmatpush1.msra.mxu0 0.0
    %2716 = vmatprep.subr.mxu0 0.0
    %2717 = vmatpush1.msra.mxu0 0.0
    %2718 = vmatprep.subr.mxu0 0.0
    %2719 = vmatpush1.msra.mxu0 0.0
    %2720 = vmatprep.subr.mxu0 0.0
    %2721 = vmatpush1.msra.mxu0 0.0
    %2722 = vmatprep.subr.mxu0 0.0
    %2723 = vmatpush1.msra.mxu0 0.0
    %2724 = vmatprep.subr.mxu0 0.0
    %2725 = vmatpush1.msra.mxu0 0.0
    %2726 = vmatprep.subr.mxu0 0.0
    %2727 = vmatpush1.msra.mxu0 0.0
    %2728 = vmatprep.subr.mxu0 0.0
    %2729 = vmatpush1.msra.mxu0 0.0
    %2730 = vmatprep.subr.mxu0 0.0
    %2731 = vmatpush1.msra.mxu0 0.0
    %2732 = vmatprep.subr.mxu0 0.0
    %2733 = vmatpush1.msra.mxu0 0.0
    %2734 = vmatprep.subr.mxu0 0.0
    %2735 = vmatpush1.msra.mxu0 0.0
    %2736 = vmatprep.subr.mxu0 0.0
    %2737 = vmatpush1.msra.mxu0 0.0
    %2738 = vmatprep.subr.mxu0 0.0
    %2739 = vmatpush1.msra.mxu0 0.0
    %2740 = vmatprep.subr.mxu0 0.0
    %2741 = vmatpush1.msra.mxu0 0.0
    %2742 = vmatprep.subr.mxu0 0.0
    %2743 = vmatpush1.msra.mxu0 0.0
    %2744 = vmatprep.subr.mxu0 0.0
    %2745 = vmatpush1.msra.mxu0 0.0
    %2746 = vmatprep.subr.mxu0 0.0
    %2747 = vmatpush1.msra.mxu0 0.0
    %2748 = vmatprep.subr.mxu0 0.0
    %2749 = vmatpush1.msra.mxu0 0.0
    %2750 = vmatprep.mubr.f32.mxu0 0.0
    %2751 = vmatmul.mubr.f32.gmra.mrb[0].mxu0 %v2684
    %v2752 = vpop.f32.mrb[0].mxu0
    %v2753 = vadd.f32 %v2189, %v2752
    %v2754 = vpop.f32.mrb[0].mxu0
    %2755 = vdwg.mxu0
    %2756 = vmatprep.subr.mxu0 0.0
    %2757 = vmatpush1.msra.mxu0 %v1909
    %2758 = vmatprep.subr.mxu0 0.0
    %2759 = vmatpush1.msra.mxu0 %v1910
    %2760 = vmatprep.subr.mxu0 0.0
    %2761 = vmatpush1.msra.mxu0 %v1911
    %2762 = vmatprep.subr.mxu0 0.0
    %2763 = vmatpush1.msra.mxu0 %v1912
    %2764 = vmatprep.subr.mxu0 0.0
    %2765 = vmatpush1.msra.mxu0 0.0
    %2766 = vmatprep.subr.mxu0 0.0
    %2767 = vmatpush1.msra.mxu0 0.0
    %2768 = vmatprep.subr.mxu0 0.0
    %2769 = vmatpush1.msra.mxu0 0.0
    %2770 = vmatprep.subr.mxu0 0.0
    %2771 = vmatpush1.msra.mxu0 0.0
    %2772 = vmatprep.subr.mxu0 0.0
    %2773 = vmatpush1.msra.mxu0 0.0
    %2774 = vmatprep.subr.mxu0 0.0
    %2775 = vmatpush1.msra.mxu0 0.0
    %2776 = vmatprep.subr.mxu0 0.0
    %2777 = vmatpush1.msra.mxu0 0.0
    %2778 = vmatprep.subr.mxu0 0.0
    %2779 = vmatpush1.msra.mxu0 0.0
    %2780 = vmatprep.subr.mxu0 0.0
    %2781 = vmatpush1.msra.mxu0 0.0
    %2782 = vmatprep.subr.mxu0 0.0
    %2783 = vmatpush1.msra.mxu0 0.0
    %2784 = vmatprep.subr.mxu0 0.0
    %2785 = vmatpush1.msra.mxu0 0.0
    %2786 = vmatprep.subr.mxu0 0.0
    %2787 = vmatpush1.msra.mxu0 0.0
    %2788 = vmatprep.subr.mxu0 0.0
    %2789 = vmatpush1.msra.mxu0 0.0
    %2790 = vmatprep.subr.mxu0 0.0
    %2791 = vmatpush1.msra.mxu0 0.0
    %2792 = vmatprep.subr.mxu0 0.0
    %2793 = vmatpush1.msra.mxu0 0.0
    %2794 = vmatprep.subr.mxu0 0.0
    %2795 = vmatpush1.msra.mxu0 0.0
    %2796 = vmatprep.subr.mxu0 0.0
    %2797 = vmatpush1.msra.mxu0 0.0
    %2798 = vmatprep.subr.mxu0 0.0
    %2799 = vmatpush1.msra.mxu0 0.0
    %2800 = vmatprep.subr.mxu0 0.0
    %2801 = vmatpush1.msra.mxu0 0.0
    %2802 = vmatprep.subr.mxu0 0.0
    %2803 = vmatpush1.msra.mxu0 0.0
    %2804 = vmatprep.subr.mxu0 0.0
    %2805 = vmatpush1.msra.mxu0 0.0
    %2806 = vmatprep.subr.mxu0 0.0
    %2807 = vmatpush1.msra.mxu0 0.0
    %2808 = vmatprep.subr.mxu0 0.0
    %2809 = vmatpush1.msra.mxu0 0.0
    %2810 = vmatprep.subr.mxu0 0.0
    %2811 = vmatpush1.msra.mxu0 0.0
    %2812 = vmatprep.subr.mxu0 0.0
    %2813 = vmatpush1.msra.mxu0 0.0
    %2814 = vmatprep.subr.mxu0 0.0
    %2815 = vmatpush1.msra.mxu0 0.0
    %2816 = vmatprep.subr.mxu0 0.0
    %2817 = vmatpush1.msra.mxu0 0.0
    %2818 = vmatprep.subr.mxu0 0.0
    %2819 = vmatpush1.msra.mxu0 0.0
    %2820 = vmatprep.mubr.f32.mxu0 0.0
    %2821 = vmatmul.mubr.f32.gmra.mrb[0].mxu0 %v2684
    %v2822 = vpop.f32.mrb[0].mxu0
    %v2823 = vadd.f32 %v2265, %v2822
    %v2824 = vpop.f32.mrb[0].mxu0
    %2825 = vdwg.mxu0
    %2826 = vmatprep.subr.mxu0 0.0
    %2827 = vmatpush1.msra.mxu0 %v1914
    %2828 = vmatprep.subr.mxu0 0.0
    %2829 = vmatpush1.msra.mxu0 %v1915
    %2830 = vmatprep.subr.mxu0 0.0
    %2831 = vmatpush1.msra.mxu0 %v1916
    %2832 = vmatprep.subr.mxu0 0.0
    %2833 = vmatpush1.msra.mxu0 %v1917
    %2834 = vmatprep.subr.mxu0 0.0
    %2835 = vmatpush1.msra.mxu0 0.0
    %2836 = vmatprep.subr.mxu0 0.0
    %2837 = vmatpush1.msra.mxu0 0.0
    %2838 = vmatprep.subr.mxu0 0.0
    %2839 = vmatpush1.msra.mxu0 0.0
    %2840 = vmatprep.subr.mxu0 0.0
    %2841 = vmatpush1.msra.mxu0 0.0
    %2842 = vmatprep.subr.mxu0 0.0
    %2843 = vmatpush1.msra.mxu0 0.0
    %2844 = vmatprep.subr.mxu0 0.0
    %2845 = vmatpush1.msra.mxu0 0.0
    %2846 = vmatprep.subr.mxu0 0.0
    %2847 = vmatpush1.msra.mxu0 0.0
    %2848 = vmatprep.subr.mxu0 0.0
    %2849 = vmatpush1.msra.mxu0 0.0
    %2850 = vmatprep.subr.mxu0 0.0
    %2851 = vmatpush1.msra.mxu0 0.0
    %2852 = vmatprep.subr.mxu0 0.0
    %2853 = vmatpush1.msra.mxu0 0.0
    %2854 = vmatprep.subr.mxu0 0.0
    %2855 = vmatpush1.msra.mxu0 0.0
    %2856 = vmatprep.subr.mxu0 0.0
    %2857 = vmatpush1.msra.mxu0 0.0
    %2858 = vmatprep.subr.mxu0 0.0
    %2859 = vmatpush1.msra.mxu0 0.0
    %2860 = vmatprep.subr.mxu0 0.0
    %2861 = vmatpush1.msra.mxu0 0.0
    %2862 = vmatprep.subr.mxu0 0.0
    %2863 = vmatpush1.msra.mxu0 0.0
    %2864 = vmatprep.subr.mxu0 0.0
    %2865 = vmatpush1.msra.mxu0 0.0
    %2866 = vmatprep.subr.mxu0 0.0
    %2867 = vmatpush1.msra.mxu0 0.0
    %2868 = vmatprep.subr.mxu0 0.0
    %2869 = vmatpush1.msra.mxu0 0.0
    %2870 = vmatprep.subr.mxu0 0.0
    %2871 = vmatpush1.msra.mxu0 0.0
    %2872 = vmatprep.subr.mxu0 0.0
    %2873 = vmatpush1.msra.mxu0 0.0
    %2874 = vmatprep.subr.mxu0 0.0
    %2875 = vmatpush1.msra.mxu0 0.0
    %2876 = vmatprep.subr.mxu0 0.0
    %2877 = vmatpush1.msra.mxu0 0.0
    %2878 = vmatprep.subr.mxu0 0.0
    %2879 = vmatpush1.msra.mxu0 0.0
    %2880 = vmatprep.subr.mxu0 0.0
    %2881 = vmatpush1.msra.mxu0 0.0
    %2882 = vmatprep.subr.mxu0 0.0
    %2883 = vmatpush1.msra.mxu0 0.0
    %2884 = vmatprep.subr.mxu0 0.0
    %2885 = vmatpush1.msra.mxu0 0.0
    %2886 = vmatprep.subr.mxu0 0.0
    %2887 = vmatpush1.msra.mxu0 0.0
    %2888 = vmatprep.subr.mxu0 0.0
    %2889 = vmatpush1.msra.mxu0 0.0
    %2890 = vmatprep.mubr.f32.mxu0 0.0
    %2891 = vmatmul.mubr.f32.gmra.mrb[0].mxu0 %v2684
    %v2892 = vpop.f32.mrb[0].mxu0
    %v2893 = vadd.f32 %v2341, %v2892
    %v2894 = vpop.f32.mrb[0].mxu0
    %2895 = vdwg.mxu0
    %v2896 = vadd.f32 %v2678, %v2753
    %v2897 = vxor.u32 %v2896, 2147483648
    %v2898 = vmul.f32 %v2897, 1.442695
    %v2899 = vpow.pop %v2898
    %v2900 = vadd.f32 %v2899, 1.0
    %v2901 = vrcp.pop %v2900
    %v2902 = vmul.f32 1.0, %v2901
    %v2903 = vadd.f32 %v2680, %v2823
    %v2904 = vxor.u32 %v2903, 2147483648
    %v2905 = vmul.f32 %v2904, 1.442695
    %v2906 = vpow.pop %v2905
    %v2907 = vadd.f32 %v2906, 1.0
    %v2908 = vrcp.pop %v2907
    %v2909 = vmul.f32 1.0, %v2908
    %v2910 = vmul.f32 %v2902, %v2893
    %v2911 = vadd.f32 %v2682, %v2910
    %v2912 = vtanh.pop %v2911
    %v2913 = vsub.f32 1.0, %v2909
    %v2914 = vmul.f32 %v2913, %v2912
    %v2915 = vmul.f32 %v2909, %v2433
    %v2916 = vadd.f32 %v2914, %v2915
    %s2917 = scalar_lea.vmem [#allocation2], 2
    %2918 = vst.msk [vmem:[%s2917] sm:$0x3] %vm383, %v2676
    %s2919 = scalar_lea.vmem [#allocation3], 12
    %2920 = vst.msk [vmem:[%s2919] sm:$0x3] %vm383, %v2916
    %s2921 = scalar_lea.vmem [#allocation4], 4
    %v2922 = vld [vmem:[%s2921] sm:$0x3]
    %s2923 = scalar_lea.vmem [#allocation5], 4
    %v2924 = vld [vmem:[%s2923] sm:$0x3]
    %s2925 = scalar_lea.vmem [#allocation6], 4
    %v2926 = vld [vmem:[%s2925] sm:$0x3]
    %v2928 = vsel %vm1932, %v2676, 0
    %2930 = vmatprep.subr.mxu0 0.0
    %2931 = vmatpush1.msra.mxu0 %v1885
    %2932 = vmatprep.subr.mxu0 0.0
    %2933 = vmatpush1.msra.mxu0 %v1886
    %2934 = vmatprep.subr.mxu0 0.0
    %2935 = vmatpush1.msra.mxu0 %v1887
    %2936 = vmatprep.subr.mxu0 0.0
    %2937 = vmatpush1.msra.mxu0 %v1888
    %2938 = vmatprep.subr.mxu0 0.0
    %2939 = vmatpush1.msra.mxu0 0.0
    %2940 = vmatprep.subr.mxu0 0.0
    %2941 = vmatpush1.msra.mxu0 0.0
    %2942 = vmatprep.subr.mxu0 0.0
    %2943 = vmatpush1.msra.mxu0 0.0
    %2944 = vmatprep.subr.mxu0 0.0
    %2945 = vmatpush1.msra.mxu0 0.0
    %2946 = vmatprep.subr.mxu0 0.0
    %2947 = vmatpush1.msra.mxu0 0.0
    %2948 = vmatprep.subr.mxu0 0.0
    %2949 = vmatpush1.msra.mxu0 0.0
    %2950 = vmatprep.subr.mxu0 0.0
    %2951 = vmatpush1.msra.mxu0 0.0
    %2952 = vmatprep.subr.mxu0 0.0
    %2953 = vmatpush1.msra.mxu0 0.0
    %2954 = vmatprep.subr.mxu0 0.0
    %2955 = vmatpush1.msra.mxu0 0.0
    %2956 = vmatprep.subr.mxu0 0.0
    %2957 = vmatpush1.msra.mxu0 0.0
    %2958 = vmatprep.subr.mxu0 0.0
    %2959 = vmatpush1.msra.mxu0 0.0
    %2960 = vmatprep.subr.mxu0 0.0
    %2961 = vmatpush1.msra.mxu0 0.0
    %2962 = vmatprep.subr.mxu0 0.0
    %2963 = vmatpush1.msra.mxu0 0.0
    %2964 = vmatprep.subr.mxu0 0.0
    %2965 = vmatpush1.msra.mxu0 0.0
    %2966 = vmatprep.subr.mxu0 0.0
    %2967 = vmatpush1.msra.mxu0 0.0
    %2968 = vmatprep.subr.mxu0 0.0
    %2969 = vmatpush1.msra.mxu0 0.0
    %2970 = vmatprep.subr.mxu0 0.0
    %2971 = vmatpush1.msra.mxu0 0.0
    %2972 = vmatprep.subr.mxu0 0.0
    %2973 = vmatpush1.msra.mxu0 0.0
    %2974 = vmatprep.subr.mxu0 0.0
    %2975 = vmatpush1.msra.mxu0 0.0
    %2976 = vmatprep.subr.mxu0 0.0
    %2977 = vmatpush1.msra.mxu0 0.0
    %2978 = vmatprep.subr.mxu0 0.0
    %2979 = vmatpush1.msra.mxu0 0.0
    %2980 = vmatprep.subr.mxu0 0.0
    %2981 = vmatpush1.msra.mxu0 0.0
    %2982 = vmatprep.subr.mxu0 0.0
    %2983 = vmatpush1.msra.mxu0 0.0
    %2984 = vmatprep.subr.mxu0 0.0
    %2985 = vmatpush1.msra.mxu0 0.0
    %2986 = vmatprep.subr.mxu0 0.0
    %2987 = vmatpush1.msra.mxu0 0.0
    %2988 = vmatprep.subr.mxu0 0.0
    %2989 = vmatpush1.msra.mxu0 0.0
    %2990 = vmatprep.subr.mxu0 0.0
    %2991 = vmatpush1.msra.mxu0 0.0
    %2992 = vmatprep.subr.mxu0 0.0
    %2993 = vmatpush1.msra.mxu0 0.0
    %2994 = vmatprep.mubr.f32.mxu0 0.0
    %2995 = vmatmul.mubr.f32.gmra.mrb[0].mxu0 %v2928
    %v2996 = vpop.f32.mrb[0].mxu0
    %v2997 = vadd.f32 %v1930, %v2996
    %v2998 = vpop.f32.mrb[0].mxu0
    %2999 = vdwg.mxu0
    %3000 = vmatprep.subr.mxu0 0.0
    %3001 = vmatpush1.msra.mxu0 %v1890
    %3002 = vmatprep.subr.mxu0 0.0
    %3003 = vmatpush1.msra.mxu0 %v1891
    %3004 = vmatprep.subr.mxu0 0.0
    %3005 = vmatpush1.msra.mxu0 %v1892
    %3006 = vmatprep.subr.mxu0 0.0
    %3007 = vmatpush1.msra.mxu0 %v1893
    %3008 = vmatprep.subr.mxu0 0.0
    %3009 = vmatpush1.msra.mxu0 0.0
    %3010 = vmatprep.subr.mxu0 0.0
    %3011 = vmatpush1.msra.mxu0 0.0
    %3012 = vmatprep.subr.mxu0 0.0
    %3013 = vmatpush1.msra.mxu0 0.0
    %3014 = vmatprep.subr.mxu0 0.0
    %3015 = vmatpush1.msra.mxu0 0.0
    %3016 = vmatprep.subr.mxu0 0.0
    %3017 = vmatpush1.msra.mxu0 0.0
    %3018 = vmatprep.subr.mxu0 0.0
    %3019 = vmatpush1.msra.mxu0 0.0
    %3020 = vmatprep.subr.mxu0 0.0
    %3021 = vmatpush1.msra.mxu0 0.0
    %3022 = vmatprep.subr.mxu0 0.0
    %3023 = vmatpush1.msra.mxu0 0.0
    %3024 = vmatprep.subr.mxu0 0.0
    %3025 = vmatpush1.msra.mxu0 0.0
    %3026 = vmatprep.subr.mxu0 0.0
    %3027 = vmatpush1.msra.mxu0 0.0
    %3028 = vmatprep.subr.mxu0 0.0
    %3029 = vmatpush1.msra.mxu0 0.0
    %3030 = vmatprep.subr.mxu0 0.0
    %3031 = vmatpush1.msra.mxu0 0.0
    %3032 = vmatprep.subr.mxu0 0.0
    %3033 = vmatpush1.msra.mxu0 0.0
    %3034 = vmatprep.subr.mxu0 0.0
    %3035 = vmatpush1.msra.mxu0 0.0
    %3036 = vmatprep.subr.mxu0 0.0
    %3037 = vmatpush1.msra.mxu0 0.0
    %3038 = vmatprep.subr.mxu0 0.0
    %3039 = vmatpush1.msra.mxu0 0.0
    %3040 = vmatprep.subr.mxu0 0.0
    %3041 = vmatpush1.msra.mxu0 0.0
    %3042 = vmatprep.subr.mxu0 0.0
    %3043 = vmatpush1.msra.mxu0 0.0
    %3044 = vmatprep.subr.mxu0 0.0
    %3045 = vmatpush1.msra.mxu0 0.0
    %3046 = vmatprep.subr.mxu0 0.0
    %3047 = vmatpush1.msra.mxu0 0.0
    %3048 = vmatprep.subr.mxu0 0.0
    %3049 = vmatpush1.msra.mxu0 0.0
    %3050 = vmatprep.subr.mxu0 0.0
    %3051 = vmatpush1.msra.mxu0 0.0
    %3052 = vmatprep.subr.mxu0 0.0
    %3053 = vmatpush1.msra.mxu0 0.0
    %3054 = vmatprep.subr.mxu0 0.0
    %3055 = vmatpush1.msra.mxu0 0.0
    %3056 = vmatprep.subr.mxu0 0.0
    %3057 = vmatpush1.msra.mxu0 0.0
    %3058 = vmatprep.subr.mxu0 0.0
    %3059 = vmatpush1.msra.mxu0 0.0
    %3060 = vmatprep.subr.mxu0 0.0
    %3061 = vmatpush1.msra.mxu0 0.0
    %3062 = vmatprep.subr.mxu0 0.0
    %3063 = vmatpush1.msra.mxu0 0.0
    %3064 = vmatprep.mubr.f32.mxu0 0.0
    %3065 = vmatmul.mubr.f32.gmra.mrb[0].mxu0 %v2928
    %v3066 = vpop.f32.mrb[0].mxu0
    %v3067 = vadd.f32 %v2010, %v3066
    %v3068 = vpop.f32.mrb[0].mxu0
    %3069 = vdwg.mxu0
    %3070 = vmatprep.subr.mxu0 0.0
    %3071 = vmatpush1.msra.mxu0 %v1895
    %3072 = vmatprep.subr.mxu0 0.0
    %3073 = vmatpush1.msra.mxu0 %v1896
    %3074 = vmatprep.subr.mxu0 0.0
    %3075 = vmatpush1.msra.mxu0 %v1897
    %3076 = vmatprep.subr.mxu0 0.0
    %3077 = vmatpush1.msra.mxu0 %v1898
    %3078 = vmatprep.subr.mxu0 0.0
    %3079 = vmatpush1.msra.mxu0 0.0
    %3080 = vmatprep.subr.mxu0 0.0
    %3081 = vmatpush1.msra.mxu0 0.0
    %3082 = vmatprep.subr.mxu0 0.0
    %3083 = vmatpush1.msra.mxu0 0.0
    %3084 = vmatprep.subr.mxu0 0.0
    %3085 = vmatpush1.msra.mxu0 0.0
    %3086 = vmatprep.subr.mxu0 0.0
    %3087 = vmatpush1.msra.mxu0 0.0
    %3088 = vmatprep.subr.mxu0 0.0
    %3089 = vmatpush1.msra.mxu0 0.0
    %3090 = vmatprep.subr.mxu0 0.0
    %3091 = vmatpush1.msra.mxu0 0.0
    %3092 = vmatprep.subr.mxu0 0.0
    %3093 = vmatpush1.msra.mxu0 0.0
    %3094 = vmatprep.subr.mxu0 0.0
    %3095 = vmatpush1.msra.mxu0 0.0
    %3096 = vmatprep.subr.mxu0 0.0
    %3097 = vmatpush1.msra.mxu0 0.0
    %3098 = vmatprep.subr.mxu0 0.0
    %3099 = vmatpush1.msra.mxu0 0.0
    %3100 = vmatprep.subr.mxu0 0.0
    %3101 = vmatpush1.msra.mxu0 0.0
    %3102 = vmatprep.subr.mxu0 0.0
    %3103 = vmatpush1.msra.mxu0 0.0
    %3104 = vmatprep.subr.mxu0 0.0
    %3105 = vmatpush1.msra.mxu0 0.0
    %3106 = vmatprep.subr.mxu0 0.0
    %3107 = vmatpush1.msra.mxu0 0.0
    %3108 = vmatprep.subr.mxu0 0.0
    %3109 = vmatpush1.msra.mxu0 0.0
    %3110 = vmatprep.subr.mxu0 0.0
    %3111 = vmatpush1.msra.mxu0 0.0
    %3112 = vmatprep.subr.mxu0 0.0
    %3113 = vmatpush1.msra.mxu0 0.0
    %3114 = vmatprep.subr.mxu0 0.0
    %3115 = vmatpush1.msra.mxu0 0.0
    %3116 = vmatprep.subr.mxu0 0.0
    %3117 = vmatpush1.msra.mxu0 0.0
    %3118 = vmatprep.subr.mxu0 0.0
    %3119 = vmatpush1.msra.mxu0 0.0
    %3120 = vmatprep.subr.mxu0 0.0
    %3121 = vmatpush1.msra.mxu0 0.0
    %3122 = vmatprep.subr.mxu0 0.0
    %3123 = vmatpush1.msra.mxu0 0.0
    %3124 = vmatprep.subr.mxu0 0.0
    %3125 = vmatpush1.msra.mxu0 0.0
    %3126 = vmatprep.subr.mxu0 0.0
    %3127 = vmatpush1.msra.mxu0 0.0
    %3128 = vmatprep.subr.mxu0 0.0
    %3129 = vmatpush1.msra.mxu0 0.0
    %3130 = vmatprep.subr.mxu0 0.0
    %3131 = vmatpush1.msra.mxu0 0.0
    %3132 = vmatprep.subr.mxu0 0.0
    %3133 = vmatpush1.msra.mxu0 0.0
    %3134 = vmatprep.mubr.f32.mxu0 0.0
    %3135 = vmatmul.mubr.f32.gmra.mrb[0].mxu0 %v2928
    %v3136 = vpop.f32.mrb[0].mxu0
    %v3137 = vadd.f32 %v2086, %v3136
    %v3138 = vpop.f32.mrb[0].mxu0
    %3139 = vdwg.mxu0
    %v3140 = vadd.f32 %v2922, %v2997
    %v3141 = vxor.u32 %v3140, 2147483648
    %v3142 = vmul.f32 %v3141, 1.442695
    %v3143 = vpow.pop %v3142
    %v3144 = vadd.f32 %v3143, 1.0
    %v3145 = vrcp.pop %v3144
    %v3146 = vmul.f32 1.0, %v3145
    %v3147 = vadd.f32 %v2924, %v3067
    %v3148 = vxor.u32 %v3147, 2147483648
    %v3149 = vmul.f32 %v3148, 1.442695
    %v3150 = vpow.pop %v3149
    %v3151 = vadd.f32 %v3150, 1.0
    %v3152 = vrcp.pop %v3151
    %v3153 = vmul.f32 1.0, %v3152
    %v3154 = vmul.f32 %v3146, %v3137
    %v3155 = vadd.f32 %v2926, %v3154
    %v3156 = vtanh.pop %v3155
    %v3157 = vsub.f32 1.0, %v3153
    %v3158 = vmul.f32 %v3157, %v3156
    %v3159 = vmul.f32 %v3153, %v2676
    %v3160 = vadd.f32 %v3158, %v3159
    %s3161 = scalar_lea.vmem [#allocation7], 10
    %v3162 = vld [vmem:[%s3161] sm:$0x3]
    %s3163 = scalar_lea.vmem [#allocation8], 10
    %v3164 = vld [vmem:[%s3163] sm:$0x3]
    %s3165 = scalar_lea.vmem [#allocation9], 10
    %v3166 = vld [vmem:[%s3165] sm:$0x3]
    %v3168 = vsel %vm1932, %v2916, 0
    %3170 = vmatprep.subr.mxu0 0.0
    %3171 = vmatpush1.msra.mxu0 %v1904
    %3172 = vmatprep.subr.mxu0 0.0
    %3173 = vmatpush1.msra.mxu0 %v1905
    %3174 = vmatprep.subr.mxu0 0.0
    %3175 = vmatpush1.msra.mxu0 %v1906
    %3176 = vmatprep.subr.mxu0 0.0
    %3177 = vmatpush1.msra.mxu0 %v1907
    %3178 = vmatprep.subr.mxu0 0.0
    %3179 = vmatpush1.msra.mxu0 0.0
    %3180 = vmatprep.subr.mxu0 0.0
    %3181 = vmatpush1.msra.mxu0 0.0
    %3182 = vmatprep.subr.mxu0 0.0
    %3183 = vmatpush1.msra.mxu0 0.0
    %3184 = vmatprep.subr.mxu0 0.0
    %3185 = vmatpush1.msra.mxu0 0.0
    %3186 = vmatprep.subr.mxu0 0.0
    %3187 = vmatpush1.msra.mxu0 0.0
    %3188 = vmatprep.subr.mxu0 0.0
    %3189 = vmatpush1.msra.mxu0 0.0
    %3190 = vmatprep.subr.mxu0 0.0
    %3191 = vmatpush1.msra.mxu0 0.0
    %3192 = vmatprep.subr.mxu0 0.0
    %3193 = vmatpush1.msra.mxu0 0.0
    %3194 = vmatprep.subr.mxu0 0.0
    %3195 = vmatpush1.msra.mxu0 0.0
    %3196 = vmatprep.subr.mxu0 0.0
    %3197 = vmatpush1.msra.mxu0 0.0
    %3198 = vmatprep.subr.mxu0 0.0
    %3199 = vmatpush1.msra.mxu0 0.0
    %3200 = vmatprep.subr.mxu0 0.0
    %3201 = vmatpush1.msra.mxu0 0.0
    %3202 = vmatprep.subr.mxu0 0.0
    %3203 = vmatpush1.msra.mxu0 0.0
    %3204 = vmatprep.subr.mxu0 0.0
    %3205 = vmatpush1.msra.mxu0 0.0
    %3206 = vmatprep.subr.mxu0 0.0
    %3207 = vmatpush1.msra.mxu0 0.0
    %3208 = vmatprep.subr.mxu0 0.0
    %3209 = vmatpush1.msra.mxu0 0.0
    %3210 = vmatprep.subr.mxu0 0.0
    %3211 = vmatpush1.msra.mxu0 0.0
    %3212 = vmatprep.subr.mxu0 0.0
    %3213 = vmatpush1.msra.mxu0 0.0
    %3214 = vmatprep.subr.mxu0 0.0
    %3215 = vmatpush1.msra.mxu0 0.0
    %3216 = vmatprep.subr.mxu0 0.0
    %3217 = vmatpush1.msra.mxu0 0.0
    %3218 = vmatprep.subr.mxu0 0.0
    %3219 = vmatpush1.msra.mxu0 0.0
    %3220 = vmatprep.subr.mxu0 0.0
    %3221 = vmatpush1.msra.mxu0 0.0
    %3222 = vmatprep.subr.mxu0 0.0
    %3223 = vmatpush1.msra.mxu0 0.0
    %3224 = vmatprep.subr.mxu0 0.0
    %3225 = vmatpush1.msra.mxu0 0.0
    %3226 = vmatprep.subr.mxu0 0.0
    %3227 = vmatpush1.msra.mxu0 0.0
    %3228 = vmatprep.subr.mxu0 0.0
    %3229 = vmatpush1.msra.mxu0 0.0
    %3230 = vmatprep.subr.mxu0 0.0
    %3231 = vmatpush1.msra.mxu0 0.0
    %3232 = vmatprep.subr.mxu0 0.0
    %3233 = vmatpush1.msra.mxu0 0.0
    %3234 = vmatprep.mubr.f32.mxu0 0.0
    %3235 = vmatmul.mubr.f32.gmra.mrb[0].mxu0 %v3168
    %v3236 = vpop.f32.mrb[0].mxu0
    %v3237 = vadd.f32 %v2189, %v3236
    %v3238 = vpop.f32.mrb[0].mxu0
    %3239 = vdwg.mxu0
    %3240 = vmatprep.subr.mxu0 0.0
    %3241 = vmatpush1.msra.mxu0 %v1909
    %3242 = vmatprep.subr.mxu0 0.0
    %3243 = vmatpush1.msra.mxu0 %v1910
    %3244 = vmatprep.subr.mxu0 0.0
    %3245 = vmatpush1.msra.mxu0 %v1911
    %3246 = vmatprep.subr.mxu0 0.0
    %3247 = vmatpush1.msra.mxu0 %v1912
    %3248 = vmatprep.subr.mxu0 0.0
    %3249 = vmatpush1.msra.mxu0 0.0
    %3250 = vmatprep.subr.mxu0 0.0
    %3251 = vmatpush1.msra.mxu0 0.0
    %3252 = vmatprep.subr.mxu0 0.0
    %3253 = vmatpush1.msra.mxu0 0.0
    %3254 = vmatprep.subr.mxu0 0.0
    %3255 = vmatpush1.msra.mxu0 0.0
    %3256 = vmatprep.subr.mxu0 0.0
    %3257 = vmatpush1.msra.mxu0 0.0
    %3258 = vmatprep.subr.mxu0 0.0
    %3259 = vmatpush1.msra.mxu0 0.0
    %3260 = vmatprep.subr.mxu0 0.0
    %3261 = vmatpush1.msra.mxu0 0.0
    %3262 = vmatprep.subr.mxu0 0.0
    %3263 = vmatpush1.msra.mxu0 0.0
    %3264 = vmatprep.subr.mxu0 0.0
    %3265 = vmatpush1.msra.mxu0 0.0
    %3266 = vmatprep.subr.mxu0 0.0
    %3267 = vmatpush1.msra.mxu0 0.0
    %3268 = vmatprep.subr.mxu0 0.0
    %3269 = vmatpush1.msra.mxu0 0.0
    %3270 = vmatprep.subr.mxu0 0.0
    %3271 = vmatpush1.msra.mxu0 0.0
    %3272 = vmatprep.subr.mxu0 0.0
    %3273 = vmatpush1.msra.mxu0 0.0
    %3274 = vmatprep.subr.mxu0 0.0
    %3275 = vmatpush1.msra.mxu0 0.0
    %3276 = vmatprep.subr.mxu0 0.0
    %3277 = vmatpush1.msra.mxu0 0.0
    %3278 = vmatprep.subr.mxu0 0.0
    %3279 = vmatpush1.msra.mxu0 0.0
    %3280 = vmatprep.subr.mxu0 0.0
    %3281 = vmatpush1.msra.mxu0 0.0
    %3282 = vmatprep.subr.mxu0 0.0
    %3283 = vmatpush1.msra.mxu0 0.0
    %3284 = vmatprep.subr.mxu0 0.0
    %3285 = vmatpush1.msra.mxu0 0.0
    %3286 = vmatprep.subr.mxu0 0.0
    %3287 = vmatpush1.msra.mxu0 0.0
    %3288 = vmatprep.subr.mxu0 0.0
    %3289 = vmatpush1.msra.mxu0 0.0
    %3290 = vmatprep.subr.mxu0 0.0
    %3291 = vmatpush1.msra.mxu0 0.0
    %3292 = vmatprep.subr.mxu0 0.0
    %3293 = vmatpush1.msra.mxu0 0.0
    %3294 = vmatprep.subr.mxu0 0.0
    %3295 = vmatpush1.msra.mxu0 0.0
    %3296 = vmatprep.subr.mxu0 0.0
    %3297 = vmatpush1.msra.mxu0 0.0
    %3298 = vmatprep.subr.mxu0 0.0
    %3299 = vmatpush1.msra.mxu0 0.0
    %3300 = vmatprep.subr.mxu0 0.0
    %3301 = vmatpush1.msra.mxu0 0.0
    %3302 = vmatprep.subr.mxu0 0.0
    %3303 = vmatpush1.msra.mxu0 0.0
    %3304 = vmatprep.mubr.f32.mxu0 0.0
    %3305 = vmatmul.mubr.f32.gmra.mrb[0].mxu0 %v3168
    %v3306 = vpop.f32.mrb[0].mxu0
    %v3307 = vadd.f32 %v2265, %v3306
    %v3308 = vpop.f32.mrb[0].mxu0
    %3309 = vdwg.mxu0
    %3310 = vmatprep.subr.mxu0 0.0
    %3311 = vmatpush1.msra.mxu0 %v1914
    %3312 = vmatprep.subr.mxu0 0.0
    %3313 = vmatpush1.msra.mxu0 %v1915
    %3314 = vmatprep.subr.mxu0 0.0
    %3315 = vmatpush1.msra.mxu0 %v1916
    %3316 = vmatprep.subr.mxu0 0.0
    %3317 = vmatpush1.msra.mxu0 %v1917
    %3318 = vmatprep.subr.mxu0 0.0
    %3319 = vmatpush1.msra.mxu0 0.0
    %3320 = vmatprep.subr.mxu0 0.0
    %3321 = vmatpush1.msra.mxu0 0.0
    %3322 = vmatprep.subr.mxu0 0.0
    %3323 = vmatpush1.msra.mxu0 0.0
    %3324 = vmatprep.subr.mxu0 0.0
    %3325 = vmatpush1.msra.mxu0 0.0
    %3326 = vmatprep.subr.mxu0 0.0
    %3327 = vmatpush1.msra.mxu0 0.0
    %3328 = vmatprep.subr.mxu0 0.0
    %3329 = vmatpush1.msra.mxu0 0.0
    %3330 = vmatprep.subr.mxu0 0.0
    %3331 = vmatpush1.msra.mxu0 0.0
    %3332 = vmatprep.subr.mxu0 0.0
    %3333 = vmatpush1.msra.mxu0 0.0
    %3334 = vmatprep.subr.mxu0 0.0
    %3335 = vmatpush1.msra.mxu0 0.0
    %3336 = vmatprep.subr.mxu0 0.0
    %3337 = vmatpush1.msra.mxu0 0.0
    %3338 = vmatprep.subr.mxu0 0.0
    %3339 = vmatpush1.msra.mxu0 0.0
    %3340 = vmatprep.subr.mxu0 0.0
    %3341 = vmatpush1.msra.mxu0 0.0
    %3342 = vmatprep.subr.mxu0 0.0
    %3343 = vmatpush1.msra.mxu0 0.0
    %3344 = vmatprep.subr.mxu0 0.0
    %3345 = vmatpush1.msra.mxu0 0.0
    %3346 = vmatprep.subr.mxu0 0.0
    %3347 = vmatpush1.msra.mxu0 0.0
    %3348 = vmatprep.subr.mxu0 0.0
    %3349 = vmatpush1.msra.mxu0 0.0
    %3350 = vmatprep.subr.mxu0 0.0
    %3351 = vmatpush1.msra.mxu0 0.0
    %3352 = vmatprep.subr.mxu0 0.0
    %3353 = vmatpush1.msra.mxu0 0.0
    %3354 = vmatprep.subr.mxu0 0.0
    %3355 = vmatpush1.msra.mxu0 0.0
    %3356 = vmatprep.subr.mxu0 0.0
    %3357 = vmatpush1.msra.mxu0 0.0
    %3358 = vmatprep.subr.mxu0 0.0
    %3359 = vmatpush1.msra.mxu0 0.0
    %3360 = vmatprep.subr.mxu0 0.0
    %3361 = vmatpush1.msra.mxu0 0.0
    %3362 = vmatprep.subr.mxu0 0.0
    %3363 = vmatpush1.msra.mxu0 0.0
    %3364 = vmatprep.subr.mxu0 0.0
    %3365 = vmatpush1.msra.mxu0 0.0
    %3366 = vmatprep.subr.mxu0 0.0
    %3367 = vmatpush1.msra.mxu0 0.0
    %3368 = vmatprep.subr.mxu0 0.0
    %3369 = vmatpush1.msra.mxu0 0.0
    %3370 = vmatprep.subr.mxu0 0.0
    %3371 = vmatpush1.msra.mxu0 0.0
    %3372 = vmatprep.subr.mxu0 0.0
    %3373 = vmatpush1.msra.mxu0 0.0
    %3374 = vmatprep.mubr.f32.mxu0 0.0
    %3375 = vmatmul.mubr.f32.gmra.mrb[0].mxu0 %v3168
    %v3376 = vpop.f32.mrb[0].mxu0
    %v3377 = vadd.f32 %v2341, %v3376
    %v3378 = vpop.f32.mrb[0].mxu0
    %3379 = vdwg.mxu0
    %v3380 = vadd.f32 %v3162, %v3237
    %v3381 = vxor.u32 %v3380, 2147483648
    %v3382 = vmul.f32 %v3381, 1.442695
    %v3383 = vpow.pop %v3382
    %v3384 = vadd.f32 %v3383, 1.0
    %v3385 = vrcp.pop %v3384
    %v3386 = vmul.f32 1.0, %v3385
    %v3387 = vadd.f32 %v3164, %v3307
    %v3388 = vxor.u32 %v3387, 2147483648
    %v3389 = vmul.f32 %v3388, 1.442695
    %v3390 = vpow.pop %v3389
    %v3391 = vadd.f32 %v3390, 1.0
    %v3392 = vrcp.pop %v3391
    %v3393 = vmul.f32 1.0, %v3392
    %v3394 = vmul.f32 %v3386, %v3377
    %v3395 = vadd.f32 %v3166, %v3394
    %v3396 = vtanh.pop %v3395
    %v3397 = vsub.f32 1.0, %v3393
    %v3398 = vmul.f32 %v3397, %v3396
    %v3399 = vmul.f32 %v3393, %v2916
    %v3400 = vadd.f32 %v3398, %v3399
    %s3401 = scalar_lea.vmem [#allocation2], 4
    %3402 = vst.msk [vmem:[%s3401] sm:$0x3] %vm383, %v3160
    %s3403 = scalar_lea.vmem [#allocation3], 10
    %3404 = vst.msk [vmem:[%s3403] sm:$0x3] %vm383, %v3400
    %s3405 = scalar_lea.vmem [#allocation4], 6
    %v3406 = vld [vmem:[%s3405] sm:$0x3]
    %s3407 = scalar_lea.vmem [#allocation5], 6
    %v3408 = vld [vmem:[%s3407] sm:$0x3]
    %s3409 = scalar_lea.vmem [#allocation6], 6
    %v3410 = vld [vmem:[%s3409] sm:$0x3]
    %v3412 = vsel %vm1932, %v3160, 0
    %3414 = vmatprep.subr.mxu0 0.0
    %3415 = vmatpush1.msra.mxu0 %v1885
    %3416 = vmatprep.subr.mxu0 0.0
    %3417 = vmatpush1.msra.mxu0 %v1886
    %3418 = vmatprep.subr.mxu0 0.0
    %3419 = vmatpush1.msra.mxu0 %v1887
    %3420 = vmatprep.subr.mxu0 0.0
    %3421 = vmatpush1.msra.mxu0 %v1888
    %3422 = vmatprep.subr.mxu0 0.0
    %3423 = vmatpush1.msra.mxu0 0.0
    %3424 = vmatprep.subr.mxu0 0.0
    %3425 = vmatpush1.msra.mxu0 0.0
    %3426 = vmatprep.subr.mxu0 0.0
    %3427 = vmatpush1.msra.mxu0 0.0
    %3428 = vmatprep.subr.mxu0 0.0
    %3429 = vmatpush1.msra.mxu0 0.0
    %3430 = vmatprep.subr.mxu0 0.0
    %3431 = vmatpush1.msra.mxu0 0.0
    %3432 = vmatprep.subr.mxu0 0.0
    %3433 = vmatpush1.msra.mxu0 0.0
    %3434 = vmatprep.subr.mxu0 0.0
    %3435 = vmatpush1.msra.mxu0 0.0
    %3436 = vmatprep.subr.mxu0 0.0
    %3437 = vmatpush1.msra.mxu0 0.0
    %3438 = vmatprep.subr.mxu0 0.0
    %3439 = vmatpush1.msra.mxu0 0.0
    %3440 = vmatprep.subr.mxu0 0.0
    %3441 = vmatpush1.msra.mxu0 0.0
    %3442 = vmatprep.subr.mxu0 0.0
    %3443 = vmatpush1.msra.mxu0 0.0
    %3444 = vmatprep.subr.mxu0 0.0
    %3445 = vmatpush1.msra.mxu0 0.0
    %3446 = vmatprep.subr.mxu0 0.0
    %3447 = vmatpush1.msra.mxu0 0.0
    %3448 = vmatprep.subr.mxu0 0.0
    %3449 = vmatpush1.msra.mxu0 0.0
    %3450 = vmatprep.subr.mxu0 0.0
    %3451 = vmatpush1.msra.mxu0 0.0
    %3452 = vmatprep.subr.mxu0 0.0
    %3453 = vmatpush1.msra.mxu0 0.0
    %3454 = vmatprep.subr.mxu0 0.0
    %3455 = vmatpush1.msra.mxu0 0.0
    %3456 = vmatprep.subr.mxu0 0.0
    %3457 = vmatpush1.msra.mxu0 0.0
    %3458 = vmatprep.subr.mxu0 0.0
    %3459 = vmatpush1.msra.mxu0 0.0
    %3460 = vmatprep.subr.mxu0 0.0
    %3461 = vmatpush1.msra.mxu0 0.0
    %3462 = vmatprep.subr.mxu0 0.0
    %3463 = vmatpush1.msra.mxu0 0.0
    %3464 = vmatprep.subr.mxu0 0.0
    %3465 = vmatpush1.msra.mxu0 0.0
    %3466 = vmatprep.subr.mxu0 0.0
    %3467 = vmatpush1.msra.mxu0 0.0
    %3468 = vmatprep.subr.mxu0 0.0
    %3469 = vmatpush1.msra.mxu0 0.0
    %3470 = vmatprep.subr.mxu0 0.0
    %3471 = vmatpush1.msra.mxu0 0.0
    %3472 = vmatprep.subr.mxu0 0.0
    %3473 = vmatpush1.msra.mxu0 0.0
    %3474 = vmatprep.subr.mxu0 0.0
    %3475 = vmatpush1.msra.mxu0 0.0
    %3476 = vmatprep.subr.mxu0 0.0
    %3477 = vmatpush1.msra.mxu0 0.0
    %3478 = vmatprep.mubr.f32.mxu0 0.0
    %3479 = vmatmul.mubr.f32.gmra.mrb[0].mxu0 %v3412
    %v3480 = vpop.f32.mrb[0].mxu0
    %v3481 = vadd.f32 %v1930, %v3480
    %v3482 = vpop.f32.mrb[0].mxu0
    %3483 = vdwg.mxu0
    %3484 = vmatprep.subr.mxu0 0.0
    %3485 = vmatpush1.msra.mxu0 %v1890
    %3486 = vmatprep.subr.mxu0 0.0
    %3487 = vmatpush1.msra.mxu0 %v1891
    %3488 = vmatprep.subr.mxu0 0.0
    %3489 = vmatpush1.msra.mxu0 %v1892
    %3490 = vmatprep.subr.mxu0 0.0
    %3491 = vmatpush1.msra.mxu0 %v1893
    %3492 = vmatprep.subr.mxu0 0.0
    %3493 = vmatpush1.msra.mxu0 0.0
    %3494 = vmatprep.subr.mxu0 0.0
    %3495 = vmatpush1.msra.mxu0 0.0
    %3496 = vmatprep.subr.mxu0 0.0
    %3497 = vmatpush1.msra.mxu0 0.0
    %3498 = vmatprep.subr.mxu0 0.0
    %3499 = vmatpush1.msra.mxu0 0.0
    %3500 = vmatprep.subr.mxu0 0.0
    %3501 = vmatpush1.msra.mxu0 0.0
    %3502 = vmatprep.subr.mxu0 0.0
    %3503 = vmatpush1.msra.mxu0 0.0
    %3504 = vmatprep.subr.mxu0 0.0
    %3505 = vmatpush1.msra.mxu0 0.0
    %3506 = vmatprep.subr.mxu0 0.0
    %3507 = vmatpush1.msra.mxu0 0.0
    %3508 = vmatprep.subr.mxu0 0.0
    %3509 = vmatpush1.msra.mxu0 0.0
    %3510 = vmatprep.subr.mxu0 0.0
    %3511 = vmatpush1.msra.mxu0 0.0
    %3512 = vmatprep.subr.mxu0 0.0
    %3513 = vmatpush1.msra.mxu0 0.0
    %3514 = vmatprep.subr.mxu0 0.0
    %3515 = vmatpush1.msra.mxu0 0.0
    %3516 = vmatprep.subr.mxu0 0.0
    %3517 = vmatpush1.msra.mxu0 0.0
    %3518 = vmatprep.subr.mxu0 0.0
    %3519 = vmatpush1.msra.mxu0 0.0
    %3520 = vmatprep.subr.mxu0 0.0
    %3521 = vmatpush1.msra.mxu0 0.0
    %3522 = vmatprep.subr.mxu0 0.0
    %3523 = vmatpush1.msra.mxu0 0.0
    %3524 = vmatprep.subr.mxu0 0.0
    %3525 = vmatpush1.msra.mxu0 0.0
    %3526 = vmatprep.subr.mxu0 0.0
    %3527 = vmatpush1.msra.mxu0 0.0
    %3528 = vmatprep.subr.mxu0 0.0
    %3529 = vmatpush1.msra.mxu0 0.0
    %3530 = vmatprep.subr.mxu0 0.0
    %3531 = vmatpush1.msra.mxu0 0.0
    %3532 = vmatprep.subr.mxu0 0.0
    %3533 = vmatpush1.msra.mxu0 0.0
    %3534 = vmatprep.subr.mxu0 0.0
    %3535 = vmatpush1.msra.mxu0 0.0
    %3536 = vmatprep.subr.mxu0 0.0
    %3537 = vmatpush1.msra.mxu0 0.0
    %3538 = vmatprep.subr.mxu0 0.0
    %3539 = vmatpush1.msra.mxu0 0.0
    %3540 = vmatprep.subr.mxu0 0.0
    %3541 = vmatpush1.msra.mxu0 0.0
    %3542 = vmatprep.subr.mxu0 0.0
    %3543 = vmatpush1.msra.mxu0 0.0
    %3544 = vmatprep.subr.mxu0 0.0
    %3545 = vmatpush1.msra.mxu0 0.0
    %3546 = vmatprep.subr.mxu0 0.0
    %3547 = vmatpush1.msra.mxu0 0.0
    %3548 = vmatprep.mubr.f32.mxu0 0.0
    %3549 = vmatmul.mubr.f32.gmra.mrb[0].mxu0 %v3412
    %v3550 = vpop.f32.mrb[0].mxu0
    %v3551 = vadd.f32 %v2010, %v3550
    %v3552 = vpop.f32.mrb[0].mxu0
    %3553 = vdwg.mxu0
    %3554 = vmatprep.subr.mxu0 0.0
    %3555 = vmatpush1.msra.mxu0 %v1895
    %3556 = vmatprep.subr.mxu0 0.0
    %3557 = vmatpush1.msra.mxu0 %v1896
    %3558 = vmatprep.subr.mxu0 0.0
    %3559 = vmatpush1.msra.mxu0 %v1897
    %3560 = vmatprep.subr.mxu0 0.0
    %3561 = vmatpush1.msra.mxu0 %v1898
    %3562 = vmatprep.subr.mxu0 0.0
    %3563 = vmatpush1.msra.mxu0 0.0
    %3564 = vmatprep.subr.mxu0 0.0
    %3565 = vmatpush1.msra.mxu0 0.0
    %3566 = vmatprep.subr.mxu0 0.0
    %3567 = vmatpush1.msra.mxu0 0.0
    %3568 = vmatprep.subr.mxu0 0.0
    %3569 = vmatpush1.msra.mxu0 0.0
    %3570 = vmatprep.subr.mxu0 0.0
    %3571 = vmatpush1.msra.mxu0 0.0
    %3572 = vmatprep.subr.mxu0 0.0
    %3573 = vmatpush1.msra.mxu0 0.0
    %3574 = vmatprep.subr.mxu0 0.0
    %3575 = vmatpush1.msra.mxu0 0.0
    %3576 = vmatprep.subr.mxu0 0.0
    %3577 = vmatpush1.msra.mxu0 0.0
    %3578 = vmatprep.subr.mxu0 0.0
    %3579 = vmatpush1.msra.mxu0 0.0
    %3580 = vmatprep.subr.mxu0 0.0
    %3581 = vmatpush1.msra.mxu0 0.0
    %3582 = vmatprep.subr.mxu0 0.0
    %3583 = vmatpush1.msra.mxu0 0.0
    %3584 = vmatprep.subr.mxu0 0.0
    %3585 = vmatpush1.msra.mxu0 0.0
    %3586 = vmatprep.subr.mxu0 0.0
    %3587 = vmatpush1.msra.mxu0 0.0
    %3588 = vmatprep.subr.mxu0 0.0
    %3589 = vmatpush1.msra.mxu0 0.0
    %3590 = vmatprep.subr.mxu0 0.0
    %3591 = vmatpush1.msra.mxu0 0.0
    %3592 = vmatprep.subr.mxu0 0.0
    %3593 = vmatpush1.msra.mxu0 0.0
    %3594 = vmatprep.subr.mxu0 0.0
    %3595 = vmatpush1.msra.mxu0 0.0
    %3596 = vmatprep.subr.mxu0 0.0
    %3597 = vmatpush1.msra.mxu0 0.0
    %3598 = vmatprep.subr.mxu0 0.0
    %3599 = vmatpush1.msra.mxu0 0.0
    %3600 = vmatprep.subr.mxu0 0.0
    %3601 = vmatpush1.msra.mxu0 0.0
    %3602 = vmatprep.subr.mxu0 0.0
    %3603 = vmatpush1.msra.mxu0 0.0
    %3604 = vmatprep.subr.mxu0 0.0
    %3605 = vmatpush1.msra.mxu0 0.0
    %3606 = vmatprep.subr.mxu0 0.0
    %3607 = vmatpush1.msra.mxu0 0.0
    %3608 = vmatprep.subr.mxu0 0.0
    %3609 = vmatpush1.msra.mxu0 0.0
    %3610 = vmatprep.subr.mxu0 0.0
    %3611 = vmatpush1.msra.mxu0 0.0
    %3612 = vmatprep.subr.mxu0 0.0
    %3613 = vmatpush1.msra.mxu0 0.0
    %3614 = vmatprep.subr.mxu0 0.0
    %3615 = vmatpush1.msra.mxu0 0.0
    %3616 = vmatprep.subr.mxu0 0.0
    %3617 = vmatpush1.msra.mxu0 0.0
    %3618 = vmatprep.mubr.f32.mxu0 0.0
    %3619 = vmatmul.mubr.f32.gmra.mrb[0].mxu0 %v3412
    %v3620 = vpop.f32.mrb[0].mxu0
    %v3621 = vadd.f32 %v2086, %v3620
    %v3622 = vpop.f32.mrb[0].mxu0
    %3623 = vdwg.mxu0
    %v3624 = vadd.f32 %v3406, %v3481
    %v3625 = vxor.u32 %v3624, 2147483648
    %v3626 = vmul.f32 %v3625, 1.442695
    %v3627 = vpow.pop %v3626
    %v3628 = vadd.f32 %v3627, 1.0
    %v3629 = vrcp.pop %v3628
    %v3630 = vmul.f32 1.0, %v3629
    %v3631 = vadd.f32 %v3408, %v3551
    %v3632 = vxor.u32 %v3631, 2147483648
    %v3633 = vmul.f32 %v3632, 1.442695
    %v3634 = vpow.pop %v3633
    %v3635 = vadd.f32 %v3634, 1.0
    %v3636 = vrcp.pop %v3635
    %v3637 = vmul.f32 1.0, %v3636
    %v3638 = vmul.f32 %v3630, %v3621
    %v3639 = vadd.f32 %v3410, %v3638
    %v3640 = vtanh.pop %v3639
    %v3641 = vsub.f32 1.0, %v3637
    %v3642 = vmul.f32 %v3641, %v3640
    %v3643 = vmul.f32 %v3637, %v3160
    %v3644 = vadd.f32 %v3642, %v3643
    %s3645 = scalar_lea.vmem [#allocation7], 8
    %v3646 = vld [vmem:[%s3645] sm:$0x3]
    %s3647 = scalar_lea.vmem [#allocation8], 8
    %v3648 = vld [vmem:[%s3647] sm:$0x3]
    %s3649 = scalar_lea.vmem [#allocation9], 8
    %v3650 = vld [vmem:[%s3649] sm:$0x3]
    %v3652 = vsel %vm1932, %v3400, 0
    %3654 = vmatprep.subr.mxu0 0.0
    %3655 = vmatpush1.msra.mxu0 %v1904
    %3656 = vmatprep.subr.mxu0 0.0
    %3657 = vmatpush1.msra.mxu0 %v1905
    %3658 = vmatprep.subr.mxu0 0.0
    %3659 = vmatpush1.msra.mxu0 %v1906
    %3660 = vmatprep.subr.mxu0 0.0
    %3661 = vmatpush1.msra.mxu0 %v1907
    %3662 = vmatprep.subr.mxu0 0.0
    %3663 = vmatpush1.msra.mxu0 0.0
    %3664 = vmatprep.subr.mxu0 0.0
    %3665 = vmatpush1.msra.mxu0 0.0
    %3666 = vmatprep.subr.mxu0 0.0
    %3667 = vmatpush1.msra.mxu0 0.0
    %3668 = vmatprep.subr.mxu0 0.0
    %3669 = vmatpush1.msra.mxu0 0.0
    %3670 = vmatprep.subr.mxu0 0.0
    %3671 = vmatpush1.msra.mxu0 0.0
    %3672 = vmatprep.subr.mxu0 0.0
    %3673 = vmatpush1.msra.mxu0 0.0
    %3674 = vmatprep.subr.mxu0 0.0
    %3675 = vmatpush1.msra.mxu0 0.0
    %3676 = vmatprep.subr.mxu0 0.0
    %3677 = vmatpush1.msra.mxu0 0.0
    %3678 = vmatprep.subr.mxu0 0.0
    %3679 = vmatpush1.msra.mxu0 0.0
    %3680 = vmatprep.subr.mxu0 0.0
    %3681 = vmatpush1.msra.mxu0 0.0
    %3682 = vmatprep.subr.mxu0 0.0
    %3683 = vmatpush1.msra.mxu0 0.0
    %3684 = vmatprep.subr.mxu0 0.0
    %3685 = vmatpush1.msra.mxu0 0.0
    %3686 = vmatprep.subr.mxu0 0.0
    %3687 = vmatpush1.msra.mxu0 0.0
    %3688 = vmatprep.subr.mxu0 0.0
    %3689 = vmatpush1.msra.mxu0 0.0
    %3690 = vmatprep.subr.mxu0 0.0
    %3691 = vmatpush1.msra.mxu0 0.0
    %3692 = vmatprep.subr.mxu0 0.0
    %3693 = vmatpush1.msra.mxu0 0.0
    %3694 = vmatprep.subr.mxu0 0.0
    %3695 = vmatpush1.msra.mxu0 0.0
    %3696 = vmatprep.subr.mxu0 0.0
    %3697 = vmatpush1.msra.mxu0 0.0
    %3698 = vmatprep.subr.mxu0 0.0
    %3699 = vmatpush1.msra.mxu0 0.0
    %3700 = vmatprep.subr.mxu0 0.0
    %3701 = vmatpush1.msra.mxu0 0.0
    %3702 = vmatprep.subr.mxu0 0.0
    %3703 = vmatpush1.msra.mxu0 0.0
    %3704 = vmatprep.subr.mxu0 0.0
    %3705 = vmatpush1.msra.mxu0 0.0
    %3706 = vmatprep.subr.mxu0 0.0
    %3707 = vmatpush1.msra.mxu0 0.0
    %3708 = vmatprep.subr.mxu0 0.0
    %3709 = vmatpush1.msra.mxu0 0.0
    %3710 = vmatprep.subr.mxu0 0.0
    %3711 = vmatpush1.msra.mxu0 0.0
    %3712 = vmatprep.subr.mxu0 0.0
    %3713 = vmatpush1.msra.mxu0 0.0
    %3714 = vmatprep.subr.mxu0 0.0
    %3715 = vmatpush1.msra.mxu0 0.0
    %3716 = vmatprep.subr.mxu0 0.0
    %3717 = vmatpush1.msra.mxu0 0.0
    %3718 = vmatprep.mubr.f32.mxu0 0.0
    %3719 = vmatmul.mubr.f32.gmra.mrb[0].mxu0 %v3652
    %v3720 = vpop.f32.mrb[0].mxu0
    %v3721 = vadd.f32 %v2189, %v3720
    %v3722 = vpop.f32.mrb[0].mxu0
    %3723 = vdwg.mxu0
    %3724 = vmatprep.subr.mxu0 0.0
    %3725 = vmatpush1.msra.mxu0 %v1909
    %3726 = vmatprep.subr.mxu0 0.0
    %3727 = vmatpush1.msra.mxu0 %v1910
    %3728 = vmatprep.subr.mxu0 0.0
    %3729 = vmatpush1.msra.mxu0 %v1911
    %3730 = vmatprep.subr.mxu0 0.0
    %3731 = vmatpush1.msra.mxu0 %v1912
    %3732 = vmatprep.subr.mxu0 0.0
    %3733 = vmatpush1.msra.mxu0 0.0
    %3734 = vmatprep.subr.mxu0 0.0
    %3735 = vmatpush1.msra.mxu0 0.0
    %3736 = vmatprep.subr.mxu0 0.0
    %3737 = vmatpush1.msra.mxu0 0.0
    %3738 = vmatprep.subr.mxu0 0.0
    %3739 = vmatpush1.msra.mxu0 0.0
    %3740 = vmatprep.subr.mxu0 0.0
    %3741 = vmatpush1.msra.mxu0 0.0
    %3742 = vmatprep.subr.mxu0 0.0
    %3743 = vmatpush1.msra.mxu0 0.0
    %3744 = vmatprep.subr.mxu0 0.0
    %3745 = vmatpush1.msra.mxu0 0.0
    %3746 = vmatprep.subr.mxu0 0.0
    %3747 = vmatpush1.msra.mxu0 0.0
    %3748 = vmatprep.subr.mxu0 0.0
    %3749 = vmatpush1.msra.mxu0 0.0
    %3750 = vmatprep.subr.mxu0 0.0
    %3751 = vmatpush1.msra.mxu0 0.0
    %3752 = vmatprep.subr.mxu0 0.0
    %3753 = vmatpush1.msra.mxu0 0.0
    %3754 = vmatprep.subr.mxu0 0.0
    %3755 = vmatpush1.msra.mxu0 0.0
    %3756 = vmatprep.subr.mxu0 0.0
    %3757 = vmatpush1.msra.mxu0 0.0
    %3758 = vmatprep.subr.mxu0 0.0
    %3759 = vmatpush1.msra.mxu0 0.0
    %3760 = vmatprep.subr.mxu0 0.0
    %3761 = vmatpush1.msra.mxu0 0.0
    %3762 = vmatprep.subr.mxu0 0.0
    %3763 = vmatpush1.msra.mxu0 0.0
    %3764 = vmatprep.subr.mxu0 0.0
    %3765 = vmatpush1.msra.mxu0 0.0
    %3766 = vmatprep.subr.mxu0 0.0
    %3767 = vmatpush1.msra.mxu0 0.0
    %3768 = vmatprep.subr.mxu0 0.0
    %3769 = vmatpush1.msra.mxu0 0.0
    %3770 = vmatprep.subr.mxu0 0.0
    %3771 = vmatpush1.msra.mxu0 0.0
    %3772 = vmatprep.subr.mxu0 0.0
    %3773 = vmatpush1.msra.mxu0 0.0
    %3774 = vmatprep.subr.mxu0 0.0
    %3775 = vmatpush1.msra.mxu0 0.0
    %3776 = vmatprep.subr.mxu0 0.0
    %3777 = vmatpush1.msra.mxu0 0.0
    %3778 = vmatprep.subr.mxu0 0.0
    %3779 = vmatpush1.msra.mxu0 0.0
    %3780 = vmatprep.subr.mxu0 0.0
    %3781 = vmatpush1.msra.mxu0 0.0
    %3782 = vmatprep.subr.mxu0 0.0
    %3783 = vmatpush1.msra.mxu0 0.0
    %3784 = vmatprep.subr.mxu0 0.0
    %3785 = vmatpush1.msra.mxu0 0.0
    %3786 = vmatprep.subr.mxu0 0.0
    %3787 = vmatpush1.msra.mxu0 0.0
    %3788 = vmatprep.mubr.f32.mxu0 0.0
    %3789 = vmatmul.mubr.f32.gmra.mrb[0].mxu0 %v3652
    %v3790 = vpop.f32.mrb[0].mxu0
    %v3791 = vadd.f32 %v2265, %v3790
    %v3792 = vpop.f32.mrb[0].mxu0
    %3793 = vdwg.mxu0
    %3794 = vmatprep.subr.mxu0 0.0
    %3795 = vmatpush1.msra.mxu0 %v1914
    %3796 = vmatprep.subr.mxu0 0.0
    %3797 = vmatpush1.msra.mxu0 %v1915
    %3798 = vmatprep.subr.mxu0 0.0
    %3799 = vmatpush1.msra.mxu0 %v1916
    %3800 = vmatprep.subr.mxu0 0.0
    %3801 = vmatpush1.msra.mxu0 %v1917
    %3802 = vmatprep.subr.mxu0 0.0
    %3803 = vmatpush1.msra.mxu0 0.0
    %3804 = vmatprep.subr.mxu0 0.0
    %3805 = vmatpush1.msra.mxu0 0.0
    %3806 = vmatprep.subr.mxu0 0.0
    %3807 = vmatpush1.msra.mxu0 0.0
    %3808 = vmatprep.subr.mxu0 0.0
    %3809 = vmatpush1.msra.mxu0 0.0
    %3810 = vmatprep.subr.mxu0 0.0
    %3811 = vmatpush1.msra.mxu0 0.0
    %3812 = vmatprep.subr.mxu0 0.0
    %3813 = vmatpush1.msra.mxu0 0.0
    %3814 = vmatprep.subr.mxu0 0.0
    %3815 = vmatpush1.msra.mxu0 0.0
    %3816 = vmatprep.subr.mxu0 0.0
    %3817 = vmatpush1.msra.mxu0 0.0
    %3818 = vmatprep.subr.mxu0 0.0
    %3819 = vmatpush1.msra.mxu0 0.0
    %3820 = vmatprep.subr.mxu0 0.0
    %3821 = vmatpush1.msra.mxu0 0.0
    %3822 = vmatprep.subr.mxu0 0.0
    %3823 = vmatpush1.msra.mxu0 0.0
    %3824 = vmatprep.subr.mxu0 0.0
    %3825 = vmatpush1.msra.mxu0 0.0
    %3826 = vmatprep.subr.mxu0 0.0
    %3827 = vmatpush1.msra.mxu0 0.0
    %3828 = vmatprep.subr.mxu0 0.0
    %3829 = vmatpush1.msra.mxu0 0.0
    %3830 = vmatprep.subr.mxu0 0.0
    %3831 = vmatpush1.msra.mxu0 0.0
    %3832 = vmatprep.subr.mxu0 0.0
    %3833 = vmatpush1.msra.mxu0 0.0
    %3834 = vmatprep.subr.mxu0 0.0
    %3835 = vmatpush1.msra.mxu0 0.0
    %3836 = vmatprep.subr.mxu0 0.0
    %3837 = vmatpush1.msra.mxu0 0.0
    %3838 = vmatprep.subr.mxu0 0.0
    %3839 = vmatpush1.msra.mxu0 0.0
    %3840 = vmatprep.subr.mxu0 0.0
    %3841 = vmatpush1.msra.mxu0 0.0
    %3842 = vmatprep.subr.mxu0 0.0
    %3843 = vmatpush1.msra.mxu0 0.0
    %3844 = vmatprep.subr.mxu0 0.0
    %3845 = vmatpush1.msra.mxu0 0.0
    %3846 = vmatprep.subr.mxu0 0.0
    %3847 = vmatpush1.msra.mxu0 0.0
    %3848 = vmatprep.subr.mxu0 0.0
    %3849 = vmatpush1.msra.mxu0 0.0
    %3850 = vmatprep.subr.mxu0 0.0
    %3851 = vmatpush1.msra.mxu0 0.0
    %3852 = vmatprep.subr.mxu0 0.0
    %3853 = vmatpush1.msra.mxu0 0.0
    %3854 = vmatprep.subr.mxu0 0.0
    %3855 = vmatpush1.msra.mxu0 0.0
    %3856 = vmatprep.subr.mxu0 0.0
    %3857 = vmatpush1.msra.mxu0 0.0
    %3858 = vmatprep.mubr.f32.mxu0 0.0
    %3859 = vmatmul.mubr.f32.gmra.mrb[0].mxu0 %v3652
    %v3860 = vpop.f32.mrb[0].mxu0
    %v3861 = vadd.f32 %v2341, %v3860
    %v3862 = vpop.f32.mrb[0].mxu0
    %3863 = vdwg.mxu0
    %v3864 = vadd.f32 %v3646, %v3721
    %v3865 = vxor.u32 %v3864, 2147483648
    %v3866 = vmul.f32 %v3865, 1.442695
    %v3867 = vpow.pop %v3866
    %v3868 = vadd.f32 %v3867, 1.0
    %v3869 = vrcp.pop %v3868
    %v3870 = vmul.f32 1.0, %v3869
    %v3871 = vadd.f32 %v3648, %v3791
    %v3872 = vxor.u32 %v3871, 2147483648
    %v3873 = vmul.f32 %v3872, 1.442695
    %v3874 = vpow.pop %v3873
    %v3875 = vadd.f32 %v3874, 1.0
    %v3876 = vrcp.pop %v3875
    %v3877 = vmul.f32 1.0, %v3876
    %v3878 = vmul.f32 %v3870, %v3861
    %v3879 = vadd.f32 %v3650, %v3878
    %v3880 = vtanh.pop %v3879
    %v3881 = vsub.f32 1.0, %v3877
    %v3882 = vmul.f32 %v3881, %v3880
    %v3883 = vmul.f32 %v3877, %v3400
    %v3884 = vadd.f32 %v3882, %v3883
    %s3885 = scalar_lea.vmem [#allocation2], 6
    %3886 = vst.msk [vmem:[%s3885] sm:$0x3] %vm383, %v3644
    %s3887 = scalar_lea.vmem [#allocation3], 8
    %3888 = vst.msk [vmem:[%s3887] sm:$0x3] %vm383, %v3884
    %s3889 = scalar_lea.vmem [#allocation4], 8
    %v3890 = vld [vmem:[%s3889] sm:$0x3]
    %s3891 = scalar_lea.vmem [#allocation5], 8
    %v3892 = vld [vmem:[%s3891] sm:$0x3]
    %s3893 = scalar_lea.vmem [#allocation6], 8
    %v3894 = vld [vmem:[%s3893] sm:$0x3]
    %v3896 = vsel %vm1932, %v3644, 0
    %3898 = vmatprep.subr.mxu0 0.0
    %3899 = vmatpush1.msra.mxu0 %v1885
    %3900 = vmatprep.subr.mxu0 0.0
    %3901 = vmatpush1.msra.mxu0 %v1886
    %3902 = vmatprep.subr.mxu0 0.0
    %3903 = vmatpush1.msra.mxu0 %v1887
    %3904 = vmatprep.subr.mxu0 0.0
    %3905 = vmatpush1.msra.mxu0 %v1888
    %3906 = vmatprep.subr.mxu0 0.0
    %3907 = vmatpush1.msra.mxu0 0.0
    %3908 = vmatprep.subr.mxu0 0.0
    %3909 = vmatpush1.msra.mxu0 0.0
    %3910 = vmatprep.subr.mxu0 0.0
    %3911 = vmatpush1.msra.mxu0 0.0
    %3912 = vmatprep.subr.mxu0 0.0
    %3913 = vmatpush1.msra.mxu0 0.0
    %3914 = vmatprep.subr.mxu0 0.0
    %3915 = vmatpush1.msra.mxu0 0.0
    %3916 = vmatprep.subr.mxu0 0.0
    %3917 = vmatpush1.msra.mxu0 0.0
    %3918 = vmatprep.subr.mxu0 0.0
    %3919 = vmatpush1.msra.mxu0 0.0
    %3920 = vmatprep.subr.mxu0 0.0
    %3921 = vmatpush1.msra.mxu0 0.0
    %3922 = vmatprep.subr.mxu0 0.0
    %3923 = vmatpush1.msra.mxu0 0.0
    %3924 = vmatprep.subr.mxu0 0.0
    %3925 = vmatpush1.msra.mxu0 0.0
    %3926 = vmatprep.subr.mxu0 0.0
    %3927 = vmatpush1.msra.mxu0 0.0
    %3928 = vmatprep.subr.mxu0 0.0
    %3929 = vmatpush1.msra.mxu0 0.0
    %3930 = vmatprep.subr.mxu0 0.0
    %3931 = vmatpush1.msra.mxu0 0.0
    %3932 = vmatprep.subr.mxu0 0.0
    %3933 = vmatpush1.msra.mxu0 0.0
    %3934 = vmatprep.subr.mxu0 0.0
    %3935 = vmatpush1.msra.mxu0 0.0
    %3936 = vmatprep.subr.mxu0 0.0
    %3937 = vmatpush1.msra.mxu0 0.0
    %3938 = vmatprep.subr.mxu0 0.0
    %3939 = vmatpush1.msra.mxu0 0.0
    %3940 = vmatprep.subr.mxu0 0.0
    %3941 = vmatpush1.msra.mxu0 0.0
    %3942 = vmatprep.subr.mxu0 0.0
    %3943 = vmatpush1.msra.mxu0 0.0
    %3944 = vmatprep.subr.mxu0 0.0
    %3945 = vmatpush1.msra.mxu0 0.0
    %3946 = vmatprep.subr.mxu0 0.0
    %3947 = vmatpush1.msra.mxu0 0.0
    %3948 = vmatprep.subr.mxu0 0.0
    %3949 = vmatpush1.msra.mxu0 0.0
    %3950 = vmatprep.subr.mxu0 0.0
    %3951 = vmatpush1.msra.mxu0 0.0
    %3952 = vmatprep.subr.mxu0 0.0
    %3953 = vmatpush1.msra.mxu0 0.0
    %3954 = vmatprep.subr.mxu0 0.0
    %3955 = vmatpush1.msra.mxu0 0.0
    %3956 = vmatprep.subr.mxu0 0.0
    %3957 = vmatpush1.msra.mxu0 0.0
    %3958 = vmatprep.subr.mxu0 0.0
    %3959 = vmatpush1.msra.mxu0 0.0
    %3960 = vmatprep.subr.mxu0 0.0
    %3961 = vmatpush1.msra.mxu0 0.0
    %3962 = vmatprep.mubr.f32.mxu0 0.0
    %3963 = vmatmul.mubr.f32.gmra.mrb[0].mxu0 %v3896
    %v3964 = vpop.f32.mrb[0].mxu0
    %v3965 = vadd.f32 %v1930, %v3964
    %v3966 = vpop.f32.mrb[0].mxu0
    %3967 = vdwg.mxu0
    %3968 = vmatprep.subr.mxu0 0.0
    %3969 = vmatpush1.msra.mxu0 %v1890
    %3970 = vmatprep.subr.mxu0 0.0
    %3971 = vmatpush1.msra.mxu0 %v1891
    %3972 = vmatprep.subr.mxu0 0.0
    %3973 = vmatpush1.msra.mxu0 %v1892
    %3974 = vmatprep.subr.mxu0 0.0
    %3975 = vmatpush1.msra.mxu0 %v1893
    %3976 = vmatprep.subr.mxu0 0.0
    %3977 = vmatpush1.msra.mxu0 0.0
    %3978 = vmatprep.subr.mxu0 0.0
    %3979 = vmatpush1.msra.mxu0 0.0
    %3980 = vmatprep.subr.mxu0 0.0
    %3981 = vmatpush1.msra.mxu0 0.0
    %3982 = vmatprep.subr.mxu0 0.0
    %3983 = vmatpush1.msra.mxu0 0.0
    %3984 = vmatprep.subr.mxu0 0.0
    %3985 = vmatpush1.msra.mxu0 0.0
    %3986 = vmatprep.subr.mxu0 0.0
    %3987 = vmatpush1.msra.mxu0 0.0
    %3988 = vmatprep.subr.mxu0 0.0
    %3989 = vmatpush1.msra.mxu0 0.0
    %3990 = vmatprep.subr.mxu0 0.0
    %3991 = vmatpush1.msra.mxu0 0.0
    %3992 = vmatprep.subr.mxu0 0.0
    %3993 = vmatpush1.msra.mxu0 0.0
    %3994 = vmatprep.subr.mxu0 0.0
    %3995 = vmatpush1.msra.mxu0 0.0
    %3996 = vmatprep.subr.mxu0 0.0
    %3997 = vmatpush1.msra.mxu0 0.0
    %3998 = vmatprep.subr.mxu0 0.0
    %3999 = vmatpush1.msra.mxu0 0.0
    %4000 = vmatprep.subr.mxu0 0.0
    %4001 = vmatpush1.msra.mxu0 0.0
    %4002 = vmatprep.subr.mxu0 0.0
    %4003 = vmatpush1.msra.mxu0 0.0
    %4004 = vmatprep.subr.mxu0 0.0
    %4005 = vmatpush1.msra.mxu0 0.0
    %4006 = vmatprep.subr.mxu0 0.0
    %4007 = vmatpush1.msra.mxu0 0.0
    %4008 = vmatprep.subr.mxu0 0.0
    %4009 = vmatpush1.msra.mxu0 0.0
    %4010 = vmatprep.subr.mxu0 0.0
    %4011 = vmatpush1.msra.mxu0 0.0
    %4012 = vmatprep.subr.mxu0 0.0
    %4013 = vmatpush1.msra.mxu0 0.0
    %4014 = vmatprep.subr.mxu0 0.0
    %4015 = vmatpush1.msra.mxu0 0.0
    %4016 = vmatprep.subr.mxu0 0.0
    %4017 = vmatpush1.msra.mxu0 0.0
    %4018 = vmatprep.subr.mxu0 0.0
    %4019 = vmatpush1.msra.mxu0 0.0
    %4020 = vmatprep.subr.mxu0 0.0
    %4021 = vmatpush1.msra.mxu0 0.0
    %4022 = vmatprep.subr.mxu0 0.0
    %4023 = vmatpush1.msra.mxu0 0.0
    %4024 = vmatprep.subr.mxu0 0.0
    %4025 = vmatpush1.msra.mxu0 0.0
    %4026 = vmatprep.subr.mxu0 0.0
    %4027 = vmatpush1.msra.mxu0 0.0
    %4028 = vmatprep.subr.mxu0 0.0
    %4029 = vmatpush1.msra.mxu0 0.0
    %4030 = vmatprep.subr.mxu0 0.0
    %4031 = vmatpush1.msra.mxu0 0.0
    %4032 = vmatprep.mubr.f32.mxu0 0.0
    %4033 = vmatmul.mubr.f32.gmra.mrb[0].mxu0 %v3896
    %v4034 = vpop.f32.mrb[0].mxu0
    %v4035 = vadd.f32 %v2010, %v4034
    %v4036 = vpop.f32.mrb[0].mxu0
    %4037 = vdwg.mxu0
    %4038 = vmatprep.subr.mxu0 0.0
    %4039 = vmatpush1.msra.mxu0 %v1895
    %4040 = vmatprep.subr.mxu0 0.0
    %4041 = vmatpush1.msra.mxu0 %v1896
    %4042 = vmatprep.subr.mxu0 0.0
    %4043 = vmatpush1.msra.mxu0 %v1897
    %4044 = vmatprep.subr.mxu0 0.0
    %4045 = vmatpush1.msra.mxu0 %v1898
    %4046 = vmatprep.subr.mxu0 0.0
    %4047 = vmatpush1.msra.mxu0 0.0
    %4048 = vmatprep.subr.mxu0 0.0
    %4049 = vmatpush1.msra.mxu0 0.0
    %4050 = vmatprep.subr.mxu0 0.0
    %4051 = vmatpush1.msra.mxu0 0.0
    %4052 = vmatprep.subr.mxu0 0.0
    %4053 = vmatpush1.msra.mxu0 0.0
    %4054 = vmatprep.subr.mxu0 0.0
    %4055 = vmatpush1.msra.mxu0 0.0
    %4056 = vmatprep.subr.mxu0 0.0
    %4057 = vmatpush1.msra.mxu0 0.0
    %4058 = vmatprep.subr.mxu0 0.0
    %4059 = vmatpush1.msra.mxu0 0.0
    %4060 = vmatprep.subr.mxu0 0.0
    %4061 = vmatpush1.msra.mxu0 0.0
    %4062 = vmatprep.subr.mxu0 0.0
    %4063 = vmatpush1.msra.mxu0 0.0
    %4064 = vmatprep.subr.mxu0 0.0
    %4065 = vmatpush1.msra.mxu0 0.0
    %4066 = vmatprep.subr.mxu0 0.0
    %4067 = vmatpush1.msra.mxu0 0.0
    %4068 = vmatprep.subr.mxu0 0.0
    %4069 = vmatpush1.msra.mxu0 0.0
    %4070 = vmatprep.subr.mxu0 0.0
    %4071 = vmatpush1.msra.mxu0 0.0
    %4072 = vmatprep.subr.mxu0 0.0
    %4073 = vmatpush1.msra.mxu0 0.0
    %4074 = vmatprep.subr.mxu0 0.0
    %4075 = vmatpush1.msra.mxu0 0.0
    %4076 = vmatprep.subr.mxu0 0.0
    %4077 = vmatpush1.msra.mxu0 0.0
    %4078 = vmatprep.subr.mxu0 0.0
    %4079 = vmatpush1.msra.mxu0 0.0
    %4080 = vmatprep.subr.mxu0 0.0
    %4081 = vmatpush1.msra.mxu0 0.0
    %4082 = vmatprep.subr.mxu0 0.0
    %4083 = vmatpush1.msra.mxu0 0.0
    %4084 = vmatprep.subr.mxu0 0.0
    %4085 = vmatpush1.msra.mxu0 0.0
    %4086 = vmatprep.subr.mxu0 0.0
    %4087 = vmatpush1.msra.mxu0 0.0
    %4088 = vmatprep.subr.mxu0 0.0
    %4089 = vmatpush1.msra.mxu0 0.0
    %4090 = vmatprep.subr.mxu0 0.0
    %4091 = vmatpush1.msra.mxu0 0.0
    %4092 = vmatprep.subr.mxu0 0.0
    %4093 = vmatpush1.msra.mxu0 0.0
    %4094 = vmatprep.subr.mxu0 0.0
    %4095 = vmatpush1.msra.mxu0 0.0
    %4096 = vmatprep.subr.mxu0 0.0
    %4097 = vmatpush1.msra.mxu0 0.0
    %4098 = vmatprep.subr.mxu0 0.0
    %4099 = vmatpush1.msra.mxu0 0.0
    %4100 = vmatprep.subr.mxu0 0.0
    %4101 = vmatpush1.msra.mxu0 0.0
    %4102 = vmatprep.mubr.f32.mxu0 0.0
    %4103 = vmatmul.mubr.f32.gmra.mrb[0].mxu0 %v3896
    %v4104 = vpop.f32.mrb[0].mxu0
    %v4105 = vadd.f32 %v2086, %v4104
    %v4106 = vpop.f32.mrb[0].mxu0
    %4107 = vdwg.mxu0
    %v4108 = vadd.f32 %v3890, %v3965
    %v4109 = vxor.u32 %v4108, 2147483648
    %v4110 = vmul.f32 %v4109, 1.442695
    %v4111 = vpow.pop %v4110
    %v4112 = vadd.f32 %v4111, 1.0
    %v4113 = vrcp.pop %v4112
    %v4114 = vmul.f32 1.0, %v4113
    %v4115 = vadd.f32 %v3892, %v4035
    %v4116 = vxor.u32 %v4115, 2147483648
    %v4117 = vmul.f32 %v4116, 1.442695
    %v4118 = vpow.pop %v4117
    %v4119 = vadd.f32 %v4118, 1.0
    %v4120 = vrcp.pop %v4119
    %v4121 = vmul.f32 1.0, %v4120
    %v4122 = vmul.f32 %v4114, %v4105
    %v4123 = vadd.f32 %v3894, %v4122
    %v4124 = vtanh.pop %v4123
    %v4125 = vsub.f32 1.0, %v4121
    %v4126 = vmul.f32 %v4125, %v4124
    %v4127 = vmul.f32 %v4121, %v3644
    %v4128 = vadd.f32 %v4126, %v4127
    %s4129 = scalar_lea.vmem [#allocation7], 6
    %v4130 = vld [vmem:[%s4129] sm:$0x3]
    %s4131 = scalar_lea.vmem [#allocation8], 6
    %v4132 = vld [vmem:[%s4131] sm:$0x3]
    %s4133 = scalar_lea.vmem [#allocation9], 6
    %v4134 = vld [vmem:[%s4133] sm:$0x3]
    %v4136 = vsel %vm1932, %v3884, 0
    %4138 = vmatprep.subr.mxu0 0.0
    %4139 = vmatpush1.msra.mxu0 %v1904
    %4140 = vmatprep.subr.mxu0 0.0
    %4141 = vmatpush1.msra.mxu0 %v1905
    %4142 = vmatprep.subr.mxu0 0.0
    %4143 = vmatpush1.msra.mxu0 %v1906
    %4144 = vmatprep.subr.mxu0 0.0
    %4145 = vmatpush1.msra.mxu0 %v1907
    %4146 = vmatprep.subr.mxu0 0.0
    %4147 = vmatpush1.msra.mxu0 0.0
    %4148 = vmatprep.subr.mxu0 0.0
    %4149 = vmatpush1.msra.mxu0 0.0
    %4150 = vmatprep.subr.mxu0 0.0
    %4151 = vmatpush1.msra.mxu0 0.0
    %4152 = vmatprep.subr.mxu0 0.0
    %4153 = vmatpush1.msra.mxu0 0.0
    %4154 = vmatprep.subr.mxu0 0.0
    %4155 = vmatpush1.msra.mxu0 0.0
    %4156 = vmatprep.subr.mxu0 0.0
    %4157 = vmatpush1.msra.mxu0 0.0
    %4158 = vmatprep.subr.mxu0 0.0
    %4159 = vmatpush1.msra.mxu0 0.0
    %4160 = vmatprep.subr.mxu0 0.0
    %4161 = vmatpush1.msra.mxu0 0.0
    %4162 = vmatprep.subr.mxu0 0.0
    %4163 = vmatpush1.msra.mxu0 0.0
    %4164 = vmatprep.subr.mxu0 0.0
    %4165 = vmatpush1.msra.mxu0 0.0
    %4166 = vmatprep.subr.mxu0 0.0
    %4167 = vmatpush1.msra.mxu0 0.0
    %4168 = vmatprep.subr.mxu0 0.0
    %4169 = vmatpush1.msra.mxu0 0.0
    %4170 = vmatprep.subr.mxu0 0.0
    %4171 = vmatpush1.msra.mxu0 0.0
    %4172 = vmatprep.subr.mxu0 0.0
    %4173 = vmatpush1.msra.mxu0 0.0
    %4174 = vmatprep.subr.mxu0 0.0
    %4175 = vmatpush1.msra.mxu0 0.0
    %4176 = vmatprep.subr.mxu0 0.0
    %4177 = vmatpush1.msra.mxu0 0.0
    %4178 = vmatprep.subr.mxu0 0.0
    %4179 = vmatpush1.msra.mxu0 0.0
    %4180 = vmatprep.subr.mxu0 0.0
    %4181 = vmatpush1.msra.mxu0 0.0
    %4182 = vmatprep.subr.mxu0 0.0
    %4183 = vmatpush1.msra.mxu0 0.0
    %4184 = vmatprep.subr.mxu0 0.0
    %4185 = vmatpush1.msra.mxu0 0.0
    %4186 = vmatprep.subr.mxu0 0.0
    %4187 = vmatpush1.msra.mxu0 0.0
    %4188 = vmatprep.subr.mxu0 0.0
    %4189 = vmatpush1.msra.mxu0 0.0
    %4190 = vmatprep.subr.mxu0 0.0
    %4191 = vmatpush1.msra.mxu0 0.0
    %4192 = vmatprep.subr.mxu0 0.0
    %4193 = vmatpush1.msra.mxu0 0.0
    %4194 = vmatprep.subr.mxu0 0.0
    %4195 = vmatpush1.msra.mxu0 0.0
    %4196 = vmatprep.subr.mxu0 0.0
    %4197 = vmatpush1.msra.mxu0 0.0
    %4198 = vmatprep.subr.mxu0 0.0
    %4199 = vmatpush1.msra.mxu0 0.0
    %4200 = vmatprep.subr.mxu0 0.0
    %4201 = vmatpush1.msra.mxu0 0.0
    %4202 = vmatprep.mubr.f32.mxu0 0.0
    %4203 = vmatmul.mubr.f32.gmra.mrb[0].mxu0 %v4136
    %v4204 = vpop.f32.mrb[0].mxu0
    %v4205 = vadd.f32 %v2189, %v4204
    %v4206 = vpop.f32.mrb[0].mxu0
    %4207 = vdwg.mxu0
    %4208 = vmatprep.subr.mxu0 0.0
    %4209 = vmatpush1.msra.mxu0 %v1909
    %4210 = vmatprep.subr.mxu0 0.0
    %4211 = vmatpush1.msra.mxu0 %v1910
    %4212 = vmatprep.subr.mxu0 0.0
    %4213 = vmatpush1.msra.mxu0 %v1911
    %4214 = vmatprep.subr.mxu0 0.0
    %4215 = vmatpush1.msra.mxu0 %v1912
    %4216 = vmatprep.subr.mxu0 0.0
    %4217 = vmatpush1.msra.mxu0 0.0
    %4218 = vmatprep.subr.mxu0 0.0
    %4219 = vmatpush1.msra.mxu0 0.0
    %4220 = vmatprep.subr.mxu0 0.0
    %4221 = vmatpush1.msra.mxu0 0.0
    %4222 = vmatprep.subr.mxu0 0.0
    %4223 = vmatpush1.msra.mxu0 0.0
    %4224 = vmatprep.subr.mxu0 0.0
    %4225 = vmatpush1.msra.mxu0 0.0
    %4226 = vmatprep.subr.mxu0 0.0
    %4227 = vmatpush1.msra.mxu0 0.0
    %4228 = vmatprep.subr.mxu0 0.0
    %4229 = vmatpush1.msra.mxu0 0.0
    %4230 = vmatprep.subr.mxu0 0.0
    %4231 = vmatpush1.msra.mxu0 0.0
    %4232 = vmatprep.subr.mxu0 0.0
    %4233 = vmatpush1.msra.mxu0 0.0
    %4234 = vmatprep.subr.mxu0 0.0
    %4235 = vmatpush1.msra.mxu0 0.0
    %4236 = vmatprep.subr.mxu0 0.0
    %4237 = vmatpush1.msra.mxu0 0.0
    %4238 = vmatprep.subr.mxu0 0.0
    %4239 = vmatpush1.msra.mxu0 0.0
    %4240 = vmatprep.subr.mxu0 0.0
    %4241 = vmatpush1.msra.mxu0 0.0
    %4242 = vmatprep.subr.mxu0 0.0
    %4243 = vmatpush1.msra.mxu0 0.0
    %4244 = vmatprep.subr.mxu0 0.0
    %4245 = vmatpush1.msra.mxu0 0.0
    %4246 = vmatprep.subr.mxu0 0.0
    %4247 = vmatpush1.msra.mxu0 0.0
    %4248 = vmatprep.subr.mxu0 0.0
    %4249 = vmatpush1.msra.mxu0 0.0
    %4250 = vmatprep.subr.mxu0 0.0
    %4251 = vmatpush1.msra.mxu0 0.0
    %4252 = vmatprep.subr.mxu0 0.0
    %4253 = vmatpush1.msra.mxu0 0.0
    %4254 = vmatprep.subr.mxu0 0.0
    %4255 = vmatpush1.msra.mxu0 0.0
    %4256 = vmatprep.subr.mxu0 0.0
    %4257 = vmatpush1.msra.mxu0 0.0
    %4258 = vmatprep.subr.mxu0 0.0
    %4259 = vmatpush1.msra.mxu0 0.0
    %4260 = vmatprep.subr.mxu0 0.0
    %4261 = vmatpush1.msra.mxu0 0.0
    %4262 = vmatprep.subr.mxu0 0.0
    %4263 = vmatpush1.msra.mxu0 0.0
    %4264 = vmatprep.subr.mxu0 0.0
    %4265 = vmatpush1.msra.mxu0 0.0
    %4266 = vmatprep.subr.mxu0 0.0
    %4267 = vmatpush1.msra.mxu0 0.0
    %4268 = vmatprep.subr.mxu0 0.0
    %4269 = vmatpush1.msra.mxu0 0.0
    %4270 = vmatprep.subr.mxu0 0.0
    %4271 = vmatpush1.msra.mxu0 0.0
    %4272 = vmatprep.mubr.f32.mxu0 0.0
    %4273 = vmatmul.mubr.f32.gmra.mrb[0].mxu0 %v4136
    %v4274 = vpop.f32.mrb[0].mxu0
    %v4275 = vadd.f32 %v2265, %v4274
    %v4276 = vpop.f32.mrb[0].mxu0
    %4277 = vdwg.mxu0
    %4278 = vmatprep.subr.mxu0 0.0
    %4279 = vmatpush1.msra.mxu0 %v1914
    %4280 = vmatprep.subr.mxu0 0.0
    %4281 = vmatpush1.msra.mxu0 %v1915
    %4282 = vmatprep.subr.mxu0 0.0
    %4283 = vmatpush1.msra.mxu0 %v1916
    %4284 = vmatprep.subr.mxu0 0.0
    %4285 = vmatpush1.msra.mxu0 %v1917
    %4286 = vmatprep.subr.mxu0 0.0
    %4287 = vmatpush1.msra.mxu0 0.0
    %4288 = vmatprep.subr.mxu0 0.0
    %4289 = vmatpush1.msra.mxu0 0.0
    %4290 = vmatprep.subr.mxu0 0.0
    %4291 = vmatpush1.msra.mxu0 0.0
    %4292 = vmatprep.subr.mxu0 0.0
    %4293 = vmatpush1.msra.mxu0 0.0
    %4294 = vmatprep.subr.mxu0 0.0
    %4295 = vmatpush1.msra.mxu0 0.0
    %4296 = vmatprep.subr.mxu0 0.0
    %4297 = vmatpush1.msra.mxu0 0.0
    %4298 = vmatprep.subr.mxu0 0.0
    %4299 = vmatpush1.msra.mxu0 0.0
    %4300 = vmatprep.subr.mxu0 0.0
    %4301 = vmatpush1.msra.mxu0 0.0
    %4302 = vmatprep.subr.mxu0 0.0
    %4303 = vmatpush1.msra.mxu0 0.0
    %4304 = vmatprep.subr.mxu0 0.0
    %4305 = vmatpush1.msra.mxu0 0.0
    %4306 = vmatprep.subr.mxu0 0.0
    %4307 = vmatpush1.msra.mxu0 0.0
    %4308 = vmatprep.subr.mxu0 0.0
    %4309 = vmatpush1.msra.mxu0 0.0
    %4310 = vmatprep.subr.mxu0 0.0
    %4311 = vmatpush1.msra.mxu0 0.0
    %4312 = vmatprep.subr.mxu0 0.0
    %4313 = vmatpush1.msra.mxu0 0.0
    %4314 = vmatprep.subr.mxu0 0.0
    %4315 = vmatpush1.msra.mxu0 0.0
    %4316 = vmatprep.subr.mxu0 0.0
    %4317 = vmatpush1.msra.mxu0 0.0
    %4318 = vmatprep.subr.mxu0 0.0
    %4319 = vmatpush1.msra.mxu0 0.0
    %4320 = vmatprep.subr.mxu0 0.0
    %4321 = vmatpush1.msra.mxu0 0.0
    %4322 = vmatprep.subr.mxu0 0.0
    %4323 = vmatpush1.msra.mxu0 0.0
    %4324 = vmatprep.subr.mxu0 0.0
    %4325 = vmatpush1.msra.mxu0 0.0
    %4326 = vmatprep.subr.mxu0 0.0
    %4327 = vmatpush1.msra.mxu0 0.0
    %4328 = vmatprep.subr.mxu0 0.0
    %4329 = vmatpush1.msra.mxu0 0.0
    %4330 = vmatprep.subr.mxu0 0.0
    %4331 = vmatpush1.msra.mxu0 0.0
    %4332 = vmatprep.subr.mxu0 0.0
    %4333 = vmatpush1.msra.mxu0 0.0
    %4334 = vmatprep.subr.mxu0 0.0
    %4335 = vmatpush1.msra.mxu0 0.0
    %4336 = vmatprep.subr.mxu0 0.0
    %4337 = vmatpush1.msra.mxu0 0.0
    %4338 = vmatprep.subr.mxu0 0.0
    %4339 = vmatpush1.msra.mxu0 0.0
    %4340 = vmatprep.subr.mxu0 0.0
    %4341 = vmatpush1.msra.mxu0 0.0
    %4342 = vmatprep.mubr.f32.mxu0 0.0
    %4343 = vmatmul.mubr.f32.gmra.mrb[0].mxu0 %v4136
    %v4344 = vpop.f32.mrb[0].mxu0
    %v4345 = vadd.f32 %v2341, %v4344
    %v4346 = vpop.f32.mrb[0].mxu0
    %4347 = vdwg.mxu0
    %v4348 = vadd.f32 %v4130, %v4205
    %v4349 = vxor.u32 %v4348, 2147483648
    %v4350 = vmul.f32 %v4349, 1.442695
    %v4351 = vpow.pop %v4350
    %v4352 = vadd.f32 %v4351, 1.0
    %v4353 = vrcp.pop %v4352
    %v4354 = vmul.f32 1.0, %v4353
    %v4355 = vadd.f32 %v4132, %v4275
    %v4356 = vxor.u32 %v4355, 2147483648
    %v4357 = vmul.f32 %v4356, 1.442695
    %v4358 = vpow.pop %v4357
    %v4359 = vadd.f32 %v4358, 1.0
    %v4360 = vrcp.pop %v4359
    %v4361 = vmul.f32 1.0, %v4360
    %v4362 = vmul.f32 %v4354, %v4345
    %v4363 = vadd.f32 %v4134, %v4362
    %v4364 = vtanh.pop %v4363
    %v4365 = vsub.f32 1.0, %v4361
    %v4366 = vmul.f32 %v4365, %v4364
    %v4367 = vmul.f32 %v4361, %v3884
    %v4368 = vadd.f32 %v4366, %v4367
    %s4369 = scalar_lea.vmem [#allocation2], 8
    %4370 = vst.msk [vmem:[%s4369] sm:$0x3] %vm383, %v4128
    %s4371 = scalar_lea.vmem [#allocation3], 6
    %4372 = vst.msk [vmem:[%s4371] sm:$0x3] %vm383, %v4368
    %s4373 = scalar_lea.vmem [#allocation4], 10
    %v4374 = vld [vmem:[%s4373] sm:$0x3]
    %s4375 = scalar_lea.vmem [#allocation5], 10
    %v4376 = vld [vmem:[%s4375] sm:$0x3]
    %s4377 = scalar_lea.vmem [#allocation6], 10
    %v4378 = vld [vmem:[%s4377] sm:$0x3]
    %v4380 = vsel %vm1932, %v4128, 0
    %4382 = vmatprep.subr.mxu0 0.0
    %4383 = vmatpush1.msra.mxu0 %v1885
    %4384 = vmatprep.subr.mxu0 0.0
    %4385 = vmatpush1.msra.mxu0 %v1886
    %4386 = vmatprep.subr.mxu0 0.0
    %4387 = vmatpush1.msra.mxu0 %v1887
    %4388 = vmatprep.subr.mxu0 0.0
    %4389 = vmatpush1.msra.mxu0 %v1888
    %4390 = vmatprep.subr.mxu0 0.0
    %4391 = vmatpush1.msra.mxu0 0.0
    %4392 = vmatprep.subr.mxu0 0.0
    %4393 = vmatpush1.msra.mxu0 0.0
    %4394 = vmatprep.subr.mxu0 0.0
    %4395 = vmatpush1.msra.mxu0 0.0
    %4396 = vmatprep.subr.mxu0 0.0
    %4397 = vmatpush1.msra.mxu0 0.0
    %4398 = vmatprep.subr.mxu0 0.0
    %4399 = vmatpush1.msra.mxu0 0.0
    %4400 = vmatprep.subr.mxu0 0.0
    %4401 = vmatpush1.msra.mxu0 0.0
    %4402 = vmatprep.subr.mxu0 0.0
    %4403 = vmatpush1.msra.mxu0 0.0
    %4404 = vmatprep.subr.mxu0 0.0
    %4405 = vmatpush1.msra.mxu0 0.0
    %4406 = vmatprep.subr.mxu0 0.0
    %4407 = vmatpush1.msra.mxu0 0.0
    %4408 = vmatprep.subr.mxu0 0.0
    %4409 = vmatpush1.msra.mxu0 0.0
    %4410 = vmatprep.subr.mxu0 0.0
    %4411 = vmatpush1.msra.mxu0 0.0
    %4412 = vmatprep.subr.mxu0 0.0
    %4413 = vmatpush1.msra.mxu0 0.0
    %4414 = vmatprep.subr.mxu0 0.0
    %4415 = vmatpush1.msra.mxu0 0.0
    %4416 = vmatprep.subr.mxu0 0.0
    %4417 = vmatpush1.msra.mxu0 0.0
    %4418 = vmatprep.subr.mxu0 0.0
    %4419 = vmatpush1.msra.mxu0 0.0
    %4420 = vmatprep.subr.mxu0 0.0
    %4421 = vmatpush1.msra.mxu0 0.0
    %4422 = vmatprep.subr.mxu0 0.0
    %4423 = vmatpush1.msra.mxu0 0.0
    %4424 = vmatprep.subr.mxu0 0.0
    %4425 = vmatpush1.msra.mxu0 0.0
    %4426 = vmatprep.subr.mxu0 0.0
    %4427 = vmatpush1.msra.mxu0 0.0
    %4428 = vmatprep.subr.mxu0 0.0
    %4429 = vmatpush1.msra.mxu0 0.0
    %4430 = vmatprep.subr.mxu0 0.0
    %4431 = vmatpush1.msra.mxu0 0.0
    %4432 = vmatprep.subr.mxu0 0.0
    %4433 = vmatpush1.msra.mxu0 0.0
    %4434 = vmatprep.subr.mxu0 0.0
    %4435 = vmatpush1.msra.mxu0 0.0
    %4436 = vmatprep.subr.mxu0 0.0
    %4437 = vmatpush1.msra.mxu0 0.0
    %4438 = vmatprep.subr.mxu0 0.0
    %4439 = vmatpush1.msra.mxu0 0.0
    %4440 = vmatprep.subr.mxu0 0.0
    %4441 = vmatpush1.msra.mxu0 0.0
    %4442 = vmatprep.subr.mxu0 0.0
    %4443 = vmatpush1.msra.mxu0 0.0
    %4444 = vmatprep.subr.mxu0 0.0
    %4445 = vmatpush1.msra.mxu0 0.0
    %4446 = vmatprep.mubr.f32.mxu0 0.0
    %4447 = vmatmul.mubr.f32.gmra.mrb[0].mxu0 %v4380
    %v4448 = vpop.f32.mrb[0].mxu0
    %v4449 = vadd.f32 %v1930, %v4448
    %v4450 = vpop.f32.mrb[0].mxu0
    %4451 = vdwg.mxu0
    %4452 = vmatprep.subr.mxu0 0.0
    %4453 = vmatpush1.msra.mxu0 %v1890
    %4454 = vmatprep.subr.mxu0 0.0
    %4455 = vmatpush1.msra.mxu0 %v1891
    %4456 = vmatprep.subr.mxu0 0.0
    %4457 = vmatpush1.msra.mxu0 %v1892
    %4458 = vmatprep.subr.mxu0 0.0
    %4459 = vmatpush1.msra.mxu0 %v1893
    %4460 = vmatprep.subr.mxu0 0.0
    %4461 = vmatpush1.msra.mxu0 0.0
    %4462 = vmatprep.subr.mxu0 0.0
    %4463 = vmatpush1.msra.mxu0 0.0
    %4464 = vmatprep.subr.mxu0 0.0
    %4465 = vmatpush1.msra.mxu0 0.0
    %4466 = vmatprep.subr.mxu0 0.0
    %4467 = vmatpush1.msra.mxu0 0.0
    %4468 = vmatprep.subr.mxu0 0.0
    %4469 = vmatpush1.msra.mxu0 0.0
    %4470 = vmatprep.subr.mxu0 0.0
    %4471 = vmatpush1.msra.mxu0 0.0
    %4472 = vmatprep.subr.mxu0 0.0
    %4473 = vmatpush1.msra.mxu0 0.0
    %4474 = vmatprep.subr.mxu0 0.0
    %4475 = vmatpush1.msra.mxu0 0.0
    %4476 = vmatprep.subr.mxu0 0.0
    %4477 = vmatpush1.msra.mxu0 0.0
    %4478 = vmatprep.subr.mxu0 0.0
    %4479 = vmatpush1.msra.mxu0 0.0
    %4480 = vmatprep.subr.mxu0 0.0
    %4481 = vmatpush1.msra.mxu0 0.0
    %4482 = vmatprep.subr.mxu0 0.0
    %4483 = vmatpush1.msra.mxu0 0.0
    %4484 = vmatprep.subr.mxu0 0.0
    %4485 = vmatpush1.msra.mxu0 0.0
    %4486 = vmatprep.subr.mxu0 0.0
    %4487 = vmatpush1.msra.mxu0 0.0
    %4488 = vmatprep.subr.mxu0 0.0
    %4489 = vmatpush1.msra.mxu0 0.0
    %4490 = vmatprep.subr.mxu0 0.0
    %4491 = vmatpush1.msra.mxu0 0.0
    %4492 = vmatprep.subr.mxu0 0.0
    %4493 = vmatpush1.msra.mxu0 0.0
    %4494 = vmatprep.subr.mxu0 0.0
    %4495 = vmatpush1.msra.mxu0 0.0
    %4496 = vmatprep.subr.mxu0 0.0
    %4497 = vmatpush1.msra.mxu0 0.0
    %4498 = vmatprep.subr.mxu0 0.0
    %4499 = vmatpush1.msra.mxu0 0.0
    %4500 = vmatprep.subr.mxu0 0.0
    %4501 = vmatpush1.msra.mxu0 0.0
    %4502 = vmatprep.subr.mxu0 0.0
    %4503 = vmatpush1.msra.mxu0 0.0
    %4504 = vmatprep.subr.mxu0 0.0
    %4505 = vmatpush1.msra.mxu0 0.0
    %4506 = vmatprep.subr.mxu0 0.0
    %4507 = vmatpush1.msra.mxu0 0.0
    %4508 = vmatprep.subr.mxu0 0.0
    %4509 = vmatpush1.msra.mxu0 0.0
    %4510 = vmatprep.subr.mxu0 0.0
    %4511 = vmatpush1.msra.mxu0 0.0
    %4512 = vmatprep.subr.mxu0 0.0
    %4513 = vmatpush1.msra.mxu0 0.0
    %4514 = vmatprep.subr.mxu0 0.0
    %4515 = vmatpush1.msra.mxu0 0.0
    %4516 = vmatprep.mubr.f32.mxu0 0.0
    %4517 = vmatmul.mubr.f32.gmra.mrb[0].mxu0 %v4380
    %v4518 = vpop.f32.mrb[0].mxu0
    %v4519 = vadd.f32 %v2010, %v4518
    %v4520 = vpop.f32.mrb[0].mxu0
    %4521 = vdwg.mxu0
    %4522 = vmatprep.subr.mxu0 0.0
    %4523 = vmatpush1.msra.mxu0 %v1895
    %4524 = vmatprep.subr.mxu0 0.0
    %4525 = vmatpush1.msra.mxu0 %v1896
    %4526 = vmatprep.subr.mxu0 0.0
    %4527 = vmatpush1.msra.mxu0 %v1897
    %4528 = vmatprep.subr.mxu0 0.0
    %4529 = vmatpush1.msra.mxu0 %v1898
    %4530 = vmatprep.subr.mxu0 0.0
    %4531 = vmatpush1.msra.mxu0 0.0
    %4532 = vmatprep.subr.mxu0 0.0
    %4533 = vmatpush1.msra.mxu0 0.0
    %4534 = vmatprep.subr.mxu0 0.0
    %4535 = vmatpush1.msra.mxu0 0.0
    %4536 = vmatprep.subr.mxu0 0.0
    %4537 = vmatpush1.msra.mxu0 0.0
    %4538 = vmatprep.subr.mxu0 0.0
    %4539 = vmatpush1.msra.mxu0 0.0
    %4540 = vmatprep.subr.mxu0 0.0
    %4541 = vmatpush1.msra.mxu0 0.0
    %4542 = vmatprep.subr.mxu0 0.0
    %4543 = vmatpush1.msra.mxu0 0.0
    %4544 = vmatprep.subr.mxu0 0.0
    %4545 = vmatpush1.msra.mxu0 0.0
    %4546 = vmatprep.subr.mxu0 0.0
    %4547 = vmatpush1.msra.mxu0 0.0
    %4548 = vmatprep.subr.mxu0 0.0
    %4549 = vmatpush1.msra.mxu0 0.0
    %4550 = vmatprep.subr.mxu0 0.0
    %4551 = vmatpush1.msra.mxu0 0.0
    %4552 = vmatprep.subr.mxu0 0.0
    %4553 = vmatpush1.msra.mxu0 0.0
    %4554 = vmatprep.subr.mxu0 0.0
    %4555 = vmatpush1.msra.mxu0 0.0
    %4556 = vmatprep.subr.mxu0 0.0
    %4557 = vmatpush1.msra.mxu0 0.0
    %4558 = vmatprep.subr.mxu0 0.0
    %4559 = vmatpush1.msra.mxu0 0.0
    %4560 = vmatprep.subr.mxu0 0.0
    %4561 = vmatpush1.msra.mxu0 0.0
    %4562 = vmatprep.subr.mxu0 0.0
    %4563 = vmatpush1.msra.mxu0 0.0
    %4564 = vmatprep.subr.mxu0 0.0
    %4565 = vmatpush1.msra.mxu0 0.0
    %4566 = vmatprep.subr.mxu0 0.0
    %4567 = vmatpush1.msra.mxu0 0.0
    %4568 = vmatprep.subr.mxu0 0.0
    %4569 = vmatpush1.msra.mxu0 0.0
    %4570 = vmatprep.subr.mxu0 0.0
    %4571 = vmatpush1.msra.mxu0 0.0
    %4572 = vmatprep.subr.mxu0 0.0
    %4573 = vmatpush1.msra.mxu0 0.0
    %4574 = vmatprep.subr.mxu0 0.0
    %4575 = vmatpush1.msra.mxu0 0.0
    %4576 = vmatprep.subr.mxu0 0.0
    %4577 = vmatpush1.msra.mxu0 0.0
    %4578 = vmatprep.subr.mxu0 0.0
    %4579 = vmatpush1.msra.mxu0 0.0
    %4580 = vmatprep.subr.mxu0 0.0
    %4581 = vmatpush1.msra.mxu0 0.0
    %4582 = vmatprep.subr.mxu0 0.0
    %4583 = vmatpush1.msra.mxu0 0.0
    %4584 = vmatprep.subr.mxu0 0.0
    %4585 = vmatpush1.msra.mxu0 0.0
    %4586 = vmatprep.mubr.f32.mxu0 0.0
    %4587 = vmatmul.mubr.f32.gmra.mrb[0].mxu0 %v4380
    %v4588 = vpop.f32.mrb[0].mxu0
    %v4589 = vadd.f32 %v2086, %v4588
    %v4590 = vpop.f32.mrb[0].mxu0
    %4591 = vdwg.mxu0
    %v4592 = vadd.f32 %v4374, %v4449
    %v4593 = vxor.u32 %v4592, 2147483648
    %v4594 = vmul.f32 %v4593, 1.442695
    %v4595 = vpow.pop %v4594
    %v4596 = vadd.f32 %v4595, 1.0
    %v4597 = vrcp.pop %v4596
    %v4598 = vmul.f32 1.0, %v4597
    %v4599 = vadd.f32 %v4376, %v4519
    %v4600 = vxor.u32 %v4599, 2147483648
    %v4601 = vmul.f32 %v4600, 1.442695
    %v4602 = vpow.pop %v4601
    %v4603 = vadd.f32 %v4602, 1.0
    %v4604 = vrcp.pop %v4603
    %v4605 = vmul.f32 1.0, %v4604
    %v4606 = vmul.f32 %v4598, %v4589
    %v4607 = vadd.f32 %v4378, %v4606
    %v4608 = vtanh.pop %v4607
    %v4609 = vsub.f32 1.0, %v4605
    %v4610 = vmul.f32 %v4609, %v4608
    %v4611 = vmul.f32 %v4605, %v4128
    %v4612 = vadd.f32 %v4610, %v4611
    %s4613 = scalar_lea.vmem [#allocation7], 4
    %v4614 = vld [vmem:[%s4613] sm:$0x3]
    %s4615 = scalar_lea.vmem [#allocation8], 4
    %v4616 = vld [vmem:[%s4615] sm:$0x3]
    %s4617 = scalar_lea.vmem [#allocation9], 4
    %v4618 = vld [vmem:[%s4617] sm:$0x3]
    %v4620 = vsel %vm1932, %v4368, 0
    %4622 = vmatprep.subr.mxu0 0.0
    %4623 = vmatpush1.msra.mxu0 %v1904
    %4624 = vmatprep.subr.mxu0 0.0
    %4625 = vmatpush1.msra.mxu0 %v1905
    %4626 = vmatprep.subr.mxu0 0.0
    %4627 = vmatpush1.msra.mxu0 %v1906
    %4628 = vmatprep.subr.mxu0 0.0
    %4629 = vmatpush1.msra.mxu0 %v1907
    %4630 = vmatprep.subr.mxu0 0.0
    %4631 = vmatpush1.msra.mxu0 0.0
    %4632 = vmatprep.subr.mxu0 0.0
    %4633 = vmatpush1.msra.mxu0 0.0
    %4634 = vmatprep.subr.mxu0 0.0
    %4635 = vmatpush1.msra.mxu0 0.0
    %4636 = vmatprep.subr.mxu0 0.0
    %4637 = vmatpush1.msra.mxu0 0.0
    %4638 = vmatprep.subr.mxu0 0.0
    %4639 = vmatpush1.msra.mxu0 0.0
    %4640 = vmatprep.subr.mxu0 0.0
    %4641 = vmatpush1.msra.mxu0 0.0
    %4642 = vmatprep.subr.mxu0 0.0
    %4643 = vmatpush1.msra.mxu0 0.0
    %4644 = vmatprep.subr.mxu0 0.0
    %4645 = vmatpush1.msra.mxu0 0.0
    %4646 = vmatprep.subr.mxu0 0.0
    %4647 = vmatpush1.msra.mxu0 0.0
    %4648 = vmatprep.subr.mxu0 0.0
    %4649 = vmatpush1.msra.mxu0 0.0
    %4650 = vmatprep.subr.mxu0 0.0
    %4651 = vmatpush1.msra.mxu0 0.0
    %4652 = vmatprep.subr.mxu0 0.0
    %4653 = vmatpush1.msra.mxu0 0.0
    %4654 = vmatprep.subr.mxu0 0.0
    %4655 = vmatpush1.msra.mxu0 0.0
    %4656 = vmatprep.subr.mxu0 0.0
    %4657 = vmatpush1.msra.mxu0 0.0
    %4658 = vmatprep.subr.mxu0 0.0
    %4659 = vmatpush1.msra.mxu0 0.0
    %4660 = vmatprep.subr.mxu0 0.0
    %4661 = vmatpush1.msra.mxu0 0.0
    %4662 = vmatprep.subr.mxu0 0.0
    %4663 = vmatpush1.msra.mxu0 0.0
    %4664 = vmatprep.subr.mxu0 0.0
    %4665 = vmatpush1.msra.mxu0 0.0
    %4666 = vmatprep.subr.mxu0 0.0
    %4667 = vmatpush1.msra.mxu0 0.0
    %4668 = vmatprep.subr.mxu0 0.0
    %4669 = vmatpush1.msra.mxu0 0.0
    %4670 = vmatprep.subr.mxu0 0.0
    %4671 = vmatpush1.msra.mxu0 0.0
    %4672 = vmatprep.subr.mxu0 0.0
    %4673 = vmatpush1.msra.mxu0 0.0
    %4674 = vmatprep.subr.mxu0 0.0
    %4675 = vmatpush1.msra.mxu0 0.0
    %4676 = vmatprep.subr.mxu0 0.0
    %4677 = vmatpush1.msra.mxu0 0.0
    %4678 = vmatprep.subr.mxu0 0.0
    %4679 = vmatpush1.msra.mxu0 0.0
    %4680 = vmatprep.subr.mxu0 0.0
    %4681 = vmatpush1.msra.mxu0 0.0
    %4682 = vmatprep.subr.mxu0 0.0
    %4683 = vmatpush1.msra.mxu0 0.0
    %4684 = vmatprep.subr.mxu0 0.0
    %4685 = vmatpush1.msra.mxu0 0.0
    %4686 = vmatprep.mubr.f32.mxu0 0.0
    %4687 = vmatmul.mubr.f32.gmra.mrb[0].mxu0 %v4620
    %v4688 = vpop.f32.mrb[0].mxu0
    %v4689 = vadd.f32 %v2189, %v4688
    %v4690 = vpop.f32.mrb[0].mxu0
    %4691 = vdwg.mxu0
    %4692 = vmatprep.subr.mxu0 0.0
    %4693 = vmatpush1.msra.mxu0 %v1909
    %4694 = vmatprep.subr.mxu0 0.0
    %4695 = vmatpush1.msra.mxu0 %v1910
    %4696 = vmatprep.subr.mxu0 0.0
    %4697 = vmatpush1.msra.mxu0 %v1911
    %4698 = vmatprep.subr.mxu0 0.0
    %4699 = vmatpush1.msra.mxu0 %v1912
    %4700 = vmatprep.subr.mxu0 0.0
    %4701 = vmatpush1.msra.mxu0 0.0
    %4702 = vmatprep.subr.mxu0 0.0
    %4703 = vmatpush1.msra.mxu0 0.0
    %4704 = vmatprep.subr.mxu0 0.0
    %4705 = vmatpush1.msra.mxu0 0.0
    %4706 = vmatprep.subr.mxu0 0.0
    %4707 = vmatpush1.msra.mxu0 0.0
    %4708 = vmatprep.subr.mxu0 0.0
    %4709 = vmatpush1.msra.mxu0 0.0
    %4710 = vmatprep.subr.mxu0 0.0
    %4711 = vmatpush1.msra.mxu0 0.0
    %4712 = vmatprep.subr.mxu0 0.0
    %4713 = vmatpush1.msra.mxu0 0.0
    %4714 = vmatprep.subr.mxu0 0.0
    %4715 = vmatpush1.msra.mxu0 0.0
    %4716 = vmatprep.subr.mxu0 0.0
    %4717 = vmatpush1.msra.mxu0 0.0
    %4718 = vmatprep.subr.mxu0 0.0
    %4719 = vmatpush1.msra.mxu0 0.0
    %4720 = vmatprep.subr.mxu0 0.0
    %4721 = vmatpush1.msra.mxu0 0.0
    %4722 = vmatprep.subr.mxu0 0.0
    %4723 = vmatpush1.msra.mxu0 0.0
    %4724 = vmatprep.subr.mxu0 0.0
    %4725 = vmatpush1.msra.mxu0 0.0
    %4726 = vmatprep.subr.mxu0 0.0
    %4727 = vmatpush1.msra.mxu0 0.0
    %4728 = vmatprep.subr.mxu0 0.0
    %4729 = vmatpush1.msra.mxu0 0.0
    %4730 = vmatprep.subr.mxu0 0.0
    %4731 = vmatpush1.msra.mxu0 0.0
    %4732 = vmatprep.subr.mxu0 0.0
    %4733 = vmatpush1.msra.mxu0 0.0
    %4734 = vmatprep.subr.mxu0 0.0
    %4735 = vmatpush1.msra.mxu0 0.0
    %4736 = vmatprep.subr.mxu0 0.0
    %4737 = vmatpush1.msra.mxu0 0.0
    %4738 = vmatprep.subr.mxu0 0.0
    %4739 = vmatpush1.msra.mxu0 0.0
    %4740 = vmatprep.subr.mxu0 0.0
    %4741 = vmatpush1.msra.mxu0 0.0
    %4742 = vmatprep.subr.mxu0 0.0
    %4743 = vmatpush1.msra.mxu0 0.0
    %4744 = vmatprep.subr.mxu0 0.0
    %4745 = vmatpush1.msra.mxu0 0.0
    %4746 = vmatprep.subr.mxu0 0.0
    %4747 = vmatpush1.msra.mxu0 0.0
    %4748 = vmatprep.subr.mxu0 0.0
    %4749 = vmatpush1.msra.mxu0 0.0
    %4750 = vmatprep.subr.mxu0 0.0
    %4751 = vmatpush1.msra.mxu0 0.0
    %4752 = vmatprep.subr.mxu0 0.0
    %4753 = vmatpush1.msra.mxu0 0.0
    %4754 = vmatprep.subr.mxu0 0.0
    %4755 = vmatpush1.msra.mxu0 0.0
    %4756 = vmatprep.mubr.f32.mxu0 0.0
    %4757 = vmatmul.mubr.f32.gmra.mrb[0].mxu0 %v4620
    %v4758 = vpop.f32.mrb[0].mxu0
    %v4759 = vadd.f32 %v2265, %v4758
    %v4760 = vpop.f32.mrb[0].mxu0
    %4761 = vdwg.mxu0
    %4762 = vmatprep.subr.mxu0 0.0
    %4763 = vmatpush1.msra.mxu0 %v1914
    %4764 = vmatprep.subr.mxu0 0.0
    %4765 = vmatpush1.msra.mxu0 %v1915
    %4766 = vmatprep.subr.mxu0 0.0
    %4767 = vmatpush1.msra.mxu0 %v1916
    %4768 = vmatprep.subr.mxu0 0.0
    %4769 = vmatpush1.msra.mxu0 %v1917
    %4770 = vmatprep.subr.mxu0 0.0
    %4771 = vmatpush1.msra.mxu0 0.0
    %4772 = vmatprep.subr.mxu0 0.0
    %4773 = vmatpush1.msra.mxu0 0.0
    %4774 = vmatprep.subr.mxu0 0.0
    %4775 = vmatpush1.msra.mxu0 0.0
    %4776 = vmatprep.subr.mxu0 0.0
    %4777 = vmatpush1.msra.mxu0 0.0
    %4778 = vmatprep.subr.mxu0 0.0
    %4779 = vmatpush1.msra.mxu0 0.0
    %4780 = vmatprep.subr.mxu0 0.0
    %4781 = vmatpush1.msra.mxu0 0.0
    %4782 = vmatprep.subr.mxu0 0.0
    %4783 = vmatpush1.msra.mxu0 0.0
    %4784 = vmatprep.subr.mxu0 0.0
    %4785 = vmatpush1.msra.mxu0 0.0
    %4786 = vmatprep.subr.mxu0 0.0
    %4787 = vmatpush1.msra.mxu0 0.0
    %4788 = vmatprep.subr.mxu0 0.0
    %4789 = vmatpush1.msra.mxu0 0.0
    %4790 = vmatprep.subr.mxu0 0.0
    %4791 = vmatpush1.msra.mxu0 0.0
    %4792 = vmatprep.subr.mxu0 0.0
    %4793 = vmatpush1.msra.mxu0 0.0
    %4794 = vmatprep.subr.mxu0 0.0
    %4795 = vmatpush1.msra.mxu0 0.0
    %4796 = vmatprep.subr.mxu0 0.0
    %4797 = vmatpush1.msra.mxu0 0.0
    %4798 = vmatprep.subr.mxu0 0.0
    %4799 = vmatpush1.msra.mxu0 0.0
    %4800 = vmatprep.subr.mxu0 0.0
    %4801 = vmatpush1.msra.mxu0 0.0
    %4802 = vmatprep.subr.mxu0 0.0
    %4803 = vmatpush1.msra.mxu0 0.0
    %4804 = vmatprep.subr.mxu0 0.0
    %4805 = vmatpush1.msra.mxu0 0.0
    %4806 = vmatprep.subr.mxu0 0.0
    %4807 = vmatpush1.msra.mxu0 0.0
    %4808 = vmatprep.subr.mxu0 0.0
    %4809 = vmatpush1.msra.mxu0 0.0
    %4810 = vmatprep.subr.mxu0 0.0
    %4811 = vmatpush1.msra.mxu0 0.0
    %4812 = vmatprep.subr.mxu0 0.0
    %4813 = vmatpush1.msra.mxu0 0.0
    %4814 = vmatprep.subr.mxu0 0.0
    %4815 = vmatpush1.msra.mxu0 0.0
    %4816 = vmatprep.subr.mxu0 0.0
    %4817 = vmatpush1.msra.mxu0 0.0
    %4818 = vmatprep.subr.mxu0 0.0
    %4819 = vmatpush1.msra.mxu0 0.0
    %4820 = vmatprep.subr.mxu0 0.0
    %4821 = vmatpush1.msra.mxu0 0.0
    %4822 = vmatprep.subr.mxu0 0.0
    %4823 = vmatpush1.msra.mxu0 0.0
    %4824 = vmatprep.subr.mxu0 0.0
    %4825 = vmatpush1.msra.mxu0 0.0
    %4826 = vmatprep.mubr.f32.mxu0 0.0
    %4827 = vmatmul.mubr.f32.gmra.mrb[0].mxu0 %v4620
    %v4828 = vpop.f32.mrb[0].mxu0
    %v4829 = vadd.f32 %v2341, %v4828
    %v4830 = vpop.f32.mrb[0].mxu0
    %4831 = vdwg.mxu0
    %v4832 = vadd.f32 %v4614, %v4689
    %v4833 = vxor.u32 %v4832, 2147483648
    %v4834 = vmul.f32 %v4833, 1.442695
    %v4835 = vpow.pop %v4834
    %v4836 = vadd.f32 %v4835, 1.0
    %v4837 = vrcp.pop %v4836
    %v4838 = vmul.f32 1.0, %v4837
    %v4839 = vadd.f32 %v4616, %v4759
    %v4840 = vxor.u32 %v4839, 2147483648
    %v4841 = vmul.f32 %v4840, 1.442695
    %v4842 = vpow.pop %v4841
    %v4843 = vadd.f32 %v4842, 1.0
    %v4844 = vrcp.pop %v4843
    %v4845 = vmul.f32 1.0, %v4844
    %v4846 = vmul.f32 %v4838, %v4829
    %v4847 = vadd.f32 %v4618, %v4846
    %v4848 = vtanh.pop %v4847
    %v4849 = vsub.f32 1.0, %v4845
    %v4850 = vmul.f32 %v4849, %v4848
    %v4851 = vmul.f32 %v4845, %v4368
    %v4852 = vadd.f32 %v4850, %v4851
    %s4853 = scalar_lea.vmem [#allocation2], 10
    %4854 = vst.msk [vmem:[%s4853] sm:$0x3] %vm383, %v4612
    %s4855 = scalar_lea.vmem [#allocation3], 4
    %4856 = vst.msk [vmem:[%s4855] sm:$0x3] %vm383, %v4852
    %s4857 = scalar_lea.vmem [#allocation4], 12
    %v4858 = vld [vmem:[%s4857] sm:$0x3]
    %s4859 = scalar_lea.vmem [#allocation5], 12
    %v4860 = vld [vmem:[%s4859] sm:$0x3]
    %s4861 = scalar_lea.vmem [#allocation6], 12
    %v4862 = vld [vmem:[%s4861] sm:$0x3]
    %v4864 = vsel %vm1932, %v4612, 0
    %4866 = vmatprep.subr.mxu0 0.0
    %4867 = vmatpush1.msra.mxu0 %v1885
    %4868 = vmatprep.subr.mxu0 0.0
    %4869 = vmatpush1.msra.mxu0 %v1886
    %4870 = vmatprep.subr.mxu0 0.0
    %4871 = vmatpush1.msra.mxu0 %v1887
    %4872 = vmatprep.subr.mxu0 0.0
    %4873 = vmatpush1.msra.mxu0 %v1888
    %4874 = vmatprep.subr.mxu0 0.0
    %4875 = vmatpush1.msra.mxu0 0.0
    %4876 = vmatprep.subr.mxu0 0.0
    %4877 = vmatpush1.msra.mxu0 0.0
    %4878 = vmatprep.subr.mxu0 0.0
    %4879 = vmatpush1.msra.mxu0 0.0
    %4880 = vmatprep.subr.mxu0 0.0
    %4881 = vmatpush1.msra.mxu0 0.0
    %4882 = vmatprep.subr.mxu0 0.0
    %4883 = vmatpush1.msra.mxu0 0.0
    %4884 = vmatprep.subr.mxu0 0.0
    %4885 = vmatpush1.msra.mxu0 0.0
    %4886 = vmatprep.subr.mxu0 0.0
    %4887 = vmatpush1.msra.mxu0 0.0
    %4888 = vmatprep.subr.mxu0 0.0
    %4889 = vmatpush1.msra.mxu0 0.0
    %4890 = vmatprep.subr.mxu0 0.0
    %4891 = vmatpush1.msra.mxu0 0.0
    %4892 = vmatprep.subr.mxu0 0.0
    %4893 = vmatpush1.msra.mxu0 0.0
    %4894 = vmatprep.subr.mxu0 0.0
    %4895 = vmatpush1.msra.mxu0 0.0
    %4896 = vmatprep.subr.mxu0 0.0
    %4897 = vmatpush1.msra.mxu0 0.0
    %4898 = vmatprep.subr.mxu0 0.0
    %4899 = vmatpush1.msra.mxu0 0.0
    %4900 = vmatprep.subr.mxu0 0.0
    %4901 = vmatpush1.msra.mxu0 0.0
    %4902 = vmatprep.subr.mxu0 0.0
    %4903 = vmatpush1.msra.mxu0 0.0
    %4904 = vmatprep.subr.mxu0 0.0
    %4905 = vmatpush1.msra.mxu0 0.0
    %4906 = vmatprep.subr.mxu0 0.0
    %4907 = vmatpush1.msra.mxu0 0.0
    %4908 = vmatprep.subr.mxu0 0.0
    %4909 = vmatpush1.msra.mxu0 0.0
    %4910 = vmatprep.subr.mxu0 0.0
    %4911 = vmatpush1.msra.mxu0 0.0
    %4912 = vmatprep.subr.mxu0 0.0
    %4913 = vmatpush1.msra.mxu0 0.0
    %4914 = vmatprep.subr.mxu0 0.0
    %4915 = vmatpush1.msra.mxu0 0.0
    %4916 = vmatprep.subr.mxu0 0.0
    %4917 = vmatpush1.msra.mxu0 0.0
    %4918 = vmatprep.subr.mxu0 0.0
    %4919 = vmatpush1.msra.mxu0 0.0
    %4920 = vmatprep.subr.mxu0 0.0
    %4921 = vmatpush1.msra.mxu0 0.0
    %4922 = vmatprep.subr.mxu0 0.0
    %4923 = vmatpush1.msra.mxu0 0.0
    %4924 = vmatprep.subr.mxu0 0.0
    %4925 = vmatpush1.msra.mxu0 0.0
    %4926 = vmatprep.subr.mxu0 0.0
    %4927 = vmatpush1.msra.mxu0 0.0
    %4928 = vmatprep.subr.mxu0 0.0
    %4929 = vmatpush1.msra.mxu0 0.0
    %4930 = vmatprep.mubr.f32.mxu0 0.0
    %4931 = vmatmul.mubr.f32.gmra.mrb[0].mxu0 %v4864
    %v4932 = vpop.f32.mrb[0].mxu0
    %v4933 = vadd.f32 %v1930, %v4932
    %v4934 = vpop.f32.mrb[0].mxu0
    %4935 = vdwg.mxu0
    %4936 = vmatprep.subr.mxu0 0.0
    %4937 = vmatpush1.msra.mxu0 %v1890
    %4938 = vmatprep.subr.mxu0 0.0
    %4939 = vmatpush1.msra.mxu0 %v1891
    %4940 = vmatprep.subr.mxu0 0.0
    %4941 = vmatpush1.msra.mxu0 %v1892
    %4942 = vmatprep.subr.mxu0 0.0
    %4943 = vmatpush1.msra.mxu0 %v1893
    %4944 = vmatprep.subr.mxu0 0.0
    %4945 = vmatpush1.msra.mxu0 0.0
    %4946 = vmatprep.subr.mxu0 0.0
    %4947 = vmatpush1.msra.mxu0 0.0
    %4948 = vmatprep.subr.mxu0 0.0
    %4949 = vmatpush1.msra.mxu0 0.0
    %4950 = vmatprep.subr.mxu0 0.0
    %4951 = vmatpush1.msra.mxu0 0.0
    %4952 = vmatprep.subr.mxu0 0.0
    %4953 = vmatpush1.msra.mxu0 0.0
    %4954 = vmatprep.subr.mxu0 0.0
    %4955 = vmatpush1.msra.mxu0 0.0
    %4956 = vmatprep.subr.mxu0 0.0
    %4957 = vmatpush1.msra.mxu0 0.0
    %4958 = vmatprep.subr.mxu0 0.0
    %4959 = vmatpush1.msra.mxu0 0.0
    %4960 = vmatprep.subr.mxu0 0.0
    %4961 = vmatpush1.msra.mxu0 0.0
    %4962 = vmatprep.subr.mxu0 0.0
    %4963 = vmatpush1.msra.mxu0 0.0
    %4964 = vmatprep.subr.mxu0 0.0
    %4965 = vmatpush1.msra.mxu0 0.0
    %4966 = vmatprep.subr.mxu0 0.0
    %4967 = vmatpush1.msra.mxu0 0.0
    %4968 = vmatprep.subr.mxu0 0.0
    %4969 = vmatpush1.msra.mxu0 0.0
    %4970 = vmatprep.subr.mxu0 0.0
    %4971 = vmatpush1.msra.mxu0 0.0
    %4972 = vmatprep.subr.mxu0 0.0
    %4973 = vmatpush1.msra.mxu0 0.0
    %4974 = vmatprep.subr.mxu0 0.0
    %4975 = vmatpush1.msra.mxu0 0.0
    %4976 = vmatprep.subr.mxu0 0.0
    %4977 = vmatpush1.msra.mxu0 0.0
    %4978 = vmatprep.subr.mxu0 0.0
    %4979 = vmatpush1.msra.mxu0 0.0
    %4980 = vmatprep.subr.mxu0 0.0
    %4981 = vmatpush1.msra.mxu0 0.0
    %4982 = vmatprep.subr.mxu0 0.0
    %4983 = vmatpush1.msra.mxu0 0.0
    %4984 = vmatprep.subr.mxu0 0.0
    %4985 = vmatpush1.msra.mxu0 0.0
    %4986 = vmatprep.subr.mxu0 0.0
    %4987 = vmatpush1.msra.mxu0 0.0
    %4988 = vmatprep.subr.mxu0 0.0
    %4989 = vmatpush1.msra.mxu0 0.0
    %4990 = vmatprep.subr.mxu0 0.0
    %4991 = vmatpush1.msra.mxu0 0.0
    %4992 = vmatprep.subr.mxu0 0.0
    %4993 = vmatpush1.msra.mxu0 0.0
    %4994 = vmatprep.subr.mxu0 0.0
    %4995 = vmatpush1.msra.mxu0 0.0
    %4996 = vmatprep.subr.mxu0 0.0
    %4997 = vmatpush1.msra.mxu0 0.0
    %4998 = vmatprep.subr.mxu0 0.0
    %4999 = vmatpush1.msra.mxu0 0.0
    %5000 = vmatprep.mubr.f32.mxu0 0.0
    %5001 = vmatmul.mubr.f32.gmra.mrb[0].mxu0 %v4864
    %v5002 = vpop.f32.mrb[0].mxu0
    %v5003 = vadd.f32 %v2010, %v5002
    %v5004 = vpop.f32.mrb[0].mxu0
    %5005 = vdwg.mxu0
    %5006 = vmatprep.subr.mxu0 0.0
    %5007 = vmatpush1.msra.mxu0 %v1895
    %5008 = vmatprep.subr.mxu0 0.0
    %5009 = vmatpush1.msra.mxu0 %v1896
    %5010 = vmatprep.subr.mxu0 0.0
    %5011 = vmatpush1.msra.mxu0 %v1897
    %5012 = vmatprep.subr.mxu0 0.0
    %5013 = vmatpush1.msra.mxu0 %v1898
    %5014 = vmatprep.subr.mxu0 0.0
    %5015 = vmatpush1.msra.mxu0 0.0
    %5016 = vmatprep.subr.mxu0 0.0
    %5017 = vmatpush1.msra.mxu0 0.0
    %5018 = vmatprep.subr.mxu0 0.0
    %5019 = vmatpush1.msra.mxu0 0.0
    %5020 = vmatprep.subr.mxu0 0.0
    %5021 = vmatpush1.msra.mxu0 0.0
    %5022 = vmatprep.subr.mxu0 0.0
    %5023 = vmatpush1.msra.mxu0 0.0
    %5024 = vmatprep.subr.mxu0 0.0
    %5025 = vmatpush1.msra.mxu0 0.0
    %5026 = vmatprep.subr.mxu0 0.0
    %5027 = vmatpush1.msra.mxu0 0.0
    %5028 = vmatprep.subr.mxu0 0.0
    %5029 = vmatpush1.msra.mxu0 0.0
    %5030 = vmatprep.subr.mxu0 0.0
    %5031 = vmatpush1.msra.mxu0 0.0
    %5032 = vmatprep.subr.mxu0 0.0
    %5033 = vmatpush1.msra.mxu0 0.0
    %5034 = vmatprep.subr.mxu0 0.0
    %5035 = vmatpush1.msra.mxu0 0.0
    %5036 = vmatprep.subr.mxu0 0.0
    %5037 = vmatpush1.msra.mxu0 0.0
    %5038 = vmatprep.subr.mxu0 0.0
    %5039 = vmatpush1.msra.mxu0 0.0
    %5040 = vmatprep.subr.mxu0 0.0
    %5041 = vmatpush1.msra.mxu0 0.0
    %5042 = vmatprep.subr.mxu0 0.0
    %5043 = vmatpush1.msra.mxu0 0.0
    %5044 = vmatprep.subr.mxu0 0.0
    %5045 = vmatpush1.msra.mxu0 0.0
    %5046 = vmatprep.subr.mxu0 0.0
    %5047 = vmatpush1.msra.mxu0 0.0
    %5048 = vmatprep.subr.mxu0 0.0
    %5049 = vmatpush1.msra.mxu0 0.0
    %5050 = vmatprep.subr.mxu0 0.0
    %5051 = vmatpush1.msra.mxu0 0.0
    %5052 = vmatprep.subr.mxu0 0.0
    %5053 = vmatpush1.msra.mxu0 0.0
    %5054 = vmatprep.subr.mxu0 0.0
    %5055 = vmatpush1.msra.mxu0 0.0
    %5056 = vmatprep.subr.mxu0 0.0
    %5057 = vmatpush1.msra.mxu0 0.0
    %5058 = vmatprep.subr.mxu0 0.0
    %5059 = vmatpush1.msra.mxu0 0.0
    %5060 = vmatprep.subr.mxu0 0.0
    %5061 = vmatpush1.msra.mxu0 0.0
    %5062 = vmatprep.subr.mxu0 0.0
    %5063 = vmatpush1.msra.mxu0 0.0
    %5064 = vmatprep.subr.mxu0 0.0
    %5065 = vmatpush1.msra.mxu0 0.0
    %5066 = vmatprep.subr.mxu0 0.0
    %5067 = vmatpush1.msra.mxu0 0.0
    %5068 = vmatprep.subr.mxu0 0.0
    %5069 = vmatpush1.msra.mxu0 0.0
    %5070 = vmatprep.mubr.f32.mxu0 0.0
    %5071 = vmatmul.mubr.f32.gmra.mrb[0].mxu0 %v4864
    %v5072 = vpop.f32.mrb[0].mxu0
    %v5073 = vadd.f32 %v2086, %v5072
    %v5074 = vpop.f32.mrb[0].mxu0
    %5075 = vdwg.mxu0
    %v5076 = vadd.f32 %v4858, %v4933
    %v5077 = vxor.u32 %v5076, 2147483648
    %v5078 = vmul.f32 %v5077, 1.442695
    %v5079 = vpow.pop %v5078
    %v5080 = vadd.f32 %v5079, 1.0
    %v5081 = vrcp.pop %v5080
    %v5082 = vmul.f32 1.0, %v5081
    %v5083 = vadd.f32 %v4860, %v5003
    %v5084 = vxor.u32 %v5083, 2147483648
    %v5085 = vmul.f32 %v5084, 1.442695
    %v5086 = vpow.pop %v5085
    %v5087 = vadd.f32 %v5086, 1.0
    %v5088 = vrcp.pop %v5087
    %v5089 = vmul.f32 1.0, %v5088
    %v5090 = vmul.f32 %v5082, %v5073
    %v5091 = vadd.f32 %v4862, %v5090
    %v5092 = vtanh.pop %v5091
    %v5093 = vsub.f32 1.0, %v5089
    %v5094 = vmul.f32 %v5093, %v5092
    %v5095 = vmul.f32 %v5089, %v4612
    %v5096 = vadd.f32 %v5094, %v5095
    %s5097 = scalar_lea.vmem [#allocation7], 2
    %v5098 = vld [vmem:[%s5097] sm:$0x3]
    %s5099 = scalar_lea.vmem [#allocation8], 2
    %v5100 = vld [vmem:[%s5099] sm:$0x3]
    %s5101 = scalar_lea.vmem [#allocation9], 2
    %v5102 = vld [vmem:[%s5101] sm:$0x3]
    %v5104 = vsel %vm1932, %v4852, 0
    %5106 = vmatprep.subr.mxu0 0.0
    %5107 = vmatpush1.msra.mxu0 %v1904
    %5108 = vmatprep.subr.mxu0 0.0
    %5109 = vmatpush1.msra.mxu0 %v1905
    %5110 = vmatprep.subr.mxu0 0.0
    %5111 = vmatpush1.msra.mxu0 %v1906
    %5112 = vmatprep.subr.mxu0 0.0
    %5113 = vmatpush1.msra.mxu0 %v1907
    %5114 = vmatprep.subr.mxu0 0.0
    %5115 = vmatpush1.msra.mxu0 0.0
    %5116 = vmatprep.subr.mxu0 0.0
    %5117 = vmatpush1.msra.mxu0 0.0
    %5118 = vmatprep.subr.mxu0 0.0
    %5119 = vmatpush1.msra.mxu0 0.0
    %5120 = vmatprep.subr.mxu0 0.0
    %5121 = vmatpush1.msra.mxu0 0.0
    %5122 = vmatprep.subr.mxu0 0.0
    %5123 = vmatpush1.msra.mxu0 0.0
    %5124 = vmatprep.subr.mxu0 0.0
    %5125 = vmatpush1.msra.mxu0 0.0
    %5126 = vmatprep.subr.mxu0 0.0
    %5127 = vmatpush1.msra.mxu0 0.0
    %5128 = vmatprep.subr.mxu0 0.0
    %5129 = vmatpush1.msra.mxu0 0.0
    %5130 = vmatprep.subr.mxu0 0.0
    %5131 = vmatpush1.msra.mxu0 0.0
    %5132 = vmatprep.subr.mxu0 0.0
    %5133 = vmatpush1.msra.mxu0 0.0
    %5134 = vmatprep.subr.mxu0 0.0
    %5135 = vmatpush1.msra.mxu0 0.0
    %5136 = vmatprep.subr.mxu0 0.0
    %5137 = vmatpush1.msra.mxu0 0.0
    %5138 = vmatprep.subr.mxu0 0.0
    %5139 = vmatpush1.msra.mxu0 0.0
    %5140 = vmatprep.subr.mxu0 0.0
    %5141 = vmatpush1.msra.mxu0 0.0
    %5142 = vmatprep.subr.mxu0 0.0
    %5143 = vmatpush1.msra.mxu0 0.0
    %5144 = vmatprep.subr.mxu0 0.0
    %5145 = vmatpush1.msra.mxu0 0.0
    %5146 = vmatprep.subr.mxu0 0.0
    %5147 = vmatpush1.msra.mxu0 0.0
    %5148 = vmatprep.subr.mxu0 0.0
    %5149 = vmatpush1.msra.mxu0 0.0
    %5150 = vmatprep.subr.mxu0 0.0
    %5151 = vmatpush1.msra.mxu0 0.0
    %5152 = vmatprep.subr.mxu0 0.0
    %5153 = vmatpush1.msra.mxu0 0.0
    %5154 = vmatprep.subr.mxu0 0.0
    %5155 = vmatpush1.msra.mxu0 0.0
    %5156 = vmatprep.subr.mxu0 0.0
    %5157 = vmatpush1.msra.mxu0 0.0
    %5158 = vmatprep.subr.mxu0 0.0
    %5159 = vmatpush1.msra.mxu0 0.0
    %5160 = vmatprep.subr.mxu0 0.0
    %5161 = vmatpush1.msra.mxu0 0.0
    %5162 = vmatprep.subr.mxu0 0.0
    %5163 = vmatpush1.msra.mxu0 0.0
    %5164 = vmatprep.subr.mxu0 0.0
    %5165 = vmatpush1.msra.mxu0 0.0
    %5166 = vmatprep.subr.mxu0 0.0
    %5167 = vmatpush1.msra.mxu0 0.0
    %5168 = vmatprep.subr.mxu0 0.0
    %5169 = vmatpush1.msra.mxu0 0.0
    %5170 = vmatprep.mubr.f32.mxu0 0.0
    %5171 = vmatmul.mubr.f32.gmra.mrb[0].mxu0 %v5104
    %v5172 = vpop.f32.mrb[0].mxu0
    %v5173 = vadd.f32 %v2189, %v5172
    %v5174 = vpop.f32.mrb[0].mxu0
    %5175 = vdwg.mxu0
    %5176 = vmatprep.subr.mxu0 0.0
    %5177 = vmatpush1.msra.mxu0 %v1909
    %5178 = vmatprep.subr.mxu0 0.0
    %5179 = vmatpush1.msra.mxu0 %v1910
    %5180 = vmatprep.subr.mxu0 0.0
    %5181 = vmatpush1.msra.mxu0 %v1911
    %5182 = vmatprep.subr.mxu0 0.0
    %5183 = vmatpush1.msra.mxu0 %v1912
    %5184 = vmatprep.subr.mxu0 0.0
    %5185 = vmatpush1.msra.mxu0 0.0
    %5186 = vmatprep.subr.mxu0 0.0
    %5187 = vmatpush1.msra.mxu0 0.0
    %5188 = vmatprep.subr.mxu0 0.0
    %5189 = vmatpush1.msra.mxu0 0.0
    %5190 = vmatprep.subr.mxu0 0.0
    %5191 = vmatpush1.msra.mxu0 0.0
    %5192 = vmatprep.subr.mxu0 0.0
    %5193 = vmatpush1.msra.mxu0 0.0
    %5194 = vmatprep.subr.mxu0 0.0
    %5195 = vmatpush1.msra.mxu0 0.0
    %5196 = vmatprep.subr.mxu0 0.0
    %5197 = vmatpush1.msra.mxu0 0.0
    %5198 = vmatprep.subr.mxu0 0.0
    %5199 = vmatpush1.msra.mxu0 0.0
    %5200 = vmatprep.subr.mxu0 0.0
    %5201 = vmatpush1.msra.mxu0 0.0
    %5202 = vmatprep.subr.mxu0 0.0
    %5203 = vmatpush1.msra.mxu0 0.0
    %5204 = vmatprep.subr.mxu0 0.0
    %5205 = vmatpush1.msra.mxu0 0.0
    %5206 = vmatprep.subr.mxu0 0.0
    %5207 = vmatpush1.msra.mxu0 0.0
    %5208 = vmatprep.subr.mxu0 0.0
    %5209 = vmatpush1.msra.mxu0 0.0
    %5210 = vmatprep.subr.mxu0 0.0
    %5211 = vmatpush1.msra.mxu0 0.0
    %5212 = vmatprep.subr.mxu0 0.0
    %5213 = vmatpush1.msra.mxu0 0.0
    %5214 = vmatprep.subr.mxu0 0.0
    %5215 = vmatpush1.msra.mxu0 0.0
    %5216 = vmatprep.subr.mxu0 0.0
    %5217 = vmatpush1.msra.mxu0 0.0
    %5218 = vmatprep.subr.mxu0 0.0
    %5219 = vmatpush1.msra.mxu0 0.0
    %5220 = vmatprep.subr.mxu0 0.0
    %5221 = vmatpush1.msra.mxu0 0.0
    %5222 = vmatprep.subr.mxu0 0.0
    %5223 = vmatpush1.msra.mxu0 0.0
    %5224 = vmatprep.subr.mxu0 0.0
    %5225 = vmatpush1.msra.mxu0 0.0
    %5226 = vmatprep.subr.mxu0 0.0
    %5227 = vmatpush1.msra.mxu0 0.0
    %5228 = vmatprep.subr.mxu0 0.0
    %5229 = vmatpush1.msra.mxu0 0.0
    %5230 = vmatprep.subr.mxu0 0.0
    %5231 = vmatpush1.msra.mxu0 0.0
    %5232 = vmatprep.subr.mxu0 0.0
    %5233 = vmatpush1.msra.mxu0 0.0
    %5234 = vmatprep.subr.mxu0 0.0
    %5235 = vmatpush1.msra.mxu0 0.0
    %5236 = vmatprep.subr.mxu0 0.0
    %5237 = vmatpush1.msra.mxu0 0.0
    %5238 = vmatprep.subr.mxu0 0.0
    %5239 = vmatpush1.msra.mxu0 0.0
    %5240 = vmatprep.mubr.f32.mxu0 0.0
    %5241 = vmatmul.mubr.f32.gmra.mrb[0].mxu0 %v5104
    %v5242 = vpop.f32.mrb[0].mxu0
    %v5243 = vadd.f32 %v2265, %v5242
    %v5244 = vpop.f32.mrb[0].mxu0
    %5245 = vdwg.mxu0
    %5246 = vmatprep.subr.mxu0 0.0
    %5247 = vmatpush1.msra.mxu0 %v1914
    %5248 = vmatprep.subr.mxu0 0.0
    %5249 = vmatpush1.msra.mxu0 %v1915
    %5250 = vmatprep.subr.mxu0 0.0
    %5251 = vmatpush1.msra.mxu0 %v1916
    %5252 = vmatprep.subr.mxu0 0.0
    %5253 = vmatpush1.msra.mxu0 %v1917
    %5254 = vmatprep.subr.mxu0 0.0
    %5255 = vmatpush1.msra.mxu0 0.0
    %5256 = vmatprep.subr.mxu0 0.0
    %5257 = vmatpush1.msra.mxu0 0.0
    %5258 = vmatprep.subr.mxu0 0.0
    %5259 = vmatpush1.msra.mxu0 0.0
    %5260 = vmatprep.subr.mxu0 0.0
    %5261 = vmatpush1.msra.mxu0 0.0
    %5262 = vmatprep.subr.mxu0 0.0
    %5263 = vmatpush1.msra.mxu0 0.0
    %5264 = vmatprep.subr.mxu0 0.0
    %5265 = vmatpush1.msra.mxu0 0.0
    %5266 = vmatprep.subr.mxu0 0.0
    %5267 = vmatpush1.msra.mxu0 0.0
    %5268 = vmatprep.subr.mxu0 0.0
    %5269 = vmatpush1.msra.mxu0 0.0
    %5270 = vmatprep.subr.mxu0 0.0
    %5271 = vmatpush1.msra.mxu0 0.0
    %5272 = vmatprep.subr.mxu0 0.0
    %5273 = vmatpush1.msra.mxu0 0.0
    %5274 = vmatprep.subr.mxu0 0.0
    %5275 = vmatpush1.msra.mxu0 0.0
    %5276 = vmatprep.subr.mxu0 0.0
    %5277 = vmatpush1.msra.mxu0 0.0
    %5278 = vmatprep.subr.mxu0 0.0
    %5279 = vmatpush1.msra.mxu0 0.0
    %5280 = vmatprep.subr.mxu0 0.0
    %5281 = vmatpush1.msra.mxu0 0.0
    %5282 = vmatprep.subr.mxu0 0.0
    %5283 = vmatpush1.msra.mxu0 0.0
    %5284 = vmatprep.subr.mxu0 0.0
    %5285 = vmatpush1.msra.mxu0 0.0
    %5286 = vmatprep.subr.mxu0 0.0
    %5287 = vmatpush1.msra.mxu0 0.0
    %5288 = vmatprep.subr.mxu0 0.0
    %5289 = vmatpush1.msra.mxu0 0.0
    %5290 = vmatprep.subr.mxu0 0.0
    %5291 = vmatpush1.msra.mxu0 0.0
    %5292 = vmatprep.subr.mxu0 0.0
    %5293 = vmatpush1.msra.mxu0 0.0
    %5294 = vmatprep.subr.mxu0 0.0
    %5295 = vmatpush1.msra.mxu0 0.0
    %5296 = vmatprep.subr.mxu0 0.0
    %5297 = vmatpush1.msra.mxu0 0.0
    %5298 = vmatprep.subr.mxu0 0.0
    %5299 = vmatpush1.msra.mxu0 0.0
    %5300 = vmatprep.subr.mxu0 0.0
    %5301 = vmatpush1.msra.mxu0 0.0
    %5302 = vmatprep.subr.mxu0 0.0
    %5303 = vmatpush1.msra.mxu0 0.0
    %5304 = vmatprep.subr.mxu0 0.0
    %5305 = vmatpush1.msra.mxu0 0.0
    %5306 = vmatprep.subr.mxu0 0.0
    %5307 = vmatpush1.msra.mxu0 0.0
    %5308 = vmatprep.subr.mxu0 0.0
    %5309 = vmatpush1.msra.mxu0 0.0
    %5310 = vmatprep.mubr.f32.mxu0 0.0
    %5311 = vmatmul.mubr.f32.gmra.mrb[0].mxu0 %v5104
    %v5312 = vpop.f32.mrb[0].mxu0
    %v5313 = vadd.f32 %v2341, %v5312
    %v5314 = vpop.f32.mrb[0].mxu0
    %5315 = vdwg.mxu0
    %v5316 = vadd.f32 %v5098, %v5173
    %v5317 = vxor.u32 %v5316, 2147483648
    %v5318 = vmul.f32 %v5317, 1.442695
    %v5319 = vpow.pop %v5318
    %v5320 = vadd.f32 %v5319, 1.0
    %v5321 = vrcp.pop %v5320
    %v5322 = vmul.f32 1.0, %v5321
    %v5323 = vadd.f32 %v5100, %v5243
    %v5324 = vxor.u32 %v5323, 2147483648
    %v5325 = vmul.f32 %v5324, 1.442695
    %v5326 = vpow.pop %v5325
    %v5327 = vadd.f32 %v5326, 1.0
    %v5328 = vrcp.pop %v5327
    %v5329 = vmul.f32 1.0, %v5328
    %v5330 = vmul.f32 %v5322, %v5313
    %v5331 = vadd.f32 %v5102, %v5330
    %v5332 = vtanh.pop %v5331
    %v5333 = vsub.f32 1.0, %v5329
    %v5334 = vmul.f32 %v5333, %v5332
    %v5335 = vmul.f32 %v5329, %v4852
    %v5336 = vadd.f32 %v5334, %v5335
    %s5337 = scalar_lea.vmem [#allocation2], 12
    %5338 = vst.msk [vmem:[%s5337] sm:$0x3] %vm383, %v5096
    %s5339 = scalar_lea.vmem [#allocation3], 2
    %5340 = vst.msk [vmem:[%s5339] sm:$0x3] %vm383, %v5336
    %s5341 = scalar_lea.vmem [#allocation4], 14
    %v5342 = vld [vmem:[%s5341] sm:$0x3]
    %s5343 = scalar_lea.vmem [#allocation5], 14
    %v5344 = vld [vmem:[%s5343] sm:$0x3]
    %s5345 = scalar_lea.vmem [#allocation6], 14
    %v5346 = vld [vmem:[%s5345] sm:$0x3]
    %v5348 = vsel %vm1932, %v5096, 0
    %5350 = vmatprep.subr.mxu0 0.0
    %5351 = vmatpush1.msra.mxu0 %v1885
    %5352 = vmatprep.subr.mxu0 0.0
    %5353 = vmatpush1.msra.mxu0 %v1886
    %5354 = vmatprep.subr.mxu0 0.0
    %5355 = vmatpush1.msra.mxu0 %v1887
    %5356 = vmatprep.subr.mxu0 0.0
    %5357 = vmatpush1.msra.mxu0 %v1888
    %5358 = vmatprep.subr.mxu0 0.0
    %5359 = vmatpush1.msra.mxu0 0.0
    %5360 = vmatprep.subr.mxu0 0.0
    %5361 = vmatpush1.msra.mxu0 0.0
    %5362 = vmatprep.subr.mxu0 0.0
    %5363 = vmatpush1.msra.mxu0 0.0
    %5364 = vmatprep.subr.mxu0 0.0
    %5365 = vmatpush1.msra.mxu0 0.0
    %5366 = vmatprep.subr.mxu0 0.0
    %5367 = vmatpush1.msra.mxu0 0.0
    %5368 = vmatprep.subr.mxu0 0.0
    %5369 = vmatpush1.msra.mxu0 0.0
    %5370 = vmatprep.subr.mxu0 0.0
    %5371 = vmatpush1.msra.mxu0 0.0
    %5372 = vmatprep.subr.mxu0 0.0
    %5373 = vmatpush1.msra.mxu0 0.0
    %5374 = vmatprep.subr.mxu0 0.0
    %5375 = vmatpush1.msra.mxu0 0.0
    %5376 = vmatprep.subr.mxu0 0.0
    %5377 = vmatpush1.msra.mxu0 0.0
    %5378 = vmatprep.subr.mxu0 0.0
    %5379 = vmatpush1.msra.mxu0 0.0
    %5380 = vmatprep.subr.mxu0 0.0
    %5381 = vmatpush1.msra.mxu0 0.0
    %5382 = vmatprep.subr.mxu0 0.0
    %5383 = vmatpush1.msra.mxu0 0.0
    %5384 = vmatprep.subr.mxu0 0.0
    %5385 = vmatpush1.msra.mxu0 0.0
    %5386 = vmatprep.subr.mxu0 0.0
    %5387 = vmatpush1.msra.mxu0 0.0
    %5388 = vmatprep.subr.mxu0 0.0
    %5389 = vmatpush1.msra.mxu0 0.0
    %5390 = vmatprep.subr.mxu0 0.0
    %5391 = vmatpush1.msra.mxu0 0.0
    %5392 = vmatprep.subr.mxu0 0.0
    %5393 = vmatpush1.msra.mxu0 0.0
    %5394 = vmatprep.subr.mxu0 0.0
    %5395 = vmatpush1.msra.mxu0 0.0
    %5396 = vmatprep.subr.mxu0 0.0
    %5397 = vmatpush1.msra.mxu0 0.0
    %5398 = vmatprep.subr.mxu0 0.0
    %5399 = vmatpush1.msra.mxu0 0.0
    %5400 = vmatprep.subr.mxu0 0.0
    %5401 = vmatpush1.msra.mxu0 0.0
    %5402 = vmatprep.subr.mxu0 0.0
    %5403 = vmatpush1.msra.mxu0 0.0
    %5404 = vmatprep.subr.mxu0 0.0
    %5405 = vmatpush1.msra.mxu0 0.0
    %5406 = vmatprep.subr.mxu0 0.0
    %5407 = vmatpush1.msra.mxu0 0.0
    %5408 = vmatprep.subr.mxu0 0.0
    %5409 = vmatpush1.msra.mxu0 0.0
    %5410 = vmatprep.subr.mxu0 0.0
    %5411 = vmatpush1.msra.mxu0 0.0
    %5412 = vmatprep.subr.mxu0 0.0
    %5413 = vmatpush1.msra.mxu0 0.0
    %5414 = vmatprep.mubr.f32.mxu0 0.0
    %5415 = vmatmul.mubr.f32.gmra.mrb[0].mxu0 %v5348
    %v5416 = vpop.f32.mrb[0].mxu0
    %v5417 = vadd.f32 %v1930, %v5416
    %v5418 = vpop.f32.mrb[0].mxu0
    %5419 = vdwg.mxu0
    %5420 = vmatprep.subr.mxu0 0.0
    %5421 = vmatpush1.msra.mxu0 %v1890
    %5422 = vmatprep.subr.mxu0 0.0
    %5423 = vmatpush1.msra.mxu0 %v1891
    %5424 = vmatprep.subr.mxu0 0.0
    %5425 = vmatpush1.msra.mxu0 %v1892
    %5426 = vmatprep.subr.mxu0 0.0
    %5427 = vmatpush1.msra.mxu0 %v1893
    %5428 = vmatprep.subr.mxu0 0.0
    %5429 = vmatpush1.msra.mxu0 0.0
    %5430 = vmatprep.subr.mxu0 0.0
    %5431 = vmatpush1.msra.mxu0 0.0
    %5432 = vmatprep.subr.mxu0 0.0
    %5433 = vmatpush1.msra.mxu0 0.0
    %5434 = vmatprep.subr.mxu0 0.0
    %5435 = vmatpush1.msra.mxu0 0.0
    %5436 = vmatprep.subr.mxu0 0.0
    %5437 = vmatpush1.msra.mxu0 0.0
    %5438 = vmatprep.subr.mxu0 0.0
    %5439 = vmatpush1.msra.mxu0 0.0
    %5440 = vmatprep.subr.mxu0 0.0
    %5441 = vmatpush1.msra.mxu0 0.0
    %5442 = vmatprep.subr.mxu0 0.0
    %5443 = vmatpush1.msra.mxu0 0.0
    %5444 = vmatprep.subr.mxu0 0.0
    %5445 = vmatpush1.msra.mxu0 0.0
    %5446 = vmatprep.subr.mxu0 0.0
    %5447 = vmatpush1.msra.mxu0 0.0
    %5448 = vmatprep.subr.mxu0 0.0
    %5449 = vmatpush1.msra.mxu0 0.0
    %5450 = vmatprep.subr.mxu0 0.0
    %5451 = vmatpush1.msra.mxu0 0.0
    %5452 = vmatprep.subr.mxu0 0.0
    %5453 = vmatpush1.msra.mxu0 0.0
    %5454 = vmatprep.subr.mxu0 0.0
    %5455 = vmatpush1.msra.mxu0 0.0
    %5456 = vmatprep.subr.mxu0 0.0
    %5457 = vmatpush1.msra.mxu0 0.0
    %5458 = vmatprep.subr.mxu0 0.0
    %5459 = vmatpush1.msra.mxu0 0.0
    %5460 = vmatprep.subr.mxu0 0.0
    %5461 = vmatpush1.msra.mxu0 0.0
    %5462 = vmatprep.subr.mxu0 0.0
    %5463 = vmatpush1.msra.mxu0 0.0
    %5464 = vmatprep.subr.mxu0 0.0
    %5465 = vmatpush1.msra.mxu0 0.0
    %5466 = vmatprep.subr.mxu0 0.0
    %5467 = vmatpush1.msra.mxu0 0.0
    %5468 = vmatprep.subr.mxu0 0.0
    %5469 = vmatpush1.msra.mxu0 0.0
    %5470 = vmatprep.subr.mxu0 0.0
    %5471 = vmatpush1.msra.mxu0 0.0
    %5472 = vmatprep.subr.mxu0 0.0
    %5473 = vmatpush1.msra.mxu0 0.0
    %5474 = vmatprep.subr.mxu0 0.0
    %5475 = vmatpush1.msra.mxu0 0.0
    %5476 = vmatprep.subr.mxu0 0.0
    %5477 = vmatpush1.msra.mxu0 0.0
    %5478 = vmatprep.subr.mxu0 0.0
    %5479 = vmatpush1.msra.mxu0 0.0
    %5480 = vmatprep.subr.mxu0 0.0
    %5481 = vmatpush1.msra.mxu0 0.0
    %5482 = vmatprep.subr.mxu0 0.0
    %5483 = vmatpush1.msra.mxu0 0.0
    %5484 = vmatprep.mubr.f32.mxu0 0.0
    %5485 = vmatmul.mubr.f32.gmra.mrb[0].mxu0 %v5348
    %v5486 = vpop.f32.mrb[0].mxu0
    %v5487 = vadd.f32 %v2010, %v5486
    %v5488 = vpop.f32.mrb[0].mxu0
    %5489 = vdwg.mxu0
    %5490 = vmatprep.subr.mxu0 0.0
    %5491 = vmatpush1.msra.mxu0 %v1895
    %5492 = vmatprep.subr.mxu0 0.0
    %5493 = vmatpush1.msra.mxu0 %v1896
    %5494 = vmatprep.subr.mxu0 0.0
    %5495 = vmatpush1.msra.mxu0 %v1897
    %5496 = vmatprep.subr.mxu0 0.0
    %5497 = vmatpush1.msra.mxu0 %v1898
    %5498 = vmatprep.subr.mxu0 0.0
    %5499 = vmatpush1.msra.mxu0 0.0
    %5500 = vmatprep.subr.mxu0 0.0
    %5501 = vmatpush1.msra.mxu0 0.0
    %5502 = vmatprep.subr.mxu0 0.0
    %5503 = vmatpush1.msra.mxu0 0.0
    %5504 = vmatprep.subr.mxu0 0.0
    %5505 = vmatpush1.msra.mxu0 0.0
    %5506 = vmatprep.subr.mxu0 0.0
    %5507 = vmatpush1.msra.mxu0 0.0
    %5508 = vmatprep.subr.mxu0 0.0
    %5509 = vmatpush1.msra.mxu0 0.0
    %5510 = vmatprep.subr.mxu0 0.0
    %5511 = vmatpush1.msra.mxu0 0.0
    %5512 = vmatprep.subr.mxu0 0.0
    %5513 = vmatpush1.msra.mxu0 0.0
    %5514 = vmatprep.subr.mxu0 0.0
    %5515 = vmatpush1.msra.mxu0 0.0
    %5516 = vmatprep.subr.mxu0 0.0
    %5517 = vmatpush1.msra.mxu0 0.0
    %5518 = vmatprep.subr.mxu0 0.0
    %5519 = vmatpush1.msra.mxu0 0.0
    %5520 = vmatprep.subr.mxu0 0.0
    %5521 = vmatpush1.msra.mxu0 0.0
    %5522 = vmatprep.subr.mxu0 0.0
    %5523 = vmatpush1.msra.mxu0 0.0
    %5524 = vmatprep.subr.mxu0 0.0
    %5525 = vmatpush1.msra.mxu0 0.0
    %5526 = vmatprep.subr.mxu0 0.0
    %5527 = vmatpush1.msra.mxu0 0.0
    %5528 = vmatprep.subr.mxu0 0.0
    %5529 = vmatpush1.msra.mxu0 0.0
    %5530 = vmatprep.subr.mxu0 0.0
    %5531 = vmatpush1.msra.mxu0 0.0
    %5532 = vmatprep.subr.mxu0 0.0
    %5533 = vmatpush1.msra.mxu0 0.0
    %5534 = vmatprep.subr.mxu0 0.0
    %5535 = vmatpush1.msra.mxu0 0.0
    %5536 = vmatprep.subr.mxu0 0.0
    %5537 = vmatpush1.msra.mxu0 0.0
    %5538 = vmatprep.subr.mxu0 0.0
    %5539 = vmatpush1.msra.mxu0 0.0
    %5540 = vmatprep.subr.mxu0 0.0
    %5541 = vmatpush1.msra.mxu0 0.0
    %5542 = vmatprep.subr.mxu0 0.0
    %5543 = vmatpush1.msra.mxu0 0.0
    %5544 = vmatprep.subr.mxu0 0.0
    %5545 = vmatpush1.msra.mxu0 0.0
    %5546 = vmatprep.subr.mxu0 0.0
    %5547 = vmatpush1.msra.mxu0 0.0
    %5548 = vmatprep.subr.mxu0 0.0
    %5549 = vmatpush1.msra.mxu0 0.0
    %5550 = vmatprep.subr.mxu0 0.0
    %5551 = vmatpush1.msra.mxu0 0.0
    %5552 = vmatprep.subr.mxu0 0.0
    %5553 = vmatpush1.msra.mxu0 0.0
    %5554 = vmatprep.mubr.f32.mxu0 0.0
    %5555 = vmatmul.mubr.f32.gmra.mrb[0].mxu0 %v5348
    %v5556 = vpop.f32.mrb[0].mxu0
    %v5557 = vadd.f32 %v2086, %v5556
    %v5558 = vpop.f32.mrb[0].mxu0
    %5559 = vdwg.mxu0
    %v5560 = vadd.f32 %v5342, %v5417
    %v5561 = vxor.u32 %v5560, 2147483648
    %v5562 = vmul.f32 %v5561, 1.442695
    %v5563 = vpow.pop %v5562
    %v5564 = vadd.f32 %v5563, 1.0
    %v5565 = vrcp.pop %v5564
    %v5566 = vmul.f32 1.0, %v5565
    %v5567 = vadd.f32 %v5344, %v5487
    %v5568 = vxor.u32 %v5567, 2147483648
    %v5569 = vmul.f32 %v5568, 1.442695
    %v5570 = vpow.pop %v5569
    %v5571 = vadd.f32 %v5570, 1.0
    %v5572 = vrcp.pop %v5571
    %v5573 = vmul.f32 1.0, %v5572
    %v5574 = vmul.f32 %v5566, %v5557
    %v5575 = vadd.f32 %v5346, %v5574
    %v5576 = vtanh.pop %v5575
    %v5577 = vsub.f32 1.0, %v5573
    %v5578 = vmul.f32 %v5577, %v5576
    %v5579 = vmul.f32 %v5573, %v5096
    %v5580 = vadd.f32 %v5578, %v5579
    %v5581 = vld [vmem:[#allocation7] sm:$0x3]
    %v5582 = vld [vmem:[#allocation8] sm:$0x3]
    %v5583 = vld [vmem:[#allocation9] sm:$0x3]
    %v5585 = vsel %vm1932, %v5336, 0
    %5587 = vmatprep.subr.mxu0 0.0
    %5588 = vmatpush1.msra.mxu0 %v1904
    %5589 = vmatprep.subr.mxu0 0.0
    %5590 = vmatpush1.msra.mxu0 %v1905
    %5591 = vmatprep.subr.mxu0 0.0
    %5592 = vmatpush1.msra.mxu0 %v1906
    %5593 = vmatprep.subr.mxu0 0.0
    %5594 = vmatpush1.msra.mxu0 %v1907
    %5595 = vmatprep.subr.mxu0 0.0
    %5596 = vmatpush1.msra.mxu0 0.0
    %5597 = vmatprep.subr.mxu0 0.0
    %5598 = vmatpush1.msra.mxu0 0.0
    %5599 = vmatprep.subr.mxu0 0.0
    %5600 = vmatpush1.msra.mxu0 0.0
    %5601 = vmatprep.subr.mxu0 0.0
    %5602 = vmatpush1.msra.mxu0 0.0
    %5603 = vmatprep.subr.mxu0 0.0
    %5604 = vmatpush1.msra.mxu0 0.0
    %5605 = vmatprep.subr.mxu0 0.0
    %5606 = vmatpush1.msra.mxu0 0.0
    %5607 = vmatprep.subr.mxu0 0.0
    %5608 = vmatpush1.msra.mxu0 0.0
    %5609 = vmatprep.subr.mxu0 0.0
    %5610 = vmatpush1.msra.mxu0 0.0
    %5611 = vmatprep.subr.mxu0 0.0
    %5612 = vmatpush1.msra.mxu0 0.0
    %5613 = vmatprep.subr.mxu0 0.0
    %5614 = vmatpush1.msra.mxu0 0.0
    %5615 = vmatprep.subr.mxu0 0.0
    %5616 = vmatpush1.msra.mxu0 0.0
    %5617 = vmatprep.subr.mxu0 0.0
    %5618 = vmatpush1.msra.mxu0 0.0
    %5619 = vmatprep.subr.mxu0 0.0
    %5620 = vmatpush1.msra.mxu0 0.0
    %5621 = vmatprep.subr.mxu0 0.0
    %5622 = vmatpush1.msra.mxu0 0.0
    %5623 = vmatprep.subr.mxu0 0.0
    %5624 = vmatpush1.msra.mxu0 0.0
    %5625 = vmatprep.subr.mxu0 0.0
    %5626 = vmatpush1.msra.mxu0 0.0
    %5627 = vmatprep.subr.mxu0 0.0
    %5628 = vmatpush1.msra.mxu0 0.0
    %5629 = vmatprep.subr.mxu0 0.0
    %5630 = vmatpush1.msra.mxu0 0.0
    %5631 = vmatprep.subr.mxu0 0.0
    %5632 = vmatpush1.msra.mxu0 0.0
    %5633 = vmatprep.subr.mxu0 0.0
    %5634 = vmatpush1.msra.mxu0 0.0
    %5635 = vmatprep.subr.mxu0 0.0
    %5636 = vmatpush1.msra.mxu0 0.0
    %5637 = vmatprep.subr.mxu0 0.0
    %5638 = vmatpush1.msra.mxu0 0.0
    %5639 = vmatprep.subr.mxu0 0.0
    %5640 = vmatpush1.msra.mxu0 0.0
    %5641 = vmatprep.subr.mxu0 0.0
    %5642 = vmatpush1.msra.mxu0 0.0
    %5643 = vmatprep.subr.mxu0 0.0
    %5644 = vmatpush1.msra.mxu0 0.0
    %5645 = vmatprep.subr.mxu0 0.0
    %5646 = vmatpush1.msra.mxu0 0.0
    %5647 = vmatprep.subr.mxu0 0.0
    %5648 = vmatpush1.msra.mxu0 0.0
    %5649 = vmatprep.subr.mxu0 0.0
    %5650 = vmatpush1.msra.mxu0 0.0
    %5651 = vmatprep.mubr.f32.mxu0 0.0
    %5652 = vmatmul.mubr.f32.gmra.mrb[0].mxu0 %v5585
    %v5653 = vpop.f32.mrb[0].mxu0
    %v5654 = vadd.f32 %v2189, %v5653
    %v5655 = vpop.f32.mrb[0].mxu0
    %5656 = vdwg.mxu0
    %5657 = vmatprep.subr.mxu0 0.0
    %5658 = vmatpush1.msra.mxu0 %v1909
    %5659 = vmatprep.subr.mxu0 0.0
    %5660 = vmatpush1.msra.mxu0 %v1910
    %5661 = vmatprep.subr.mxu0 0.0
    %5662 = vmatpush1.msra.mxu0 %v1911
    %5663 = vmatprep.subr.mxu0 0.0
    %5664 = vmatpush1.msra.mxu0 %v1912
    %5665 = vmatprep.subr.mxu0 0.0
    %5666 = vmatpush1.msra.mxu0 0.0
    %5667 = vmatprep.subr.mxu0 0.0
    %5668 = vmatpush1.msra.mxu0 0.0
    %5669 = vmatprep.subr.mxu0 0.0
    %5670 = vmatpush1.msra.mxu0 0.0
    %5671 = vmatprep.subr.mxu0 0.0
    %5672 = vmatpush1.msra.mxu0 0.0
    %5673 = vmatprep.subr.mxu0 0.0
    %5674 = vmatpush1.msra.mxu0 0.0
    %5675 = vmatprep.subr.mxu0 0.0
    %5676 = vmatpush1.msra.mxu0 0.0
    %5677 = vmatprep.subr.mxu0 0.0
    %5678 = vmatpush1.msra.mxu0 0.0
    %5679 = vmatprep.subr.mxu0 0.0
    %5680 = vmatpush1.msra.mxu0 0.0
    %5681 = vmatprep.subr.mxu0 0.0
    %5682 = vmatpush1.msra.mxu0 0.0
    %5683 = vmatprep.subr.mxu0 0.0
    %5684 = vmatpush1.msra.mxu0 0.0
    %5685 = vmatprep.subr.mxu0 0.0
    %5686 = vmatpush1.msra.mxu0 0.0
    %5687 = vmatprep.subr.mxu0 0.0
    %5688 = vmatpush1.msra.mxu0 0.0
    %5689 = vmatprep.subr.mxu0 0.0
    %5690 = vmatpush1.msra.mxu0 0.0
    %5691 = vmatprep.subr.mxu0 0.0
    %5692 = vmatpush1.msra.mxu0 0.0
    %5693 = vmatprep.subr.mxu0 0.0
    %5694 = vmatpush1.msra.mxu0 0.0
    %5695 = vmatprep.subr.mxu0 0.0
    %5696 = vmatpush1.msra.mxu0 0.0
    %5697 = vmatprep.subr.mxu0 0.0
    %5698 = vmatpush1.msra.mxu0 0.0
    %5699 = vmatprep.subr.mxu0 0.0
    %5700 = vmatpush1.msra.mxu0 0.0
    %5701 = vmatprep.subr.mxu0 0.0
    %5702 = vmatpush1.msra.mxu0 0.0
    %5703 = vmatprep.subr.mxu0 0.0
    %5704 = vmatpush1.msra.mxu0 0.0
    %5705 = vmatprep.subr.mxu0 0.0
    %5706 = vmatpush1.msra.mxu0 0.0
    %5707 = vmatprep.subr.mxu0 0.0
    %5708 = vmatpush1.msra.mxu0 0.0
    %5709 = vmatprep.subr.mxu0 0.0
    %5710 = vmatpush1.msra.mxu0 0.0
    %5711 = vmatprep.subr.mxu0 0.0
    %5712 = vmatpush1.msra.mxu0 0.0
    %5713 = vmatprep.subr.mxu0 0.0
    %5714 = vmatpush1.msra.mxu0 0.0
    %5715 = vmatprep.subr.mxu0 0.0
    %5716 = vmatpush1.msra.mxu0 0.0
    %5717 = vmatprep.subr.mxu0 0.0
    %5718 = vmatpush1.msra.mxu0 0.0
    %5719 = vmatprep.subr.mxu0 0.0
    %5720 = vmatpush1.msra.mxu0 0.0
    %5721 = vmatprep.mubr.f32.mxu0 0.0
    %5722 = vmatmul.mubr.f32.gmra.mrb[0].mxu0 %v5585
    %v5723 = vpop.f32.mrb[0].mxu0
    %v5724 = vadd.f32 %v2265, %v5723
    %v5725 = vpop.f32.mrb[0].mxu0
    %5726 = vdwg.mxu0
    %5727 = vmatprep.subr.mxu0 0.0
    %5728 = vmatpush1.msra.mxu0 %v1914
    %5729 = vmatprep.subr.mxu0 0.0
    %5730 = vmatpush1.msra.mxu0 %v1915
    %5731 = vmatprep.subr.mxu0 0.0
    %5732 = vmatpush1.msra.mxu0 %v1916
    %5733 = vmatprep.subr.mxu0 0.0
    %5734 = vmatpush1.msra.mxu0 %v1917
    %5735 = vmatprep.subr.mxu0 0.0
    %5736 = vmatpush1.msra.mxu0 0.0
    %5737 = vmatprep.subr.mxu0 0.0
    %5738 = vmatpush1.msra.mxu0 0.0
    %5739 = vmatprep.subr.mxu0 0.0
    %5740 = vmatpush1.msra.mxu0 0.0
    %5741 = vmatprep.subr.mxu0 0.0
    %5742 = vmatpush1.msra.mxu0 0.0
    %5743 = vmatprep.subr.mxu0 0.0
    %5744 = vmatpush1.msra.mxu0 0.0
    %5745 = vmatprep.subr.mxu0 0.0
    %5746 = vmatpush1.msra.mxu0 0.0
    %5747 = vmatprep.subr.mxu0 0.0
    %5748 = vmatpush1.msra.mxu0 0.0
    %5749 = vmatprep.subr.mxu0 0.0
    %5750 = vmatpush1.msra.mxu0 0.0
    %5751 = vmatprep.subr.mxu0 0.0
    %5752 = vmatpush1.msra.mxu0 0.0
    %5753 = vmatprep.subr.mxu0 0.0
    %5754 = vmatpush1.msra.mxu0 0.0
    %5755 = vmatprep.subr.mxu0 0.0
    %5756 = vmatpush1.msra.mxu0 0.0
    %5757 = vmatprep.subr.mxu0 0.0
    %5758 = vmatpush1.msra.mxu0 0.0
    %5759 = vmatprep.subr.mxu0 0.0
    %5760 = vmatpush1.msra.mxu0 0.0
    %5761 = vmatprep.subr.mxu0 0.0
    %5762 = vmatpush1.msra.mxu0 0.0
    %5763 = vmatprep.subr.mxu0 0.0
    %5764 = vmatpush1.msra.mxu0 0.0
    %5765 = vmatprep.subr.mxu0 0.0
    %5766 = vmatpush1.msra.mxu0 0.0
    %5767 = vmatprep.subr.mxu0 0.0
    %5768 = vmatpush1.msra.mxu0 0.0
    %5769 = vmatprep.subr.mxu0 0.0
    %5770 = vmatpush1.msra.mxu0 0.0
    %5771 = vmatprep.subr.mxu0 0.0
    %5772 = vmatpush1.msra.mxu0 0.0
    %5773 = vmatprep.subr.mxu0 0.0
    %5774 = vmatpush1.msra.mxu0 0.0
    %5775 = vmatprep.subr.mxu0 0.0
    %5776 = vmatpush1.msra.mxu0 0.0
    %5777 = vmatprep.subr.mxu0 0.0
    %5778 = vmatpush1.msra.mxu0 0.0
    %5779 = vmatprep.subr.mxu0 0.0
    %5780 = vmatpush1.msra.mxu0 0.0
    %5781 = vmatprep.subr.mxu0 0.0
    %5782 = vmatpush1.msra.mxu0 0.0
    %5783 = vmatprep.subr.mxu0 0.0
    %5784 = vmatpush1.msra.mxu0 0.0
    %5785 = vmatprep.subr.mxu0 0.0
    %5786 = vmatpush1.msra.mxu0 0.0
    %5787 = vmatprep.subr.mxu0 0.0
    %5788 = vmatpush1.msra.mxu0 0.0
    %5789 = vmatprep.subr.mxu0 0.0
    %5790 = vmatpush1.msra.mxu0 0.0
    %5791 = vmatprep.mubr.f32.mxu0 0.0
    %5792 = vmatmul.mubr.f32.gmra.mrb[0].mxu0 %v5585
    %v5793 = vpop.f32.mrb[0].mxu0
    %v5794 = vadd.f32 %v2341, %v5793
    %v5795 = vpop.f32.mrb[0].mxu0
    %5796 = vdwg.mxu0
    %v5797 = vadd.f32 %v5581, %v5654
    %v5798 = vxor.u32 %v5797, 2147483648
    %v5799 = vmul.f32 %v5798, 1.442695
    %v5800 = vpow.pop %v5799
    %v5801 = vadd.f32 %v5800, 1.0
    %v5802 = vrcp.pop %v5801
    %v5803 = vmul.f32 1.0, %v5802
    %v5804 = vadd.f32 %v5582, %v5724
    %v5805 = vxor.u32 %v5804, 2147483648
    %v5806 = vmul.f32 %v5805, 1.442695
    %v5807 = vpow.pop %v5806
    %v5808 = vadd.f32 %v5807, 1.0
    %v5809 = vrcp.pop %v5808
    %v5810 = vmul.f32 1.0, %v5809
    %v5811 = vmul.f32 %v5803, %v5794
    %v5812 = vadd.f32 %v5583, %v5811
    %v5813 = vtanh.pop %v5812
    %v5814 = vsub.f32 1.0, %v5810
    %v5815 = vmul.f32 %v5814, %v5813
    %v5816 = vmul.f32 %v5810, %v5336
    %v5817 = vadd.f32 %v5815, %v5816
    %s5818 = scalar_lea.vmem [#allocation2], 14
    %5819 = vst.msk [vmem:[%s5818] sm:$0x3] %vm383, %v5580
    %5820 = vst.msk [vmem:[#allocation3] sm:$0x3] %vm383, %v5817
    %v5821 = vld [vmem:[#allocation2] sm:$0x3]
    %v5822 = vld [vmem:[#allocation2 + $0x2] sm:$0x3]
    %v5823 = vld [vmem:[#allocation2 + $0x4] sm:$0x3]
    %v5824 = vld [vmem:[#allocation2 + $0x6] sm:$0x3]
    %v5825 = vld [vmem:[#allocation2 + $0x8] sm:$0x3]
    %v5826 = vld [vmem:[#allocation2 + $0xa] sm:$0x3]
    %v5827 = vld [vmem:[#allocation2 + $0xc] sm:$0x3]
    %v5828 = vld [vmem:[#allocation2 + $0xe] sm:$0x3]
    %v5837 = vcombine.low %v5821, %v5822
    %v5838 = vcombine.low %v5823, %v5824
    %v5840 = vunpack.c.l.s4 1983009808
    %v5841 = vunpack.c.0.s8 %v5840
    %v5842 = vlaneseq
    %v5843 = vshrl.u32 %v5842, 7
    %v5844 = vsub.s32 %v5841, %v5843
    %v5845 = vrot.slane %v5837, %v5844
    %v5847 = vunpack.c.l.s4 1983009808
    %v5848 = vunpack.c.0.s8 %v5847
    %v5849 = vlaneseq
    %v5850 = vshrl.u32 %v5849, 7
    %v5851 = vsub.s32 %v5848, %v5850
    %v5852 = vrot.slane %v5838, %v5851
    %v5853 = vcombine.low %v5845, %v5852
    %v5854 = vcombine.low %v5825, %v5826
    %v5855 = vcombine.low %v5827, %v5828
    %v5857 = vunpack.c.l.s4 1983009808
    %v5858 = vunpack.c.0.s8 %v5857
    %v5859 = vlaneseq
    %v5860 = vshrl.u32 %v5859, 7
    %v5861 = vsub.s32 %v5858, %v5860
    %v5862 = vrot.slane %v5854, %v5861
    %v5864 = vunpack.c.l.s4 1983009808
    %v5865 = vunpack.c.0.s8 %v5864
    %v5866 = vlaneseq
    %v5867 = vshrl.u32 %v5866, 7
    %v5868 = vsub.s32 %v5865, %v5867
    %v5869 = vrot.slane %v5855, %v5868
    %v5870 = vcombine.low %v5862, %v5869
    %v5873 = vpack.c.bf16 %v5870, %v5853
    %v5874 = vld [vmem:[#allocation3] sm:$0x3]
    %v5875 = vld [vmem:[#allocation3 + $0x2] sm:$0x3]
    %v5876 = vld [vmem:[#allocation3 + $0x4] sm:$0x3]
    %v5877 = vld [vmem:[#allocation3 + $0x6] sm:$0x3]
    %v5878 = vld [vmem:[#allocation3 + $0x8] sm:$0x3]
    %v5879 = vld [vmem:[#allocation3 + $0xa] sm:$0x3]
    %v5880 = vld [vmem:[#allocation3 + $0xc] sm:$0x3]
    %v5881 = vld [vmem:[#allocation3 + $0xe] sm:$0x3]
    %v5890 = vcombine.low %v5874, %v5875
    %v5891 = vcombine.low %v5876, %v5877
    %v5893 = vunpack.c.l.s4 1983009808
    %v5894 = vunpack.c.0.s8 %v5893
    %v5895 = vlaneseq
    %v5896 = vshrl.u32 %v5895, 7
    %v5897 = vsub.s32 %v5894, %v5896
    %v5898 = vrot.slane %v5890, %v5897
    %v5900 = vunpack.c.l.s4 1983009808
    %v5901 = vunpack.c.0.s8 %v5900
    %v5902 = vlaneseq
    %v5903 = vshrl.u32 %v5902, 7
    %v5904 = vsub.s32 %v5901, %v5903
    %v5905 = vrot.slane %v5891, %v5904
    %v5906 = vcombine.low %v5898, %v5905
    %v5907 = vcombine.low %v5878, %v5879
    %v5908 = vcombine.low %v5880, %v5881
    %v5910 = vunpack.c.l.s4 1983009808
    %v5911 = vunpack.c.0.s8 %v5910
    %v5912 = vlaneseq
    %v5913 = vshrl.u32 %v5912, 7
    %v5914 = vsub.s32 %v5911, %v5913
    %v5915 = vrot.slane %v5907, %v5914
    %v5917 = vunpack.c.l.s4 1983009808
    %v5918 = vunpack.c.0.s8 %v5917
    %v5919 = vlaneseq
    %v5920 = vshrl.u32 %v5919, 7
    %v5921 = vsub.s32 %v5918, %v5920
    %v5922 = vrot.slane %v5908, %v5921
    %v5923 = vcombine.low %v5915, %v5922
    %v5926 = vpack.c.bf16 %v5923, %v5906
    %v5927 = vld [vmem:[%s5818] sm:$0x3]
    %v5928 = vpack.c.bf16 %v5927, %v5927
    %v5929 = vld [vmem:[%s2435] sm:$0x3]
    %v5930 = vpack.c.bf16 %v5929, %v5929
    %v5931 = vld [vmem:[%s9] sm:$0xf]
    %v5932 = vld [vmem:[%s9 + $0x4] sm:$0xf]
    %v5933 = vld [vmem:[%s9 + $0x8] sm:$0xf]
    %v5934 = vld [vmem:[%s9 + $0xc] sm:$0xf]
    %v5935 = vld [vmem:[%s9 + $0x10] sm:$0xf]
    %v5936 = vld [vmem:[%s9 + $0x14] sm:$0xf]
    %v5937 = vld [vmem:[%s9 + $0x18] sm:$0xf]
    %v5938 = vld [vmem:[%s9 + $0x1c] sm:$0xf]
    %v5939 = vld [vmem:[%s11] sm:$0x1]
    %v5944 = vunpack.c.l.b16 %v5931
    %v5945 = vunpack.c.l.b16 %v5932
    %v5946 = vunpack.c.l.b16 %v5933
    %v5947 = vunpack.c.l.b16 %v5934
    %v5948 = vpack.c.b16 %v5945, %v5944
    %v5949 = vpack.c.b16 %v5947, %v5946
    %v5953 = vsel %vm1932, %v5873, 0
    %5955 = vmatprep.subr.bf16.mxu0 0
    %5956 = vmatpush1.bf16.msra.mxu0 %v5948
    %5957 = vmatprep.subr.bf16.mxu0 0
    %5958 = vmatpush1.bf16.msra.mxu0 %v5949
    %5959 = vmatprep.subr.bf16.mxu0 0
    %5960 = vmatpush1.bf16.msra.mxu0 0
    %5961 = vmatprep.subr.bf16.mxu0 0
    %5962 = vmatpush1.bf16.msra.mxu0 0
    %5963 = vmatprep.subr.bf16.mxu0 0
    %5964 = vmatpush1.bf16.msra.mxu0 0
    %5965 = vmatprep.subr.bf16.mxu0 0
    %5966 = vmatpush1.bf16.msra.mxu0 0
    %5967 = vmatprep.subr.bf16.mxu0 0
    %5968 = vmatpush1.bf16.msra.mxu0 0
    %5969 = vmatprep.subr.bf16.mxu0 0
    %5970 = vmatpush1.bf16.msra.mxu0 0
    %5971 = vmatprep.subr.bf16.mxu0 0
    %5972 = vmatpush1.bf16.msra.mxu0 0
    %5973 = vmatprep.subr.bf16.mxu0 0
    %5974 = vmatpush1.bf16.msra.mxu0 0
    %5975 = vmatprep.subr.bf16.mxu0 0
    %5976 = vmatpush1.bf16.msra.mxu0 0
    %5977 = vmatprep.subr.bf16.mxu0 0
    %5978 = vmatpush1.bf16.msra.mxu0 0
    %5979 = vmatprep.subr.bf16.mxu0 0
    %5980 = vmatpush1.bf16.msra.mxu0 0
    %5981 = vmatprep.subr.bf16.mxu0 0
    %5982 = vmatpush1.bf16.msra.mxu0 0
    %5983 = vmatprep.subr.bf16.mxu0 0
    %5984 = vmatpush1.bf16.msra.mxu0 0
    %5985 = vmatprep.subr.bf16.mxu0 0
    %5986 = vmatpush1.bf16.msra.mxu0 0
    %5987 = vmatprep.mubr.bf16.mxu0 0
    %5988 = vmatmul.mubr.bf16.gmra.mrb[0].mxu0 %v5953
    %v5989 = vpop.f32.mrb[0].mxu0
    %v5990 = vadd.f32 0.0, %v5989
    %v5991 = vpop.f32.mrb[0].mxu0
    %v5992 = vpop.f32.mrb[0].mxu0
    %v5993 = vadd.f32 0.0, %v5992
    %v5994 = vpop.f32.mrb[0].mxu0
    %5995 = vdwg.mxu0
    %v5997 = vlaneseq
    %v5998 = vshrl.u32 %v5997, 7
    %v5999 = vsub.s32 0, %v5998
    %v6000 = vrot.slane %v5939, %v5999
    %v6002 = vadd.f32 %v6000, %v5990
    %v6003 = vadd.f32 %v6000, %v5993
    %v6008 = vunpack.c.l.b16 %v5935
    %v6009 = vunpack.c.l.b16 %v5936
    %v6010 = vunpack.c.l.b16 %v5937
    %v6011 = vunpack.c.l.b16 %v5938
    %v6012 = vpack.c.b16 %v6009, %v6008
    %v6013 = vpack.c.b16 %v6011, %v6010
    %v6017 = vsel %vm1932, %v5926, 0
    %6019 = vmatprep.subr.bf16.mxu0 0
    %6020 = vmatpush1.bf16.msra.mxu0 %v6012
    %6021 = vmatprep.subr.bf16.mxu0 0
    %6022 = vmatpush1.bf16.msra.mxu0 %v6013
    %6023 = vmatprep.subr.bf16.mxu0 0
    %6024 = vmatpush1.bf16.msra.mxu0 0
    %6025 = vmatprep.subr.bf16.mxu0 0
    %6026 = vmatpush1.bf16.msra.mxu0 0
    %6027 = vmatprep.subr.bf16.mxu0 0
    %6028 = vmatpush1.bf16.msra.mxu0 0
    %6029 = vmatprep.subr.bf16.mxu0 0
    %6030 = vmatpush1.bf16.msra.mxu0 0
    %6031 = vmatprep.subr.bf16.mxu0 0
    %6032 = vmatpush1.bf16.msra.mxu0 0
    %6033 = vmatprep.subr.bf16.mxu0 0
    %6034 = vmatpush1.bf16.msra.mxu0 0
    %6035 = vmatprep.subr.bf16.mxu0 0
    %6036 = vmatpush1.bf16.msra.mxu0 0
    %6037 = vmatprep.subr.bf16.mxu0 0
    %6038 = vmatpush1.bf16.msra.mxu0 0
    %6039 = vmatprep.subr.bf16.mxu0 0
    %6040 = vmatpush1.bf16.msra.mxu0 0
    %6041 = vmatprep.subr.bf16.mxu0 0
    %6042 = vmatpush1.bf16.msra.mxu0 0
    %6043 = vmatprep.subr.bf16.mxu0 0
    %6044 = vmatpush1.bf16.msra.mxu0 0
    %6045 = vmatprep.subr.bf16.mxu0 0
    %6046 = vmatpush1.bf16.msra.mxu0 0
    %6047 = vmatprep.subr.bf16.mxu0 0
    %6048 = vmatpush1.bf16.msra.mxu0 0
    %6049 = vmatprep.subr.bf16.mxu0 0
    %6050 = vmatpush1.bf16.msra.mxu0 0
    %6051 = vmatprep.mubr.bf16.mxu0 0
    %6052 = vmatmul.mubr.bf16.gmra.mrb[0].mxu0 %v6017
    %v6053 = vpop.f32.mrb[0].mxu0
    %v6054 = vadd.f32 0.0, %v6053
    %v6055 = vpop.f32.mrb[0].mxu0
    %v6056 = vpop.f32.mrb[0].mxu0
    %v6057 = vadd.f32 0.0, %v6056
    %v6058 = vpop.f32.mrb[0].mxu0
    %6059 = vdwg.mxu0
    %v6060 = vadd.f32 %v6002, %v6054
    %v6061 = vadd.f32 %v6003, %v6057
    %v6064 = vcombine.high %v6060, %v6060
    %v6066 = vunpack.c.l.s4 1983009808
    %v6067 = vunpack.c.0.s8 %v6066
    %v6068 = vlaneseq
    %v6069 = vshrl.u32 %v6068, 7
    %v6070 = vsub.s32 %v6067, %v6069
    %v6071 = vrot.slane %v6060, %v6070
    %v6073 = vunpack.c.l.s4 1983009808
    %v6074 = vunpack.c.0.s8 %v6073
    %v6075 = vlaneseq
    %v6076 = vshrl.u32 %v6075, 7
    %v6077 = vsub.s32 %v6074, %v6076
    %v6078 = vrot.slane %v6064, %v6077
    %v6079 = vcombine.high %v6071, %v6071
    %v6080 = vcombine.high %v6078, %v6078
    %v6081 = vcombine.high %v6061, %v6061
    %v6083 = vunpack.c.l.s4 1983009808
    %v6084 = vunpack.c.0.s8 %v6083
    %v6085 = vlaneseq
    %v6086 = vshrl.u32 %v6085, 7
    %v6087 = vsub.s32 %v6084, %v6086
    %v6088 = vrot.slane %v6061, %v6087
    %v6090 = vunpack.c.l.s4 1983009808
    %v6091 = vunpack.c.0.s8 %v6090
    %v6092 = vlaneseq
    %v6093 = vshrl.u32 %v6092, 7
    %v6094 = vsub.s32 %v6091, %v6093
    %v6095 = vrot.slane %v6081, %v6094
    %v6096 = vcombine.high %v6088, %v6088
    %v6097 = vcombine.high %v6095, %v6095
    %6106 = vst.msk [vmem:[#allocation4] sm:$0x3] %vm383, %v6071
    %6107 = vst.msk [vmem:[#allocation4 + $0x2] sm:$0x3] %vm383, %v6079
    %6108 = vst.msk [vmem:[#allocation4 + $0x4] sm:$0x3] %vm383, %v6078
    %6109 = vst.msk [vmem:[#allocation4 + $0x6] sm:$0x3] %vm383, %v6080
    %6110 = vst.msk [vmem:[#allocation4 + $0x8] sm:$0x3] %vm383, %v6088
    %6111 = vst.msk [vmem:[#allocation4 + $0xa] sm:$0x3] %vm383, %v6096
    %6112 = vst.msk [vmem:[#allocation4 + $0xc] sm:$0x3] %vm383, %v6095
    %6113 = vst.msk [vmem:[#allocation4 + $0xe] sm:$0x3] %vm383, %v6097
    %s6114 = scalar_lea.vmem %s9, 32
    %v6115 = vld [vmem:[%s6114] sm:$0xf]
    %v6116 = vld [vmem:[%s6114 + $0x4] sm:$0xf]
    %v6117 = vld [vmem:[%s6114 + $0x8] sm:$0xf]
    %v6118 = vld [vmem:[%s6114 + $0xc] sm:$0xf]
    %v6119 = vld [vmem:[%s6114 + $0x10] sm:$0xf]
    %v6120 = vld [vmem:[%s6114 + $0x14] sm:$0xf]
    %v6121 = vld [vmem:[%s6114 + $0x18] sm:$0xf]
    %v6122 = vld [vmem:[%s6114 + $0x1c] sm:$0xf]
    %s6123 = scalar_lea.vmem %s11, 1
    %v6124 = vld [vmem:[%s6123] sm:$0x1]
    %v6129 = vunpack.c.l.b16 %v6115
    %v6130 = vunpack.c.l.b16 %v6116
    %v6131 = vunpack.c.l.b16 %v6117
    %v6132 = vunpack.c.l.b16 %v6118
    %v6133 = vpack.c.b16 %v6130, %v6129
    %v6134 = vpack.c.b16 %v6132, %v6131
    %6137 = vmatprep.subr.bf16.mxu0 0
    %6138 = vmatpush1.bf16.msra.mxu0 %v6133
    %6139 = vmatprep.subr.bf16.mxu0 0
    %6140 = vmatpush1.bf16.msra.mxu0 %v6134
    %6141 = vmatprep.subr.bf16.mxu0 0
    %6142 = vmatpush1.bf16.msra.mxu0 0
    %6143 = vmatprep.subr.bf16.mxu0 0
    %6144 = vmatpush1.bf16.msra.mxu0 0
    %6145 = vmatprep.subr.bf16.mxu0 0
    %6146 = vmatpush1.bf16.msra.mxu0 0
    %6147 = vmatprep.subr.bf16.mxu0 0
    %6148 = vmatpush1.bf16.msra.mxu0 0
    %6149 = vmatprep.subr.bf16.mxu0 0
    %6150 = vmatpush1.bf16.msra.mxu0 0
    %6151 = vmatprep.subr.bf16.mxu0 0
    %6152 = vmatpush1.bf16.msra.mxu0 0
    %6153 = vmatprep.subr.bf16.mxu0 0
    %6154 = vmatpush1.bf16.msra.mxu0 0
    %6155 = vmatprep.subr.bf16.mxu0 0
    %6156 = vmatpush1.bf16.msra.mxu0 0
    %6157 = vmatprep.subr.bf16.mxu0 0
    %6158 = vmatpush1.bf16.msra.mxu0 0
    %6159 = vmatprep.subr.bf16.mxu0 0
    %6160 = vmatpush1.bf16.msra.mxu0 0
    %6161 = vmatprep.subr.bf16.mxu0 0
    %6162 = vmatpush1.bf16.msra.mxu0 0
    %6163 = vmatprep.subr.bf16.mxu0 0
    %6164 = vmatpush1.bf16.msra.mxu0 0
    %6165 = vmatprep.subr.bf16.mxu0 0
    %6166 = vmatpush1.bf16.msra.mxu0 0
    %6167 = vmatprep.subr.bf16.mxu0 0
    %6168 = vmatpush1.bf16.msra.mxu0 0
    %6169 = vmatprep.mubr.bf16.mxu0 0
    %6170 = vmatmul.mubr.bf16.gmra.mrb[0].mxu0 %v5953
    %v6171 = vpop.f32.mrb[0].mxu0
    %v6172 = vadd.f32 0.0, %v6171
    %v6173 = vpop.f32.mrb[0].mxu0
    %v6174 = vpop.f32.mrb[0].mxu0
    %v6175 = vadd.f32 0.0, %v6174
    %v6176 = vpop.f32.mrb[0].mxu0
    %6177 = vdwg.mxu0
    %v6179 = vlaneseq
    %v6180 = vshrl.u32 %v6179, 7
    %v6181 = vsub.s32 0, %v6180
    %v6182 = vrot.slane %v6124, %v6181
    %v6184 = vadd.f32 %v6182, %v6172
    %v6185 = vadd.f32 %v6182, %v6175
    %v6190 = vunpack.c.l.b16 %v6119
    %v6191 = vunpack.c.l.b16 %v6120
    %v6192 = vunpack.c.l.b16 %v6121
    %v6193 = vunpack.c.l.b16 %v6122
    %v6194 = vpack.c.b16 %v6191, %v6190
    %v6195 = vpack.c.b16 %v6193, %v6192
    %6198 = vmatprep.subr.bf16.mxu0 0
    %6199 = vmatpush1.bf16.msra.mxu0 %v6194
    %6200 = vmatprep.subr.bf16.mxu0 0
    %6201 = vmatpush1.bf16.msra.mxu0 %v6195
    %6202 = vmatprep.subr.bf16.mxu0 0
    %6203 = vmatpush1.bf16.msra.mxu0 0
    %6204 = vmatprep.subr.bf16.mxu0 0
    %6205 = vmatpush1.bf16.msra.mxu0 0
    %6206 = vmatprep.subr.bf16.mxu0 0
    %6207 = vmatpush1.bf16.msra.mxu0 0
    %6208 = vmatprep.subr.bf16.mxu0 0
    %6209 = vmatpush1.bf16.msra.mxu0 0
    %6210 = vmatprep.subr.bf16.mxu0 0
    %6211 = vmatpush1.bf16.msra.mxu0 0
    %6212 = vmatprep.subr.bf16.mxu0 0
    %6213 = vmatpush1.bf16.msra.mxu0 0
    %6214 = vmatprep.subr.bf16.mxu0 0
    %6215 = vmatpush1.bf16.msra.mxu0 0
    %6216 = vmatprep.subr.bf16.mxu0 0
    %6217 = vmatpush1.bf16.msra.mxu0 0
    %6218 = vmatprep.subr.bf16.mxu0 0
    %6219 = vmatpush1.bf16.msra.mxu0 0
    %6220 = vmatprep.subr.bf16.mxu0 0
    %6221 = vmatpush1.bf16.msra.mxu0 0
    %6222 = vmatprep.subr.bf16.mxu0 0
    %6223 = vmatpush1.bf16.msra.mxu0 0
    %6224 = vmatprep.subr.bf16.mxu0 0
    %6225 = vmatpush1.bf16.msra.mxu0 0
    %6226 = vmatprep.subr.bf16.mxu0 0
    %6227 = vmatpush1.bf16.msra.mxu0 0
    %6228 = vmatprep.subr.bf16.mxu0 0
    %6229 = vmatpush1.bf16.msra.mxu0 0
    %6230 = vmatprep.mubr.bf16.mxu0 0
    %6231 = vmatmul.mubr.bf16.gmra.mrb[0].mxu0 %v6017
    %v6232 = vpop.f32.mrb[0].mxu0
    %v6233 = vadd.f32 0.0, %v6232
    %v6234 = vpop.f32.mrb[0].mxu0
    %v6235 = vpop.f32.mrb[0].mxu0
    %v6236 = vadd.f32 0.0, %v6235
    %v6237 = vpop.f32.mrb[0].mxu0
    %6238 = vdwg.mxu0
    %v6239 = vadd.f32 %v6184, %v6233
    %v6240 = vadd.f32 %v6185, %v6236
    %v6243 = vcombine.high %v6239, %v6239
    %v6245 = vunpack.c.l.s4 1983009808
    %v6246 = vunpack.c.0.s8 %v6245
    %v6247 = vlaneseq
    %v6248 = vshrl.u32 %v6247, 7
    %v6249 = vsub.s32 %v6246, %v6248
    %v6250 = vrot.slane %v6239, %v6249
    %v6252 = vunpack.c.l.s4 1983009808
    %v6253 = vunpack.c.0.s8 %v6252
    %v6254 = vlaneseq
    %v6255 = vshrl.u32 %v6254, 7
    %v6256 = vsub.s32 %v6253, %v6255
    %v6257 = vrot.slane %v6243, %v6256
    %v6258 = vcombine.high %v6250, %v6250
    %v6259 = vcombine.high %v6257, %v6257
    %v6260 = vcombine.high %v6240, %v6240
    %v6262 = vunpack.c.l.s4 1983009808
    %v6263 = vunpack.c.0.s8 %v6262
    %v6264 = vlaneseq
    %v6265 = vshrl.u32 %v6264, 7
    %v6266 = vsub.s32 %v6263, %v6265
    %v6267 = vrot.slane %v6240, %v6266
    %v6269 = vunpack.c.l.s4 1983009808
    %v6270 = vunpack.c.0.s8 %v6269
    %v6271 = vlaneseq
    %v6272 = vshrl.u32 %v6271, 7
    %v6273 = vsub.s32 %v6270, %v6272
    %v6274 = vrot.slane %v6260, %v6273
    %v6275 = vcombine.high %v6267, %v6267
    %v6276 = vcombine.high %v6274, %v6274
    %6285 = vst.msk [vmem:[#allocation5] sm:$0x3] %vm383, %v6250
    %6286 = vst.msk [vmem:[#allocation5 + $0x2] sm:$0x3] %vm383, %v6258
    %6287 = vst.msk [vmem:[#allocation5 + $0x4] sm:$0x3] %vm383, %v6257
    %6288 = vst.msk [vmem:[#allocation5 + $0x6] sm:$0x3] %vm383, %v6259
    %6289 = vst.msk [vmem:[#allocation5 + $0x8] sm:$0x3] %vm383, %v6267
    %6290 = vst.msk [vmem:[#allocation5 + $0xa] sm:$0x3] %vm383, %v6275
    %6291 = vst.msk [vmem:[#allocation5 + $0xc] sm:$0x3] %vm383, %v6274
    %6292 = vst.msk [vmem:[#allocation5 + $0xe] sm:$0x3] %vm383, %v6276
    %s6293 = scalar_lea.vmem %s9, 64
    %v6294 = vld [vmem:[%s6293] sm:$0xf]
    %v6295 = vld [vmem:[%s6293 + $0x4] sm:$0xf]
    %v6296 = vld [vmem:[%s6293 + $0x8] sm:$0xf]
    %v6297 = vld [vmem:[%s6293 + $0xc] sm:$0xf]
    %v6298 = vld [vmem:[%s6293 + $0x10] sm:$0xf]
    %v6299 = vld [vmem:[%s6293 + $0x14] sm:$0xf]
    %v6300 = vld [vmem:[%s6293 + $0x18] sm:$0xf]
    %v6301 = vld [vmem:[%s6293 + $0x1c] sm:$0xf]
    %s6302 = scalar_lea.vmem %s11, 2
    %v6303 = vld [vmem:[%s6302] sm:$0x1]
    %v6308 = vunpack.c.l.b16 %v6294
    %v6309 = vunpack.c.l.b16 %v6295
    %v6310 = vunpack.c.l.b16 %v6296
    %v6311 = vunpack.c.l.b16 %v6297
    %v6312 = vpack.c.b16 %v6309, %v6308
    %v6313 = vpack.c.b16 %v6311, %v6310
    %6316 = vmatprep.subr.bf16.mxu0 0
    %6317 = vmatpush1.bf16.msra.mxu0 %v6312
    %6318 = vmatprep.subr.bf16.mxu0 0
    %6319 = vmatpush1.bf16.msra.mxu0 %v6313
    %6320 = vmatprep.subr.bf16.mxu0 0
    %6321 = vmatpush1.bf16.msra.mxu0 0
    %6322 = vmatprep.subr.bf16.mxu0 0
    %6323 = vmatpush1.bf16.msra.mxu0 0
    %6324 = vmatprep.subr.bf16.mxu0 0
    %6325 = vmatpush1.bf16.msra.mxu0 0
    %6326 = vmatprep.subr.bf16.mxu0 0
    %6327 = vmatpush1.bf16.msra.mxu0 0
    %6328 = vmatprep.subr.bf16.mxu0 0
    %6329 = vmatpush1.bf16.msra.mxu0 0
    %6330 = vmatprep.subr.bf16.mxu0 0
    %6331 = vmatpush1.bf16.msra.mxu0 0
    %6332 = vmatprep.subr.bf16.mxu0 0
    %6333 = vmatpush1.bf16.msra.mxu0 0
    %6334 = vmatprep.subr.bf16.mxu0 0
    %6335 = vmatpush1.bf16.msra.mxu0 0
    %6336 = vmatprep.subr.bf16.mxu0 0
    %6337 = vmatpush1.bf16.msra.mxu0 0
    %6338 = vmatprep.subr.bf16.mxu0 0
    %6339 = vmatpush1.bf16.msra.mxu0 0
    %6340 = vmatprep.subr.bf16.mxu0 0
    %6341 = vmatpush1.bf16.msra.mxu0 0
    %6342 = vmatprep.subr.bf16.mxu0 0
    %6343 = vmatpush1.bf16.msra.mxu0 0
    %6344 = vmatprep.subr.bf16.mxu0 0
    %6345 = vmatpush1.bf16.msra.mxu0 0
    %6346 = vmatprep.subr.bf16.mxu0 0
    %6347 = vmatpush1.bf16.msra.mxu0 0
    %6348 = vmatprep.mubr.bf16.mxu0 0
    %6349 = vmatmul.mubr.bf16.gmra.mrb[0].mxu0 %v5953
    %v6350 = vpop.f32.mrb[0].mxu0
    %v6351 = vadd.f32 0.0, %v6350
    %v6352 = vpop.f32.mrb[0].mxu0
    %v6353 = vpop.f32.mrb[0].mxu0
    %v6354 = vadd.f32 0.0, %v6353
    %v6355 = vpop.f32.mrb[0].mxu0
    %6356 = vdwg.mxu0
    %v6358 = vlaneseq
    %v6359 = vshrl.u32 %v6358, 7
    %v6360 = vsub.s32 0, %v6359
    %v6361 = vrot.slane %v6303, %v6360
    %v6363 = vadd.f32 %v6361, %v6351
    %v6364 = vadd.f32 %v6361, %v6354
    %v6369 = vunpack.c.l.b16 %v6298
    %v6370 = vunpack.c.l.b16 %v6299
    %v6371 = vunpack.c.l.b16 %v6300
    %v6372 = vunpack.c.l.b16 %v6301
    %v6373 = vpack.c.b16 %v6370, %v6369
    %v6374 = vpack.c.b16 %v6372, %v6371
    %6377 = vmatprep.subr.bf16.mxu0 0
    %6378 = vmatpush1.bf16.msra.mxu0 %v6373
    %6379 = vmatprep.subr.bf16.mxu0 0
    %6380 = vmatpush1.bf16.msra.mxu0 %v6374
    %6381 = vmatprep.subr.bf16.mxu0 0
    %6382 = vmatpush1.bf16.msra.mxu0 0
    %6383 = vmatprep.subr.bf16.mxu0 0
    %6384 = vmatpush1.bf16.msra.mxu0 0
    %6385 = vmatprep.subr.bf16.mxu0 0
    %6386 = vmatpush1.bf16.msra.mxu0 0
    %6387 = vmatprep.subr.bf16.mxu0 0
    %6388 = vmatpush1.bf16.msra.mxu0 0
    %6389 = vmatprep.subr.bf16.mxu0 0
    %6390 = vmatpush1.bf16.msra.mxu0 0
    %6391 = vmatprep.subr.bf16.mxu0 0
    %6392 = vmatpush1.bf16.msra.mxu0 0
    %6393 = vmatprep.subr.bf16.mxu0 0
    %6394 = vmatpush1.bf16.msra.mxu0 0
    %6395 = vmatprep.subr.bf16.mxu0 0
    %6396 = vmatpush1.bf16.msra.mxu0 0
    %6397 = vmatprep.subr.bf16.mxu0 0
    %6398 = vmatpush1.bf16.msra.mxu0 0
    %6399 = vmatprep.subr.bf16.mxu0 0
    %6400 = vmatpush1.bf16.msra.mxu0 0
    %6401 = vmatprep.subr.bf16.mxu0 0
    %6402 = vmatpush1.bf16.msra.mxu0 0
    %6403 = vmatprep.subr.bf16.mxu0 0
    %6404 = vmatpush1.bf16.msra.mxu0 0
    %6405 = vmatprep.subr.bf16.mxu0 0
    %6406 = vmatpush1.bf16.msra.mxu0 0
    %6407 = vmatprep.subr.bf16.mxu0 0
    %6408 = vmatpush1.bf16.msra.mxu0 0
    %6409 = vmatprep.mubr.bf16.mxu0 0
    %6410 = vmatmul.mubr.bf16.gmra.mrb[0].mxu0 %v6017
    %v6411 = vpop.f32.mrb[0].mxu0
    %v6412 = vadd.f32 0.0, %v6411
    %v6413 = vpop.f32.mrb[0].mxu0
    %v6414 = vpop.f32.mrb[0].mxu0
    %v6415 = vadd.f32 0.0, %v6414
    %v6416 = vpop.f32.mrb[0].mxu0
    %6417 = vdwg.mxu0
    %v6418 = vadd.f32 %v6363, %v6412
    %v6419 = vadd.f32 %v6364, %v6415
    %v6422 = vcombine.high %v6418, %v6418
    %v6424 = vunpack.c.l.s4 1983009808
    %v6425 = vunpack.c.0.s8 %v6424
    %v6426 = vlaneseq
    %v6427 = vshrl.u32 %v6426, 7
    %v6428 = vsub.s32 %v6425, %v6427
    %v6429 = vrot.slane %v6418, %v6428
    %v6431 = vunpack.c.l.s4 1983009808
    %v6432 = vunpack.c.0.s8 %v6431
    %v6433 = vlaneseq
    %v6434 = vshrl.u32 %v6433, 7
    %v6435 = vsub.s32 %v6432, %v6434
    %v6436 = vrot.slane %v6422, %v6435
    %v6437 = vcombine.high %v6429, %v6429
    %v6438 = vcombine.high %v6436, %v6436
    %v6439 = vcombine.high %v6419, %v6419
    %v6441 = vunpack.c.l.s4 1983009808
    %v6442 = vunpack.c.0.s8 %v6441
    %v6443 = vlaneseq
    %v6444 = vshrl.u32 %v6443, 7
    %v6445 = vsub.s32 %v6442, %v6444
    %v6446 = vrot.slane %v6419, %v6445
    %v6448 = vunpack.c.l.s4 1983009808
    %v6449 = vunpack.c.0.s8 %v6448
    %v6450 = vlaneseq
    %v6451 = vshrl.u32 %v6450, 7
    %v6452 = vsub.s32 %v6449, %v6451
    %v6453 = vrot.slane %v6439, %v6452
    %v6454 = vcombine.high %v6446, %v6446
    %v6455 = vcombine.high %v6453, %v6453
    %6464 = vst.msk [vmem:[#allocation6] sm:$0x3] %vm383, %v6429
    %6465 = vst.msk [vmem:[#allocation6 + $0x2] sm:$0x3] %vm383, %v6437
    %6466 = vst.msk [vmem:[#allocation6 + $0x4] sm:$0x3] %vm383, %v6436
    %6467 = vst.msk [vmem:[#allocation6 + $0x6] sm:$0x3] %vm383, %v6438
    %6468 = vst.msk [vmem:[#allocation6 + $0x8] sm:$0x3] %vm383, %v6446
    %6469 = vst.msk [vmem:[#allocation6 + $0xa] sm:$0x3] %vm383, %v6454
    %6470 = vst.msk [vmem:[#allocation6 + $0xc] sm:$0x3] %vm383, %v6453
    %6471 = vst.msk [vmem:[#allocation6 + $0xe] sm:$0x3] %vm383, %v6455
    %v6472 = vld [vmem:[%s10] sm:$0xff]
    %v6473 = vld [vmem:[%s10 + $0x8] sm:$0xff]
    %v6474 = vld [vmem:[%s10 + $0x10] sm:$0xff]
    %v6475 = vld [vmem:[%s10 + $0x18] sm:$0xff]
    %s6476 = scalar_lea.vmem %s10, 32
    %v6477 = vld [vmem:[%s6476] sm:$0xff]
    %v6478 = vld [vmem:[%s6476 + $0x8] sm:$0xff]
    %v6479 = vld [vmem:[%s6476 + $0x10] sm:$0xff]
    %v6480 = vld [vmem:[%s6476 + $0x18] sm:$0xff]
    %s6481 = scalar_lea.vmem %s10, 64
    %v6482 = vld [vmem:[%s6481] sm:$0xff]
    %v6483 = vld [vmem:[%s6481 + $0x8] sm:$0xff]
    %v6484 = vld [vmem:[%s6481 + $0x10] sm:$0xff]
    %v6485 = vld [vmem:[%s6481 + $0x18] sm:$0xff]
    %v6486 = vld [vmem:[%s12] sm:$0x1]
    %s6487 = scalar_lea.vmem %s12, 1
    %v6488 = vld [vmem:[%s6487] sm:$0x1]
    %s6489 = scalar_lea.vmem %s12, 2
    %v6490 = vld [vmem:[%s6489] sm:$0x1]
    %v6491 = vld [vmem:[#allocation4] sm:$0x3]
    %v6492 = vld [vmem:[#allocation5] sm:$0x3]
    %v6493 = vld [vmem:[#allocation6] sm:$0x3]
    %v6495 = vlaneseq
    %v6496 = vshrl.u32 %v6495, 7
    %v6497 = vsub.s32 0, %v6496
    %v6498 = vrot.slane %v6486, %v6497
    %6500 = vmatprep.subr.mxu0 0.0
    %6501 = vmatpush1.msra.mxu0 %v6472
    %6502 = vmatprep.subr.mxu0 0.0
    %6503 = vmatpush1.msra.mxu0 %v6473
    %6504 = vmatprep.subr.mxu0 0.0
    %6505 = vmatpush1.msra.mxu0 %v6474
    %6506 = vmatprep.subr.mxu0 0.0
    %6507 = vmatpush1.msra.mxu0 %v6475
    %6508 = vmatprep.subr.mxu0 0.0
    %6509 = vmatpush1.msra.mxu0 0.0
    %6510 = vmatprep.subr.mxu0 0.0
    %6511 = vmatpush1.msra.mxu0 0.0
    %6512 = vmatprep.subr.mxu0 0.0
    %6513 = vmatpush1.msra.mxu0 0.0
    %6514 = vmatprep.subr.mxu0 0.0
    %6515 = vmatpush1.msra.mxu0 0.0
    %6516 = vmatprep.subr.mxu0 0.0
    %6517 = vmatpush1.msra.mxu0 0.0
    %6518 = vmatprep.subr.mxu0 0.0
    %6519 = vmatpush1.msra.mxu0 0.0
    %6520 = vmatprep.subr.mxu0 0.0
    %6521 = vmatpush1.msra.mxu0 0.0
    %6522 = vmatprep.subr.mxu0 0.0
    %6523 = vmatpush1.msra.mxu0 0.0
    %6524 = vmatprep.subr.mxu0 0.0
    %6525 = vmatpush1.msra.mxu0 0.0
    %6526 = vmatprep.subr.mxu0 0.0
    %6527 = vmatpush1.msra.mxu0 0.0
    %6528 = vmatprep.subr.mxu0 0.0
    %6529 = vmatpush1.msra.mxu0 0.0
    %6530 = vmatprep.subr.mxu0 0.0
    %6531 = vmatpush1.msra.mxu0 0.0
    %6532 = vmatprep.subr.mxu0 0.0
    %6533 = vmatpush1.msra.mxu0 0.0
    %6534 = vmatprep.subr.mxu0 0.0
    %6535 = vmatpush1.msra.mxu0 0.0
    %6536 = vmatprep.subr.mxu0 0.0
    %6537 = vmatpush1.msra.mxu0 0.0
    %6538 = vmatprep.subr.mxu0 0.0
    %6539 = vmatpush1.msra.mxu0 0.0
    %6540 = vmatprep.subr.mxu0 0.0
    %6541 = vmatpush1.msra.mxu0 0.0
    %6542 = vmatprep.subr.mxu0 0.0
    %6543 = vmatpush1.msra.mxu0 0.0
    %6544 = vmatprep.subr.mxu0 0.0
    %6545 = vmatpush1.msra.mxu0 0.0
    %6546 = vmatprep.subr.mxu0 0.0
    %6547 = vmatpush1.msra.mxu0 0.0
    %6548 = vmatprep.subr.mxu0 0.0
    %6549 = vmatpush1.msra.mxu0 0.0
    %6550 = vmatprep.subr.mxu0 0.0
    %6551 = vmatpush1.msra.mxu0 0.0
    %6552 = vmatprep.subr.mxu0 0.0
    %6553 = vmatpush1.msra.mxu0 0.0
    %6554 = vmatprep.subr.mxu0 0.0
    %6555 = vmatpush1.msra.mxu0 0.0
    %6556 = vmatprep.subr.mxu0 0.0
    %6557 = vmatpush1.msra.mxu0 0.0
    %6558 = vmatprep.subr.mxu0 0.0
    %6559 = vmatpush1.msra.mxu0 0.0
    %6560 = vmatprep.subr.mxu0 0.0
    %6561 = vmatpush1.msra.mxu0 0.0
    %6562 = vmatprep.subr.mxu0 0.0
    %6563 = vmatpush1.msra.mxu0 0.0
    %6564 = vmatprep.mubr.f32.mxu0 0.0
    %6565 = vmatmul.mubr.f32.gmra.mrb[0].mxu0 %v1934
    %v6566 = vpop.f32.mrb[0].mxu0
    %v6567 = vadd.f32 %v6498, %v6566
    %v6568 = vpop.f32.mrb[0].mxu0
    %6569 = vdwg.mxu0
    %v6571 = vlaneseq
    %v6572 = vshrl.u32 %v6571, 7
    %v6573 = vsub.s32 0, %v6572
    %v6574 = vrot.slane %v6488, %v6573
    %6576 = vmatprep.subr.mxu0 0.0
    %6577 = vmatpush1.msra.mxu0 %v6477
    %6578 = vmatprep.subr.mxu0 0.0
    %6579 = vmatpush1.msra.mxu0 %v6478
    %6580 = vmatprep.subr.mxu0 0.0
    %6581 = vmatpush1.msra.mxu0 %v6479
    %6582 = vmatprep.subr.mxu0 0.0
    %6583 = vmatpush1.msra.mxu0 %v6480
    %6584 = vmatprep.subr.mxu0 0.0
    %6585 = vmatpush1.msra.mxu0 0.0
    %6586 = vmatprep.subr.mxu0 0.0
    %6587 = vmatpush1.msra.mxu0 0.0
    %6588 = vmatprep.subr.mxu0 0.0
    %6589 = vmatpush1.msra.mxu0 0.0
    %6590 = vmatprep.subr.mxu0 0.0
    %6591 = vmatpush1.msra.mxu0 0.0
    %6592 = vmatprep.subr.mxu0 0.0
    %6593 = vmatpush1.msra.mxu0 0.0
    %6594 = vmatprep.subr.mxu0 0.0
    %6595 = vmatpush1.msra.mxu0 0.0
    %6596 = vmatprep.subr.mxu0 0.0
    %6597 = vmatpush1.msra.mxu0 0.0
    %6598 = vmatprep.subr.mxu0 0.0
    %6599 = vmatpush1.msra.mxu0 0.0
    %6600 = vmatprep.subr.mxu0 0.0
    %6601 = vmatpush1.msra.mxu0 0.0
    %6602 = vmatprep.subr.mxu0 0.0
    %6603 = vmatpush1.msra.mxu0 0.0
    %6604 = vmatprep.subr.mxu0 0.0
    %6605 = vmatpush1.msra.mxu0 0.0
    %6606 = vmatprep.subr.mxu0 0.0
    %6607 = vmatpush1.msra.mxu0 0.0
    %6608 = vmatprep.subr.mxu0 0.0
    %6609 = vmatpush1.msra.mxu0 0.0
    %6610 = vmatprep.subr.mxu0 0.0
    %6611 = vmatpush1.msra.mxu0 0.0
    %6612 = vmatprep.subr.mxu0 0.0
    %6613 = vmatpush1.msra.mxu0 0.0
    %6614 = vmatprep.subr.mxu0 0.0
    %6615 = vmatpush1.msra.mxu0 0.0
    %6616 = vmatprep.subr.mxu0 0.0
    %6617 = vmatpush1.msra.mxu0 0.0
    %6618 = vmatprep.subr.mxu0 0.0
    %6619 = vmatpush1.msra.mxu0 0.0
    %6620 = vmatprep.subr.mxu0 0.0
    %6621 = vmatpush1.msra.mxu0 0.0
    %6622 = vmatprep.subr.mxu0 0.0
    %6623 = vmatpush1.msra.mxu0 0.0
    %6624 = vmatprep.subr.mxu0 0.0
    %6625 = vmatpush1.msra.mxu0 0.0
    %6626 = vmatprep.subr.mxu0 0.0
    %6627 = vmatpush1.msra.mxu0 0.0
    %6628 = vmatprep.subr.mxu0 0.0
    %6629 = vmatpush1.msra.mxu0 0.0
    %6630 = vmatprep.subr.mxu0 0.0
    %6631 = vmatpush1.msra.mxu0 0.0
    %6632 = vmatprep.subr.mxu0 0.0
    %6633 = vmatpush1.msra.mxu0 0.0
    %6634 = vmatprep.subr.mxu0 0.0
    %6635 = vmatpush1.msra.mxu0 0.0
    %6636 = vmatprep.subr.mxu0 0.0
    %6637 = vmatpush1.msra.mxu0 0.0
    %6638 = vmatprep.subr.mxu0 0.0
    %6639 = vmatpush1.msra.mxu0 0.0
    %6640 = vmatprep.mubr.f32.mxu0 0.0
    %6641 = vmatmul.mubr.f32.gmra.mrb[0].mxu0 %v1934
    %v6642 = vpop.f32.mrb[0].mxu0
    %v6643 = vadd.f32 %v6574, %v6642
    %v6644 = vpop.f32.mrb[0].mxu0
    %6645 = vdwg.mxu0
    %v6647 = vlaneseq
    %v6648 = vshrl.u32 %v6647, 7
    %v6649 = vsub.s32 0, %v6648
    %v6650 = vrot.slane %v6490, %v6649
    %6652 = vmatprep.subr.mxu0 0.0
    %6653 = vmatpush1.msra.mxu0 %v6482
    %6654 = vmatprep.subr.mxu0 0.0
    %6655 = vmatpush1.msra.mxu0 %v6483
    %6656 = vmatprep.subr.mxu0 0.0
    %6657 = vmatpush1.msra.mxu0 %v6484
    %6658 = vmatprep.subr.mxu0 0.0
    %6659 = vmatpush1.msra.mxu0 %v6485
    %6660 = vmatprep.subr.mxu0 0.0
    %6661 = vmatpush1.msra.mxu0 0.0
    %6662 = vmatprep.subr.mxu0 0.0
    %6663 = vmatpush1.msra.mxu0 0.0
    %6664 = vmatprep.subr.mxu0 0.0
    %6665 = vmatpush1.msra.mxu0 0.0
    %6666 = vmatprep.subr.mxu0 0.0
    %6667 = vmatpush1.msra.mxu0 0.0
    %6668 = vmatprep.subr.mxu0 0.0
    %6669 = vmatpush1.msra.mxu0 0.0
    %6670 = vmatprep.subr.mxu0 0.0
    %6671 = vmatpush1.msra.mxu0 0.0
    %6672 = vmatprep.subr.mxu0 0.0
    %6673 = vmatpush1.msra.mxu0 0.0
    %6674 = vmatprep.subr.mxu0 0.0
    %6675 = vmatpush1.msra.mxu0 0.0
    %6676 = vmatprep.subr.mxu0 0.0
    %6677 = vmatpush1.msra.mxu0 0.0
    %6678 = vmatprep.subr.mxu0 0.0
    %6679 = vmatpush1.msra.mxu0 0.0
    %6680 = vmatprep.subr.mxu0 0.0
    %6681 = vmatpush1.msra.mxu0 0.0
    %6682 = vmatprep.subr.mxu0 0.0
    %6683 = vmatpush1.msra.mxu0 0.0
    %6684 = vmatprep.subr.mxu0 0.0
    %6685 = vmatpush1.msra.mxu0 0.0
    %6686 = vmatprep.subr.mxu0 0.0
    %6687 = vmatpush1.msra.mxu0 0.0
    %6688 = vmatprep.subr.mxu0 0.0
    %6689 = vmatpush1.msra.mxu0 0.0
    %6690 = vmatprep.subr.mxu0 0.0
    %6691 = vmatpush1.msra.mxu0 0.0
    %6692 = vmatprep.subr.mxu0 0.0
    %6693 = vmatpush1.msra.mxu0 0.0
    %6694 = vmatprep.subr.mxu0 0.0
    %6695 = vmatpush1.msra.mxu0 0.0
    %6696 = vmatprep.subr.mxu0 0.0
    %6697 = vmatpush1.msra.mxu0 0.0
    %6698 = vmatprep.subr.mxu0 0.0
    %6699 = vmatpush1.msra.mxu0 0.0
    %6700 = vmatprep.subr.mxu0 0.0
    %6701 = vmatpush1.msra.mxu0 0.0
    %6702 = vmatprep.subr.mxu0 0.0
    %6703 = vmatpush1.msra.mxu0 0.0
    %6704 = vmatprep.subr.mxu0 0.0
    %6705 = vmatpush1.msra.mxu0 0.0
    %6706 = vmatprep.subr.mxu0 0.0
    %6707 = vmatpush1.msra.mxu0 0.0
    %6708 = vmatprep.subr.mxu0 0.0
    %6709 = vmatpush1.msra.mxu0 0.0
    %6710 = vmatprep.subr.mxu0 0.0
    %6711 = vmatpush1.msra.mxu0 0.0
    %6712 = vmatprep.subr.mxu0 0.0
    %6713 = vmatpush1.msra.mxu0 0.0
    %6714 = vmatprep.subr.mxu0 0.0
    %6715 = vmatpush1.msra.mxu0 0.0
    %6716 = vmatprep.mubr.f32.mxu0 0.0
    %6717 = vmatmul.mubr.f32.gmra.mrb[0].mxu0 %v1934
    %v6718 = vpop.f32.mrb[0].mxu0
    %v6719 = vadd.f32 %v6650, %v6718
    %v6720 = vpop.f32.mrb[0].mxu0
    %6721 = vdwg.mxu0
    %v6722 = vadd.f32 %v6491, %v6567
    %v6723 = vxor.u32 %v6722, 2147483648
    %v6724 = vmul.f32 %v6723, 1.442695
    %v6725 = vpow.pop %v6724
    %v6726 = vadd.f32 %v6725, 1.0
    %v6727 = vrcp.pop %v6726
    %v6728 = vmul.f32 1.0, %v6727
    %v6729 = vadd.f32 %v6492, %v6643
    %v6730 = vxor.u32 %v6729, 2147483648
    %v6731 = vmul.f32 %v6730, 1.442695
    %v6732 = vpow.pop %v6731
    %v6733 = vadd.f32 %v6732, 1.0
    %v6734 = vrcp.pop %v6733
    %v6735 = vmul.f32 1.0, %v6734
    %v6736 = vmul.f32 %v6728, %v6719
    %v6737 = vadd.f32 %v6493, %v6736
    %v6738 = vtanh.pop %v6737
    %v6739 = vsub.f32 1.0, %v6735
    %v6740 = vmul.f32 %v6739, %v6738
    %v6741 = vmul.f32 %v6735, 0.0
    %v6742 = vadd.f32 %v6740, %v6741
    %v6743 = vld [vmem:[%s2437] sm:$0x3]
    %v6744 = vld [vmem:[%s2439] sm:$0x3]
    %v6745 = vld [vmem:[%s2441] sm:$0x3]
    %v6747 = vsel %vm1932, %v6742, 0
    %6749 = vmatprep.subr.mxu0 0.0
    %6750 = vmatpush1.msra.mxu0 %v6472
    %6751 = vmatprep.subr.mxu0 0.0
    %6752 = vmatpush1.msra.mxu0 %v6473
    %6753 = vmatprep.subr.mxu0 0.0
    %6754 = vmatpush1.msra.mxu0 %v6474
    %6755 = vmatprep.subr.mxu0 0.0
    %6756 = vmatpush1.msra.mxu0 %v6475
    %6757 = vmatprep.subr.mxu0 0.0
    %6758 = vmatpush1.msra.mxu0 0.0
    %6759 = vmatprep.subr.mxu0 0.0
    %6760 = vmatpush1.msra.mxu0 0.0
    %6761 = vmatprep.subr.mxu0 0.0
    %6762 = vmatpush1.msra.mxu0 0.0
    %6763 = vmatprep.subr.mxu0 0.0
    %6764 = vmatpush1.msra.mxu0 0.0
    %6765 = vmatprep.subr.mxu0 0.0
    %6766 = vmatpush1.msra.mxu0 0.0
    %6767 = vmatprep.subr.mxu0 0.0
    %6768 = vmatpush1.msra.mxu0 0.0
    %6769 = vmatprep.subr.mxu0 0.0
    %6770 = vmatpush1.msra.mxu0 0.0
    %6771 = vmatprep.subr.mxu0 0.0
    %6772 = vmatpush1.msra.mxu0 0.0
    %6773 = vmatprep.subr.mxu0 0.0
    %6774 = vmatpush1.msra.mxu0 0.0
    %6775 = vmatprep.subr.mxu0 0.0
    %6776 = vmatpush1.msra.mxu0 0.0
    %6777 = vmatprep.subr.mxu0 0.0
    %6778 = vmatpush1.msra.mxu0 0.0
    %6779 = vmatprep.subr.mxu0 0.0
    %6780 = vmatpush1.msra.mxu0 0.0
    %6781 = vmatprep.subr.mxu0 0.0
    %6782 = vmatpush1.msra.mxu0 0.0
    %6783 = vmatprep.subr.mxu0 0.0
    %6784 = vmatpush1.msra.mxu0 0.0
    %6785 = vmatprep.subr.mxu0 0.0
    %6786 = vmatpush1.msra.mxu0 0.0
    %6787 = vmatprep.subr.mxu0 0.0
    %6788 = vmatpush1.msra.mxu0 0.0
    %6789 = vmatprep.subr.mxu0 0.0
    %6790 = vmatpush1.msra.mxu0 0.0
    %6791 = vmatprep.subr.mxu0 0.0
    %6792 = vmatpush1.msra.mxu0 0.0
    %6793 = vmatprep.subr.mxu0 0.0
    %6794 = vmatpush1.msra.mxu0 0.0
    %6795 = vmatprep.subr.mxu0 0.0
    %6796 = vmatpush1.msra.mxu0 0.0
    %6797 = vmatprep.subr.mxu0 0.0
    %6798 = vmatpush1.msra.mxu0 0.0
    %6799 = vmatprep.subr.mxu0 0.0
    %6800 = vmatpush1.msra.mxu0 0.0
    %6801 = vmatprep.subr.mxu0 0.0
    %6802 = vmatpush1.msra.mxu0 0.0
    %6803 = vmatprep.subr.mxu0 0.0
    %6804 = vmatpush1.msra.mxu0 0.0
    %6805 = vmatprep.subr.mxu0 0.0
    %6806 = vmatpush1.msra.mxu0 0.0
    %6807 = vmatprep.subr.mxu0 0.0
    %6808 = vmatpush1.msra.mxu0 0.0
    %6809 = vmatprep.subr.mxu0 0.0
    %6810 = vmatpush1.msra.mxu0 0.0
    %6811 = vmatprep.subr.mxu0 0.0
    %6812 = vmatpush1.msra.mxu0 0.0
    %6813 = vmatprep.mubr.f32.mxu0 0.0
    %6814 = vmatmul.mubr.f32.gmra.mrb[0].mxu0 %v6747
    %v6815 = vpop.f32.mrb[0].mxu0
    %v6816 = vadd.f32 %v6498, %v6815
    %v6817 = vpop.f32.mrb[0].mxu0
    %6818 = vdwg.mxu0
    %6819 = vmatprep.subr.mxu0 0.0
    %6820 = vmatpush1.msra.mxu0 %v6477
    %6821 = vmatprep.subr.mxu0 0.0
    %6822 = vmatpush1.msra.mxu0 %v6478
    %6823 = vmatprep.subr.mxu0 0.0
    %6824 = vmatpush1.msra.mxu0 %v6479
    %6825 = vmatprep.subr.mxu0 0.0
    %6826 = vmatpush1.msra.mxu0 %v6480
    %6827 = vmatprep.subr.mxu0 0.0
    %6828 = vmatpush1.msra.mxu0 0.0
    %6829 = vmatprep.subr.mxu0 0.0
    %6830 = vmatpush1.msra.mxu0 0.0
    %6831 = vmatprep.subr.mxu0 0.0
    %6832 = vmatpush1.msra.mxu0 0.0
    %6833 = vmatprep.subr.mxu0 0.0
    %6834 = vmatpush1.msra.mxu0 0.0
    %6835 = vmatprep.subr.mxu0 0.0
    %6836 = vmatpush1.msra.mxu0 0.0
    %6837 = vmatprep.subr.mxu0 0.0
    %6838 = vmatpush1.msra.mxu0 0.0
    %6839 = vmatprep.subr.mxu0 0.0
    %6840 = vmatpush1.msra.mxu0 0.0
    %6841 = vmatprep.subr.mxu0 0.0
    %6842 = vmatpush1.msra.mxu0 0.0
    %6843 = vmatprep.subr.mxu0 0.0
    %6844 = vmatpush1.msra.mxu0 0.0
    %6845 = vmatprep.subr.mxu0 0.0
    %6846 = vmatpush1.msra.mxu0 0.0
    %6847 = vmatprep.subr.mxu0 0.0
    %6848 = vmatpush1.msra.mxu0 0.0
    %6849 = vmatprep.subr.mxu0 0.0
    %6850 = vmatpush1.msra.mxu0 0.0
    %6851 = vmatprep.subr.mxu0 0.0
    %6852 = vmatpush1.msra.mxu0 0.0
    %6853 = vmatprep.subr.mxu0 0.0
    %6854 = vmatpush1.msra.mxu0 0.0
    %6855 = vmatprep.subr.mxu0 0.0
    %6856 = vmatpush1.msra.mxu0 0.0
    %6857 = vmatprep.subr.mxu0 0.0
    %6858 = vmatpush1.msra.mxu0 0.0
    %6859 = vmatprep.subr.mxu0 0.0
    %6860 = vmatpush1.msra.mxu0 0.0
    %6861 = vmatprep.subr.mxu0 0.0
    %6862 = vmatpush1.msra.mxu0 0.0
    %6863 = vmatprep.subr.mxu0 0.0
    %6864 = vmatpush1.msra.mxu0 0.0
    %6865 = vmatprep.subr.mxu0 0.0
    %6866 = vmatpush1.msra.mxu0 0.0
    %6867 = vmatprep.subr.mxu0 0.0
    %6868 = vmatpush1.msra.mxu0 0.0
    %6869 = vmatprep.subr.mxu0 0.0
    %6870 = vmatpush1.msra.mxu0 0.0
    %6871 = vmatprep.subr.mxu0 0.0
    %6872 = vmatpush1.msra.mxu0 0.0
    %6873 = vmatprep.subr.mxu0 0.0
    %6874 = vmatpush1.msra.mxu0 0.0
    %6875 = vmatprep.subr.mxu0 0.0
    %6876 = vmatpush1.msra.mxu0 0.0
    %6877 = vmatprep.subr.mxu0 0.0
    %6878 = vmatpush1.msra.mxu0 0.0
    %6879 = vmatprep.subr.mxu0 0.0
    %6880 = vmatpush1.msra.mxu0 0.0
    %6881 = vmatprep.subr.mxu0 0.0
    %6882 = vmatpush1.msra.mxu0 0.0
    %6883 = vmatprep.mubr.f32.mxu0 0.0
    %6884 = vmatmul.mubr.f32.gmra.mrb[0].mxu0 %v6747
    %v6885 = vpop.f32.mrb[0].mxu0
    %v6886 = vadd.f32 %v6574, %v6885
    %v6887 = vpop.f32.mrb[0].mxu0
    %6888 = vdwg.mxu0
    %6889 = vmatprep.subr.mxu0 0.0
    %6890 = vmatpush1.msra.mxu0 %v6482
    %6891 = vmatprep.subr.mxu0 0.0
    %6892 = vmatpush1.msra.mxu0 %v6483
    %6893 = vmatprep.subr.mxu0 0.0
    %6894 = vmatpush1.msra.mxu0 %v6484
    %6895 = vmatprep.subr.mxu0 0.0
    %6896 = vmatpush1.msra.mxu0 %v6485
    %6897 = vmatprep.subr.mxu0 0.0
    %6898 = vmatpush1.msra.mxu0 0.0
    %6899 = vmatprep.subr.mxu0 0.0
    %6900 = vmatpush1.msra.mxu0 0.0
    %6901 = vmatprep.subr.mxu0 0.0
    %6902 = vmatpush1.msra.mxu0 0.0
    %6903 = vmatprep.subr.mxu0 0.0
    %6904 = vmatpush1.msra.mxu0 0.0
    %6905 = vmatprep.subr.mxu0 0.0
    %6906 = vmatpush1.msra.mxu0 0.0
    %6907 = vmatprep.subr.mxu0 0.0
    %6908 = vmatpush1.msra.mxu0 0.0
    %6909 = vmatprep.subr.mxu0 0.0
    %6910 = vmatpush1.msra.mxu0 0.0
    %6911 = vmatprep.subr.mxu0 0.0
    %6912 = vmatpush1.msra.mxu0 0.0
    %6913 = vmatprep.subr.mxu0 0.0
    %6914 = vmatpush1.msra.mxu0 0.0
    %6915 = vmatprep.subr.mxu0 0.0
    %6916 = vmatpush1.msra.mxu0 0.0
    %6917 = vmatprep.subr.mxu0 0.0
    %6918 = vmatpush1.msra.mxu0 0.0
    %6919 = vmatprep.subr.mxu0 0.0
    %6920 = vmatpush1.msra.mxu0 0.0
    %6921 = vmatprep.subr.mxu0 0.0
    %6922 = vmatpush1.msra.mxu0 0.0
    %6923 = vmatprep.subr.mxu0 0.0
    %6924 = vmatpush1.msra.mxu0 0.0
    %6925 = vmatprep.subr.mxu0 0.0
    %6926 = vmatpush1.msra.mxu0 0.0
    %6927 = vmatprep.subr.mxu0 0.0
    %6928 = vmatpush1.msra.mxu0 0.0
    %6929 = vmatprep.subr.mxu0 0.0
    %6930 = vmatpush1.msra.mxu0 0.0
    %6931 = vmatprep.subr.mxu0 0.0
    %6932 = vmatpush1.msra.mxu0 0.0
    %6933 = vmatprep.subr.mxu0 0.0
    %6934 = vmatpush1.msra.mxu0 0.0
    %6935 = vmatprep.subr.mxu0 0.0
    %6936 = vmatpush1.msra.mxu0 0.0
    %6937 = vmatprep.subr.mxu0 0.0
    %6938 = vmatpush1.msra.mxu0 0.0
    %6939 = vmatprep.subr.mxu0 0.0
    %6940 = vmatpush1.msra.mxu0 0.0
    %6941 = vmatprep.subr.mxu0 0.0
    %6942 = vmatpush1.msra.mxu0 0.0
    %6943 = vmatprep.subr.mxu0 0.0
    %6944 = vmatpush1.msra.mxu0 0.0
    %6945 = vmatprep.subr.mxu0 0.0
    %6946 = vmatpush1.msra.mxu0 0.0
    %6947 = vmatprep.subr.mxu0 0.0
    %6948 = vmatpush1.msra.mxu0 0.0
    %6949 = vmatprep.subr.mxu0 0.0
    %6950 = vmatpush1.msra.mxu0 0.0
    %6951 = vmatprep.subr.mxu0 0.0
    %6952 = vmatpush1.msra.mxu0 0.0
    %6953 = vmatprep.mubr.f32.mxu0 0.0
    %6954 = vmatmul.mubr.f32.gmra.mrb[0].mxu0 %v6747
    %v6955 = vpop.f32.mrb[0].mxu0
    %v6956 = vadd.f32 %v6650, %v6955
    %v6957 = vpop.f32.mrb[0].mxu0
    %6958 = vdwg.mxu0
    %v6959 = vadd.f32 %v6743, %v6816
    %v6960 = vxor.u32 %v6959, 2147483648
    %v6961 = vmul.f32 %v6960, 1.442695
    %v6962 = vpow.pop %v6961
    %v6963 = vadd.f32 %v6962, 1.0
    %v6964 = vrcp.pop %v6963
    %v6965 = vmul.f32 1.0, %v6964
    %v6966 = vadd.f32 %v6744, %v6886
    %v6967 = vxor.u32 %v6966, 2147483648
    %v6968 = vmul.f32 %v6967, 1.442695
    %v6969 = vpow.pop %v6968
    %v6970 = vadd.f32 %v6969, 1.0
    %v6971 = vrcp.pop %v6970
    %v6972 = vmul.f32 1.0, %v6971
    %v6973 = vmul.f32 %v6965, %v6956
    %v6974 = vadd.f32 %v6745, %v6973
    %v6975 = vtanh.pop %v6974
    %v6976 = vsub.f32 1.0, %v6972
    %v6977 = vmul.f32 %v6976, %v6975
    %v6978 = vmul.f32 %v6972, %v6742
    %v6979 = vadd.f32 %v6977, %v6978
    %v6980 = vld [vmem:[%s2921] sm:$0x3]
    %v6981 = vld [vmem:[%s2923] sm:$0x3]
    %v6982 = vld [vmem:[%s2925] sm:$0x3]
    %v6984 = vsel %vm1932, %v6979, 0
    %6986 = vmatprep.subr.mxu0 0.0
    %6987 = vmatpush1.msra.mxu0 %v6472
    %6988 = vmatprep.subr.mxu0 0.0
    %6989 = vmatpush1.msra.mxu0 %v6473
    %6990 = vmatprep.subr.mxu0 0.0
    %6991 = vmatpush1.msra.mxu0 %v6474
    %6992 = vmatprep.subr.mxu0 0.0
    %6993 = vmatpush1.msra.mxu0 %v6475
    %6994 = vmatprep.subr.mxu0 0.0
    %6995 = vmatpush1.msra.mxu0 0.0
    %6996 = vmatprep.subr.mxu0 0.0
    %6997 = vmatpush1.msra.mxu0 0.0
    %6998 = vmatprep.subr.mxu0 0.0
    %6999 = vmatpush1.msra.mxu0 0.0
    %7000 = vmatprep.subr.mxu0 0.0
    %7001 = vmatpush1.msra.mxu0 0.0
    %7002 = vmatprep.subr.mxu0 0.0
    %7003 = vmatpush1.msra.mxu0 0.0
    %7004 = vmatprep.subr.mxu0 0.0
    %7005 = vmatpush1.msra.mxu0 0.0
    %7006 = vmatprep.subr.mxu0 0.0
    %7007 = vmatpush1.msra.mxu0 0.0
    %7008 = vmatprep.subr.mxu0 0.0
    %7009 = vmatpush1.msra.mxu0 0.0
    %7010 = vmatprep.subr.mxu0 0.0
    %7011 = vmatpush1.msra.mxu0 0.0
    %7012 = vmatprep.subr.mxu0 0.0
    %7013 = vmatpush1.msra.mxu0 0.0
    %7014 = vmatprep.subr.mxu0 0.0
    %7015 = vmatpush1.msra.mxu0 0.0
    %7016 = vmatprep.subr.mxu0 0.0
    %7017 = vmatpush1.msra.mxu0 0.0
    %7018 = vmatprep.subr.mxu0 0.0
    %7019 = vmatpush1.msra.mxu0 0.0
    %7020 = vmatprep.subr.mxu0 0.0
    %7021 = vmatpush1.msra.mxu0 0.0
    %7022 = vmatprep.subr.mxu0 0.0
    %7023 = vmatpush1.msra.mxu0 0.0
    %7024 = vmatprep.subr.mxu0 0.0
    %7025 = vmatpush1.msra.mxu0 0.0
    %7026 = vmatprep.subr.mxu0 0.0
    %7027 = vmatpush1.msra.mxu0 0.0
    %7028 = vmatprep.subr.mxu0 0.0
    %7029 = vmatpush1.msra.mxu0 0.0
    %7030 = vmatprep.subr.mxu0 0.0
    %7031 = vmatpush1.msra.mxu0 0.0
    %7032 = vmatprep.subr.mxu0 0.0
    %7033 = vmatpush1.msra.mxu0 0.0
    %7034 = vmatprep.subr.mxu0 0.0
    %7035 = vmatpush1.msra.mxu0 0.0
    %7036 = vmatprep.subr.mxu0 0.0
    %7037 = vmatpush1.msra.mxu0 0.0
    %7038 = vmatprep.subr.mxu0 0.0
    %7039 = vmatpush1.msra.mxu0 0.0
    %7040 = vmatprep.subr.mxu0 0.0
    %7041 = vmatpush1.msra.mxu0 0.0
    %7042 = vmatprep.subr.mxu0 0.0
    %7043 = vmatpush1.msra.mxu0 0.0
    %7044 = vmatprep.subr.mxu0 0.0
    %7045 = vmatpush1.msra.mxu0 0.0
    %7046 = vmatprep.subr.mxu0 0.0
    %7047 = vmatpush1.msra.mxu0 0.0
    %7048 = vmatprep.subr.mxu0 0.0
    %7049 = vmatpush1.msra.mxu0 0.0
    %7050 = vmatprep.mubr.f32.mxu0 0.0
    %7051 = vmatmul.mubr.f32.gmra.mrb[0].mxu0 %v6984
    %v7052 = vpop.f32.mrb[0].mxu0
    %v7053 = vadd.f32 %v6498, %v7052
    %v7054 = vpop.f32.mrb[0].mxu0
    %7055 = vdwg.mxu0
    %7056 = vmatprep.subr.mxu0 0.0
    %7057 = vmatpush1.msra.mxu0 %v6477
    %7058 = vmatprep.subr.mxu0 0.0
    %7059 = vmatpush1.msra.mxu0 %v6478
    %7060 = vmatprep.subr.mxu0 0.0
    %7061 = vmatpush1.msra.mxu0 %v6479
    %7062 = vmatprep.subr.mxu0 0.0
    %7063 = vmatpush1.msra.mxu0 %v6480
    %7064 = vmatprep.subr.mxu0 0.0
    %7065 = vmatpush1.msra.mxu0 0.0
    %7066 = vmatprep.subr.mxu0 0.0
    %7067 = vmatpush1.msra.mxu0 0.0
    %7068 = vmatprep.subr.mxu0 0.0
    %7069 = vmatpush1.msra.mxu0 0.0
    %7070 = vmatprep.subr.mxu0 0.0
    %7071 = vmatpush1.msra.mxu0 0.0
    %7072 = vmatprep.subr.mxu0 0.0
    %7073 = vmatpush1.msra.mxu0 0.0
    %7074 = vmatprep.subr.mxu0 0.0
    %7075 = vmatpush1.msra.mxu0 0.0
    %7076 = vmatprep.subr.mxu0 0.0
    %7077 = vmatpush1.msra.mxu0 0.0
    %7078 = vmatprep.subr.mxu0 0.0
    %7079 = vmatpush1.msra.mxu0 0.0
    %7080 = vmatprep.subr.mxu0 0.0
    %7081 = vmatpush1.msra.mxu0 0.0
    %7082 = vmatprep.subr.mxu0 0.0
    %7083 = vmatpush1.msra.mxu0 0.0
    %7084 = vmatprep.subr.mxu0 0.0
    %7085 = vmatpush1.msra.mxu0 0.0
    %7086 = vmatprep.subr.mxu0 0.0
    %7087 = vmatpush1.msra.mxu0 0.0
    %7088 = vmatprep.subr.mxu0 0.0
    %7089 = vmatpush1.msra.mxu0 0.0
    %7090 = vmatprep.subr.mxu0 0.0
    %7091 = vmatpush1.msra.mxu0 0.0
    %7092 = vmatprep.subr.mxu0 0.0
    %7093 = vmatpush1.msra.mxu0 0.0
    %7094 = vmatprep.subr.mxu0 0.0
    %7095 = vmatpush1.msra.mxu0 0.0
    %7096 = vmatprep.subr.mxu0 0.0
    %7097 = vmatpush1.msra.mxu0 0.0
    %7098 = vmatprep.subr.mxu0 0.0
    %7099 = vmatpush1.msra.mxu0 0.0
    %7100 = vmatprep.subr.mxu0 0.0
    %7101 = vmatpush1.msra.mxu0 0.0
    %7102 = vmatprep.subr.mxu0 0.0
    %7103 = vmatpush1.msra.mxu0 0.0
    %7104 = vmatprep.subr.mxu0 0.0
    %7105 = vmatpush1.msra.mxu0 0.0
    %7106 = vmatprep.subr.mxu0 0.0
    %7107 = vmatpush1.msra.mxu0 0.0
    %7108 = vmatprep.subr.mxu0 0.0
    %7109 = vmatpush1.msra.mxu0 0.0
    %7110 = vmatprep.subr.mxu0 0.0
    %7111 = vmatpush1.msra.mxu0 0.0
    %7112 = vmatprep.subr.mxu0 0.0
    %7113 = vmatpush1.msra.mxu0 0.0
    %7114 = vmatprep.subr.mxu0 0.0
    %7115 = vmatpush1.msra.mxu0 0.0
    %7116 = vmatprep.subr.mxu0 0.0
    %7117 = vmatpush1.msra.mxu0 0.0
    %7118 = vmatprep.subr.mxu0 0.0
    %7119 = vmatpush1.msra.mxu0 0.0
    %7120 = vmatprep.mubr.f32.mxu0 0.0
    %7121 = vmatmul.mubr.f32.gmra.mrb[0].mxu0 %v6984
    %v7122 = vpop.f32.mrb[0].mxu0
    %v7123 = vadd.f32 %v6574, %v7122
    %v7124 = vpop.f32.mrb[0].mxu0
    %7125 = vdwg.mxu0
    %7126 = vmatprep.subr.mxu0 0.0
    %7127 = vmatpush1.msra.mxu0 %v6482
    %7128 = vmatprep.subr.mxu0 0.0
    %7129 = vmatpush1.msra.mxu0 %v6483
    %7130 = vmatprep.subr.mxu0 0.0
    %7131 = vmatpush1.msra.mxu0 %v6484
    %7132 = vmatprep.subr.mxu0 0.0
    %7133 = vmatpush1.msra.mxu0 %v6485
    %7134 = vmatprep.subr.mxu0 0.0
    %7135 = vmatpush1.msra.mxu0 0.0
    %7136 = vmatprep.subr.mxu0 0.0
    %7137 = vmatpush1.msra.mxu0 0.0
    %7138 = vmatprep.subr.mxu0 0.0
    %7139 = vmatpush1.msra.mxu0 0.0
    %7140 = vmatprep.subr.mxu0 0.0
    %7141 = vmatpush1.msra.mxu0 0.0
    %7142 = vmatprep.subr.mxu0 0.0
    %7143 = vmatpush1.msra.mxu0 0.0
    %7144 = vmatprep.subr.mxu0 0.0
    %7145 = vmatpush1.msra.mxu0 0.0
    %7146 = vmatprep.subr.mxu0 0.0
    %7147 = vmatpush1.msra.mxu0 0.0
    %7148 = vmatprep.subr.mxu0 0.0
    %7149 = vmatpush1.msra.mxu0 0.0
    %7150 = vmatprep.subr.mxu0 0.0
    %7151 = vmatpush1.msra.mxu0 0.0
    %7152 = vmatprep.subr.mxu0 0.0
    %7153 = vmatpush1.msra.mxu0 0.0
    %7154 = vmatprep.subr.mxu0 0.0
    %7155 = vmatpush1.msra.mxu0 0.0
    %7156 = vmatprep.subr.mxu0 0.0
    %7157 = vmatpush1.msra.mxu0 0.0
    %7158 = vmatprep.subr.mxu0 0.0
    %7159 = vmatpush1.msra.mxu0 0.0
    %7160 = vmatprep.subr.mxu0 0.0
    %7161 = vmatpush1.msra.mxu0 0.0
    %7162 = vmatprep.subr.mxu0 0.0
    %7163 = vmatpush1.msra.mxu0 0.0
    %7164 = vmatprep.subr.mxu0 0.0
    %7165 = vmatpush1.msra.mxu0 0.0
    %7166 = vmatprep.subr.mxu0 0.0
    %7167 = vmatpush1.msra.mxu0 0.0
    %7168 = vmatprep.subr.mxu0 0.0
    %7169 = vmatpush1.msra.mxu0 0.0
    %7170 = vmatprep.subr.mxu0 0.0
    %7171 = vmatpush1.msra.mxu0 0.0
    %7172 = vmatprep.subr.mxu0 0.0
    %7173 = vmatpush1.msra.mxu0 0.0
    %7174 = vmatprep.subr.mxu0 0.0
    %7175 = vmatpush1.msra.mxu0 0.0
    %7176 = vmatprep.subr.mxu0 0.0
    %7177 = vmatpush1.msra.mxu0 0.0
    %7178 = vmatprep.subr.mxu0 0.0
    %7179 = vmatpush1.msra.mxu0 0.0
    %7180 = vmatprep.subr.mxu0 0.0
    %7181 = vmatpush1.msra.mxu0 0.0
    %7182 = vmatprep.subr.mxu0 0.0
    %7183 = vmatpush1.msra.mxu0 0.0
    %7184 = vmatprep.subr.mxu0 0.0
    %7185 = vmatpush1.msra.mxu0 0.0
    %7186 = vmatprep.subr.mxu0 0.0
    %7187 = vmatpush1.msra.mxu0 0.0
    %7188 = vmatprep.subr.mxu0 0.0
    %7189 = vmatpush1.msra.mxu0 0.0
    %7190 = vmatprep.mubr.f32.mxu0 0.0
    %7191 = vmatmul.mubr.f32.gmra.mrb[0].mxu0 %v6984
    %v7192 = vpop.f32.mrb[0].mxu0
    %v7193 = vadd.f32 %v6650, %v7192
    %v7194 = vpop.f32.mrb[0].mxu0
    %7195 = vdwg.mxu0
    %v7196 = vadd.f32 %v6980, %v7053
    %v7197 = vxor.u32 %v7196, 2147483648
    %v7198 = vmul.f32 %v7197, 1.442695
    %v7199 = vpow.pop %v7198
    %v7200 = vadd.f32 %v7199, 1.0
    %v7201 = vrcp.pop %v7200
    %v7202 = vmul.f32 1.0, %v7201
    %v7203 = vadd.f32 %v6981, %v7123
    %v7204 = vxor.u32 %v7203, 2147483648
    %v7205 = vmul.f32 %v7204, 1.442695
    %v7206 = vpow.pop %v7205
    %v7207 = vadd.f32 %v7206, 1.0
    %v7208 = vrcp.pop %v7207
    %v7209 = vmul.f32 1.0, %v7208
    %v7210 = vmul.f32 %v7202, %v7193
    %v7211 = vadd.f32 %v6982, %v7210
    %v7212 = vtanh.pop %v7211
    %v7213 = vsub.f32 1.0, %v7209
    %v7214 = vmul.f32 %v7213, %v7212
    %v7215 = vmul.f32 %v7209, %v6979
    %v7216 = vadd.f32 %v7214, %v7215
    %v7217 = vld [vmem:[%s3405] sm:$0x3]
    %v7218 = vld [vmem:[%s3407] sm:$0x3]
    %v7219 = vld [vmem:[%s3409] sm:$0x3]
    %v7221 = vsel %vm1932, %v7216, 0
    %7223 = vmatprep.subr.mxu0 0.0
    %7224 = vmatpush1.msra.mxu0 %v6472
    %7225 = vmatprep.subr.mxu0 0.0
    %7226 = vmatpush1.msra.mxu0 %v6473
    %7227 = vmatprep.subr.mxu0 0.0
    %7228 = vmatpush1.msra.mxu0 %v6474
    %7229 = vmatprep.subr.mxu0 0.0
    %7230 = vmatpush1.msra.mxu0 %v6475
    %7231 = vmatprep.subr.mxu0 0.0
    %7232 = vmatpush1.msra.mxu0 0.0
    %7233 = vmatprep.subr.mxu0 0.0
    %7234 = vmatpush1.msra.mxu0 0.0
    %7235 = vmatprep.subr.mxu0 0.0
    %7236 = vmatpush1.msra.mxu0 0.0
    %7237 = vmatprep.subr.mxu0 0.0
    %7238 = vmatpush1.msra.mxu0 0.0
    %7239 = vmatprep.subr.mxu0 0.0
    %7240 = vmatpush1.msra.mxu0 0.0
    %7241 = vmatprep.subr.mxu0 0.0
    %7242 = vmatpush1.msra.mxu0 0.0
    %7243 = vmatprep.subr.mxu0 0.0
    %7244 = vmatpush1.msra.mxu0 0.0
    %7245 = vmatprep.subr.mxu0 0.0
    %7246 = vmatpush1.msra.mxu0 0.0
    %7247 = vmatprep.subr.mxu0 0.0
    %7248 = vmatpush1.msra.mxu0 0.0
    %7249 = vmatprep.subr.mxu0 0.0
    %7250 = vmatpush1.msra.mxu0 0.0
    %7251 = vmatprep.subr.mxu0 0.0
    %7252 = vmatpush1.msra.mxu0 0.0
    %7253 = vmatprep.subr.mxu0 0.0
    %7254 = vmatpush1.msra.mxu0 0.0
    %7255 = vmatprep.subr.mxu0 0.0
    %7256 = vmatpush1.msra.mxu0 0.0
    %7257 = vmatprep.subr.mxu0 0.0
    %7258 = vmatpush1.msra.mxu0 0.0
    %7259 = vmatprep.subr.mxu0 0.0
    %7260 = vmatpush1.msra.mxu0 0.0
    %7261 = vmatprep.subr.mxu0 0.0
    %7262 = vmatpush1.msra.mxu0 0.0
    %7263 = vmatprep.subr.mxu0 0.0
    %7264 = vmatpush1.msra.mxu0 0.0
    %7265 = vmatprep.subr.mxu0 0.0
    %7266 = vmatpush1.msra.mxu0 0.0
    %7267 = vmatprep.subr.mxu0 0.0
    %7268 = vmatpush1.msra.mxu0 0.0
    %7269 = vmatprep.subr.mxu0 0.0
    %7270 = vmatpush1.msra.mxu0 0.0
    %7271 = vmatprep.subr.mxu0 0.0
    %7272 = vmatpush1.msra.mxu0 0.0
    %7273 = vmatprep.subr.mxu0 0.0
    %7274 = vmatpush1.msra.mxu0 0.0
    %7275 = vmatprep.subr.mxu0 0.0
    %7276 = vmatpush1.msra.mxu0 0.0
    %7277 = vmatprep.subr.mxu0 0.0
    %7278 = vmatpush1.msra.mxu0 0.0
    %7279 = vmatprep.subr.mxu0 0.0
    %7280 = vmatpush1.msra.mxu0 0.0
    %7281 = vmatprep.subr.mxu0 0.0
    %7282 = vmatpush1.msra.mxu0 0.0
    %7283 = vmatprep.subr.mxu0 0.0
    %7284 = vmatpush1.msra.mxu0 0.0
    %7285 = vmatprep.subr.mxu0 0.0
    %7286 = vmatpush1.msra.mxu0 0.0
    %7287 = vmatprep.mubr.f32.mxu0 0.0
    %7288 = vmatmul.mubr.f32.gmra.mrb[0].mxu0 %v7221
    %v7289 = vpop.f32.mrb[0].mxu0
    %v7290 = vadd.f32 %v6498, %v7289
    %v7291 = vpop.f32.mrb[0].mxu0
    %7292 = vdwg.mxu0
    %7293 = vmatprep.subr.mxu0 0.0
    %7294 = vmatpush1.msra.mxu0 %v6477
    %7295 = vmatprep.subr.mxu0 0.0
    %7296 = vmatpush1.msra.mxu0 %v6478
    %7297 = vmatprep.subr.mxu0 0.0
    %7298 = vmatpush1.msra.mxu0 %v6479
    %7299 = vmatprep.subr.mxu0 0.0
    %7300 = vmatpush1.msra.mxu0 %v6480
    %7301 = vmatprep.subr.mxu0 0.0
    %7302 = vmatpush1.msra.mxu0 0.0
    %7303 = vmatprep.subr.mxu0 0.0
    %7304 = vmatpush1.msra.mxu0 0.0
    %7305 = vmatprep.subr.mxu0 0.0
    %7306 = vmatpush1.msra.mxu0 0.0
    %7307 = vmatprep.subr.mxu0 0.0
    %7308 = vmatpush1.msra.mxu0 0.0
    %7309 = vmatprep.subr.mxu0 0.0
    %7310 = vmatpush1.msra.mxu0 0.0
    %7311 = vmatprep.subr.mxu0 0.0
    %7312 = vmatpush1.msra.mxu0 0.0
    %7313 = vmatprep.subr.mxu0 0.0
    %7314 = vmatpush1.msra.mxu0 0.0
    %7315 = vmatprep.subr.mxu0 0.0
    %7316 = vmatpush1.msra.mxu0 0.0
    %7317 = vmatprep.subr.mxu0 0.0
    %7318 = vmatpush1.msra.mxu0 0.0
    %7319 = vmatprep.subr.mxu0 0.0
    %7320 = vmatpush1.msra.mxu0 0.0
    %7321 = vmatprep.subr.mxu0 0.0
    %7322 = vmatpush1.msra.mxu0 0.0
    %7323 = vmatprep.subr.mxu0 0.0
    %7324 = vmatpush1.msra.mxu0 0.0
    %7325 = vmatprep.subr.mxu0 0.0
    %7326 = vmatpush1.msra.mxu0 0.0
    %7327 = vmatprep.subr.mxu0 0.0
    %7328 = vmatpush1.msra.mxu0 0.0
    %7329 = vmatprep.subr.mxu0 0.0
    %7330 = vmatpush1.msra.mxu0 0.0
    %7331 = vmatprep.subr.mxu0 0.0
    %7332 = vmatpush1.msra.mxu0 0.0
    %7333 = vmatprep.subr.mxu0 0.0
    %7334 = vmatpush1.msra.mxu0 0.0
    %7335 = vmatprep.subr.mxu0 0.0
    %7336 = vmatpush1.msra.mxu0 0.0
    %7337 = vmatprep.subr.mxu0 0.0
    %7338 = vmatpush1.msra.mxu0 0.0
    %7339 = vmatprep.subr.mxu0 0.0
    %7340 = vmatpush1.msra.mxu0 0.0
    %7341 = vmatprep.subr.mxu0 0.0
    %7342 = vmatpush1.msra.mxu0 0.0
    %7343 = vmatprep.subr.mxu0 0.0
    %7344 = vmatpush1.msra.mxu0 0.0
    %7345 = vmatprep.subr.mxu0 0.0
    %7346 = vmatpush1.msra.mxu0 0.0
    %7347 = vmatprep.subr.mxu0 0.0
    %7348 = vmatpush1.msra.mxu0 0.0
    %7349 = vmatprep.subr.mxu0 0.0
    %7350 = vmatpush1.msra.mxu0 0.0
    %7351 = vmatprep.subr.mxu0 0.0
    %7352 = vmatpush1.msra.mxu0 0.0
    %7353 = vmatprep.subr.mxu0 0.0
    %7354 = vmatpush1.msra.mxu0 0.0
    %7355 = vmatprep.subr.mxu0 0.0
    %7356 = vmatpush1.msra.mxu0 0.0
    %7357 = vmatprep.mubr.f32.mxu0 0.0
    %7358 = vmatmul.mubr.f32.gmra.mrb[0].mxu0 %v7221
    %v7359 = vpop.f32.mrb[0].mxu0
    %v7360 = vadd.f32 %v6574, %v7359
    %v7361 = vpop.f32.mrb[0].mxu0
    %7362 = vdwg.mxu0
    %7363 = vmatprep.subr.mxu0 0.0
    %7364 = vmatpush1.msra.mxu0 %v6482
    %7365 = vmatprep.subr.mxu0 0.0
    %7366 = vmatpush1.msra.mxu0 %v6483
    %7367 = vmatprep.subr.mxu0 0.0
    %7368 = vmatpush1.msra.mxu0 %v6484
    %7369 = vmatprep.subr.mxu0 0.0
    %7370 = vmatpush1.msra.mxu0 %v6485
    %7371 = vmatprep.subr.mxu0 0.0
    %7372 = vmatpush1.msra.mxu0 0.0
    %7373 = vmatprep.subr.mxu0 0.0
    %7374 = vmatpush1.msra.mxu0 0.0
    %7375 = vmatprep.subr.mxu0 0.0
    %7376 = vmatpush1.msra.mxu0 0.0
    %7377 = vmatprep.subr.mxu0 0.0
    %7378 = vmatpush1.msra.mxu0 0.0
    %7379 = vmatprep.subr.mxu0 0.0
    %7380 = vmatpush1.msra.mxu0 0.0
    %7381 = vmatprep.subr.mxu0 0.0
    %7382 = vmatpush1.msra.mxu0 0.0
    %7383 = vmatprep.subr.mxu0 0.0
    %7384 = vmatpush1.msra.mxu0 0.0
    %7385 = vmatprep.subr.mxu0 0.0
    %7386 = vmatpush1.msra.mxu0 0.0
    %7387 = vmatprep.subr.mxu0 0.0
    %7388 = vmatpush1.msra.mxu0 0.0
    %7389 = vmatprep.subr.mxu0 0.0
    %7390 = vmatpush1.msra.mxu0 0.0
    %7391 = vmatprep.subr.mxu0 0.0
    %7392 = vmatpush1.msra.mxu0 0.0
    %7393 = vmatprep.subr.mxu0 0.0
    %7394 = vmatpush1.msra.mxu0 0.0
    %7395 = vmatprep.subr.mxu0 0.0
    %7396 = vmatpush1.msra.mxu0 0.0
    %7397 = vmatprep.subr.mxu0 0.0
    %7398 = vmatpush1.msra.mxu0 0.0
    %7399 = vmatprep.subr.mxu0 0.0
    %7400 = vmatpush1.msra.mxu0 0.0
    %7401 = vmatprep.subr.mxu0 0.0
    %7402 = vmatpush1.msra.mxu0 0.0
    %7403 = vmatprep.subr.mxu0 0.0
    %7404 = vmatpush1.msra.mxu0 0.0
    %7405 = vmatprep.subr.mxu0 0.0
    %7406 = vmatpush1.msra.mxu0 0.0
    %7407 = vmatprep.subr.mxu0 0.0
    %7408 = vmatpush1.msra.mxu0 0.0
    %7409 = vmatprep.subr.mxu0 0.0
    %7410 = vmatpush1.msra.mxu0 0.0
    %7411 = vmatprep.subr.mxu0 0.0
    %7412 = vmatpush1.msra.mxu0 0.0
    %7413 = vmatprep.subr.mxu0 0.0
    %7414 = vmatpush1.msra.mxu0 0.0
    %7415 = vmatprep.subr.mxu0 0.0
    %7416 = vmatpush1.msra.mxu0 0.0
    %7417 = vmatprep.subr.mxu0 0.0
    %7418 = vmatpush1.msra.mxu0 0.0
    %7419 = vmatprep.subr.mxu0 0.0
    %7420 = vmatpush1.msra.mxu0 0.0
    %7421 = vmatprep.subr.mxu0 0.0
    %7422 = vmatpush1.msra.mxu0 0.0
    %7423 = vmatprep.subr.mxu0 0.0
    %7424 = vmatpush1.msra.mxu0 0.0
    %7425 = vmatprep.subr.mxu0 0.0
    %7426 = vmatpush1.msra.mxu0 0.0
    %7427 = vmatprep.mubr.f32.mxu0 0.0
    %7428 = vmatmul.mubr.f32.gmra.mrb[0].mxu0 %v7221
    %v7429 = vpop.f32.mrb[0].mxu0
    %v7430 = vadd.f32 %v6650, %v7429
    %v7431 = vpop.f32.mrb[0].mxu0
    %7432 = vdwg.mxu0
    %v7433 = vadd.f32 %v7217, %v7290
    %v7434 = vxor.u32 %v7433, 2147483648
    %v7435 = vmul.f32 %v7434, 1.442695
    %v7436 = vpow.pop %v7435
    %v7437 = vadd.f32 %v7436, 1.0
    %v7438 = vrcp.pop %v7437
    %v7439 = vmul.f32 1.0, %v7438
    %v7440 = vadd.f32 %v7218, %v7360
    %v7441 = vxor.u32 %v7440, 2147483648
    %v7442 = vmul.f32 %v7441, 1.442695
    %v7443 = vpow.pop %v7442
    %v7444 = vadd.f32 %v7443, 1.0
    %v7445 = vrcp.pop %v7444
    %v7446 = vmul.f32 1.0, %v7445
    %v7447 = vmul.f32 %v7439, %v7430
    %v7448 = vadd.f32 %v7219, %v7447
    %v7449 = vtanh.pop %v7448
    %v7450 = vsub.f32 1.0, %v7446
    %v7451 = vmul.f32 %v7450, %v7449
    %v7452 = vmul.f32 %v7446, %v7216
    %v7453 = vadd.f32 %v7451, %v7452
    %v7454 = vld [vmem:[%s3889] sm:$0x3]
    %v7455 = vld [vmem:[%s3891] sm:$0x3]
    %v7456 = vld [vmem:[%s3893] sm:$0x3]
    %v7458 = vsel %vm1932, %v7453, 0
    %7460 = vmatprep.subr.mxu0 0.0
    %7461 = vmatpush1.msra.mxu0 %v6472
    %7462 = vmatprep.subr.mxu0 0.0
    %7463 = vmatpush1.msra.mxu0 %v6473
    %7464 = vmatprep.subr.mxu0 0.0
    %7465 = vmatpush1.msra.mxu0 %v6474
    %7466 = vmatprep.subr.mxu0 0.0
    %7467 = vmatpush1.msra.mxu0 %v6475
    %7468 = vmatprep.subr.mxu0 0.0
    %7469 = vmatpush1.msra.mxu0 0.0
    %7470 = vmatprep.subr.mxu0 0.0
    %7471 = vmatpush1.msra.mxu0 0.0
    %7472 = vmatprep.subr.mxu0 0.0
    %7473 = vmatpush1.msra.mxu0 0.0
    %7474 = vmatprep.subr.mxu0 0.0
    %7475 = vmatpush1.msra.mxu0 0.0
    %7476 = vmatprep.subr.mxu0 0.0
    %7477 = vmatpush1.msra.mxu0 0.0
    %7478 = vmatprep.subr.mxu0 0.0
    %7479 = vmatpush1.msra.mxu0 0.0
    %7480 = vmatprep.subr.mxu0 0.0
    %7481 = vmatpush1.msra.mxu0 0.0
    %7482 = vmatprep.subr.mxu0 0.0
    %7483 = vmatpush1.msra.mxu0 0.0
    %7484 = vmatprep.subr.mxu0 0.0
    %7485 = vmatpush1.msra.mxu0 0.0
    %7486 = vmatprep.subr.mxu0 0.0
    %7487 = vmatpush1.msra.mxu0 0.0
    %7488 = vmatprep.subr.mxu0 0.0
    %7489 = vmatpush1.msra.mxu0 0.0
    %7490 = vmatprep.subr.mxu0 0.0
    %7491 = vmatpush1.msra.mxu0 0.0
    %7492 = vmatprep.subr.mxu0 0.0
    %7493 = vmatpush1.msra.mxu0 0.0
    %7494 = vmatprep.subr.mxu0 0.0
    %7495 = vmatpush1.msra.mxu0 0.0
    %7496 = vmatprep.subr.mxu0 0.0
    %7497 = vmatpush1.msra.mxu0 0.0
    %7498 = vmatprep.subr.mxu0 0.0
    %7499 = vmatpush1.msra.mxu0 0.0
    %7500 = vmatprep.subr.mxu0 0.0
    %7501 = vmatpush1.msra.mxu0 0.0
    %7502 = vmatprep.subr.mxu0 0.0
    %7503 = vmatpush1.msra.mxu0 0.0
    %7504 = vmatprep.subr.mxu0 0.0
    %7505 = vmatpush1.msra.mxu0 0.0
    %7506 = vmatprep.subr.mxu0 0.0
    %7507 = vmatpush1.msra.mxu0 0.0
    %7508 = vmatprep.subr.mxu0 0.0
    %7509 = vmatpush1.msra.mxu0 0.0
    %7510 = vmatprep.subr.mxu0 0.0
    %7511 = vmatpush1.msra.mxu0 0.0
    %7512 = vmatprep.subr.mxu0 0.0
    %7513 = vmatpush1.msra.mxu0 0.0
    %7514 = vmatprep.subr.mxu0 0.0
    %7515 = vmatpush1.msra.mxu0 0.0
    %7516 = vmatprep.subr.mxu0 0.0
    %7517 = vmatpush1.msra.mxu0 0.0
    %7518 = vmatprep.subr.mxu0 0.0
    %7519 = vmatpush1.msra.mxu0 0.0
    %7520 = vmatprep.subr.mxu0 0.0
    %7521 = vmatpush1.msra.mxu0 0.0
    %7522 = vmatprep.subr.mxu0 0.0
    %7523 = vmatpush1.msra.mxu0 0.0
    %7524 = vmatprep.mubr.f32.mxu0 0.0
    %7525 = vmatmul.mubr.f32.gmra.mrb[0].mxu0 %v7458
    %v7526 = vpop.f32.mrb[0].mxu0
    %v7527 = vadd.f32 %v6498, %v7526
    %v7528 = vpop.f32.mrb[0].mxu0
    %7529 = vdwg.mxu0
    %7530 = vmatprep.subr.mxu0 0.0
    %7531 = vmatpush1.msra.mxu0 %v6477
    %7532 = vmatprep.subr.mxu0 0.0
    %7533 = vmatpush1.msra.mxu0 %v6478
    %7534 = vmatprep.subr.mxu0 0.0
    %7535 = vmatpush1.msra.mxu0 %v6479
    %7536 = vmatprep.subr.mxu0 0.0
    %7537 = vmatpush1.msra.mxu0 %v6480
    %7538 = vmatprep.subr.mxu0 0.0
    %7539 = vmatpush1.msra.mxu0 0.0
    %7540 = vmatprep.subr.mxu0 0.0
    %7541 = vmatpush1.msra.mxu0 0.0
    %7542 = vmatprep.subr.mxu0 0.0
    %7543 = vmatpush1.msra.mxu0 0.0
    %7544 = vmatprep.subr.mxu0 0.0
    %7545 = vmatpush1.msra.mxu0 0.0
    %7546 = vmatprep.subr.mxu0 0.0
    %7547 = vmatpush1.msra.mxu0 0.0
    %7548 = vmatprep.subr.mxu0 0.0
    %7549 = vmatpush1.msra.mxu0 0.0
    %7550 = vmatprep.subr.mxu0 0.0
    %7551 = vmatpush1.msra.mxu0 0.0
    %7552 = vmatprep.subr.mxu0 0.0
    %7553 = vmatpush1.msra.mxu0 0.0
    %7554 = vmatprep.subr.mxu0 0.0
    %7555 = vmatpush1.msra.mxu0 0.0
    %7556 = vmatprep.subr.mxu0 0.0
    %7557 = vmatpush1.msra.mxu0 0.0
    %7558 = vmatprep.subr.mxu0 0.0
    %7559 = vmatpush1.msra.mxu0 0.0
    %7560 = vmatprep.subr.mxu0 0.0
    %7561 = vmatpush1.msra.mxu0 0.0
    %7562 = vmatprep.subr.mxu0 0.0
    %7563 = vmatpush1.msra.mxu0 0.0
    %7564 = vmatprep.subr.mxu0 0.0
    %7565 = vmatpush1.msra.mxu0 0.0
    %7566 = vmatprep.subr.mxu0 0.0
    %7567 = vmatpush1.msra.mxu0 0.0
    %7568 = vmatprep.subr.mxu0 0.0
    %7569 = vmatpush1.msra.mxu0 0.0
    %7570 = vmatprep.subr.mxu0 0.0
    %7571 = vmatpush1.msra.mxu0 0.0
    %7572 = vmatprep.subr.mxu0 0.0
    %7573 = vmatpush1.msra.mxu0 0.0
    %7574 = vmatprep.subr.mxu0 0.0
    %7575 = vmatpush1.msra.mxu0 0.0
    %7576 = vmatprep.subr.mxu0 0.0
    %7577 = vmatpush1.msra.mxu0 0.0
    %7578 = vmatprep.subr.mxu0 0.0
    %7579 = vmatpush1.msra.mxu0 0.0
    %7580 = vmatprep.subr.mxu0 0.0
    %7581 = vmatpush1.msra.mxu0 0.0
    %7582 = vmatprep.subr.mxu0 0.0
    %7583 = vmatpush1.msra.mxu0 0.0
    %7584 = vmatprep.subr.mxu0 0.0
    %7585 = vmatpush1.msra.mxu0 0.0
    %7586 = vmatprep.subr.mxu0 0.0
    %7587 = vmatpush1.msra.mxu0 0.0
    %7588 = vmatprep.subr.mxu0 0.0
    %7589 = vmatpush1.msra.mxu0 0.0
    %7590 = vmatprep.subr.mxu0 0.0
    %7591 = vmatpush1.msra.mxu0 0.0
    %7592 = vmatprep.subr.mxu0 0.0
    %7593 = vmatpush1.msra.mxu0 0.0
    %7594 = vmatprep.mubr.f32.mxu0 0.0
    %7595 = vmatmul.mubr.f32.gmra.mrb[0].mxu0 %v7458
    %v7596 = vpop.f32.mrb[0].mxu0
    %v7597 = vadd.f32 %v6574, %v7596
    %v7598 = vpop.f32.mrb[0].mxu0
    %7599 = vdwg.mxu0
    %7600 = vmatprep.subr.mxu0 0.0
    %7601 = vmatpush1.msra.mxu0 %v6482
    %7602 = vmatprep.subr.mxu0 0.0
    %7603 = vmatpush1.msra.mxu0 %v6483
    %7604 = vmatprep.subr.mxu0 0.0
    %7605 = vmatpush1.msra.mxu0 %v6484
    %7606 = vmatprep.subr.mxu0 0.0
    %7607 = vmatpush1.msra.mxu0 %v6485
    %7608 = vmatprep.subr.mxu0 0.0
    %7609 = vmatpush1.msra.mxu0 0.0
    %7610 = vmatprep.subr.mxu0 0.0
    %7611 = vmatpush1.msra.mxu0 0.0
    %7612 = vmatprep.subr.mxu0 0.0
    %7613 = vmatpush1.msra.mxu0 0.0
    %7614 = vmatprep.subr.mxu0 0.0
    %7615 = vmatpush1.msra.mxu0 0.0
    %7616 = vmatprep.subr.mxu0 0.0
    %7617 = vmatpush1.msra.mxu0 0.0
    %7618 = vmatprep.subr.mxu0 0.0
    %7619 = vmatpush1.msra.mxu0 0.0
    %7620 = vmatprep.subr.mxu0 0.0
    %7621 = vmatpush1.msra.mxu0 0.0
    %7622 = vmatprep.subr.mxu0 0.0
    %7623 = vmatpush1.msra.mxu0 0.0
    %7624 = vmatprep.subr.mxu0 0.0
    %7625 = vmatpush1.msra.mxu0 0.0
    %7626 = vmatprep.subr.mxu0 0.0
    %7627 = vmatpush1.msra.mxu0 0.0
    %7628 = vmatprep.subr.mxu0 0.0
    %7629 = vmatpush1.msra.mxu0 0.0
    %7630 = vmatprep.subr.mxu0 0.0
    %7631 = vmatpush1.msra.mxu0 0.0
    %7632 = vmatprep.subr.mxu0 0.0
    %7633 = vmatpush1.msra.mxu0 0.0
    %7634 = vmatprep.subr.mxu0 0.0
    %7635 = vmatpush1.msra.mxu0 0.0
    %7636 = vmatprep.subr.mxu0 0.0
    %7637 = vmatpush1.msra.mxu0 0.0
    %7638 = vmatprep.subr.mxu0 0.0
    %7639 = vmatpush1.msra.mxu0 0.0
    %7640 = vmatprep.subr.mxu0 0.0
    %7641 = vmatpush1.msra.mxu0 0.0
    %7642 = vmatprep.subr.mxu0 0.0
    %7643 = vmatpush1.msra.mxu0 0.0
    %7644 = vmatprep.subr.mxu0 0.0
    %7645 = vmatpush1.msra.mxu0 0.0
    %7646 = vmatprep.subr.mxu0 0.0
    %7647 = vmatpush1.msra.mxu0 0.0
    %7648 = vmatprep.subr.mxu0 0.0
    %7649 = vmatpush1.msra.mxu0 0.0
    %7650 = vmatprep.subr.mxu0 0.0
    %7651 = vmatpush1.msra.mxu0 0.0
    %7652 = vmatprep.subr.mxu0 0.0
    %7653 = vmatpush1.msra.mxu0 0.0
    %7654 = vmatprep.subr.mxu0 0.0
    %7655 = vmatpush1.msra.mxu0 0.0
    %7656 = vmatprep.subr.mxu0 0.0
    %7657 = vmatpush1.msra.mxu0 0.0
    %7658 = vmatprep.subr.mxu0 0.0
    %7659 = vmatpush1.msra.mxu0 0.0
    %7660 = vmatprep.subr.mxu0 0.0
    %7661 = vmatpush1.msra.mxu0 0.0
    %7662 = vmatprep.subr.mxu0 0.0
    %7663 = vmatpush1.msra.mxu0 0.0
    %7664 = vmatprep.mubr.f32.mxu0 0.0
    %7665 = vmatmul.mubr.f32.gmra.mrb[0].mxu0 %v7458
    %v7666 = vpop.f32.mrb[0].mxu0
    %v7667 = vadd.f32 %v6650, %v7666
    %v7668 = vpop.f32.mrb[0].mxu0
    %7669 = vdwg.mxu0
    %v7670 = vadd.f32 %v7454, %v7527
    %v7671 = vxor.u32 %v7670, 2147483648
    %v7672 = vmul.f32 %v7671, 1.442695
    %v7673 = vpow.pop %v7672
    %v7674 = vadd.f32 %v7673, 1.0
    %v7675 = vrcp.pop %v7674
    %v7676 = vmul.f32 1.0, %v7675
    %v7677 = vadd.f32 %v7455, %v7597
    %v7678 = vxor.u32 %v7677, 2147483648
    %v7679 = vmul.f32 %v7678, 1.442695
    %v7680 = vpow.pop %v7679
    %v7681 = vadd.f32 %v7680, 1.0
    %v7682 = vrcp.pop %v7681
    %v7683 = vmul.f32 1.0, %v7682
    %v7684 = vmul.f32 %v7676, %v7667
    %v7685 = vadd.f32 %v7456, %v7684
    %v7686 = vtanh.pop %v7685
    %v7687 = vsub.f32 1.0, %v7683
    %v7688 = vmul.f32 %v7687, %v7686
    %v7689 = vmul.f32 %v7683, %v7453
    %v7690 = vadd.f32 %v7688, %v7689
    %v7691 = vld [vmem:[%s4373] sm:$0x3]
    %v7692 = vld [vmem:[%s4375] sm:$0x3]
    %v7693 = vld [vmem:[%s4377] sm:$0x3]
    %v7695 = vsel %vm1932, %v7690, 0
    %7697 = vmatprep.subr.mxu0 0.0
    %7698 = vmatpush1.msra.mxu0 %v6472
    %7699 = vmatprep.subr.mxu0 0.0
    %7700 = vmatpush1.msra.mxu0 %v6473
    %7701 = vmatprep.subr.mxu0 0.0
    %7702 = vmatpush1.msra.mxu0 %v6474
    %7703 = vmatprep.subr.mxu0 0.0
    %7704 = vmatpush1.msra.mxu0 %v6475
    %7705 = vmatprep.subr.mxu0 0.0
    %7706 = vmatpush1.msra.mxu0 0.0
    %7707 = vmatprep.subr.mxu0 0.0
    %7708 = vmatpush1.msra.mxu0 0.0
    %7709 = vmatprep.subr.mxu0 0.0
    %7710 = vmatpush1.msra.mxu0 0.0
    %7711 = vmatprep.subr.mxu0 0.0
    %7712 = vmatpush1.msra.mxu0 0.0
    %7713 = vmatprep.subr.mxu0 0.0
    %7714 = vmatpush1.msra.mxu0 0.0
    %7715 = vmatprep.subr.mxu0 0.0
    %7716 = vmatpush1.msra.mxu0 0.0
    %7717 = vmatprep.subr.mxu0 0.0
    %7718 = vmatpush1.msra.mxu0 0.0
    %7719 = vmatprep.subr.mxu0 0.0
    %7720 = vmatpush1.msra.mxu0 0.0
    %7721 = vmatprep.subr.mxu0 0.0
    %7722 = vmatpush1.msra.mxu0 0.0
    %7723 = vmatprep.subr.mxu0 0.0
    %7724 = vmatpush1.msra.mxu0 0.0
    %7725 = vmatprep.subr.mxu0 0.0
    %7726 = vmatpush1.msra.mxu0 0.0
    %7727 = vmatprep.subr.mxu0 0.0
    %7728 = vmatpush1.msra.mxu0 0.0
    %7729 = vmatprep.subr.mxu0 0.0
    %7730 = vmatpush1.msra.mxu0 0.0
    %7731 = vmatprep.subr.mxu0 0.0
    %7732 = vmatpush1.msra.mxu0 0.0
    %7733 = vmatprep.subr.mxu0 0.0
    %7734 = vmatpush1.msra.mxu0 0.0
    %7735 = vmatprep.subr.mxu0 0.0
    %7736 = vmatpush1.msra.mxu0 0.0
    %7737 = vmatprep.subr.mxu0 0.0
    %7738 = vmatpush1.msra.mxu0 0.0
    %7739 = vmatprep.subr.mxu0 0.0
    %7740 = vmatpush1.msra.mxu0 0.0
    %7741 = vmatprep.subr.mxu0 0.0
    %7742 = vmatpush1.msra.mxu0 0.0
    %7743 = vmatprep.subr.mxu0 0.0
    %7744 = vmatpush1.msra.mxu0 0.0
    %7745 = vmatprep.subr.mxu0 0.0
    %7746 = vmatpush1.msra.mxu0 0.0
    %7747 = vmatprep.subr.mxu0 0.0
    %7748 = vmatpush1.msra.mxu0 0.0
    %7749 = vmatprep.subr.mxu0 0.0
    %7750 = vmatpush1.msra.mxu0 0.0
    %7751 = vmatprep.subr.mxu0 0.0
    %7752 = vmatpush1.msra.mxu0 0.0
    %7753 = vmatprep.subr.mxu0 0.0
    %7754 = vmatpush1.msra.mxu0 0.0
    %7755 = vmatprep.subr.mxu0 0.0
    %7756 = vmatpush1.msra.mxu0 0.0
    %7757 = vmatprep.subr.mxu0 0.0
    %7758 = vmatpush1.msra.mxu0 0.0
    %7759 = vmatprep.subr.mxu0 0.0
    %7760 = vmatpush1.msra.mxu0 0.0
    %7761 = vmatprep.mubr.f32.mxu0 0.0
    %7762 = vmatmul.mubr.f32.gmra.mrb[0].mxu0 %v7695
    %v7763 = vpop.f32.mrb[0].mxu0
    %v7764 = vadd.f32 %v6498, %v7763
    %v7765 = vpop.f32.mrb[0].mxu0
    %7766 = vdwg.mxu0
    %7767 = vmatprep.subr.mxu0 0.0
    %7768 = vmatpush1.msra.mxu0 %v6477
    %7769 = vmatprep.subr.mxu0 0.0
    %7770 = vmatpush1.msra.mxu0 %v6478
    %7771 = vmatprep.subr.mxu0 0.0
    %7772 = vmatpush1.msra.mxu0 %v6479
    %7773 = vmatprep.subr.mxu0 0.0
    %7774 = vmatpush1.msra.mxu0 %v6480
    %7775 = vmatprep.subr.mxu0 0.0
    %7776 = vmatpush1.msra.mxu0 0.0
    %7777 = vmatprep.subr.mxu0 0.0
    %7778 = vmatpush1.msra.mxu0 0.0
    %7779 = vmatprep.subr.mxu0 0.0
    %7780 = vmatpush1.msra.mxu0 0.0
    %7781 = vmatprep.subr.mxu0 0.0
    %7782 = vmatpush1.msra.mxu0 0.0
    %7783 = vmatprep.subr.mxu0 0.0
    %7784 = vmatpush1.msra.mxu0 0.0
    %7785 = vmatprep.subr.mxu0 0.0
    %7786 = vmatpush1.msra.mxu0 0.0
    %7787 = vmatprep.subr.mxu0 0.0
    %7788 = vmatpush1.msra.mxu0 0.0
    %7789 = vmatprep.subr.mxu0 0.0
    %7790 = vmatpush1.msra.mxu0 0.0
    %7791 = vmatprep.subr.mxu0 0.0
    %7792 = vmatpush1.msra.mxu0 0.0
    %7793 = vmatprep.subr.mxu0 0.0
    %7794 = vmatpush1.msra.mxu0 0.0
    %7795 = vmatprep.subr.mxu0 0.0
    %7796 = vmatpush1.msra.mxu0 0.0
    %7797 = vmatprep.subr.mxu0 0.0
    %7798 = vmatpush1.msra.mxu0 0.0
    %7799 = vmatprep.subr.mxu0 0.0
    %7800 = vmatpush1.msra.mxu0 0.0
    %7801 = vmatprep.subr.mxu0 0.0
    %7802 = vmatpush1.msra.mxu0 0.0
    %7803 = vmatprep.subr.mxu0 0.0
    %7804 = vmatpush1.msra.mxu0 0.0
    %7805 = vmatprep.subr.mxu0 0.0
    %7806 = vmatpush1.msra.mxu0 0.0
    %7807 = vmatprep.subr.mxu0 0.0
    %7808 = vmatpush1.msra.mxu0 0.0
    %7809 = vmatprep.subr.mxu0 0.0
    %7810 = vmatpush1.msra.mxu0 0.0
    %7811 = vmatprep.subr.mxu0 0.0
    %7812 = vmatpush1.msra.mxu0 0.0
    %7813 = vmatprep.subr.mxu0 0.0
    %7814 = vmatpush1.msra.mxu0 0.0
    %7815 = vmatprep.subr.mxu0 0.0
    %7816 = vmatpush1.msra.mxu0 0.0
    %7817 = vmatprep.subr.mxu0 0.0
    %7818 = vmatpush1.msra.mxu0 0.0
    %7819 = vmatprep.subr.mxu0 0.0
    %7820 = vmatpush1.msra.mxu0 0.0
    %7821 = vmatprep.subr.mxu0 0.0
    %7822 = vmatpush1.msra.mxu0 0.0
    %7823 = vmatprep.subr.mxu0 0.0
    %7824 = vmatpush1.msra.mxu0 0.0
    %7825 = vmatprep.subr.mxu0 0.0
    %7826 = vmatpush1.msra.mxu0 0.0
    %7827 = vmatprep.subr.mxu0 0.0
    %7828 = vmatpush1.msra.mxu0 0.0
    %7829 = vmatprep.subr.mxu0 0.0
    %7830 = vmatpush1.msra.mxu0 0.0
    %7831 = vmatprep.mubr.f32.mxu0 0.0
    %7832 = vmatmul.mubr.f32.gmra.mrb[0].mxu0 %v7695
    %v7833 = vpop.f32.mrb[0].mxu0
    %v7834 = vadd.f32 %v6574, %v7833
    %v7835 = vpop.f32.mrb[0].mxu0
    %7836 = vdwg.mxu0
    %7837 = vmatprep.subr.mxu0 0.0
    %7838 = vmatpush1.msra.mxu0 %v6482
    %7839 = vmatprep.subr.mxu0 0.0
    %7840 = vmatpush1.msra.mxu0 %v6483
    %7841 = vmatprep.subr.mxu0 0.0
    %7842 = vmatpush1.msra.mxu0 %v6484
    %7843 = vmatprep.subr.mxu0 0.0
    %7844 = vmatpush1.msra.mxu0 %v6485
    %7845 = vmatprep.subr.mxu0 0.0
    %7846 = vmatpush1.msra.mxu0 0.0
    %7847 = vmatprep.subr.mxu0 0.0
    %7848 = vmatpush1.msra.mxu0 0.0
    %7849 = vmatprep.subr.mxu0 0.0
    %7850 = vmatpush1.msra.mxu0 0.0
    %7851 = vmatprep.subr.mxu0 0.0
    %7852 = vmatpush1.msra.mxu0 0.0
    %7853 = vmatprep.subr.mxu0 0.0
    %7854 = vmatpush1.msra.mxu0 0.0
    %7855 = vmatprep.subr.mxu0 0.0
    %7856 = vmatpush1.msra.mxu0 0.0
    %7857 = vmatprep.subr.mxu0 0.0
    %7858 = vmatpush1.msra.mxu0 0.0
    %7859 = vmatprep.subr.mxu0 0.0
    %7860 = vmatpush1.msra.mxu0 0.0
    %7861 = vmatprep.subr.mxu0 0.0
    %7862 = vmatpush1.msra.mxu0 0.0
    %7863 = vmatprep.subr.mxu0 0.0
    %7864 = vmatpush1.msra.mxu0 0.0
    %7865 = vmatprep.subr.mxu0 0.0
    %7866 = vmatpush1.msra.mxu0 0.0
    %7867 = vmatprep.subr.mxu0 0.0
    %7868 = vmatpush1.msra.mxu0 0.0
    %7869 = vmatprep.subr.mxu0 0.0
    %7870 = vmatpush1.msra.mxu0 0.0
    %7871 = vmatprep.subr.mxu0 0.0
    %7872 = vmatpush1.msra.mxu0 0.0
    %7873 = vmatprep.subr.mxu0 0.0
    %7874 = vmatpush1.msra.mxu0 0.0
    %7875 = vmatprep.subr.mxu0 0.0
    %7876 = vmatpush1.msra.mxu0 0.0
    %7877 = vmatprep.subr.mxu0 0.0
    %7878 = vmatpush1.msra.mxu0 0.0
    %7879 = vmatprep.subr.mxu0 0.0
    %7880 = vmatpush1.msra.mxu0 0.0
    %7881 = vmatprep.subr.mxu0 0.0
    %7882 = vmatpush1.msra.mxu0 0.0
    %7883 = vmatprep.subr.mxu0 0.0
    %7884 = vmatpush1.msra.mxu0 0.0
    %7885 = vmatprep.subr.mxu0 0.0
    %7886 = vmatpush1.msra.mxu0 0.0
    %7887 = vmatprep.subr.mxu0 0.0
    %7888 = vmatpush1.msra.mxu0 0.0
    %7889 = vmatprep.subr.mxu0 0.0
    %7890 = vmatpush1.msra.mxu0 0.0
    %7891 = vmatprep.subr.mxu0 0.0
    %7892 = vmatpush1.msra.mxu0 0.0
    %7893 = vmatprep.subr.mxu0 0.0
    %7894 = vmatpush1.msra.mxu0 0.0
    %7895 = vmatprep.subr.mxu0 0.0
    %7896 = vmatpush1.msra.mxu0 0.0
    %7897 = vmatprep.subr.mxu0 0.0
    %7898 = vmatpush1.msra.mxu0 0.0
    %7899 = vmatprep.subr.mxu0 0.0
    %7900 = vmatpush1.msra.mxu0 0.0
    %7901 = vmatprep.mubr.f32.mxu0 0.0
    %7902 = vmatmul.mubr.f32.gmra.mrb[0].mxu0 %v7695
    %v7903 = vpop.f32.mrb[0].mxu0
    %v7904 = vadd.f32 %v6650, %v7903
    %v7905 = vpop.f32.mrb[0].mxu0
    %7906 = vdwg.mxu0
    %v7907 = vadd.f32 %v7691, %v7764
    %v7908 = vxor.u32 %v7907, 2147483648
    %v7909 = vmul.f32 %v7908, 1.442695
    %v7910 = vpow.pop %v7909
    %v7911 = vadd.f32 %v7910, 1.0
    %v7912 = vrcp.pop %v7911
    %v7913 = vmul.f32 1.0, %v7912
    %v7914 = vadd.f32 %v7692, %v7834
    %v7915 = vxor.u32 %v7914, 2147483648
    %v7916 = vmul.f32 %v7915, 1.442695
    %v7917 = vpow.pop %v7916
    %v7918 = vadd.f32 %v7917, 1.0
    %v7919 = vrcp.pop %v7918
    %v7920 = vmul.f32 1.0, %v7919
    %v7921 = vmul.f32 %v7913, %v7904
    %v7922 = vadd.f32 %v7693, %v7921
    %v7923 = vtanh.pop %v7922
    %v7924 = vsub.f32 1.0, %v7920
    %v7925 = vmul.f32 %v7924, %v7923
    %v7926 = vmul.f32 %v7920, %v7690
    %v7927 = vadd.f32 %v7925, %v7926
    %v7928 = vld [vmem:[%s4857] sm:$0x3]
    %v7929 = vld [vmem:[%s4859] sm:$0x3]
    %v7930 = vld [vmem:[%s4861] sm:$0x3]
    %v7932 = vsel %vm1932, %v7927, 0
    %7934 = vmatprep.subr.mxu0 0.0
    %7935 = vmatpush1.msra.mxu0 %v6472
    %7936 = vmatprep.subr.mxu0 0.0
    %7937 = vmatpush1.msra.mxu0 %v6473
    %7938 = vmatprep.subr.mxu0 0.0
    %7939 = vmatpush1.msra.mxu0 %v6474
    %7940 = vmatprep.subr.mxu0 0.0
    %7941 = vmatpush1.msra.mxu0 %v6475
    %7942 = vmatprep.subr.mxu0 0.0
    %7943 = vmatpush1.msra.mxu0 0.0
    %7944 = vmatprep.subr.mxu0 0.0
    %7945 = vmatpush1.msra.mxu0 0.0
    %7946 = vmatprep.subr.mxu0 0.0
    %7947 = vmatpush1.msra.mxu0 0.0
    %7948 = vmatprep.subr.mxu0 0.0
    %7949 = vmatpush1.msra.mxu0 0.0
    %7950 = vmatprep.subr.mxu0 0.0
    %7951 = vmatpush1.msra.mxu0 0.0
    %7952 = vmatprep.subr.mxu0 0.0
    %7953 = vmatpush1.msra.mxu0 0.0
    %7954 = vmatprep.subr.mxu0 0.0
    %7955 = vmatpush1.msra.mxu0 0.0
    %7956 = vmatprep.subr.mxu0 0.0
    %7957 = vmatpush1.msra.mxu0 0.0
    %7958 = vmatprep.subr.mxu0 0.0
    %7959 = vmatpush1.msra.mxu0 0.0
    %7960 = vmatprep.subr.mxu0 0.0
    %7961 = vmatpush1.msra.mxu0 0.0
    %7962 = vmatprep.subr.mxu0 0.0
    %7963 = vmatpush1.msra.mxu0 0.0
    %7964 = vmatprep.subr.mxu0 0.0
    %7965 = vmatpush1.msra.mxu0 0.0
    %7966 = vmatprep.subr.mxu0 0.0
    %7967 = vmatpush1.msra.mxu0 0.0
    %7968 = vmatprep.subr.mxu0 0.0
    %7969 = vmatpush1.msra.mxu0 0.0
    %7970 = vmatprep.subr.mxu0 0.0
    %7971 = vmatpush1.msra.mxu0 0.0
    %7972 = vmatprep.subr.mxu0 0.0
    %7973 = vmatpush1.msra.mxu0 0.0
    %7974 = vmatprep.subr.mxu0 0.0
    %7975 = vmatpush1.msra.mxu0 0.0
    %7976 = vmatprep.subr.mxu0 0.0
    %7977 = vmatpush1.msra.mxu0 0.0
    %7978 = vmatprep.subr.mxu0 0.0
    %7979 = vmatpush1.msra.mxu0 0.0
    %7980 = vmatprep.subr.mxu0 0.0
    %7981 = vmatpush1.msra.mxu0 0.0
    %7982 = vmatprep.subr.mxu0 0.0
    %7983 = vmatpush1.msra.mxu0 0.0
    %7984 = vmatprep.subr.mxu0 0.0
    %7985 = vmatpush1.msra.mxu0 0.0
    %7986 = vmatprep.subr.mxu0 0.0
    %7987 = vmatpush1.msra.mxu0 0.0
    %7988 = vmatprep.subr.mxu0 0.0
    %7989 = vmatpush1.msra.mxu0 0.0
    %7990 = vmatprep.subr.mxu0 0.0
    %7991 = vmatpush1.msra.mxu0 0.0
    %7992 = vmatprep.subr.mxu0 0.0
    %7993 = vmatpush1.msra.mxu0 0.0
    %7994 = vmatprep.subr.mxu0 0.0
    %7995 = vmatpush1.msra.mxu0 0.0
    %7996 = vmatprep.subr.mxu0 0.0
    %7997 = vmatpush1.msra.mxu0 0.0
    %7998 = vmatprep.mubr.f32.mxu0 0.0
    %7999 = vmatmul.mubr.f32.gmra.mrb[0].mxu0 %v7932
    %v8000 = vpop.f32.mrb[0].mxu0
    %v8001 = vadd.f32 %v6498, %v8000
    %v8002 = vpop.f32.mrb[0].mxu0
    %8003 = vdwg.mxu0
    %8004 = vmatprep.subr.mxu0 0.0
    %8005 = vmatpush1.msra.mxu0 %v6477
    %8006 = vmatprep.subr.mxu0 0.0
    %8007 = vmatpush1.msra.mxu0 %v6478
    %8008 = vmatprep.subr.mxu0 0.0
    %8009 = vmatpush1.msra.mxu0 %v6479
    %8010 = vmatprep.subr.mxu0 0.0
    %8011 = vmatpush1.msra.mxu0 %v6480
    %8012 = vmatprep.subr.mxu0 0.0
    %8013 = vmatpush1.msra.mxu0 0.0
    %8014 = vmatprep.subr.mxu0 0.0
    %8015 = vmatpush1.msra.mxu0 0.0
    %8016 = vmatprep.subr.mxu0 0.0
    %8017 = vmatpush1.msra.mxu0 0.0
    %8018 = vmatprep.subr.mxu0 0.0
    %8019 = vmatpush1.msra.mxu0 0.0
    %8020 = vmatprep.subr.mxu0 0.0
    %8021 = vmatpush1.msra.mxu0 0.0
    %8022 = vmatprep.subr.mxu0 0.0
    %8023 = vmatpush1.msra.mxu0 0.0
    %8024 = vmatprep.subr.mxu0 0.0
    %8025 = vmatpush1.msra.mxu0 0.0
    %8026 = vmatprep.subr.mxu0 0.0
    %8027 = vmatpush1.msra.mxu0 0.0
    %8028 = vmatprep.subr.mxu0 0.0
    %8029 = vmatpush1.msra.mxu0 0.0
    %8030 = vmatprep.subr.mxu0 0.0
    %8031 = vmatpush1.msra.mxu0 0.0
    %8032 = vmatprep.subr.mxu0 0.0
    %8033 = vmatpush1.msra.mxu0 0.0
    %8034 = vmatprep.subr.mxu0 0.0
    %8035 = vmatpush1.msra.mxu0 0.0
    %8036 = vmatprep.subr.mxu0 0.0
    %8037 = vmatpush1.msra.mxu0 0.0
    %8038 = vmatprep.subr.mxu0 0.0
    %8039 = vmatpush1.msra.mxu0 0.0
    %8040 = vmatprep.subr.mxu0 0.0
    %8041 = vmatpush1.msra.mxu0 0.0
    %8042 = vmatprep.subr.mxu0 0.0
    %8043 = vmatpush1.msra.mxu0 0.0
    %8044 = vmatprep.subr.mxu0 0.0
    %8045 = vmatpush1.msra.mxu0 0.0
    %8046 = vmatprep.subr.mxu0 0.0
    %8047 = vmatpush1.msra.mxu0 0.0
    %8048 = vmatprep.subr.mxu0 0.0
    %8049 = vmatpush1.msra.mxu0 0.0
    %8050 = vmatprep.subr.mxu0 0.0
    %8051 = vmatpush1.msra.mxu0 0.0
    %8052 = vmatprep.subr.mxu0 0.0
    %8053 = vmatpush1.msra.mxu0 0.0
    %8054 = vmatprep.subr.mxu0 0.0
    %8055 = vmatpush1.msra.mxu0 0.0
    %8056 = vmatprep.subr.mxu0 0.0
    %8057 = vmatpush1.msra.mxu0 0.0
    %8058 = vmatprep.subr.mxu0 0.0
    %8059 = vmatpush1.msra.mxu0 0.0
    %8060 = vmatprep.subr.mxu0 0.0
    %8061 = vmatpush1.msra.mxu0 0.0
    %8062 = vmatprep.subr.mxu0 0.0
    %8063 = vmatpush1.msra.mxu0 0.0
    %8064 = vmatprep.subr.mxu0 0.0
    %8065 = vmatpush1.msra.mxu0 0.0
    %8066 = vmatprep.subr.mxu0 0.0
    %8067 = vmatpush1.msra.mxu0 0.0
    %8068 = vmatprep.mubr.f32.mxu0 0.0
    %8069 = vmatmul.mubr.f32.gmra.mrb[0].mxu0 %v7932
    %v8070 = vpop.f32.mrb[0].mxu0
    %v8071 = vadd.f32 %v6574, %v8070
    %v8072 = vpop.f32.mrb[0].mxu0
    %8073 = vdwg.mxu0
    %8074 = vmatprep.subr.mxu0 0.0
    %8075 = vmatpush1.msra.mxu0 %v6482
    %8076 = vmatprep.subr.mxu0 0.0
    %8077 = vmatpush1.msra.mxu0 %v6483
    %8078 = vmatprep.subr.mxu0 0.0
    %8079 = vmatpush1.msra.mxu0 %v6484
    %8080 = vmatprep.subr.mxu0 0.0
    %8081 = vmatpush1.msra.mxu0 %v6485
    %8082 = vmatprep.subr.mxu0 0.0
    %8083 = vmatpush1.msra.mxu0 0.0
    %8084 = vmatprep.subr.mxu0 0.0
    %8085 = vmatpush1.msra.mxu0 0.0
    %8086 = vmatprep.subr.mxu0 0.0
    %8087 = vmatpush1.msra.mxu0 0.0
    %8088 = vmatprep.subr.mxu0 0.0
    %8089 = vmatpush1.msra.mxu0 0.0
    %8090 = vmatprep.subr.mxu0 0.0
    %8091 = vmatpush1.msra.mxu0 0.0
    %8092 = vmatprep.subr.mxu0 0.0
    %8093 = vmatpush1.msra.mxu0 0.0
    %8094 = vmatprep.subr.mxu0 0.0
    %8095 = vmatpush1.msra.mxu0 0.0
    %8096 = vmatprep.subr.mxu0 0.0
    %8097 = vmatpush1.msra.mxu0 0.0
    %8098 = vmatprep.subr.mxu0 0.0
    %8099 = vmatpush1.msra.mxu0 0.0
    %8100 = vmatprep.subr.mxu0 0.0
    %8101 = vmatpush1.msra.mxu0 0.0
    %8102 = vmatprep.subr.mxu0 0.0
    %8103 = vmatpush1.msra.mxu0 0.0
    %8104 = vmatprep.subr.mxu0 0.0
    %8105 = vmatpush1.msra.mxu0 0.0
    %8106 = vmatprep.subr.mxu0 0.0
    %8107 = vmatpush1.msra.mxu0 0.0
    %8108 = vmatprep.subr.mxu0 0.0
    %8109 = vmatpush1.msra.mxu0 0.0
    %8110 = vmatprep.subr.mxu0 0.0
    %8111 = vmatpush1.msra.mxu0 0.0
    %8112 = vmatprep.subr.mxu0 0.0
    %8113 = vmatpush1.msra.mxu0 0.0
    %8114 = vmatprep.subr.mxu0 0.0
    %8115 = vmatpush1.msra.mxu0 0.0
    %8116 = vmatprep.subr.mxu0 0.0
    %8117 = vmatpush1.msra.mxu0 0.0
    %8118 = vmatprep.subr.mxu0 0.0
    %8119 = vmatpush1.msra.mxu0 0.0
    %8120 = vmatprep.subr.mxu0 0.0
    %8121 = vmatpush1.msra.mxu0 0.0
    %8122 = vmatprep.subr.mxu0 0.0
    %8123 = vmatpush1.msra.mxu0 0.0
    %8124 = vmatprep.subr.mxu0 0.0
    %8125 = vmatpush1.msra.mxu0 0.0
    %8126 = vmatprep.subr.mxu0 0.0
    %8127 = vmatpush1.msra.mxu0 0.0
    %8128 = vmatprep.subr.mxu0 0.0
    %8129 = vmatpush1.msra.mxu0 0.0
    %8130 = vmatprep.subr.mxu0 0.0
    %8131 = vmatpush1.msra.mxu0 0.0
    %8132 = vmatprep.subr.mxu0 0.0
    %8133 = vmatpush1.msra.mxu0 0.0
    %8134 = vmatprep.subr.mxu0 0.0
    %8135 = vmatpush1.msra.mxu0 0.0
    %8136 = vmatprep.subr.mxu0 0.0
    %8137 = vmatpush1.msra.mxu0 0.0
    %8138 = vmatprep.mubr.f32.mxu0 0.0
    %8139 = vmatmul.mubr.f32.gmra.mrb[0].mxu0 %v7932
    %v8140 = vpop.f32.mrb[0].mxu0
    %v8141 = vadd.f32 %v6650, %v8140
    %v8142 = vpop.f32.mrb[0].mxu0
    %8143 = vdwg.mxu0
    %v8144 = vadd.f32 %v7928, %v8001
    %v8145 = vxor.u32 %v8144, 2147483648
    %v8146 = vmul.f32 %v8145, 1.442695
    %v8147 = vpow.pop %v8146
    %v8148 = vadd.f32 %v8147, 1.0
    %v8149 = vrcp.pop %v8148
    %v8150 = vmul.f32 1.0, %v8149
    %v8151 = vadd.f32 %v7929, %v8071
    %v8152 = vxor.u32 %v8151, 2147483648
    %v8153 = vmul.f32 %v8152, 1.442695
    %v8154 = vpow.pop %v8153
    %v8155 = vadd.f32 %v8154, 1.0
    %v8156 = vrcp.pop %v8155
    %v8157 = vmul.f32 1.0, %v8156
    %v8158 = vmul.f32 %v8150, %v8141
    %v8159 = vadd.f32 %v7930, %v8158
    %v8160 = vtanh.pop %v8159
    %v8161 = vsub.f32 1.0, %v8157
    %v8162 = vmul.f32 %v8161, %v8160
    %v8163 = vmul.f32 %v8157, %v7927
    %v8164 = vadd.f32 %v8162, %v8163
    %v8165 = vld [vmem:[%s5341] sm:$0x3]
    %v8166 = vld [vmem:[%s5343] sm:$0x3]
    %v8167 = vld [vmem:[%s5345] sm:$0x3]
    %v8169 = vsel %vm1932, %v8164, 0
    %8171 = vmatprep.subr.mxu0 0.0
    %8172 = vmatpush1.msra.mxu0 %v6472
    %8173 = vmatprep.subr.mxu0 0.0
    %8174 = vmatpush1.msra.mxu0 %v6473
    %8175 = vmatprep.subr.mxu0 0.0
    %8176 = vmatpush1.msra.mxu0 %v6474
    %8177 = vmatprep.subr.mxu0 0.0
    %8178 = vmatpush1.msra.mxu0 %v6475
    %8179 = vmatprep.subr.mxu0 0.0
    %8180 = vmatpush1.msra.mxu0 0.0
    %8181 = vmatprep.subr.mxu0 0.0
    %8182 = vmatpush1.msra.mxu0 0.0
    %8183 = vmatprep.subr.mxu0 0.0
    %8184 = vmatpush1.msra.mxu0 0.0
    %8185 = vmatprep.subr.mxu0 0.0
    %8186 = vmatpush1.msra.mxu0 0.0
    %8187 = vmatprep.subr.mxu0 0.0
    %8188 = vmatpush1.msra.mxu0 0.0
    %8189 = vmatprep.subr.mxu0 0.0
    %8190 = vmatpush1.msra.mxu0 0.0
    %8191 = vmatprep.subr.mxu0 0.0
    %8192 = vmatpush1.msra.mxu0 0.0
    %8193 = vmatprep.subr.mxu0 0.0
    %8194 = vmatpush1.msra.mxu0 0.0
    %8195 = vmatprep.subr.mxu0 0.0
    %8196 = vmatpush1.msra.mxu0 0.0
    %8197 = vmatprep.subr.mxu0 0.0
    %8198 = vmatpush1.msra.mxu0 0.0
    %8199 = vmatprep.subr.mxu0 0.0
    %8200 = vmatpush1.msra.mxu0 0.0
    %8201 = vmatprep.subr.mxu0 0.0
    %8202 = vmatpush1.msra.mxu0 0.0
    %8203 = vmatprep.subr.mxu0 0.0
    %8204 = vmatpush1.msra.mxu0 0.0
    %8205 = vmatprep.subr.mxu0 0.0
    %8206 = vmatpush1.msra.mxu0 0.0
    %8207 = vmatprep.subr.mxu0 0.0
    %8208 = vmatpush1.msra.mxu0 0.0
    %8209 = vmatprep.subr.mxu0 0.0
    %8210 = vmatpush1.msra.mxu0 0.0
    %8211 = vmatprep.subr.mxu0 0.0
    %8212 = vmatpush1.msra.mxu0 0.0
    %8213 = vmatprep.subr.mxu0 0.0
    %8214 = vmatpush1.msra.mxu0 0.0
    %8215 = vmatprep.subr.mxu0 0.0
    %8216 = vmatpush1.msra.mxu0 0.0
    %8217 = vmatprep.subr.mxu0 0.0
    %8218 = vmatpush1.msra.mxu0 0.0
    %8219 = vmatprep.subr.mxu0 0.0
    %8220 = vmatpush1.msra.mxu0 0.0
    %8221 = vmatprep.subr.mxu0 0.0
    %8222 = vmatpush1.msra.mxu0 0.0
    %8223 = vmatprep.subr.mxu0 0.0
    %8224 = vmatpush1.msra.mxu0 0.0
    %8225 = vmatprep.subr.mxu0 0.0
    %8226 = vmatpush1.msra.mxu0 0.0
    %8227 = vmatprep.subr.mxu0 0.0
    %8228 = vmatpush1.msra.mxu0 0.0
    %8229 = vmatprep.subr.mxu0 0.0
    %8230 = vmatpush1.msra.mxu0 0.0
    %8231 = vmatprep.subr.mxu0 0.0
    %8232 = vmatpush1.msra.mxu0 0.0
    %8233 = vmatprep.subr.mxu0 0.0
    %8234 = vmatpush1.msra.mxu0 0.0
    %8235 = vmatprep.mubr.f32.mxu0 0.0
    %8236 = vmatmul.mubr.f32.gmra.mrb[0].mxu0 %v8169
    %v8237 = vpop.f32.mrb[0].mxu0
    %v8238 = vadd.f32 %v6498, %v8237
    %v8239 = vpop.f32.mrb[0].mxu0
    %8240 = vdwg.mxu0
    %8241 = vmatprep.subr.mxu0 0.0
    %8242 = vmatpush1.msra.mxu0 %v6477
    %8243 = vmatprep.subr.mxu0 0.0
    %8244 = vmatpush1.msra.mxu0 %v6478
    %8245 = vmatprep.subr.mxu0 0.0
    %8246 = vmatpush1.msra.mxu0 %v6479
    %8247 = vmatprep.subr.mxu0 0.0
    %8248 = vmatpush1.msra.mxu0 %v6480
    %8249 = vmatprep.subr.mxu0 0.0
    %8250 = vmatpush1.msra.mxu0 0.0
    %8251 = vmatprep.subr.mxu0 0.0
    %8252 = vmatpush1.msra.mxu0 0.0
    %8253 = vmatprep.subr.mxu0 0.0
    %8254 = vmatpush1.msra.mxu0 0.0
    %8255 = vmatprep.subr.mxu0 0.0
    %8256 = vmatpush1.msra.mxu0 0.0
    %8257 = vmatprep.subr.mxu0 0.0
    %8258 = vmatpush1.msra.mxu0 0.0
    %8259 = vmatprep.subr.mxu0 0.0
    %8260 = vmatpush1.msra.mxu0 0.0
    %8261 = vmatprep.subr.mxu0 0.0
    %8262 = vmatpush1.msra.mxu0 0.0
    %8263 = vmatprep.subr.mxu0 0.0
    %8264 = vmatpush1.msra.mxu0 0.0
    %8265 = vmatprep.subr.mxu0 0.0
    %8266 = vmatpush1.msra.mxu0 0.0
    %8267 = vmatprep.subr.mxu0 0.0
    %8268 = vmatpush1.msra.mxu0 0.0
    %8269 = vmatprep.subr.mxu0 0.0
    %8270 = vmatpush1.msra.mxu0 0.0
    %8271 = vmatprep.subr.mxu0 0.0
    %8272 = vmatpush1.msra.mxu0 0.0
    %8273 = vmatprep.subr.mxu0 0.0
    %8274 = vmatpush1.msra.mxu0 0.0
    %8275 = vmatprep.subr.mxu0 0.0
    %8276 = vmatpush1.msra.mxu0 0.0
    %8277 = vmatprep.subr.mxu0 0.0
    %8278 = vmatpush1.msra.mxu0 0.0
    %8279 = vmatprep.subr.mxu0 0.0
    %8280 = vmatpush1.msra.mxu0 0.0
    %8281 = vmatprep.subr.mxu0 0.0
    %8282 = vmatpush1.msra.mxu0 0.0
    %8283 = vmatprep.subr.mxu0 0.0
    %8284 = vmatpush1.msra.mxu0 0.0
    %8285 = vmatprep.subr.mxu0 0.0
    %8286 = vmatpush1.msra.mxu0 0.0
    %8287 = vmatprep.subr.mxu0 0.0
    %8288 = vmatpush1.msra.mxu0 0.0
    %8289 = vmatprep.subr.mxu0 0.0
    %8290 = vmatpush1.msra.mxu0 0.0
    %8291 = vmatprep.subr.mxu0 0.0
    %8292 = vmatpush1.msra.mxu0 0.0
    %8293 = vmatprep.subr.mxu0 0.0
    %8294 = vmatpush1.msra.mxu0 0.0
    %8295 = vmatprep.subr.mxu0 0.0
    %8296 = vmatpush1.msra.mxu0 0.0
    %8297 = vmatprep.subr.mxu0 0.0
    %8298 = vmatpush1.msra.mxu0 0.0
    %8299 = vmatprep.subr.mxu0 0.0
    %8300 = vmatpush1.msra.mxu0 0.0
    %8301 = vmatprep.subr.mxu0 0.0
    %8302 = vmatpush1.msra.mxu0 0.0
    %8303 = vmatprep.subr.mxu0 0.0
    %8304 = vmatpush1.msra.mxu0 0.0
    %8305 = vmatprep.mubr.f32.mxu0 0.0
    %8306 = vmatmul.mubr.f32.gmra.mrb[0].mxu0 %v8169
    %v8307 = vpop.f32.mrb[0].mxu0
    %v8308 = vadd.f32 %v6574, %v8307
    %v8309 = vpop.f32.mrb[0].mxu0
    %8310 = vdwg.mxu0
    %8311 = vmatprep.subr.mxu0 0.0
    %8312 = vmatpush1.msra.mxu0 %v6482
    %8313 = vmatprep.subr.mxu0 0.0
    %8314 = vmatpush1.msra.mxu0 %v6483
    %8315 = vmatprep.subr.mxu0 0.0
    %8316 = vmatpush1.msra.mxu0 %v6484
    %8317 = vmatprep.subr.mxu0 0.0
    %8318 = vmatpush1.msra.mxu0 %v6485
    %8319 = vmatprep.subr.mxu0 0.0
    %8320 = vmatpush1.msra.mxu0 0.0
    %8321 = vmatprep.subr.mxu0 0.0
    %8322 = vmatpush1.msra.mxu0 0.0
    %8323 = vmatprep.subr.mxu0 0.0
    %8324 = vmatpush1.msra.mxu0 0.0
    %8325 = vmatprep.subr.mxu0 0.0
    %8326 = vmatpush1.msra.mxu0 0.0
    %8327 = vmatprep.subr.mxu0 0.0
    %8328 = vmatpush1.msra.mxu0 0.0
    %8329 = vmatprep.subr.mxu0 0.0
    %8330 = vmatpush1.msra.mxu0 0.0
    %8331 = vmatprep.subr.mxu0 0.0
    %8332 = vmatpush1.msra.mxu0 0.0
    %8333 = vmatprep.subr.mxu0 0.0
    %8334 = vmatpush1.msra.mxu0 0.0
    %8335 = vmatprep.subr.mxu0 0.0
    %8336 = vmatpush1.msra.mxu0 0.0
    %8337 = vmatprep.subr.mxu0 0.0
    %8338 = vmatpush1.msra.mxu0 0.0
    %8339 = vmatprep.subr.mxu0 0.0
    %8340 = vmatpush1.msra.mxu0 0.0
    %8341 = vmatprep.subr.mxu0 0.0
    %8342 = vmatpush1.msra.mxu0 0.0
    %8343 = vmatprep.subr.mxu0 0.0
    %8344 = vmatpush1.msra.mxu0 0.0
    %8345 = vmatprep.subr.mxu0 0.0
    %8346 = vmatpush1.msra.mxu0 0.0
    %8347 = vmatprep.subr.mxu0 0.0
    %8348 = vmatpush1.msra.mxu0 0.0
    %8349 = vmatprep.subr.mxu0 0.0
    %8350 = vmatpush1.msra.mxu0 0.0
    %8351 = vmatprep.subr.mxu0 0.0
    %8352 = vmatpush1.msra.mxu0 0.0
    %8353 = vmatprep.subr.mxu0 0.0
    %8354 = vmatpush1.msra.mxu0 0.0
    %8355 = vmatprep.subr.mxu0 0.0
    %8356 = vmatpush1.msra.mxu0 0.0
    %8357 = vmatprep.subr.mxu0 0.0
    %8358 = vmatpush1.msra.mxu0 0.0
    %8359 = vmatprep.subr.mxu0 0.0
    %8360 = vmatpush1.msra.mxu0 0.0
    %8361 = vmatprep.subr.mxu0 0.0
    %8362 = vmatpush1.msra.mxu0 0.0
    %8363 = vmatprep.subr.mxu0 0.0
    %8364 = vmatpush1.msra.mxu0 0.0
    %8365 = vmatprep.subr.mxu0 0.0
    %8366 = vmatpush1.msra.mxu0 0.0
    %8367 = vmatprep.subr.mxu0 0.0
    %8368 = vmatpush1.msra.mxu0 0.0
    %8369 = vmatprep.subr.mxu0 0.0
    %8370 = vmatpush1.msra.mxu0 0.0
    %8371 = vmatprep.subr.mxu0 0.0
    %8372 = vmatpush1.msra.mxu0 0.0
    %8373 = vmatprep.subr.mxu0 0.0
    %8374 = vmatpush1.msra.mxu0 0.0
    %8375 = vmatprep.mubr.f32.mxu0 0.0
    %8376 = vmatmul.mubr.f32.gmra.mrb[0].mxu0 %v8169
    %v8377 = vpop.f32.mrb[0].mxu0
    %v8378 = vadd.f32 %v6650, %v8377
    %v8379 = vpop.f32.mrb[0].mxu0
    %8380 = vdwg.mxu0
    %v8381 = vadd.f32 %v8165, %v8238
    %v8382 = vxor.u32 %v8381, 2147483648
    %v8383 = vmul.f32 %v8382, 1.442695
    %v8384 = vpow.pop %v8383
    %v8385 = vadd.f32 %v8384, 1.0
    %v8386 = vrcp.pop %v8385
    %v8387 = vmul.f32 1.0, %v8386
    %v8388 = vadd.f32 %v8166, %v8308
    %v8389 = vxor.u32 %v8388, 2147483648
    %v8390 = vmul.f32 %v8389, 1.442695
    %v8391 = vpow.pop %v8390
    %v8392 = vadd.f32 %v8391, 1.0
    %v8393 = vrcp.pop %v8392
    %v8394 = vmul.f32 1.0, %v8393
    %v8395 = vmul.f32 %v8387, %v8378
    %v8396 = vadd.f32 %v8167, %v8395
    %v8397 = vtanh.pop %v8396
    %v8398 = vsub.f32 1.0, %v8394
    %v8399 = vmul.f32 %v8398, %v8397
    %v8400 = vmul.f32 %v8394, %v8164
    %v8401 = vadd.f32 %v8399, %v8400
    %v8402 = vld [vmem:[%s13] sm:$0xf]
    %v8403 = vld [vmem:[%s13 + $0x4] sm:$0xf]
    %v8404 = vld [vmem:[%s13 + $0x8] sm:$0xf]
    %v8405 = vld [vmem:[%s13 + $0xc] sm:$0xf]
    %v8406 = vld [vmem:[%s13 + $0x10] sm:$0xf]
    %v8407 = vld [vmem:[%s13 + $0x14] sm:$0xf]
    %v8408 = vld [vmem:[%s13 + $0x18] sm:$0xf]
    %v8409 = vld [vmem:[%s13 + $0x1c] sm:$0xf]
    %v8410 = vld [vmem:[%s15] sm:$0x1]
    %v8415 = vunpack.c.l.b16 %v8402
    %v8416 = vunpack.c.l.b16 %v8403
    %v8417 = vunpack.c.l.b16 %v8404
    %v8418 = vunpack.c.l.b16 %v8405
    %v8419 = vpack.c.b16 %v8416, %v8415
    %v8420 = vpack.c.b16 %v8418, %v8417
    %v8424 = vsel %vm1932, %v5928, 0
    %8426 = vmatprep.subr.bf16.mxu0 0
    %8427 = vmatpush1.bf16.msra.mxu0 %v8419
    %8428 = vmatprep.subr.bf16.mxu0 0
    %8429 = vmatpush1.bf16.msra.mxu0 %v8420
    %8430 = vmatprep.subr.bf16.mxu0 0
    %8431 = vmatpush1.bf16.msra.mxu0 0
    %8432 = vmatprep.subr.bf16.mxu0 0
    %8433 = vmatpush1.bf16.msra.mxu0 0
    %8434 = vmatprep.subr.bf16.mxu0 0
    %8435 = vmatpush1.bf16.msra.mxu0 0
    %8436 = vmatprep.subr.bf16.mxu0 0
    %8437 = vmatpush1.bf16.msra.mxu0 0
    %8438 = vmatprep.subr.bf16.mxu0 0
    %8439 = vmatpush1.bf16.msra.mxu0 0
    %8440 = vmatprep.subr.bf16.mxu0 0
    %8441 = vmatpush1.bf16.msra.mxu0 0
    %8442 = vmatprep.subr.bf16.mxu0 0
    %8443 = vmatpush1.bf16.msra.mxu0 0
    %8444 = vmatprep.subr.bf16.mxu0 0
    %8445 = vmatpush1.bf16.msra.mxu0 0
    %8446 = vmatprep.subr.bf16.mxu0 0
    %8447 = vmatpush1.bf16.msra.mxu0 0
    %8448 = vmatprep.subr.bf16.mxu0 0
    %8449 = vmatpush1.bf16.msra.mxu0 0
    %8450 = vmatprep.subr.bf16.mxu0 0
    %8451 = vmatpush1.bf16.msra.mxu0 0
    %8452 = vmatprep.subr.bf16.mxu0 0
    %8453 = vmatpush1.bf16.msra.mxu0 0
    %8454 = vmatprep.subr.bf16.mxu0 0
    %8455 = vmatpush1.bf16.msra.mxu0 0
    %8456 = vmatprep.subr.bf16.mxu0 0
    %8457 = vmatpush1.bf16.msra.mxu0 0
    %8458 = vmatprep.mubr.bf16.mxu0 0
    %8459 = vmatmul.mubr.bf16.gmra.mrb[0].mxu0 %v8424
    %v8460 = vpop.f32.mrb[0].mxu0
    %v8461 = vadd.f32 0.0, %v8460
    %v8462 = vpop.f32.mrb[0].mxu0
    %v8463 = vpop.f32.mrb[0].mxu0
    %v8464 = vpop.f32.mrb[0].mxu0
    %8465 = vdwg.mxu0
    %v8467 = vlaneseq
    %v8468 = vshrl.u32 %v8467, 7
    %v8469 = vsub.s32 0, %v8468
    %v8470 = vrot.slane %v8410, %v8469
    %v8472 = vadd.f32 %v8470, %v8461
    %v8477 = vunpack.c.l.b16 %v8406
    %v8478 = vunpack.c.l.b16 %v8407
    %v8479 = vunpack.c.l.b16 %v8408
    %v8480 = vunpack.c.l.b16 %v8409
    %v8481 = vpack.c.b16 %v8478, %v8477
    %v8482 = vpack.c.b16 %v8480, %v8479
    %v8486 = vsel %vm1932, %v5930, 0
    %8488 = vmatprep.subr.bf16.mxu0 0
    %8489 = vmatpush1.bf16.msra.mxu0 %v8481
    %8490 = vmatprep.subr.bf16.mxu0 0
    %8491 = vmatpush1.bf16.msra.mxu0 %v8482
    %8492 = vmatprep.subr.bf16.mxu0 0
    %8493 = vmatpush1.bf16.msra.mxu0 0
    %8494 = vmatprep.subr.bf16.mxu0 0
    %8495 = vmatpush1.bf16.msra.mxu0 0
    %8496 = vmatprep.subr.bf16.mxu0 0
    %8497 = vmatpush1.bf16.msra.mxu0 0
    %8498 = vmatprep.subr.bf16.mxu0 0
    %8499 = vmatpush1.bf16.msra.mxu0 0
    %8500 = vmatprep.subr.bf16.mxu0 0
    %8501 = vmatpush1.bf16.msra.mxu0 0
    %8502 = vmatprep.subr.bf16.mxu0 0
    %8503 = vmatpush1.bf16.msra.mxu0 0
    %8504 = vmatprep.subr.bf16.mxu0 0
    %8505 = vmatpush1.bf16.msra.mxu0 0
    %8506 = vmatprep.subr.bf16.mxu0 0
    %8507 = vmatpush1.bf16.msra.mxu0 0
    %8508 = vmatprep.subr.bf16.mxu0 0
    %8509 = vmatpush1.bf16.msra.mxu0 0
    %8510 = vmatprep.subr.bf16.mxu0 0
    %8511 = vmatpush1.bf16.msra.mxu0 0
    %8512 = vmatprep.subr.bf16.mxu0 0
    %8513 = vmatpush1.bf16.msra.mxu0 0
    %8514 = vmatprep.subr.bf16.mxu0 0
    %8515 = vmatpush1.bf16.msra.mxu0 0
    %8516 = vmatprep.subr.bf16.mxu0 0
    %8517 = vmatpush1.bf16.msra.mxu0 0
    %8518 = vmatprep.subr.bf16.mxu0 0
    %8519 = vmatpush1.bf16.msra.mxu0 0
    %8520 = vmatprep.mubr.bf16.mxu0 0
    %8521 = vmatmul.mubr.bf16.gmra.mrb[0].mxu0 %v8486
    %v8522 = vpop.f32.mrb[0].mxu0
    %v8523 = vadd.f32 0.0, %v8522
    %v8524 = vpop.f32.mrb[0].mxu0
    %v8525 = vpop.f32.mrb[0].mxu0
    %v8526 = vpop.f32.mrb[0].mxu0
    %8527 = vdwg.mxu0
    %v8528 = vadd.f32 %v8472, %v8523
    %s8529 = scalar_lea.vmem %s13, 32
    %v8530 = vld [vmem:[%s8529] sm:$0xf]
    %v8531 = vld [vmem:[%s8529 + $0x4] sm:$0xf]
    %v8532 = vld [vmem:[%s8529 + $0x8] sm:$0xf]
    %v8533 = vld [vmem:[%s8529 + $0xc] sm:$0xf]
    %v8534 = vld [vmem:[%s8529 + $0x10] sm:$0xf]
    %v8535 = vld [vmem:[%s8529 + $0x14] sm:$0xf]
    %v8536 = vld [vmem:[%s8529 + $0x18] sm:$0xf]
    %v8537 = vld [vmem:[%s8529 + $0x1c] sm:$0xf]
    %s8538 = scalar_lea.vmem %s15, 1
    %v8539 = vld [vmem:[%s8538] sm:$0x1]
    %v8544 = vunpack.c.l.b16 %v8530
    %v8545 = vunpack.c.l.b16 %v8531
    %v8546 = vunpack.c.l.b16 %v8532
    %v8547 = vunpack.c.l.b16 %v8533
    %v8548 = vpack.c.b16 %v8545, %v8544
    %v8549 = vpack.c.b16 %v8547, %v8546
    %8552 = vmatprep.subr.bf16.mxu0 0
    %8553 = vmatpush1.bf16.msra.mxu0 %v8548
    %8554 = vmatprep.subr.bf16.mxu0 0
    %8555 = vmatpush1.bf16.msra.mxu0 %v8549
    %8556 = vmatprep.subr.bf16.mxu0 0
    %8557 = vmatpush1.bf16.msra.mxu0 0
    %8558 = vmatprep.subr.bf16.mxu0 0
    %8559 = vmatpush1.bf16.msra.mxu0 0
    %8560 = vmatprep.subr.bf16.mxu0 0
    %8561 = vmatpush1.bf16.msra.mxu0 0
    %8562 = vmatprep.subr.bf16.mxu0 0
    %8563 = vmatpush1.bf16.msra.mxu0 0
    %8564 = vmatprep.subr.bf16.mxu0 0
    %8565 = vmatpush1.bf16.msra.mxu0 0
    %8566 = vmatprep.subr.bf16.mxu0 0
    %8567 = vmatpush1.bf16.msra.mxu0 0
    %8568 = vmatprep.subr.bf16.mxu0 0
    %8569 = vmatpush1.bf16.msra.mxu0 0
    %8570 = vmatprep.subr.bf16.mxu0 0
    %8571 = vmatpush1.bf16.msra.mxu0 0
    %8572 = vmatprep.subr.bf16.mxu0 0
    %8573 = vmatpush1.bf16.msra.mxu0 0
    %8574 = vmatprep.subr.bf16.mxu0 0
    %8575 = vmatpush1.bf16.msra.mxu0 0
    %8576 = vmatprep.subr.bf16.mxu0 0
    %8577 = vmatpush1.bf16.msra.mxu0 0
    %8578 = vmatprep.subr.bf16.mxu0 0
    %8579 = vmatpush1.bf16.msra.mxu0 0
    %8580 = vmatprep.subr.bf16.mxu0 0
    %8581 = vmatpush1.bf16.msra.mxu0 0
    %8582 = vmatprep.subr.bf16.mxu0 0
    %8583 = vmatpush1.bf16.msra.mxu0 0
    %8584 = vmatprep.mubr.bf16.mxu0 0
    %8585 = vmatmul.mubr.bf16.gmra.mrb[0].mxu0 %v8424
    %v8586 = vpop.f32.mrb[0].mxu0
    %v8587 = vadd.f32 0.0, %v8586
    %v8588 = vpop.f32.mrb[0].mxu0
    %v8589 = vpop.f32.mrb[0].mxu0
    %v8590 = vpop.f32.mrb[0].mxu0
    %8591 = vdwg.mxu0
    %v8593 = vlaneseq
    %v8594 = vshrl.u32 %v8593, 7
    %v8595 = vsub.s32 0, %v8594
    %v8596 = vrot.slane %v8539, %v8595
    %v8598 = vadd.f32 %v8596, %v8587
    %v8603 = vunpack.c.l.b16 %v8534
    %v8604 = vunpack.c.l.b16 %v8535
    %v8605 = vunpack.c.l.b16 %v8536
    %v8606 = vunpack.c.l.b16 %v8537
    %v8607 = vpack.c.b16 %v8604, %v8603
    %v8608 = vpack.c.b16 %v8606, %v8605
    %8611 = vmatprep.subr.bf16.mxu0 0
    %8612 = vmatpush1.bf16.msra.mxu0 %v8607
    %8613 = vmatprep.subr.bf16.mxu0 0
    %8614 = vmatpush1.bf16.msra.mxu0 %v8608
    %8615 = vmatprep.subr.bf16.mxu0 0
    %8616 = vmatpush1.bf16.msra.mxu0 0
    %8617 = vmatprep.subr.bf16.mxu0 0
    %8618 = vmatpush1.bf16.msra.mxu0 0
    %8619 = vmatprep.subr.bf16.mxu0 0
    %8620 = vmatpush1.bf16.msra.mxu0 0
    %8621 = vmatprep.subr.bf16.mxu0 0
    %8622 = vmatpush1.bf16.msra.mxu0 0
    %8623 = vmatprep.subr.bf16.mxu0 0
    %8624 = vmatpush1.bf16.msra.mxu0 0
    %8625 = vmatprep.subr.bf16.mxu0 0
    %8626 = vmatpush1.bf16.msra.mxu0 0
    %8627 = vmatprep.subr.bf16.mxu0 0
    %8628 = vmatpush1.bf16.msra.mxu0 0
    %8629 = vmatprep.subr.bf16.mxu0 0
    %8630 = vmatpush1.bf16.msra.mxu0 0
    %8631 = vmatprep.subr.bf16.mxu0 0
    %8632 = vmatpush1.bf16.msra.mxu0 0
    %8633 = vmatprep.subr.bf16.mxu0 0
    %8634 = vmatpush1.bf16.msra.mxu0 0
    %8635 = vmatprep.subr.bf16.mxu0 0
    %8636 = vmatpush1.bf16.msra.mxu0 0
    %8637 = vmatprep.subr.bf16.mxu0 0
    %8638 = vmatpush1.bf16.msra.mxu0 0
    %8639 = vmatprep.subr.bf16.mxu0 0
    %8640 = vmatpush1.bf16.msra.mxu0 0
    %8641 = vmatprep.subr.bf16.mxu0 0
    %8642 = vmatpush1.bf16.msra.mxu0 0
    %8643 = vmatprep.mubr.bf16.mxu0 0
    %8644 = vmatmul.mubr.bf16.gmra.mrb[0].mxu0 %v8486
    %v8645 = vpop.f32.mrb[0].mxu0
    %v8646 = vadd.f32 0.0, %v8645
    %v8647 = vpop.f32.mrb[0].mxu0
    %v8648 = vpop.f32.mrb[0].mxu0
    %v8649 = vpop.f32.mrb[0].mxu0
    %8650 = vdwg.mxu0
    %v8651 = vadd.f32 %v8598, %v8646
    %s8652 = scalar_lea.vmem %s13, 64
    %v8653 = vld [vmem:[%s8652] sm:$0xf]
    %v8654 = vld [vmem:[%s8652 + $0x4] sm:$0xf]
    %v8655 = vld [vmem:[%s8652 + $0x8] sm:$0xf]
    %v8656 = vld [vmem:[%s8652 + $0xc] sm:$0xf]
    %v8657 = vld [vmem:[%s8652 + $0x10] sm:$0xf]
    %v8658 = vld [vmem:[%s8652 + $0x14] sm:$0xf]
    %v8659 = vld [vmem:[%s8652 + $0x18] sm:$0xf]
    %v8660 = vld [vmem:[%s8652 + $0x1c] sm:$0xf]
    %s8661 = scalar_lea.vmem %s15, 2
    %v8662 = vld [vmem:[%s8661] sm:$0x1]
    %v8667 = vunpack.c.l.b16 %v8653
    %v8668 = vunpack.c.l.b16 %v8654
    %v8669 = vunpack.c.l.b16 %v8655
    %v8670 = vunpack.c.l.b16 %v8656
    %v8671 = vpack.c.b16 %v8668, %v8667
    %v8672 = vpack.c.b16 %v8670, %v8669
    %8675 = vmatprep.subr.bf16.mxu0 0
    %8676 = vmatpush1.bf16.msra.mxu0 %v8671
    %8677 = vmatprep.subr.bf16.mxu0 0
    %8678 = vmatpush1.bf16.msra.mxu0 %v8672
    %8679 = vmatprep.subr.bf16.mxu0 0
    %8680 = vmatpush1.bf16.msra.mxu0 0
    %8681 = vmatprep.subr.bf16.mxu0 0
    %8682 = vmatpush1.bf16.msra.mxu0 0
    %8683 = vmatprep.subr.bf16.mxu0 0
    %8684 = vmatpush1.bf16.msra.mxu0 0
    %8685 = vmatprep.subr.bf16.mxu0 0
    %8686 = vmatpush1.bf16.msra.mxu0 0
    %8687 = vmatprep.subr.bf16.mxu0 0
    %8688 = vmatpush1.bf16.msra.mxu0 0
    %8689 = vmatprep.subr.bf16.mxu0 0
    %8690 = vmatpush1.bf16.msra.mxu0 0
    %8691 = vmatprep.subr.bf16.mxu0 0
    %8692 = vmatpush1.bf16.msra.mxu0 0
    %8693 = vmatprep.subr.bf16.mxu0 0
    %8694 = vmatpush1.bf16.msra.mxu0 0
    %8695 = vmatprep.subr.bf16.mxu0 0
    %8696 = vmatpush1.bf16.msra.mxu0 0
    %8697 = vmatprep.subr.bf16.mxu0 0
    %8698 = vmatpush1.bf16.msra.mxu0 0
    %8699 = vmatprep.subr.bf16.mxu0 0
    %8700 = vmatpush1.bf16.msra.mxu0 0
    %8701 = vmatprep.subr.bf16.mxu0 0
    %8702 = vmatpush1.bf16.msra.mxu0 0
    %8703 = vmatprep.subr.bf16.mxu0 0
    %8704 = vmatpush1.bf16.msra.mxu0 0
    %8705 = vmatprep.subr.bf16.mxu0 0
    %8706 = vmatpush1.bf16.msra.mxu0 0
    %8707 = vmatprep.mubr.bf16.mxu0 0
    %8708 = vmatmul.mubr.bf16.gmra.mrb[0].mxu0 %v8424
    %v8709 = vpop.f32.mrb[0].mxu0
    %v8710 = vadd.f32 0.0, %v8709
    %v8711 = vpop.f32.mrb[0].mxu0
    %v8712 = vpop.f32.mrb[0].mxu0
    %v8713 = vpop.f32.mrb[0].mxu0
    %8714 = vdwg.mxu0
    %v8716 = vlaneseq
    %v8717 = vshrl.u32 %v8716, 7
    %v8718 = vsub.s32 0, %v8717
    %v8719 = vrot.slane %v8662, %v8718
    %v8721 = vadd.f32 %v8719, %v8710
    %v8726 = vunpack.c.l.b16 %v8657
    %v8727 = vunpack.c.l.b16 %v8658
    %v8728 = vunpack.c.l.b16 %v8659
    %v8729 = vunpack.c.l.b16 %v8660
    %v8730 = vpack.c.b16 %v8727, %v8726
    %v8731 = vpack.c.b16 %v8729, %v8728
    %8734 = vmatprep.subr.bf16.mxu0 0
    %8735 = vmatpush1.bf16.msra.mxu0 %v8730
    %8736 = vmatprep.subr.bf16.mxu0 0
    %8737 = vmatpush1.bf16.msra.mxu0 %v8731
    %8738 = vmatprep.subr.bf16.mxu0 0
    %8739 = vmatpush1.bf16.msra.mxu0 0
    %8740 = vmatprep.subr.bf16.mxu0 0
    %8741 = vmatpush1.bf16.msra.mxu0 0
    %8742 = vmatprep.subr.bf16.mxu0 0
    %8743 = vmatpush1.bf16.msra.mxu0 0
    %8744 = vmatprep.subr.bf16.mxu0 0
    %8745 = vmatpush1.bf16.msra.mxu0 0
    %8746 = vmatprep.subr.bf16.mxu0 0
    %8747 = vmatpush1.bf16.msra.mxu0 0
    %8748 = vmatprep.subr.bf16.mxu0 0
    %8749 = vmatpush1.bf16.msra.mxu0 0
    %8750 = vmatprep.subr.bf16.mxu0 0
    %8751 = vmatpush1.bf16.msra.mxu0 0
    %8752 = vmatprep.subr.bf16.mxu0 0
    %8753 = vmatpush1.bf16.msra.mxu0 0
    %8754 = vmatprep.subr.bf16.mxu0 0
    %8755 = vmatpush1.bf16.msra.mxu0 0
    %8756 = vmatprep.subr.bf16.mxu0 0
    %8757 = vmatpush1.bf16.msra.mxu0 0
    %8758 = vmatprep.subr.bf16.mxu0 0
    %8759 = vmatpush1.bf16.msra.mxu0 0
    %8760 = vmatprep.subr.bf16.mxu0 0
    %8761 = vmatpush1.bf16.msra.mxu0 0
    %8762 = vmatprep.subr.bf16.mxu0 0
    %8763 = vmatpush1.bf16.msra.mxu0 0
    %8764 = vmatprep.subr.bf16.mxu0 0
    %8765 = vmatpush1.bf16.msra.mxu0 0
    %8766 = vmatprep.mubr.bf16.mxu0 0
    %8767 = vmatmul.mubr.bf16.gmra.mrb[0].mxu0 %v8486
    %v8768 = vpop.f32.mrb[0].mxu0
    %v8769 = vadd.f32 0.0, %v8768
    %v8770 = vpop.f32.mrb[0].mxu0
    %v8771 = vpop.f32.mrb[0].mxu0
    %v8772 = vpop.f32.mrb[0].mxu0
    %8773 = vdwg.mxu0
    %v8774 = vadd.f32 %v8721, %v8769
    %v8775 = vld [vmem:[%s16] sm:$0x1]
    %v8777 = vlaneseq
    %v8778 = vshrl.u32 %v8777, 7
    %v8779 = vsub.s32 0, %v8778
    %v8780 = vrot.slane %v8775, %v8779
    %v8782 = vadd.f32 %v8528, %v8780
    %v8783 = vxor.u32 %v8782, 2147483648
    %v8784 = vmul.f32 %v8783, 1.442695
    %v8785 = vpow.pop %v8784
    %v8786 = vadd.f32 %v8785, 1.0
    %v8787 = vrcp.pop %v8786
    %v8788 = vmul.f32 1.0, %v8787
    %s8789 = scalar_lea.vmem %s16, 1
    %v8790 = vld [vmem:[%s8789] sm:$0x1]
    %v8792 = vlaneseq
    %v8793 = vshrl.u32 %v8792, 7
    %v8794 = vsub.s32 0, %v8793
    %v8795 = vrot.slane %v8790, %v8794
    %v8797 = vadd.f32 %v8651, %v8795
    %v8798 = vxor.u32 %v8797, 2147483648
    %v8799 = vmul.f32 %v8798, 1.442695
    %v8800 = vpow.pop %v8799
    %v8801 = vadd.f32 %v8800, 1.0
    %v8802 = vrcp.pop %v8801
    %v8803 = vmul.f32 1.0, %v8802
    %s8804 = scalar_lea.vmem %s16, 2
    %v8805 = vld [vmem:[%s8804] sm:$0x1]
    %v8807 = vlaneseq
    %v8808 = vshrl.u32 %v8807, 7
    %v8809 = vsub.s32 0, %v8808
    %v8810 = vrot.slane %v8805, %v8809
    %v8812 = vmul.f32 %v8788, %v8810
    %v8813 = vadd.f32 %v8774, %v8812
    %v8814 = vtanh.pop %v8813
    %v8815 = vsub.f32 1.0, %v8803
    %v8816 = vmul.f32 %v8815, %v8814
    %vm8817 = vcmp.ge.f32.partialorder %v8401, 0.0
    %v8818 = vmul.f32 %v8401, 0.1
    %v8819 = vsel %vm8817, %v8401, %v8818
    %vm8820 = vcmp.ge.f32.partialorder %v8816, 0.0
    %v8821 = vmul.f32 %v8816, 0.1
    %v8822 = vsel %vm8820, %v8816, %v8821
    %v8823 = vld [vmem:[%s17] sm:$0xff]
    %v8824 = vld [vmem:[%s17 + $0x8] sm:$0xff]
    %v8825 = vld [vmem:[%s17 + $0x10] sm:$0xff]
    %v8826 = vld [vmem:[%s17 + $0x18] sm:$0xff]
    %v8827 = vld [vmem:[%s17 + $0x20] sm:$0xff]
    %v8828 = vld [vmem:[%s17 + $0x28] sm:$0xff]
    %v8829 = vld [vmem:[%s17 + $0x30] sm:$0xff]
    %v8830 = vld [vmem:[%s17 + $0x38] sm:$0xff]
    %v8832 = vsel %vm1932, %v8822, 0
    %8834 = vmatprep.subr.mxu0 0.0
    %8835 = vmatpush1.msra.mxu0 %v8827
    %8836 = vmatprep.subr.mxu0 0.0
    %8837 = vmatpush1.msra.mxu0 %v8828
    %8838 = vmatprep.subr.mxu0 0.0
    %8839 = vmatpush1.msra.mxu0 %v8829
    %8840 = vmatprep.subr.mxu0 0.0
    %8841 = vmatpush1.msra.mxu0 %v8830
    %8842 = vmatprep.subr.mxu0 0.0
    %8843 = vmatpush1.msra.mxu0 0.0
    %8844 = vmatprep.subr.mxu0 0.0
    %8845 = vmatpush1.msra.mxu0 0.0
    %8846 = vmatprep.subr.mxu0 0.0
    %8847 = vmatpush1.msra.mxu0 0.0
    %8848 = vmatprep.subr.mxu0 0.0
    %8849 = vmatpush1.msra.mxu0 0.0
    %8850 = vmatprep.subr.mxu0 0.0
    %8851 = vmatpush1.msra.mxu0 0.0
    %8852 = vmatprep.subr.mxu0 0.0
    %8853 = vmatpush1.msra.mxu0 0.0
    %8854 = vmatprep.subr.mxu0 0.0
    %8855 = vmatpush1.msra.mxu0 0.0
    %8856 = vmatprep.subr.mxu0 0.0
    %8857 = vmatpush1.msra.mxu0 0.0
    %8858 = vmatprep.subr.mxu0 0.0
    %8859 = vmatpush1.msra.mxu0 0.0
    %8860 = vmatprep.subr.mxu0 0.0
    %8861 = vmatpush1.msra.mxu0 0.0
    %8862 = vmatprep.subr.mxu0 0.0
    %8863 = vmatpush1.msra.mxu0 0.0
    %8864 = vmatprep.subr.mxu0 0.0
    %8865 = vmatpush1.msra.mxu0 0.0
    %8866 = vmatprep.subr.mxu0 0.0
    %8867 = vmatpush1.msra.mxu0 0.0
    %8868 = vmatprep.subr.mxu0 0.0
    %8869 = vmatpush1.msra.mxu0 0.0
    %8870 = vmatprep.subr.mxu0 0.0
    %8871 = vmatpush1.msra.mxu0 0.0
    %8872 = vmatprep.subr.mxu0 0.0
    %8873 = vmatpush1.msra.mxu0 0.0
    %8874 = vmatprep.subr.mxu0 0.0
    %8875 = vmatpush1.msra.mxu0 0.0
    %8876 = vmatprep.subr.mxu0 0.0
    %8877 = vmatpush1.msra.mxu0 0.0
    %8878 = vmatprep.subr.mxu0 0.0
    %8879 = vmatpush1.msra.mxu0 0.0
    %8880 = vmatprep.subr.mxu0 0.0
    %8881 = vmatpush1.msra.mxu0 0.0
    %8882 = vmatprep.subr.mxu0 0.0
    %8883 = vmatpush1.msra.mxu0 0.0
    %8884 = vmatprep.subr.mxu0 0.0
    %8885 = vmatpush1.msra.mxu0 0.0
    %8886 = vmatprep.subr.mxu0 0.0
    %8887 = vmatpush1.msra.mxu0 0.0
    %8888 = vmatprep.subr.mxu0 0.0
    %8889 = vmatpush1.msra.mxu0 0.0
    %8890 = vmatprep.subr.mxu0 0.0
    %8891 = vmatpush1.msra.mxu0 0.0
    %8892 = vmatprep.subr.mxu0 0.0
    %8893 = vmatpush1.msra.mxu0 0.0
    %8894 = vmatprep.subr.mxu0 0.0
    %8895 = vmatpush1.msra.mxu0 0.0
    %8896 = vmatprep.subr.mxu0 0.0
    %8897 = vmatpush1.msra.mxu0 0.0
    %8898 = vmatprep.mubr.f32.mxu0 0.0
    %8899 = vmatmul.mubr.f32.gmra.mrb[0].mxu0 %v8832
    %v8900 = vpop.f32.mrb[0].mxu0
    %v8901 = vadd.f32 0.0, %v8900
    %v8902 = vpop.f32.mrb[0].mxu0
    %8903 = vdwg.mxu0
    %v8905 = vsel %vm1932, %v8819, 0
    %8907 = vmatprep.subr.mxu0 0.0
    %8908 = vmatpush1.msra.mxu0 %v8823
    %8909 = vmatprep.subr.mxu0 0.0
    %8910 = vmatpush1.msra.mxu0 %v8824
    %8911 = vmatprep.subr.mxu0 0.0
    %8912 = vmatpush1.msra.mxu0 %v8825
    %8913 = vmatprep.subr.mxu0 0.0
    %8914 = vmatpush1.msra.mxu0 %v8826
    %8915 = vmatprep.subr.mxu0 0.0
    %8916 = vmatpush1.msra.mxu0 0.0
    %8917 = vmatprep.subr.mxu0 0.0
    %8918 = vmatpush1.msra.mxu0 0.0
    %8919 = vmatprep.subr.mxu0 0.0
    %8920 = vmatpush1.msra.mxu0 0.0
    %8921 = vmatprep.subr.mxu0 0.0
    %8922 = vmatpush1.msra.mxu0 0.0
    %8923 = vmatprep.subr.mxu0 0.0
    %8924 = vmatpush1.msra.mxu0 0.0
    %8925 = vmatprep.subr.mxu0 0.0
    %8926 = vmatpush1.msra.mxu0 0.0
    %8927 = vmatprep.subr.mxu0 0.0
    %8928 = vmatpush1.msra.mxu0 0.0
    %8929 = vmatprep.subr.mxu0 0.0
    %8930 = vmatpush1.msra.mxu0 0.0
    %8931 = vmatprep.subr.mxu0 0.0
    %8932 = vmatpush1.msra.mxu0 0.0
    %8933 = vmatprep.subr.mxu0 0.0
    %8934 = vmatpush1.msra.mxu0 0.0
    %8935 = vmatprep.subr.mxu0 0.0
    %8936 = vmatpush1.msra.mxu0 0.0
    %8937 = vmatprep.subr.mxu0 0.0
    %8938 = vmatpush1.msra.mxu0 0.0
    %8939 = vmatprep.subr.mxu0 0.0
    %8940 = vmatpush1.msra.mxu0 0.0
    %8941 = vmatprep.subr.mxu0 0.0
    %8942 = vmatpush1.msra.mxu0 0.0
    %8943 = vmatprep.subr.mxu0 0.0
    %8944 = vmatpush1.msra.mxu0 0.0
    %8945 = vmatprep.subr.mxu0 0.0
    %8946 = vmatpush1.msra.mxu0 0.0
    %8947 = vmatprep.subr.mxu0 0.0
    %8948 = vmatpush1.msra.mxu0 0.0
    %8949 = vmatprep.subr.mxu0 0.0
    %8950 = vmatpush1.msra.mxu0 0.0
    %8951 = vmatprep.subr.mxu0 0.0
    %8952 = vmatpush1.msra.mxu0 0.0
    %8953 = vmatprep.subr.mxu0 0.0
    %8954 = vmatpush1.msra.mxu0 0.0
    %8955 = vmatprep.subr.mxu0 0.0
    %8956 = vmatpush1.msra.mxu0 0.0
    %8957 = vmatprep.subr.mxu0 0.0
    %8958 = vmatpush1.msra.mxu0 0.0
    %8959 = vmatprep.subr.mxu0 0.0
    %8960 = vmatpush1.msra.mxu0 0.0
    %8961 = vmatprep.subr.mxu0 0.0
    %8962 = vmatpush1.msra.mxu0 0.0
    %8963 = vmatprep.subr.mxu0 0.0
    %8964 = vmatpush1.msra.mxu0 0.0
    %8965 = vmatprep.subr.mxu0 0.0
    %8966 = vmatpush1.msra.mxu0 0.0
    %8967 = vmatprep.subr.mxu0 0.0
    %8968 = vmatpush1.msra.mxu0 0.0
    %8969 = vmatprep.subr.mxu0 0.0
    %8970 = vmatpush1.msra.mxu0 0.0
    %8971 = vmatprep.mubr.f32.mxu0 0.0
    %8972 = vmatmul.mubr.f32.gmra.mrb[0].mxu0 %v8905
    %v8973 = vpop.f32.mrb[0].mxu0
    %v8974 = vadd.f32 %v8901, %v8973
    %v8975 = vpop.f32.mrb[0].mxu0
    %8976 = vdwg.mxu0
    %v8977 = vld [vmem:[%s18] sm:$0x1]
    %v8979 = vlaneseq
    %v8980 = vshrl.u32 %v8979, 7
    %v8981 = vsub.s32 0, %v8980
    %v8982 = vrot.slane %v8977, %v8981
    %v8984 = vadd.f32 %v8974, %v8982
    %vm8985 = vcmp.ge.f32.partialorder %v8984, 0.0
    %v8986 = vmul.f32 %v8984, 0.1
    %v8987 = vsel %vm8985, %v8984, %v8986
    %v8988 = vld [vmem:[%s19] sm:$0xff]
    %v8989 = vld [vmem:[%s19 + $0x8] sm:$0xff]
    %v8990 = vld [vmem:[%s19 + $0x10] sm:$0xff]
    %v8991 = vld [vmem:[%s19 + $0x18] sm:$0xff]
    %v8992 = vld [vmem:[%s20] sm:$0x1]
    %v8994 = vlaneseq
    %v8995 = vshrl.u32 %v8994, 7
    %v8996 = vsub.s32 0, %v8995
    %v8997 = vrot.slane %v8992, %v8996
    %v9000 = vsel %vm1932, %v8987, 0
    %9002 = vmatprep.subr.mxu0 0.0
    %9003 = vmatpush1.msra.mxu0 %v8988
    %9004 = vmatprep.subr.mxu0 0.0
    %9005 = vmatpush1.msra.mxu0 %v8989
    %9006 = vmatprep.subr.mxu0 0.0
    %9007 = vmatpush1.msra.mxu0 %v8990
    %9008 = vmatprep.subr.mxu0 0.0
    %9009 = vmatpush1.msra.mxu0 %v8991
    %9010 = vmatprep.subr.mxu0 0.0
    %9011 = vmatpush1.msra.mxu0 0.0
    %9012 = vmatprep.subr.mxu0 0.0
    %9013 = vmatpush1.msra.mxu0 0.0
    %9014 = vmatprep.subr.mxu0 0.0
    %9015 = vmatpush1.msra.mxu0 0.0
    %9016 = vmatprep.subr.mxu0 0.0
    %9017 = vmatpush1.msra.mxu0 0.0
    %9018 = vmatprep.subr.mxu0 0.0
    %9019 = vmatpush1.msra.mxu0 0.0
    %9020 = vmatprep.subr.mxu0 0.0
    %9021 = vmatpush1.msra.mxu0 0.0
    %9022 = vmatprep.subr.mxu0 0.0
    %9023 = vmatpush1.msra.mxu0 0.0
    %9024 = vmatprep.subr.mxu0 0.0
    %9025 = vmatpush1.msra.mxu0 0.0
    %9026 = vmatprep.subr.mxu0 0.0
    %9027 = vmatpush1.msra.mxu0 0.0
    %9028 = vmatprep.subr.mxu0 0.0
    %9029 = vmatpush1.msra.mxu0 0.0
    %9030 = vmatprep.subr.mxu0 0.0
    %9031 = vmatpush1.msra.mxu0 0.0
    %9032 = vmatprep.subr.mxu0 0.0
    %9033 = vmatpush1.msra.mxu0 0.0
    %9034 = vmatprep.subr.mxu0 0.0
    %9035 = vmatpush1.msra.mxu0 0.0
    %9036 = vmatprep.subr.mxu0 0.0
    %9037 = vmatpush1.msra.mxu0 0.0
    %9038 = vmatprep.subr.mxu0 0.0
    %9039 = vmatpush1.msra.mxu0 0.0
    %9040 = vmatprep.subr.mxu0 0.0
    %9041 = vmatpush1.msra.mxu0 0.0
    %9042 = vmatprep.subr.mxu0 0.0
    %9043 = vmatpush1.msra.mxu0 0.0
    %9044 = vmatprep.subr.mxu0 0.0
    %9045 = vmatpush1.msra.mxu0 0.0
    %9046 = vmatprep.subr.mxu0 0.0
    %9047 = vmatpush1.msra.mxu0 0.0
    %9048 = vmatprep.subr.mxu0 0.0
    %9049 = vmatpush1.msra.mxu0 0.0
    %9050 = vmatprep.subr.mxu0 0.0
    %9051 = vmatpush1.msra.mxu0 0.0
    %9052 = vmatprep.subr.mxu0 0.0
    %9053 = vmatpush1.msra.mxu0 0.0
    %9054 = vmatprep.subr.mxu0 0.0
    %9055 = vmatpush1.msra.mxu0 0.0
    %9056 = vmatprep.subr.mxu0 0.0
    %9057 = vmatpush1.msra.mxu0 0.0
    %9058 = vmatprep.subr.mxu0 0.0
    %9059 = vmatpush1.msra.mxu0 0.0
    %9060 = vmatprep.subr.mxu0 0.0
    %9061 = vmatpush1.msra.mxu0 0.0
    %9062 = vmatprep.subr.mxu0 0.0
    %9063 = vmatpush1.msra.mxu0 0.0
    %9064 = vmatprep.subr.mxu0 0.0
    %9065 = vmatpush1.msra.mxu0 0.0
    %9066 = vmatprep.mubr.f32.mxu0 0.0
    %9067 = vmatmul.mubr.f32.gmra.mrb[0].mxu0 %v9000
    %v9068 = vpop.f32.mrb[0].mxu0
    %v9069 = vadd.f32 %v8997, %v9068
    %v9070 = vpop.f32.mrb[0].mxu0
    %9071 = vdwg.mxu0
    %vm9072 = vcmask 74752
    %9073 = vst.msk [vmem:[#allocation10] sm:$0x3] %vm9072, %v9069
    // Predicated region
    $region86: #{tpu_custom_call.1} parent=1 // pred_check
      _
    $region87: #{tpu_custom_call.1} parent=1 // pred_check_branch
      %9075 = sbr.rel (0) target = $region89
    $region88: #{tpu_custom_call.1} parent=1 // pred_region
      %s9077 = ssub.s32 32, 32
      %9078 = vsyncadd [#allocation11], %s9077
      %s9080 = sshll.u32 [#allocation10], 4
      %s9081 = int_to_ptr.vmem [resolvable:$true] %s9080
      %9083 = dma.vmem_to_hbm [thread:$0]  %s9081, 32, %s21, [#allocation11]
    $region89: #{tpu_custom_call.1} parent=1 // pred_fallthru
      _
    // Predicated region
    $region90: #{tpu_custom_call.1} parent=1 // pred_check
      _
    $region91: #{tpu_custom_call.1} parent=1 // pred_check_branch
      %9085 = sbr.rel (0) target = $region93
    $region92: #{tpu_custom_call.1} parent=1 // pred_region
      %9086 = dma.done [#allocation11], 32
    $region93: #{tpu_custom_call.1} parent=1 // pred_fallthru
      _
    %9087 = vsyncpa [#allocation11], 1

</llo_original>
